<compile_context>
chip_gen: v5e
topology: v5e:2x2
jax: 0.10.0
libtpu: 0.0.40
codegen_flags: <defaults>
</compile_context>

<pallas_src>
import functools
import math

import numpy as np
import jax
import jax.numpy as jnp
from jax.experimental import pallas as pl
from jax.experimental.pallas import tpu as pltpu

# ------------------------- small synthetic config -------------------------
B = 2          # batch
NUM_SEQ = 4    # number of document chunks
L_URL = 16     # url token length
L_DOC = 16     # doc-chunk token length
H = 128        # hidden size (stands in for 768)
N_HEADS = 4
D_HEAD = H // N_HEADS
INTER = 256    # FFN intermediate size
VOCAB = 512
MAX_POS = 32
N_OUT = 5      # len(spam_subtype_mapping) - 3
N_OUT_PAD = 128
LN_EPS = 1e-12
SCALE = 1.0 / math.sqrt(D_HEAD)

try:
    _DEVICE_KIND = jax.devices()[0].device_kind.lower()
except Exception:  # pragma: no cover
    _DEVICE_KIND = ""
# v6e / v7x have a bf16 VPU/EUP -> run the FFN GELU chain in bf16 there.
_BF16_GELU = ("v6" in _DEVICE_KIND) or ("v7" in _DEVICE_KIND)
# v7x has 2 TensorCores per chip -> split the batch grid there; 1 block elsewhere.
_SPLIT = 2 if ("v7" in _DEVICE_KIND and B % 2 == 0) else 1

_PARALLEL = pltpu.CompilerParams(dimension_semantics=("parallel",))


def _full_spec(a):
    """Whole-array block, same block every grid step (weights stay resident)."""
    nd = a.ndim
    return pl.BlockSpec(a.shape, lambda i, _nd=nd: (0,) * _nd)


# ------------------------------ in-kernel math (traced) ------------------------------
def _gelu(x):
    # TODO(synk): HF BERT uses exact erf-GELU; tanh approximation used here.
    if _BF16_GELU:
        x = x.astype(jnp.bfloat16)
    return 0.5 * x * (1.0 + jnp.tanh(0.7978845608028654 * (x + 0.044715 * x * x * x)))


def _ln(x, g, b):
    mu = jnp.mean(x, axis=-1, keepdims=True)
    d = x - mu
    var = jnp.mean(d * d, axis=-1, keepdims=True)
    return d * jax.lax.rsqrt(var + LN_EPS) * g + b


def _mm(a, w):
    # bf16 MXU operands, f32 accumulation.
    return jnp.dot(a.astype(jnp.bfloat16), w.astype(jnp.bfloat16),
                   preferred_element_type=jnp.float32)


def _f32mm(a, w):
    # exact f32 matmul for tiny constant gather / permutation / pooling matrices.
    return jnp.dot(a, w, preferred_element_type=jnp.float32)


def _encoder_layer(x, mask_add, wqkv, bqkv, wo, bo,
                   ln1g, ln1b, w1, b1, w2, b2, ln2g, ln2b):
    """One post-LN BERT encoder layer on a (rows, H) slab (batch folded into rows)."""
    qkv = _mm(x, wqkv) + bqkv                                      # (rows, 3H)
    attn = jnp.zeros_like(x)                                       # f32 accumulator
    for h in range(N_HEADS):                                       # static lane slices
        q = qkv[:, h * D_HEAD:(h + 1) * D_HEAD]
        k = qkv[:, H + h * D_HEAD:H + (h + 1) * D_HEAD]
        v = qkv[:, 2 * H + h * D_HEAD:2 * H + (h + 1) * D_HEAD]
        s = jax.lax.dot_general(q.astype(jnp.bfloat16), k.astype(jnp.bfloat16),
                                (((1,), (1,)), ((), ())),
                                preferred_element_type=jnp.float32) * SCALE
        s = s + mask_add                                           # (rows, rows)
        s = s - jnp.max(s, axis=-1, keepdims=True)
        p = jnp.exp(s)
        p = p * pl.reciprocal(jnp.sum(p, axis=-1, keepdims=True), approx=True)
        ctx = jnp.dot(p.astype(jnp.bfloat16), v.astype(jnp.bfloat16),
                      preferred_element_type=jnp.float32)          # (rows, D_HEAD)
        # per-head accumulation into the output projection (no head concat):
        # wo sliced along sublanes at 8-aligned offsets.
        attn = attn + _mm(ctx, wo[h * D_HEAD:(h + 1) * D_HEAD, :])
    x = _ln(x + attn + bo, ln1g, ln1b)
    inter = _gelu(_mm(x, w1) + b1)
    return _ln(x + _mm(inter, w2) + b2, ln2g, ln2b)


def _encoder_stack(x, mask_add, L):
    for l in range(L["wqkv"].shape[0]):
        x = _encoder_layer(x, mask_add,
                           L["wqkv"][l], L["bqkv"][l], L["wo"][l], L["bo"][l],
                           L["ln1g"][l], L["ln1b"][l], L["w1"][l], L["b1"][l],
                           L["w2"][l], L["b2"][l], L["ln2g"][l], L["ln2b"][l])
    return x


def _bert_pooled_branch(x_in, mask_add, enc):
    """Embedding-LN -> encoder layer(s) -> batched pooler(tanh on CLS rows)."""
    x = _ln(x_in, enc["emb_ln_g"][...], enc["emb_ln_b"][...])
    x = _encoder_stack(x, mask_add, enc["layers"])
    # batched pooler: gather all CLS rows with one tiny constant f32 matmul,
    # then one (n_seq, H) x (H, H) pooler matmul + tanh (lane-dense).
    cls = _f32mm(enc["cls_gather"][...], x)                        # (n_seq, H)
    return jnp.tanh(_mm(cls, enc["pool_w"][...]) + enc["pool_b"][...])


# ------------------------------ the fused kernel ------------------------------
def _spam_fused_kernel(treedef, urlx_ref, urlmask_ref, docx_ref, docmask_ref, *rest):
    w_refs, out_ref = rest[:-1], rest[-1]
    W = jax.tree_util.tree_unflatten(treedef, list(w_refs))

    # url encoder: one (b_chunk*L_URL, H) slab, block-diag + padding attn mask.
    url_pooled = _bert_pooled_branch(urlx_ref[...], urlmask_ref[0], W["url"])
    # doc encoder: NUM_SEQ chunk loop + batch folded into the rows of one slab.
    doc_pooled = _bert_pooled_branch(docx_ref[...], docmask_ref[0], W["doc"])

    C = W["comb"]
    # reorder [url_0..url_{b-1}, doc_00..doc_{b-1,NUM_SEQ-1}] into per-batch
    # [url_b, doc_b0..doc_b{NUM_SEQ-1}] combine order via one tiny permutation matmul.
    stacked = jnp.concatenate([url_pooled, doc_pooled], axis=0)
    h = _f32mm(C["perm"][...], stacked)                            # (b_chunk*(NUM_SEQ+1), H)
    # x = x + PositionalEncoding(x)  ==  2*x + sinusoidal pe  (faithful to PyTorch code)
    x = h + (h + C["pe"][...])
    x = _ln(x, C["emb_ln_g"][...], C["emb_ln_b"][...])
    # combine encoder: no mask within a batch row, -1e4 across folded batches.
    x = _encoder_stack(x, C["attn_mask"][...], C["layers"])
    # per-batch mean over the NUM_SEQ+1 positions (one small f32 matmul).
    pooled = _f32mm(C["pool_mat"][...], x)                         # (b_chunk, H)
    y = jnp.maximum(_mm(pooled, W["fc1_w"][...]) + W["fc1_b"][...], 0.0)
    out_ref[0] = _mm(y, W["fc2_w"][...]) + W["fc2_b"][...]         # (b_chunk, 128) lane-dense


# ------------------------------ wrapper ------------------------------
def _embed(ids, p):
    """BERT embedding sum (word + position + token-type-0), done once in the wrapper."""
    # TODO(synk): could move this gather in-kernel (table is VMEM-sized) if Mosaic
    # row-gather lowering is guaranteed; kept as a single XLA gather here.
    n_seq, L = ids.shape
    we = jnp.take(p["word_emb"], ids, axis=0)                      # (n_seq, L, H)
    x = we + p["pos_emb"][None, :L, :] + p["type_emb"][0][None, None, :]
    return x.reshape(n_seq * L, H)


def _attn_mask(ids_seq, split):
    """(split, rows, rows) additive mask: block-diagonal over the sequences folded
    into one grid step's rows, combined with key padding (id == 0 -> -1e4)."""
    n_seq, L = ids_seq.shape
    rows = (n_seq // split) * L
    seq_of = np.arange(rows) // L
    same_seq = jnp.asarray(seq_of[:, None] == seq_of[None, :])
    key_ok = ids_seq.reshape(split, rows) != 0
    allowed = jnp.logical_and(same_seq[None, :, :], key_ok[:, None, :])
    return jnp.where(allowed, 0.0, -10000.0).astype(jnp.float32)


def _kernel_weights(params, b_chunk):
    """Weight / constant pytree consumed by the fused kernel (all VMEM-resident)."""
    S = NUM_SEQ + 1

    def enc_block(p, n_seq, seq_len):
        g = np.zeros((n_seq, n_seq * seq_len), np.float32)
        g[np.arange(n_seq), np.arange(n_seq) * seq_len] = 1.0      # CLS-row gather
        return {"emb_ln_g": p["emb_ln_g"], "emb_ln_b": p["emb_ln_b"],
                "layers": p["layers"], "cls_gather": jnp.asarray(g),
                "pool_w": p["pool_w"], "pool_b": p["pool_b"]}

    crows = b_chunk * S
    perm = np.zeros((crows, crows), np.float32)
    pool_mat = np.zeros((b_chunk, crows), np.float32)
    for b in range(b_chunk):
        perm[b * S, b] = 1.0                                       # url   -> slot 0
        for j in range(NUM_SEQ):
            perm[b * S + 1 + j, b_chunk + b * NUM_SEQ + j] = 1.0   # doc j -> slot j+1
        pool_mat[b, b * S:(b + 1) * S] = 1.0 / S
    grp = np.arange(crows) // S
    comb_mask = np.where(grp[:, None] == grp[None, :], 0.0, -10000.0).astype(np.float32)

    cp = params["combine"]
    return {
        "url": enc_block(params["url_enc"], b_chunk, L_URL),
        "doc": enc_block(params["enc"], b_chunk * NUM_SEQ, L_DOC),
        "comb": {"emb_ln_g": cp["emb_ln_g"], "emb_ln_b": cp["emb_ln_b"],
                 "layers": cp["layers"],
                 "pe": jnp.tile(cp["sin_pe"], (b_chunk, 1)),
                 "attn_mask": jnp.asarray(comb_mask),
                 "perm": jnp.asarray(perm),
                 "pool_mat": jnp.asarray(pool_mat)},
        "fc1_w": params["fc1"]["w"], "fc1_b": params["fc1"]["b"],
        "fc2_w": params["fc2"]["w"], "fc2_b": params["fc2"]["b"],
    }


def spam_forward(url_ids, x_ids, params, split=_SPLIT):
    batch = url_ids.shape[0]
    assert batch % split == 0
    b_chunk = batch // split

    doc_ids = x_ids.reshape(batch * NUM_SEQ, L_DOC)
    url_x = _embed(url_ids, params["url_enc"])                     # (B*L_URL, H)
    doc_x = _embed(doc_ids, params["enc"])                         # (B*NUM_SEQ*L_DOC, H)
    url_mask = _attn_mask(url_ids, split)                          # (split, r_url, r_url)
    doc_mask = _attn_mask(doc_ids, split)                          # (split, r_doc, r_doc)

    kw = _kernel_weights(params, b_chunk)
    leaves, treedef = jax.tree_util.tree_flatten(kw)

    r_url = b_chunk * L_URL
    r_doc = b_chunk * NUM_SEQ * L_DOC
    out = pl.pallas_call(
        functools.partial(_spam_fused_kernel, treedef),
        grid=(split,),
        in_specs=[pl.BlockSpec((r_url, H), lambda i: (i, 0)),
                  pl.BlockSpec((1, r_url, r_url), lambda i: (i, 0, 0)),
                  pl.BlockSpec((r_doc, H), lambda i: (i, 0)),
                  pl.BlockSpec((1, r_doc, r_doc), lambda i: (i, 0, 0))]
                 + [_full_spec(a) for a in leaves],
        out_specs=pl.BlockSpec((1, b_chunk, N_OUT_PAD), lambda i: (i, 0, 0)),
        out_shape=jax.ShapeDtypeStruct((split, b_chunk, N_OUT_PAD), jnp.float32),
        compiler_params=_PARALLEL,
    )(url_x, url_mask, doc_x, doc_mask, *leaves)
    return out.reshape(batch, N_OUT_PAD)[:, :N_OUT]                # (B, 5)


# ------------------------------ parameter init ------------------------------
def sinusoidal_pe(seq_len, dim):
    pe = np.zeros((seq_len, dim), dtype=np.float32)
    position = np.arange(0, seq_len, dtype=np.float32)[:, None]
    div_term = np.exp(np.arange(0, dim, 2, dtype=np.float32) * (-math.log(10000.0) / dim))
    pe[:, 0::2] = np.sin(position * div_term)
    pe[:, 1::2] = np.cos(position * div_term)
    return jnp.asarray(pe)


def init_params(key):
    keys = iter(jax.random.split(key, 64))

    def nrm(shape, dtype=jnp.float32):
        return (jax.random.normal(next(keys), shape, jnp.float32) * 0.02).astype(dtype)

    def layers(n):
        # matmul weights stored bf16 (MXU operands); biases / LN params f32.
        return {
            "wqkv": nrm((n, H, 3 * H), jnp.bfloat16),   # fused Q|K|V projection
            "bqkv": jnp.zeros((n, 1, 3 * H), jnp.float32),
            "wo":   nrm((n, H, H), jnp.bfloat16),
            "bo":   jnp.zeros((n, 1, H), jnp.float32),
            "ln1g": jnp.ones((n, 1, H), jnp.float32),
            "ln1b": jnp.zeros((n, 1, H), jnp.float32),
            "w1":   nrm((n, H, INTER), jnp.bfloat16),
            "b1":   jnp.zeros((n, 1, INTER), jnp.float32),
            "w2":   nrm((n, INTER, H), jnp.bfloat16),
            "b2":   jnp.zeros((n, 1, H), jnp.float32),
            "ln2g": jnp.ones((n, 1, H), jnp.float32),
            "ln2b": jnp.zeros((n, 1, H), jnp.float32),
        }

    def bert(num_layers):
        return {
            "word_emb": nrm((VOCAB, H)),
            "pos_emb":  nrm((MAX_POS, H)),
            "type_emb": nrm((2, H)),
            "emb_ln_g": jnp.ones((1, H), jnp.float32),
            "emb_ln_b": jnp.zeros((1, H), jnp.float32),
            "layers":   layers(num_layers),
            "pool_w":   nrm((H, H), jnp.bfloat16),
            "pool_b":   jnp.zeros((1, H), jnp.float32),
        }

    # fc2 output lane-padded to 128 (zeros in cols 5..127); sliced in wrapper.
    fc2_w = jnp.zeros((256, N_OUT_PAD), jnp.float32)
    fc2_w = fc2_w.at[:, :N_OUT].set(jax.random.normal(next(keys), (256, N_OUT)) * 0.02)

    return {
        "url_enc": bert(1),            # url_enc: 1 encoder layer
        "enc": bert(1),                # enc: enc_num_layers = 1
        "combine": {                   # combine: 1 layer, sinusoidal PE, no word emb
            "emb_ln_g": jnp.ones((1, H), jnp.float32),
            "emb_ln_b": jnp.zeros((1, H), jnp.float32),
            "layers": layers(1),
            "sin_pe": sinusoidal_pe(NUM_SEQ + 1, H),
        },
        "fc1": {"w": nrm((H, 256), jnp.bfloat16), "b": jnp.zeros((1, 256), jnp.float32)},
        "fc2": {"w": fc2_w.astype(jnp.bfloat16), "b": jnp.zeros((1, N_OUT_PAD), jnp.float32)},
    }


# ------------------------------ main ------------------------------
if __name__ == "__main__":
    root = jax.random.PRNGKey(0)
    k_params, k_url, k_x = jax.random.split(root, 3)

    params = init_params(k_params)
    url_ids = jax.random.randint(k_url, (B, L_URL), 0, VOCAB, dtype=jnp.int32)
    x_ids = jax.random.randint(k_x, (B, NUM_SEQ, L_DOC), 0, VOCAB, dtype=jnp.int32)

    fwd = jax.jit(lambda u, x: spam_forward(u, x, params))
    out = jax.block_until_ready(fwd(url_ids, x_ids))
    assert out.shape == (B, N_OUT), out.shape
    assert bool(jnp.all(jnp.isfinite(out)))
    print("KERNEL_OK")
</pallas_src>

<mosaic_0001>
module attributes {stable_mosaic.version = 11 : i64} {
  func.func @_spam_fused_kernel(%arg0: i32, %arg1: memref<32x128xf32, #tpu.memory_space<vmem>>, %arg2: memref<1x32x32xf32, #tpu.memory_space<vmem>>, %arg3: memref<128x128xf32, #tpu.memory_space<vmem>>, %arg4: memref<1x128x128xf32, #tpu.memory_space<vmem>>, %arg5: memref<10x10xf32, #tpu.memory_space<vmem>>, %arg6: memref<1x128xf32, #tpu.memory_space<vmem>>, %arg7: memref<1x128xf32, #tpu.memory_space<vmem>>, %arg8: memref<1x1x256xf32, #tpu.memory_space<vmem>>, %arg9: memref<1x1x128xf32, #tpu.memory_space<vmem>>, %arg10: memref<1x1x128xf32, #tpu.memory_space<vmem>>, %arg11: memref<1x1x384xf32, #tpu.memory_space<vmem>>, %arg12: memref<1x1x128xf32, #tpu.memory_space<vmem>>, %arg13: memref<1x1x128xf32, #tpu.memory_space<vmem>>, %arg14: memref<1x1x128xf32, #tpu.memory_space<vmem>>, %arg15: memref<1x1x128xf32, #tpu.memory_space<vmem>>, %arg16: memref<1x128x256xbf16, #tpu.memory_space<vmem>>, %arg17: memref<1x256x128xbf16, #tpu.memory_space<vmem>>, %arg18: memref<1x128x128xbf16, #tpu.memory_space<vmem>>, %arg19: memref<1x128x384xbf16, #tpu.memory_space<vmem>>, %arg20: memref<10x128xf32, #tpu.memory_space<vmem>>, %arg21: memref<10x10xf32, #tpu.memory_space<vmem>>, %arg22: memref<2x10xf32, #tpu.memory_space<vmem>>, %arg23: memref<8x128xf32, #tpu.memory_space<vmem>>, %arg24: memref<1x128xf32, #tpu.memory_space<vmem>>, %arg25: memref<1x128xf32, #tpu.memory_space<vmem>>, %arg26: memref<1x1x256xf32, #tpu.memory_space<vmem>>, %arg27: memref<1x1x128xf32, #tpu.memory_space<vmem>>, %arg28: memref<1x1x128xf32, #tpu.memory_space<vmem>>, %arg29: memref<1x1x384xf32, #tpu.memory_space<vmem>>, %arg30: memref<1x1x128xf32, #tpu.memory_space<vmem>>, %arg31: memref<1x1x128xf32, #tpu.memory_space<vmem>>, %arg32: memref<1x1x128xf32, #tpu.memory_space<vmem>>, %arg33: memref<1x1x128xf32, #tpu.memory_space<vmem>>, %arg34: memref<1x128x256xbf16, #tpu.memory_space<vmem>>, %arg35: memref<1x256x128xbf16, #tpu.memory_space<vmem>>, %arg36: memref<1x128x128xbf16, #tpu.memory_space<vmem>>, %arg37: memref<1x128x384xbf16, #tpu.memory_space<vmem>>, %arg38: memref<1x128xf32, #tpu.memory_space<vmem>>, %arg39: memref<128x128xbf16, #tpu.memory_space<vmem>>, %arg40: memref<1x256xf32, #tpu.memory_space<vmem>>, %arg41: memref<128x256xbf16, #tpu.memory_space<vmem>>, %arg42: memref<1x128xf32, #tpu.memory_space<vmem>>, %arg43: memref<256x128xbf16, #tpu.memory_space<vmem>>, %arg44: memref<2x32xf32, #tpu.memory_space<vmem>>, %arg45: memref<1x128xf32, #tpu.memory_space<vmem>>, %arg46: memref<1x128xf32, #tpu.memory_space<vmem>>, %arg47: memref<1x1x256xf32, #tpu.memory_space<vmem>>, %arg48: memref<1x1x128xf32, #tpu.memory_space<vmem>>, %arg49: memref<1x1x128xf32, #tpu.memory_space<vmem>>, %arg50: memref<1x1x384xf32, #tpu.memory_space<vmem>>, %arg51: memref<1x1x128xf32, #tpu.memory_space<vmem>>, %arg52: memref<1x1x128xf32, #tpu.memory_space<vmem>>, %arg53: memref<1x1x128xf32, #tpu.memory_space<vmem>>, %arg54: memref<1x1x128xf32, #tpu.memory_space<vmem>>, %arg55: memref<1x128x256xbf16, #tpu.memory_space<vmem>>, %arg56: memref<1x256x128xbf16, #tpu.memory_space<vmem>>, %arg57: memref<1x128x128xbf16, #tpu.memory_space<vmem>>, %arg58: memref<1x128x384xbf16, #tpu.memory_space<vmem>>, %arg59: memref<1x128xf32, #tpu.memory_space<vmem>>, %arg60: memref<128x128xbf16, #tpu.memory_space<vmem>>, %arg61: memref<1x2x128xf32, #tpu.memory_space<vmem>>) attributes {dimension_semantics = [#tpu.dimension_semantics<parallel>], iteration_bounds = array<i64: 1>, scalar_prefetch = 0 : i64, scratch_operands = 0 : i64, tpu.core_type = #tpu.core_type<tc>, window_params = [{transform_indices = @transform_0, window_bounds = array<i64: 32, 128>}, {transform_indices = @transform_1, window_bounds = array<i64: 1, 32, 32>}, {transform_indices = @transform_2, window_bounds = array<i64: 128, 128>}, {transform_indices = @transform_3, window_bounds = array<i64: 1, 128, 128>}, {pipeline_mode = #tpu.pipeline_mode<synchronous>, transform_indices = @transform_4, window_bounds = array<i64: 10, 10>}, {pipeline_mode = #tpu.pipeline_mode<synchronous>, transform_indices = @transform_5, window_bounds = array<i64: 1, 128>}, {pipeline_mode = #tpu.pipeline_mode<synchronous>, transform_indices = @transform_6, window_bounds = array<i64: 1, 128>}, {pipeline_mode = #tpu.pipeline_mode<synchronous>, transform_indices = @transform_7, window_bounds = array<i64: 1, 1, 256>}, {pipeline_mode = #tpu.pipeline_mode<synchronous>, transform_indices = @transform_8, window_bounds = array<i64: 1, 1, 128>}, {pipeline_mode = #tpu.pipeline_mode<synchronous>, transform_indices = @transform_9, window_bounds = array<i64: 1, 1, 128>}, {pipeline_mode = #tpu.pipeline_mode<synchronous>, transform_indices = @transform_10, window_bounds = array<i64: 1, 1, 384>}, {pipeline_mode = #tpu.pipeline_mode<synchronous>, transform_indices = @transform_11, window_bounds = array<i64: 1, 1, 128>}, {pipeline_mode = #tpu.pipeline_mode<synchronous>, transform_indices = @transform_12, window_bounds = array<i64: 1, 1, 128>}, {pipeline_mode = #tpu.pipeline_mode<synchronous>, transform_indices = @transform_13, window_bounds = array<i64: 1, 1, 128>}, {pipeline_mode = #tpu.pipeline_mode<synchronous>, transform_indices = @transform_14, window_bounds = array<i64: 1, 1, 128>}, {pipeline_mode = #tpu.pipeline_mode<synchronous>, transform_indices = @transform_15, window_bounds = array<i64: 1, 128, 256>}, {pipeline_mode = #tpu.pipeline_mode<synchronous>, transform_indices = @transform_16, window_bounds = array<i64: 1, 256, 128>}, {pipeline_mode = #tpu.pipeline_mode<synchronous>, transform_indices = @transform_17, window_bounds = array<i64: 1, 128, 128>}, {pipeline_mode = #tpu.pipeline_mode<synchronous>, transform_indices = @transform_18, window_bounds = array<i64: 1, 128, 384>}, {pipeline_mode = #tpu.pipeline_mode<synchronous>, transform_indices = @transform_19, window_bounds = array<i64: 10, 128>}, {pipeline_mode = #tpu.pipeline_mode<synchronous>, transform_indices = @transform_20, window_bounds = array<i64: 10, 10>}, {pipeline_mode = #tpu.pipeline_mode<synchronous>, transform_indices = @transform_21, window_bounds = array<i64: 2, 10>}, {pipeline_mode = #tpu.pipeline_mode<synchronous>, transform_indices = @transform_22, window_bounds = array<i64: 8, 128>}, {pipeline_mode = #tpu.pipeline_mode<synchronous>, transform_indices = @transform_23, window_bounds = array<i64: 1, 128>}, {pipeline_mode = #tpu.pipeline_mode<synchronous>, transform_indices = @transform_24, window_bounds = array<i64: 1, 128>}, {pipeline_mode = #tpu.pipeline_mode<synchronous>, transform_indices = @transform_25, window_bounds = array<i64: 1, 1, 256>}, {pipeline_mode = #tpu.pipeline_mode<synchronous>, transform_indices = @transform_26, window_bounds = array<i64: 1, 1, 128>}, {pipeline_mode = #tpu.pipeline_mode<synchronous>, transform_indices = @transform_27, window_bounds = array<i64: 1, 1, 128>}, {pipeline_mode = #tpu.pipeline_mode<synchronous>, transform_indices = @transform_28, window_bounds = array<i64: 1, 1, 384>}, {pipeline_mode = #tpu.pipeline_mode<synchronous>, transform_indices = @transform_29, window_bounds = array<i64: 1, 1, 128>}, {pipeline_mode = #tpu.pipeline_mode<synchronous>, transform_indices = @transform_30, window_bounds = array<i64: 1, 1, 128>}, {pipeline_mode = #tpu.pipeline_mode<synchronous>, transform_indices = @transform_31, window_bounds = array<i64: 1, 1, 128>}, {pipeline_mode = #tpu.pipeline_mode<synchronous>, transform_indices = @transform_32, window_bounds = array<i64: 1, 1, 128>}, {pipeline_mode = #tpu.pipeline_mode<synchronous>, transform_indices = @transform_33, window_bounds = array<i64: 1, 128, 256>}, {pipeline_mode = #tpu.pipeline_mode<synchronous>, transform_indices = @transform_34, window_bounds = array<i64: 1, 256, 128>}, {pipeline_mode = #tpu.pipeline_mode<synchronous>, transform_indices = @transform_35, window_bounds = array<i64: 1, 128, 128>}, {pipeline_mode = #tpu.pipeline_mode<synchronous>, transform_indices = @transform_36, window_bounds = array<i64: 1, 128, 384>}, {pipeline_mode = #tpu.pipeline_mode<synchronous>, transform_indices = @transform_37, window_bounds = array<i64: 1, 128>}, {pipeline_mode = #tpu.pipeline_mode<synchronous>, transform_indices = @transform_38, window_bounds = array<i64: 128, 128>}, {pipeline_mode = #tpu.pipeline_mode<synchronous>, transform_indices = @transform_39, window_bounds = array<i64: 1, 256>}, {pipeline_mode = #tpu.pipeline_mode<synchronous>, transform_indices = @transform_40, window_bounds = array<i64: 128, 256>}, {pipeline_mode = #tpu.pipeline_mode<synchronous>, transform_indices = @transform_41, window_bounds = array<i64: 1, 128>}, {pipeline_mode = #tpu.pipeline_mode<synchronous>, transform_indices = @transform_42, window_bounds = array<i64: 256, 128>}, {pipeline_mode = #tpu.pipeline_mode<synchronous>, transform_indices = @transform_43, window_bounds = array<i64: 2, 32>}, {pipeline_mode = #tpu.pipeline_mode<synchronous>, transform_indices = @transform_44, window_bounds = array<i64: 1, 128>}, {pipeline_mode = #tpu.pipeline_mode<synchronous>, transform_indices = @transform_45, window_bounds = array<i64: 1, 128>}, {pipeline_mode = #tpu.pipeline_mode<synchronous>, transform_indices = @transform_46, window_bounds = array<i64: 1, 1, 256>}, {pipeline_mode = #tpu.pipeline_mode<synchronous>, transform_indices = @transform_47, window_bounds = array<i64: 1, 1, 128>}, {pipeline_mode = #tpu.pipeline_mode<synchronous>, transform_indices = @transform_48, window_bounds = array<i64: 1, 1, 128>}, {pipeline_mode = #tpu.pipeline_mode<synchronous>, transform_indices = @transform_49, window_bounds = array<i64: 1, 1, 384>}, {pipeline_mode = #tpu.pipeline_mode<synchronous>, transform_indices = @transform_50, window_bounds = array<i64: 1, 1, 128>}, {pipeline_mode = #tpu.pipeline_mode<synchronous>, transform_indices = @transform_51, window_bounds = array<i64: 1, 1, 128>}, {pipeline_mode = #tpu.pipeline_mode<synchronous>, transform_indices = @transform_52, window_bounds = array<i64: 1, 1, 128>}, {pipeline_mode = #tpu.pipeline_mode<synchronous>, transform_indices = @transform_53, window_bounds = array<i64: 1, 1, 128>}, {pipeline_mode = #tpu.pipeline_mode<synchronous>, transform_indices = @transform_54, window_bounds = array<i64: 1, 128, 256>}, {pipeline_mode = #tpu.pipeline_mode<synchronous>, transform_indices = @transform_55, window_bounds = array<i64: 1, 256, 128>}, {pipeline_mode = #tpu.pipeline_mode<synchronous>, transform_indices = @transform_56, window_bounds = array<i64: 1, 128, 128>}, {pipeline_mode = #tpu.pipeline_mode<synchronous>, transform_indices = @transform_57, window_bounds = array<i64: 1, 128, 384>}, {pipeline_mode = #tpu.pipeline_mode<synchronous>, transform_indices = @transform_58, window_bounds = array<i64: 1, 128>}, {pipeline_mode = #tpu.pipeline_mode<synchronous>, transform_indices = @transform_59, window_bounds = array<i64: 128, 128>}, {transform_indices = @transform_60, window_bounds = array<i64: 1, 2, 128>}]} {
    %c0 = arith.constant 0 : index
    %c0_0 = arith.constant 0 : index
    %0 = vector.load %arg1[%c0, %c0_0] : memref<32x128xf32, #tpu.memory_space<vmem>>, vector<32x128xf32>
    %c0_1 = arith.constant 0 : index
    %c0_2 = arith.constant 0 : index
    %c0_3 = arith.constant 0 : index
    %1 = vector.load %arg2[%c0_1, %c0_2, %c0_3] : memref<1x32x32xf32, #tpu.memory_space<vmem>>, vector<1x32x32xf32>
    %2 = vector.shape_cast %1 : vector<1x32x32xf32> to vector<32x32xf32>
    %c0_4 = arith.constant 0 : index
    %c0_5 = arith.constant 0 : index
    %3 = vector.load %arg46[%c0_4, %c0_5] : memref<1x128xf32, #tpu.memory_space<vmem>>, vector<1x128xf32>
    %c0_6 = arith.constant 0 : index
    %c0_7 = arith.constant 0 : index
    %4 = vector.load %arg45[%c0_6, %c0_7] : memref<1x128xf32, #tpu.memory_space<vmem>>, vector<1x128xf32>
    %cst = arith.constant dense<0.000000e+00> : vector<32xf32>
    %5 = vector.multi_reduction <add>, %0, %cst [1] : vector<32x128xf32> to vector<32xf32>
    %6 = vector.shape_cast %5 : vector<32xf32> to vector<32x1xf32>
    %cst_8 = arith.constant 1.280000e+02 : f32
    %7 = vector.broadcast %cst_8 : f32 to vector<32x1xf32>
    %8 = arith.divf %6, %7 : vector<32x1xf32>
    %9 = vector.broadcast %8 : vector<32x1xf32> to vector<32x128xf32>
    %10 = arith.subf %0, %9 : vector<32x128xf32>
    %11 = arith.mulf %10, %10 : vector<32x128xf32>
    %cst_9 = arith.constant dense<0.000000e+00> : vector<32xf32>
    %12 = vector.multi_reduction <add>, %11, %cst_9 [1] : vector<32x128xf32> to vector<32xf32>
    %13 = vector.shape_cast %12 : vector<32xf32> to vector<32x1xf32>
    %cst_10 = arith.constant 1.280000e+02 : f32
    %14 = vector.broadcast %cst_10 : f32 to vector<32x1xf32>
    %15 = arith.divf %13, %14 : vector<32x1xf32>
    %cst_11 = arith.constant 9.99999996E-13 : f32
    %16 = vector.broadcast %cst_11 : f32 to vector<32x1xf32>
    %17 = arith.addf %15, %16 : vector<32x1xf32>
    %18 = math.rsqrt %17 : vector<32x1xf32>
    %19 = vector.broadcast %18 : vector<32x1xf32> to vector<32x128xf32>
    %20 = arith.mulf %10, %19 : vector<32x128xf32>
    %21 = vector.broadcast %3 : vector<1x128xf32> to vector<32x128xf32>
    %22 = arith.mulf %20, %21 : vector<32x128xf32>
    %23 = vector.broadcast %4 : vector<1x128xf32> to vector<32x128xf32>
    %24 = arith.addf %22, %23 : vector<32x128xf32>
    %c0_12 = arith.constant 0 : index
    %c0_13 = arith.constant 0 : index
    %c0_14 = arith.constant 0 : index
    %25 = vector.load %arg58[%c0_12, %c0_13, %c0_14] : memref<1x128x384xbf16, #tpu.memory_space<vmem>>, vector<1x128x384xbf16>
    %26 = vector.shape_cast %25 : vector<1x128x384xbf16> to vector<128x384xbf16>
    %c0_15 = arith.constant 0 : index
    %c0_16 = arith.constant 0 : index
    %c0_17 = arith.constant 0 : index
    %27 = vector.load %arg50[%c0_15, %c0_16, %c0_17] : memref<1x1x384xf32, #tpu.memory_space<vmem>>, vector<1x1x384xf32>
    %28 = vector.shape_cast %27 : vector<1x1x384xf32> to vector<1x384xf32>
    %c0_18 = arith.constant 0 : index
    %c0_19 = arith.constant 0 : index
    %c0_20 = arith.constant 0 : index
    %29 = vector.load %arg57[%c0_18, %c0_19, %c0_20] : memref<1x128x128xbf16, #tpu.memory_space<vmem>>, vector<1x128x128xbf16>
    %30 = vector.shape_cast %29 : vector<1x128x128xbf16> to vector<128x128xbf16>
    %c0_21 = arith.constant 0 : index
    %c0_22 = arith.constant 0 : index
    %c0_23 = arith.constant 0 : index
    %31 = vector.load %arg49[%c0_21, %c0_22, %c0_23] : memref<1x1x128xf32, #tpu.memory_space<vmem>>, vector<1x1x128xf32>
    %32 = vector.shape_cast %31 : vector<1x1x128xf32> to vector<1x128xf32>
    %c0_24 = arith.constant 0 : index
    %c0_25 = arith.constant 0 : index
    %c0_26 = arith.constant 0 : index
    %33 = vector.load %arg52[%c0_24, %c0_25, %c0_26] : memref<1x1x128xf32, #tpu.memory_space<vmem>>, vector<1x1x128xf32>
    %34 = vector.shape_cast %33 : vector<1x1x128xf32> to vector<1x128xf32>
    %c0_27 = arith.constant 0 : index
    %c0_28 = arith.constant 0 : index
    %c0_29 = arith.constant 0 : index
    %35 = vector.load %arg51[%c0_27, %c0_28, %c0_29] : memref<1x1x128xf32, #tpu.memory_space<vmem>>, vector<1x1x128xf32>
    %36 = vector.shape_cast %35 : vector<1x1x128xf32> to vector<1x128xf32>
    %c0_30 = arith.constant 0 : index
    %c0_31 = arith.constant 0 : index
    %c0_32 = arith.constant 0 : index
    %37 = vector.load %arg55[%c0_30, %c0_31, %c0_32] : memref<1x128x256xbf16, #tpu.memory_space<vmem>>, vector<1x128x256xbf16>
    %38 = vector.shape_cast %37 : vector<1x128x256xbf16> to vector<128x256xbf16>
    %c0_33 = arith.constant 0 : index
    %c0_34 = arith.constant 0 : index
    %c0_35 = arith.constant 0 : index
    %39 = vector.load %arg47[%c0_33, %c0_34, %c0_35] : memref<1x1x256xf32, #tpu.memory_space<vmem>>, vector<1x1x256xf32>
    %40 = vector.shape_cast %39 : vector<1x1x256xf32> to vector<1x256xf32>
    %c0_36 = arith.constant 0 : index
    %c0_37 = arith.constant 0 : index
    %c0_38 = arith.constant 0 : index
    %41 = vector.load %arg56[%c0_36, %c0_37, %c0_38] : memref<1x256x128xbf16, #tpu.memory_space<vmem>>, vector<1x256x128xbf16>
    %42 = vector.shape_cast %41 : vector<1x256x128xbf16> to vector<256x128xbf16>
    %c0_39 = arith.constant 0 : index
    %c0_40 = arith.constant 0 : index
    %c0_41 = arith.constant 0 : index
    %43 = vector.load %arg48[%c0_39, %c0_40, %c0_41] : memref<1x1x128xf32, #tpu.memory_space<vmem>>, vector<1x1x128xf32>
    %44 = vector.shape_cast %43 : vector<1x1x128xf32> to vector<1x128xf32>
    %c0_42 = arith.constant 0 : index
    %c0_43 = arith.constant 0 : index
    %c0_44 = arith.constant 0 : index
    %45 = vector.load %arg54[%c0_42, %c0_43, %c0_44] : memref<1x1x128xf32, #tpu.memory_space<vmem>>, vector<1x1x128xf32>
    %46 = vector.shape_cast %45 : vector<1x1x128xf32> to vector<1x128xf32>
    %c0_45 = arith.constant 0 : index
    %c0_46 = arith.constant 0 : index
    %c0_47 = arith.constant 0 : index
    %47 = vector.load %arg53[%c0_45, %c0_46, %c0_47] : memref<1x1x128xf32, #tpu.memory_space<vmem>>, vector<1x1x128xf32>
    %48 = vector.shape_cast %47 : vector<1x1x128xf32> to vector<1x128xf32>
    %49 = arith.truncf %24 : vector<32x128xf32> to vector<32x128xbf16>
    %cst_48 = arith.constant dense<0.000000e+00> : vector<32x384xf32>
    %50 = tpu.matmul %49, %26, %cst_48 {dimension_numbers = #tpu.dot_dimension_numbers<[1], [0], [0], [1], [0, 0, 1, 1], [], []>} : vector<32x128xbf16>, vector<128x384xbf16>, vector<32x384xf32> -> vector<32x384xf32>
    %51 = vector.broadcast %28 : vector<1x384xf32> to vector<32x384xf32>
    %52 = arith.addf %50, %51 : vector<32x384xf32>
    %cst_49 = arith.constant 0.000000e+00 : f32
    %53 = vector.broadcast %cst_49 : f32 to vector<32x128xf32>
    %54 = vector.extract_strided_slice %52 {offsets = [0, 0], sizes = [32, 32], strides = [1, 1]} : vector<32x384xf32> to vector<32x32xf32>
    %55 = vector.extract_strided_slice %52 {offsets = [0, 128], sizes = [32, 32], strides = [1, 1]} : vector<32x384xf32> to vector<32x32xf32>
    %56 = vector.extract_strided_slice %52 {offsets = [0, 256], sizes = [32, 32], strides = [1, 1]} : vector<32x384xf32> to vector<32x32xf32>
    %57 = arith.truncf %54 : vector<32x32xf32> to vector<32x32xbf16>
    %58 = arith.truncf %55 : vector<32x32xf32> to vector<32x32xbf16>
    %cst_50 = arith.constant dense<0.000000e+00> : vector<32x32xf32>
    %59 = tpu.matmul %57, %58, %cst_50 {dimension_numbers = #tpu.dot_dimension_numbers<[1], [1], [0], [0], [0, 0, 1, 0], [], []>} : vector<32x32xbf16>, vector<32x32xbf16>, vector<32x32xf32> -> vector<32x32xf32>
    %cst_51 = arith.constant 0.176776692 : f32
    %60 = vector.broadcast %cst_51 : f32 to vector<32x32xf32>
    %61 = arith.mulf %59, %60 : vector<32x32xf32>
    %62 = arith.addf %61, %2 : vector<32x32xf32>
    %cst_52 = arith.constant dense<0xFF800000> : vector<32xf32>
    %63 = vector.multi_reduction <maximumf>, %62, %cst_52 [1] : vector<32x32xf32> to vector<32xf32>
    %64 = vector.shape_cast %63 : vector<32xf32> to vector<32x1xf32>
    %65 = vector.broadcast %64 : vector<32x1xf32> to vector<32x32xf32>
    %66 = arith.subf %62, %65 : vector<32x32xf32>
    %67 = math.exp %66 : vector<32x32xf32>
    %cst_53 = arith.constant dense<0.000000e+00> : vector<32xf32>
    %68 = vector.multi_reduction <add>, %67, %cst_53 [1] : vector<32x32xf32> to vector<32xf32>
    %69 = vector.shape_cast %68 : vector<32xf32> to vector<32x1xf32>
    %70 = tpu.reciprocal %69 {approx = true} : vector<32x1xf32> -> vector<32x1xf32>
    %71 = vector.broadcast %70 : vector<32x1xf32> to vector<32x32xf32>
    %72 = arith.mulf %67, %71 : vector<32x32xf32>
    %73 = arith.truncf %72 : vector<32x32xf32> to vector<32x32xbf16>
    %74 = arith.truncf %56 : vector<32x32xf32> to vector<32x32xbf16>
    %cst_54 = arith.constant dense<0.000000e+00> : vector<32x32xf32>
    %75 = tpu.matmul %73, %74, %cst_54 {dimension_numbers = #tpu.dot_dimension_numbers<[1], [0], [0], [1], [0, 0, 1, 1], [], []>} : vector<32x32xbf16>, vector<32x32xbf16>, vector<32x32xf32> -> vector<32x32xf32>
    %76 = vector.extract_strided_slice %30 {offsets = [0, 0], sizes = [32, 128], strides = [1, 1]} : vector<128x128xbf16> to vector<32x128xbf16>
    %77 = arith.truncf %75 : vector<32x32xf32> to vector<32x32xbf16>
    %cst_55 = arith.constant dense<0.000000e+00> : vector<32x128xf32>
    %78 = tpu.matmul %77, %76, %cst_55 {dimension_numbers = #tpu.dot_dimension_numbers<[1], [0], [0], [1], [0, 0, 1, 1], [], []>} : vector<32x32xbf16>, vector<32x128xbf16>, vector<32x128xf32> -> vector<32x128xf32>
    %79 = arith.addf %53, %78 : vector<32x128xf32>
    %80 = vector.extract_strided_slice %52 {offsets = [0, 32], sizes = [32, 32], strides = [1, 1]} : vector<32x384xf32> to vector<32x32xf32>
    %81 = vector.extract_strided_slice %52 {offsets = [0, 160], sizes = [32, 32], strides = [1, 1]} : vector<32x384xf32> to vector<32x32xf32>
    %82 = vector.extract_strided_slice %52 {offsets = [0, 288], sizes = [32, 32], strides = [1, 1]} : vector<32x384xf32> to vector<32x32xf32>
    %83 = arith.truncf %80 : vector<32x32xf32> to vector<32x32xbf16>
    %84 = arith.truncf %81 : vector<32x32xf32> to vector<32x32xbf16>
    %cst_56 = arith.constant dense<0.000000e+00> : vector<32x32xf32>
    %85 = tpu.matmul %83, %84, %cst_56 {dimension_numbers = #tpu.dot_dimension_numbers<[1], [1], [0], [0], [0, 0, 1, 0], [], []>} : vector<32x32xbf16>, vector<32x32xbf16>, vector<32x32xf32> -> vector<32x32xf32>
    %cst_57 = arith.constant 0.176776692 : f32
    %86 = vector.broadcast %cst_57 : f32 to vector<32x32xf32>
    %87 = arith.mulf %85, %86 : vector<32x32xf32>
    %88 = arith.addf %87, %2 : vector<32x32xf32>
    %cst_58 = arith.constant dense<0xFF800000> : vector<32xf32>
    %89 = vector.multi_reduction <maximumf>, %88, %cst_58 [1] : vector<32x32xf32> to vector<32xf32>
    %90 = vector.shape_cast %89 : vector<32xf32> to vector<32x1xf32>
    %91 = vector.broadcast %90 : vector<32x1xf32> to vector<32x32xf32>
    %92 = arith.subf %88, %91 : vector<32x32xf32>
    %93 = math.exp %92 : vector<32x32xf32>
    %cst_59 = arith.constant dense<0.000000e+00> : vector<32xf32>
    %94 = vector.multi_reduction <add>, %93, %cst_59 [1] : vector<32x32xf32> to vector<32xf32>
    %95 = vector.shape_cast %94 : vector<32xf32> to vector<32x1xf32>
    %96 = tpu.reciprocal %95 {approx = true} : vector<32x1xf32> -> vector<32x1xf32>
    %97 = vector.broadcast %96 : vector<32x1xf32> to vector<32x32xf32>
    %98 = arith.mulf %93, %97 : vector<32x32xf32>
    %99 = arith.truncf %98 : vector<32x32xf32> to vector<32x32xbf16>
    %100 = arith.truncf %82 : vector<32x32xf32> to vector<32x32xbf16>
    %cst_60 = arith.constant dense<0.000000e+00> : vector<32x32xf32>
    %101 = tpu.matmul %99, %100, %cst_60 {dimension_numbers = #tpu.dot_dimension_numbers<[1], [0], [0], [1], [0, 0, 1, 1], [], []>} : vector<32x32xbf16>, vector<32x32xbf16>, vector<32x32xf32> -> vector<32x32xf32>
    %102 = vector.extract_strided_slice %30 {offsets = [32, 0], sizes = [32, 128], strides = [1, 1]} : vector<128x128xbf16> to vector<32x128xbf16>
    %103 = arith.truncf %101 : vector<32x32xf32> to vector<32x32xbf16>
    %cst_61 = arith.constant dense<0.000000e+00> : vector<32x128xf32>
    %104 = tpu.matmul %103, %102, %cst_61 {dimension_numbers = #tpu.dot_dimension_numbers<[1], [0], [0], [1], [0, 0, 1, 1], [], []>} : vector<32x32xbf16>, vector<32x128xbf16>, vector<32x128xf32> -> vector<32x128xf32>
    %105 = arith.addf %79, %104 : vector<32x128xf32>
    %106 = vector.extract_strided_slice %52 {offsets = [0, 64], sizes = [32, 32], strides = [1, 1]} : vector<32x384xf32> to vector<32x32xf32>
    %107 = vector.extract_strided_slice %52 {offsets = [0, 192], sizes = [32, 32], strides = [1, 1]} : vector<32x384xf32> to vector<32x32xf32>
    %108 = vector.extract_strided_slice %52 {offsets = [0, 320], sizes = [32, 32], strides = [1, 1]} : vector<32x384xf32> to vector<32x32xf32>
    %109 = arith.truncf %106 : vector<32x32xf32> to vector<32x32xbf16>
    %110 = arith.truncf %107 : vector<32x32xf32> to vector<32x32xbf16>
    %cst_62 = arith.constant dense<0.000000e+00> : vector<32x32xf32>
    %111 = tpu.matmul %109, %110, %cst_62 {dimension_numbers = #tpu.dot_dimension_numbers<[1], [1], [0], [0], [0, 0, 1, 0], [], []>} : vector<32x32xbf16>, vector<32x32xbf16>, vector<32x32xf32> -> vector<32x32xf32>
    %cst_63 = arith.constant 0.176776692 : f32
    %112 = vector.broadcast %cst_63 : f32 to vector<32x32xf32>
    %113 = arith.mulf %111, %112 : vector<32x32xf32>
    %114 = arith.addf %113, %2 : vector<32x32xf32>
    %cst_64 = arith.constant dense<0xFF800000> : vector<32xf32>
    %115 = vector.multi_reduction <maximumf>, %114, %cst_64 [1] : vector<32x32xf32> to vector<32xf32>
    %116 = vector.shape_cast %115 : vector<32xf32> to vector<32x1xf32>
    %117 = vector.broadcast %116 : vector<32x1xf32> to vector<32x32xf32>
    %118 = arith.subf %114, %117 : vector<32x32xf32>
    %119 = math.exp %118 : vector<32x32xf32>
    %cst_65 = arith.constant dense<0.000000e+00> : vector<32xf32>
    %120 = vector.multi_reduction <add>, %119, %cst_65 [1] : vector<32x32xf32> to vector<32xf32>
    %121 = vector.shape_cast %120 : vector<32xf32> to vector<32x1xf32>
    %122 = tpu.reciprocal %121 {approx = true} : vector<32x1xf32> -> vector<32x1xf32>
    %123 = vector.broadcast %122 : vector<32x1xf32> to vector<32x32xf32>
    %124 = arith.mulf %119, %123 : vector<32x32xf32>
    %125 = arith.truncf %124 : vector<32x32xf32> to vector<32x32xbf16>
    %126 = arith.truncf %108 : vector<32x32xf32> to vector<32x32xbf16>
    %cst_66 = arith.constant dense<0.000000e+00> : vector<32x32xf32>
    %127 = tpu.matmul %125, %126, %cst_66 {dimension_numbers = #tpu.dot_dimension_numbers<[1], [0], [0], [1], [0, 0, 1, 1], [], []>} : vector<32x32xbf16>, vector<32x32xbf16>, vector<32x32xf32> -> vector<32x32xf32>
    %128 = vector.extract_strided_slice %30 {offsets = [64, 0], sizes = [32, 128], strides = [1, 1]} : vector<128x128xbf16> to vector<32x128xbf16>
    %129 = arith.truncf %127 : vector<32x32xf32> to vector<32x32xbf16>
    %cst_67 = arith.constant dense<0.000000e+00> : vector<32x128xf32>
    %130 = tpu.matmul %129, %128, %cst_67 {dimension_numbers = #tpu.dot_dimension_numbers<[1], [0], [0], [1], [0, 0, 1, 1], [], []>} : vector<32x32xbf16>, vector<32x128xbf16>, vector<32x128xf32> -> vector<32x128xf32>
    %131 = arith.addf %105, %130 : vector<32x128xf32>
    %132 = vector.extract_strided_slice %52 {offsets = [0, 96], sizes = [32, 32], strides = [1, 1]} : vector<32x384xf32> to vector<32x32xf32>
    %133 = vector.extract_strided_slice %52 {offsets = [0, 224], sizes = [32, 32], strides = [1, 1]} : vector<32x384xf32> to vector<32x32xf32>
    %134 = vector.extract_strided_slice %52 {offsets = [0, 352], sizes = [32, 32], strides = [1, 1]} : vector<32x384xf32> to vector<32x32xf32>
    %135 = arith.truncf %132 : vector<32x32xf32> to vector<32x32xbf16>
    %136 = arith.truncf %133 : vector<32x32xf32> to vector<32x32xbf16>
    %cst_68 = arith.constant dense<0.000000e+00> : vector<32x32xf32>
    %137 = tpu.matmul %135, %136, %cst_68 {dimension_numbers = #tpu.dot_dimension_numbers<[1], [1], [0], [0], [0, 0, 1, 0], [], []>} : vector<32x32xbf16>, vector<32x32xbf16>, vector<32x32xf32> -> vector<32x32xf32>
    %cst_69 = arith.constant 0.176776692 : f32
    %138 = vector.broadcast %cst_69 : f32 to vector<32x32xf32>
    %139 = arith.mulf %137, %138 : vector<32x32xf32>
    %140 = arith.addf %139, %2 : vector<32x32xf32>
    %cst_70 = arith.constant dense<0xFF800000> : vector<32xf32>
    %141 = vector.multi_reduction <maximumf>, %140, %cst_70 [1] : vector<32x32xf32> to vector<32xf32>
    %142 = vector.shape_cast %141 : vector<32xf32> to vector<32x1xf32>
    %143 = vector.broadcast %142 : vector<32x1xf32> to vector<32x32xf32>
    %144 = arith.subf %140, %143 : vector<32x32xf32>
    %145 = math.exp %144 : vector<32x32xf32>
    %cst_71 = arith.constant dense<0.000000e+00> : vector<32xf32>
    %146 = vector.multi_reduction <add>, %145, %cst_71 [1] : vector<32x32xf32> to vector<32xf32>
    %147 = vector.shape_cast %146 : vector<32xf32> to vector<32x1xf32>
    %148 = tpu.reciprocal %147 {approx = true} : vector<32x1xf32> -> vector<32x1xf32>
    %149 = vector.broadcast %148 : vector<32x1xf32> to vector<32x32xf32>
    %150 = arith.mulf %145, %149 : vector<32x32xf32>
    %151 = arith.truncf %150 : vector<32x32xf32> to vector<32x32xbf16>
    %152 = arith.truncf %134 : vector<32x32xf32> to vector<32x32xbf16>
    %cst_72 = arith.constant dense<0.000000e+00> : vector<32x32xf32>
    %153 = tpu.matmul %151, %152, %cst_72 {dimension_numbers = #tpu.dot_dimension_numbers<[1], [0], [0], [1], [0, 0, 1, 1], [], []>} : vector<32x32xbf16>, vector<32x32xbf16>, vector<32x32xf32> -> vector<32x32xf32>
    %154 = vector.extract_strided_slice %30 {offsets = [96, 0], sizes = [32, 128], strides = [1, 1]} : vector<128x128xbf16> to vector<32x128xbf16>
    %155 = arith.truncf %153 : vector<32x32xf32> to vector<32x32xbf16>
    %cst_73 = arith.constant dense<0.000000e+00> : vector<32x128xf32>
    %156 = tpu.matmul %155, %154, %cst_73 {dimension_numbers = #tpu.dot_dimension_numbers<[1], [0], [0], [1], [0, 0, 1, 1], [], []>} : vector<32x32xbf16>, vector<32x128xbf16>, vector<32x128xf32> -> vector<32x128xf32>
    %157 = arith.addf %131, %156 : vector<32x128xf32>
    %158 = arith.addf %24, %157 : vector<32x128xf32>
    %159 = vector.broadcast %32 : vector<1x128xf32> to vector<32x128xf32>
    %160 = arith.addf %158, %159 : vector<32x128xf32>
    %cst_74 = arith.constant dense<0.000000e+00> : vector<32xf32>
    %161 = vector.multi_reduction <add>, %160, %cst_74 [1] : vector<32x128xf32> to vector<32xf32>
    %162 = vector.shape_cast %161 : vector<32xf32> to vector<32x1xf32>
    %cst_75 = arith.constant 1.280000e+02 : f32
    %163 = vector.broadcast %cst_75 : f32 to vector<32x1xf32>
    %164 = arith.divf %162, %163 : vector<32x1xf32>
    %165 = vector.broadcast %164 : vector<32x1xf32> to vector<32x128xf32>
    %166 = arith.subf %160, %165 : vector<32x128xf32>
    %167 = arith.mulf %166, %166 : vector<32x128xf32>
    %cst_76 = arith.constant dense<0.000000e+00> : vector<32xf32>
    %168 = vector.multi_reduction <add>, %167, %cst_76 [1] : vector<32x128xf32> to vector<32xf32>
    %169 = vector.shape_cast %168 : vector<32xf32> to vector<32x1xf32>
    %cst_77 = arith.constant 1.280000e+02 : f32
    %170 = vector.broadcast %cst_77 : f32 to vector<32x1xf32>
    %171 = arith.divf %169, %170 : vector<32x1xf32>
    %cst_78 = arith.constant 9.99999996E-13 : f32
    %172 = vector.broadcast %cst_78 : f32 to vector<32x1xf32>
    %173 = arith.addf %171, %172 : vector<32x1xf32>
    %174 = math.rsqrt %173 : vector<32x1xf32>
    %175 = vector.broadcast %174 : vector<32x1xf32> to vector<32x128xf32>
    %176 = arith.mulf %166, %175 : vector<32x128xf32>
    %177 = vector.broadcast %34 : vector<1x128xf32> to vector<32x128xf32>
    %178 = arith.mulf %176, %177 : vector<32x128xf32>
    %179 = vector.broadcast %36 : vector<1x128xf32> to vector<32x128xf32>
    %180 = arith.addf %178, %179 : vector<32x128xf32>
    %181 = arith.truncf %180 : vector<32x128xf32> to vector<32x128xbf16>
    %cst_79 = arith.constant dense<0.000000e+00> : vector<32x256xf32>
    %182 = tpu.matmul %181, %38, %cst_79 {dimension_numbers = #tpu.dot_dimension_numbers<[1], [0], [0], [1], [0, 0, 1, 1], [], []>} : vector<32x128xbf16>, vector<128x256xbf16>, vector<32x256xf32> -> vector<32x256xf32>
    %183 = vector.broadcast %40 : vector<1x256xf32> to vector<32x256xf32>
    %184 = arith.addf %182, %183 : vector<32x256xf32>
    %cst_80 = arith.constant 5.000000e-01 : f32
    %185 = vector.broadcast %cst_80 : f32 to vector<32x256xf32>
    %186 = arith.mulf %185, %184 : vector<32x256xf32>
    %cst_81 = arith.constant 4.471500e-02 : f32
    %187 = vector.broadcast %cst_81 : f32 to vector<32x256xf32>
    %188 = arith.mulf %187, %184 : vector<32x256xf32>
    %189 = arith.mulf %188, %184 : vector<32x256xf32>
    %190 = arith.mulf %189, %184 : vector<32x256xf32>
    %191 = arith.addf %184, %190 : vector<32x256xf32>
    %cst_82 = arith.constant 0.797884583 : f32
    %192 = vector.broadcast %cst_82 : f32 to vector<32x256xf32>
    %193 = arith.mulf %192, %191 : vector<32x256xf32>
    %194 = math.tanh %193 : vector<32x256xf32>
    %cst_83 = arith.constant 1.000000e+00 : f32
    %195 = vector.broadcast %cst_83 : f32 to vector<32x256xf32>
    %196 = arith.addf %195, %194 : vector<32x256xf32>
    %197 = arith.mulf %186, %196 : vector<32x256xf32>
    %198 = arith.truncf %197 : vector<32x256xf32> to vector<32x256xbf16>
    %cst_84 = arith.constant dense<0.000000e+00> : vector<32x128xf32>
    %199 = tpu.matmul %198, %42, %cst_84 {dimension_numbers = #tpu.dot_dimension_numbers<[1], [0], [0], [1], [0, 0, 1, 1], [], []>} : vector<32x256xbf16>, vector<256x128xbf16>, vector<32x128xf32> -> vector<32x128xf32>
    %200 = arith.addf %180, %199 : vector<32x128xf32>
    %201 = vector.broadcast %44 : vector<1x128xf32> to vector<32x128xf32>
    %202 = arith.addf %200, %201 : vector<32x128xf32>
    %cst_85 = arith.constant dense<0.000000e+00> : vector<32xf32>
    %203 = vector.multi_reduction <add>, %202, %cst_85 [1] : vector<32x128xf32> to vector<32xf32>
    %204 = vector.shape_cast %203 : vector<32xf32> to vector<32x1xf32>
    %cst_86 = arith.constant 1.280000e+02 : f32
    %205 = vector.broadcast %cst_86 : f32 to vector<32x1xf32>
    %206 = arith.divf %204, %205 : vector<32x1xf32>
    %207 = vector.broadcast %206 : vector<32x1xf32> to vector<32x128xf32>
    %208 = arith.subf %202, %207 : vector<32x128xf32>
    %209 = arith.mulf %208, %208 : vector<32x128xf32>
    %cst_87 = arith.constant dense<0.000000e+00> : vector<32xf32>
    %210 = vector.multi_reduction <add>, %209, %cst_87 [1] : vector<32x128xf32> to vector<32xf32>
    %211 = vector.shape_cast %210 : vector<32xf32> to vector<32x1xf32>
    %cst_88 = arith.constant 1.280000e+02 : f32
    %212 = vector.broadcast %cst_88 : f32 to vector<32x1xf32>
    %213 = arith.divf %211, %212 : vector<32x1xf32>
    %cst_89 = arith.constant 9.99999996E-13 : f32
    %214 = vector.broadcast %cst_89 : f32 to vector<32x1xf32>
    %215 = arith.addf %213, %214 : vector<32x1xf32>
    %216 = math.rsqrt %215 : vector<32x1xf32>
    %217 = vector.broadcast %216 : vector<32x1xf32> to vector<32x128xf32>
    %218 = arith.mulf %208, %217 : vector<32x128xf32>
    %219 = vector.broadcast %46 : vector<1x128xf32> to vector<32x128xf32>
    %220 = arith.mulf %218, %219 : vector<32x128xf32>
    %221 = vector.broadcast %48 : vector<1x128xf32> to vector<32x128xf32>
    %222 = arith.addf %220, %221 : vector<32x128xf32>
    %c0_90 = arith.constant 0 : index
    %c0_91 = arith.constant 0 : index
    %223 = vector.load %arg44[%c0_90, %c0_91] : memref<2x32xf32, #tpu.memory_space<vmem>>, vector<2x32xf32>
    %cst_92 = arith.constant dense<0.000000e+00> : vector<2x128xf32>
    %224 = tpu.matmul %223, %222, %cst_92 {dimension_numbers = #tpu.dot_dimension_numbers<[1], [0], [0], [1], [0, 0, 1, 1], [], []>} : vector<2x32xf32>, vector<32x128xf32>, vector<2x128xf32> -> vector<2x128xf32>
    %c0_93 = arith.constant 0 : index
    %c0_94 = arith.constant 0 : index
    %225 = vector.load %arg60[%c0_93, %c0_94] : memref<128x128xbf16, #tpu.memory_space<vmem>>, vector<128x128xbf16>
    %226 = arith.truncf %224 : vector<2x128xf32> to vector<2x128xbf16>
    %cst_95 = arith.constant dense<0.000000e+00> : vector<2x128xf32>
    %227 = tpu.matmul %226, %225, %cst_95 {dimension_numbers = #tpu.dot_dimension_numbers<[1], [0], [0], [1], [0, 0, 1, 1], [], []>} : vector<2x128xbf16>, vector<128x128xbf16>, vector<2x128xf32> -> vector<2x128xf32>
    %c0_96 = arith.constant 0 : index
    %c0_97 = arith.constant 0 : index
    %228 = vector.load %arg59[%c0_96, %c0_97] : memref<1x128xf32, #tpu.memory_space<vmem>>, vector<1x128xf32>
    %229 = vector.broadcast %228 : vector<1x128xf32> to vector<2x128xf32>
    %230 = arith.addf %227, %229 : vector<2x128xf32>
    %231 = math.tanh %230 : vector<2x128xf32>
    %c0_98 = arith.constant 0 : index
    %c0_99 = arith.constant 0 : index
    %232 = vector.load %arg3[%c0_98, %c0_99] : memref<128x128xf32, #tpu.memory_space<vmem>>, vector<128x128xf32>
    %c0_100 = arith.constant 0 : index
    %c0_101 = arith.constant 0 : index
    %c0_102 = arith.constant 0 : index
    %233 = vector.load %arg4[%c0_100, %c0_101, %c0_102] : memref<1x128x128xf32, #tpu.memory_space<vmem>>, vector<1x128x128xf32>
    %234 = vector.shape_cast %233 : vector<1x128x128xf32> to vector<128x128xf32>
    %c0_103 = arith.constant 0 : index
    %c0_104 = arith.constant 0 : index
    %235 = vector.load %arg25[%c0_103, %c0_104] : memref<1x128xf32, #tpu.memory_space<vmem>>, vector<1x128xf32>
    %c0_105 = arith.constant 0 : index
    %c0_106 = arith.constant 0 : index
    %236 = vector.load %arg24[%c0_105, %c0_106] : memref<1x128xf32, #tpu.memory_space<vmem>>, vector<1x128xf32>
    %cst_107 = arith.constant dense<0.000000e+00> : vector<128xf32>
    %237 = vector.multi_reduction <add>, %232, %cst_107 [1] : vector<128x128xf32> to vector<128xf32>
    %238 = vector.shape_cast %237 : vector<128xf32> to vector<128x1xf32>
    %cst_108 = arith.constant 1.280000e+02 : f32
    %239 = vector.broadcast %cst_108 : f32 to vector<128x1xf32>
    %240 = arith.divf %238, %239 : vector<128x1xf32>
    %241 = vector.broadcast %240 : vector<128x1xf32> to vector<128x128xf32>
    %242 = arith.subf %232, %241 : vector<128x128xf32>
    %243 = arith.mulf %242, %242 : vector<128x128xf32>
    %cst_109 = arith.constant dense<0.000000e+00> : vector<128xf32>
    %244 = vector.multi_reduction <add>, %243, %cst_109 [1] : vector<128x128xf32> to vector<128xf32>
    %245 = vector.shape_cast %244 : vector<128xf32> to vector<128x1xf32>
    %cst_110 = arith.constant 1.280000e+02 : f32
    %246 = vector.broadcast %cst_110 : f32 to vector<128x1xf32>
    %247 = arith.divf %245, %246 : vector<128x1xf32>
    %cst_111 = arith.constant 9.99999996E-13 : f32
    %248 = vector.broadcast %cst_111 : f32 to vector<128x1xf32>
    %249 = arith.addf %247, %248 : vector<128x1xf32>
    %250 = math.rsqrt %249 : vector<128x1xf32>
    %251 = vector.broadcast %250 : vector<128x1xf32> to vector<128x128xf32>
    %252 = arith.mulf %242, %251 : vector<128x128xf32>
    %253 = vector.broadcast %235 : vector<1x128xf32> to vector<128x128xf32>
    %254 = arith.mulf %252, %253 : vector<128x128xf32>
    %255 = vector.broadcast %236 : vector<1x128xf32> to vector<128x128xf32>
    %256 = arith.addf %254, %255 : vector<128x128xf32>
    %c0_112 = arith.constant 0 : index
    %c0_113 = arith.constant 0 : index
    %c0_114 = arith.constant 0 : index
    %257 = vector.load %arg37[%c0_112, %c0_113, %c0_114] : memref<1x128x384xbf16, #tpu.memory_space<vmem>>, vector<1x128x384xbf16>
    %258 = vector.shape_cast %257 : vector<1x128x384xbf16> to vector<128x384xbf16>
    %c0_115 = arith.constant 0 : index
    %c0_116 = arith.constant 0 : index
    %c0_117 = arith.constant 0 : index
    %259 = vector.load %arg29[%c0_115, %c0_116, %c0_117] : memref<1x1x384xf32, #tpu.memory_space<vmem>>, vector<1x1x384xf32>
    %260 = vector.shape_cast %259 : vector<1x1x384xf32> to vector<1x384xf32>
    %c0_118 = arith.constant 0 : index
    %c0_119 = arith.constant 0 : index
    %c0_120 = arith.constant 0 : index
    %261 = vector.load %arg36[%c0_118, %c0_119, %c0_120] : memref<1x128x128xbf16, #tpu.memory_space<vmem>>, vector<1x128x128xbf16>
    %262 = vector.shape_cast %261 : vector<1x128x128xbf16> to vector<128x128xbf16>
    %c0_121 = arith.constant 0 : index
    %c0_122 = arith.constant 0 : index
    %c0_123 = arith.constant 0 : index
    %263 = vector.load %arg28[%c0_121, %c0_122, %c0_123] : memref<1x1x128xf32, #tpu.memory_space<vmem>>, vector<1x1x128xf32>
    %264 = vector.shape_cast %263 : vector<1x1x128xf32> to vector<1x128xf32>
    %c0_124 = arith.constant 0 : index
    %c0_125 = arith.constant 0 : index
    %c0_126 = arith.constant 0 : index
    %265 = vector.load %arg31[%c0_124, %c0_125, %c0_126] : memref<1x1x128xf32, #tpu.memory_space<vmem>>, vector<1x1x128xf32>
    %266 = vector.shape_cast %265 : vector<1x1x128xf32> to vector<1x128xf32>
    %c0_127 = arith.constant 0 : index
    %c0_128 = arith.constant 0 : index
    %c0_129 = arith.constant 0 : index
    %267 = vector.load %arg30[%c0_127, %c0_128, %c0_129] : memref<1x1x128xf32, #tpu.memory_space<vmem>>, vector<1x1x128xf32>
    %268 = vector.shape_cast %267 : vector<1x1x128xf32> to vector<1x128xf32>
    %c0_130 = arith.constant 0 : index
    %c0_131 = arith.constant 0 : index
    %c0_132 = arith.constant 0 : index
    %269 = vector.load %arg34[%c0_130, %c0_131, %c0_132] : memref<1x128x256xbf16, #tpu.memory_space<vmem>>, vector<1x128x256xbf16>
    %270 = vector.shape_cast %269 : vector<1x128x256xbf16> to vector<128x256xbf16>
    %c0_133 = arith.constant 0 : index
    %c0_134 = arith.constant 0 : index
    %c0_135 = arith.constant 0 : index
    %271 = vector.load %arg26[%c0_133, %c0_134, %c0_135] : memref<1x1x256xf32, #tpu.memory_space<vmem>>, vector<1x1x256xf32>
    %272 = vector.shape_cast %271 : vector<1x1x256xf32> to vector<1x256xf32>
    %c0_136 = arith.constant 0 : index
    %c0_137 = arith.constant 0 : index
    %c0_138 = arith.constant 0 : index
    %273 = vector.load %arg35[%c0_136, %c0_137, %c0_138] : memref<1x256x128xbf16, #tpu.memory_space<vmem>>, vector<1x256x128xbf16>
    %274 = vector.shape_cast %273 : vector<1x256x128xbf16> to vector<256x128xbf16>
    %c0_139 = arith.constant 0 : index
    %c0_140 = arith.constant 0 : index
    %c0_141 = arith.constant 0 : index
    %275 = vector.load %arg27[%c0_139, %c0_140, %c0_141] : memref<1x1x128xf32, #tpu.memory_space<vmem>>, vector<1x1x128xf32>
    %276 = vector.shape_cast %275 : vector<1x1x128xf32> to vector<1x128xf32>
    %c0_142 = arith.constant 0 : index
    %c0_143 = arith.constant 0 : index
    %c0_144 = arith.constant 0 : index
    %277 = vector.load %arg33[%c0_142, %c0_143, %c0_144] : memref<1x1x128xf32, #tpu.memory_space<vmem>>, vector<1x1x128xf32>
    %278 = vector.shape_cast %277 : vector<1x1x128xf32> to vector<1x128xf32>
    %c0_145 = arith.constant 0 : index
    %c0_146 = arith.constant 0 : index
    %c0_147 = arith.constant 0 : index
    %279 = vector.load %arg32[%c0_145, %c0_146, %c0_147] : memref<1x1x128xf32, #tpu.memory_space<vmem>>, vector<1x1x128xf32>
    %280 = vector.shape_cast %279 : vector<1x1x128xf32> to vector<1x128xf32>
    %281 = arith.truncf %256 : vector<128x128xf32> to vector<128x128xbf16>
    %cst_148 = arith.constant dense<0.000000e+00> : vector<128x384xf32>
    %282 = tpu.matmul %281, %258, %cst_148 {dimension_numbers = #tpu.dot_dimension_numbers<[1], [0], [0], [1], [0, 0, 1, 1], [], []>} : vector<128x128xbf16>, vector<128x384xbf16>, vector<128x384xf32> -> vector<128x384xf32>
    %283 = vector.broadcast %260 : vector<1x384xf32> to vector<128x384xf32>
    %284 = arith.addf %282, %283 : vector<128x384xf32>
    %cst_149 = arith.constant 0.000000e+00 : f32
    %285 = vector.broadcast %cst_149 : f32 to vector<128x128xf32>
    %286 = vector.extract_strided_slice %284 {offsets = [0, 0], sizes = [128, 32], strides = [1, 1]} : vector<128x384xf32> to vector<128x32xf32>
    %287 = vector.extract_strided_slice %284 {offsets = [0, 128], sizes = [128, 32], strides = [1, 1]} : vector<128x384xf32> to vector<128x32xf32>
    %288 = vector.extract_strided_slice %284 {offsets = [0, 256], sizes = [128, 32], strides = [1, 1]} : vector<128x384xf32> to vector<128x32xf32>
    %289 = arith.truncf %286 : vector<128x32xf32> to vector<128x32xbf16>
    %290 = arith.truncf %287 : vector<128x32xf32> to vector<128x32xbf16>
    %cst_150 = arith.constant dense<0.000000e+00> : vector<128x128xf32>
    %291 = tpu.matmul %289, %290, %cst_150 {dimension_numbers = #tpu.dot_dimension_numbers<[1], [1], [0], [0], [0, 0, 1, 0], [], []>} : vector<128x32xbf16>, vector<128x32xbf16>, vector<128x128xf32> -> vector<128x128xf32>
    %cst_151 = arith.constant 0.176776692 : f32
    %292 = vector.broadcast %cst_151 : f32 to vector<128x128xf32>
    %293 = arith.mulf %291, %292 : vector<128x128xf32>
    %294 = arith.addf %293, %234 : vector<128x128xf32>
    %cst_152 = arith.constant dense<0xFF800000> : vector<128xf32>
    %295 = vector.multi_reduction <maximumf>, %294, %cst_152 [1] : vector<128x128xf32> to vector<128xf32>
    %296 = vector.shape_cast %295 : vector<128xf32> to vector<128x1xf32>
    %297 = vector.broadcast %296 : vector<128x1xf32> to vector<128x128xf32>
    %298 = arith.subf %294, %297 : vector<128x128xf32>
    %299 = math.exp %298 : vector<128x128xf32>
    %cst_153 = arith.constant dense<0.000000e+00> : vector<128xf32>
    %300 = vector.multi_reduction <add>, %299, %cst_153 [1] : vector<128x128xf32> to vector<128xf32>
    %301 = vector.shape_cast %300 : vector<128xf32> to vector<128x1xf32>
    %302 = tpu.reciprocal %301 {approx = true} : vector<128x1xf32> -> vector<128x1xf32>
    %303 = vector.broadcast %302 : vector<128x1xf32> to vector<128x128xf32>
    %304 = arith.mulf %299, %303 : vector<128x128xf32>
    %305 = arith.truncf %304 : vector<128x128xf32> to vector<128x128xbf16>
    %306 = arith.truncf %288 : vector<128x32xf32> to vector<128x32xbf16>
    %cst_154 = arith.constant dense<0.000000e+00> : vector<128x32xf32>
    %307 = tpu.matmul %305, %306, %cst_154 {dimension_numbers = #tpu.dot_dimension_numbers<[1], [0], [0], [1], [0, 0, 1, 1], [], []>} : vector<128x128xbf16>, vector<128x32xbf16>, vector<128x32xf32> -> vector<128x32xf32>
    %308 = vector.extract_strided_slice %262 {offsets = [0, 0], sizes = [32, 128], strides = [1, 1]} : vector<128x128xbf16> to vector<32x128xbf16>
    %309 = arith.truncf %307 : vector<128x32xf32> to vector<128x32xbf16>
    %cst_155 = arith.constant dense<0.000000e+00> : vector<128x128xf32>
    %310 = tpu.matmul %309, %308, %cst_155 {dimension_numbers = #tpu.dot_dimension_numbers<[1], [0], [0], [1], [0, 0, 1, 1], [], []>} : vector<128x32xbf16>, vector<32x128xbf16>, vector<128x128xf32> -> vector<128x128xf32>
    %311 = arith.addf %285, %310 : vector<128x128xf32>
    %312 = vector.extract_strided_slice %284 {offsets = [0, 32], sizes = [128, 32], strides = [1, 1]} : vector<128x384xf32> to vector<128x32xf32>
    %313 = vector.extract_strided_slice %284 {offsets = [0, 160], sizes = [128, 32], strides = [1, 1]} : vector<128x384xf32> to vector<128x32xf32>
    %314 = vector.extract_strided_slice %284 {offsets = [0, 288], sizes = [128, 32], strides = [1, 1]} : vector<128x384xf32> to vector<128x32xf32>
    %315 = arith.truncf %312 : vector<128x32xf32> to vector<128x32xbf16>
    %316 = arith.truncf %313 : vector<128x32xf32> to vector<128x32xbf16>
    %cst_156 = arith.constant dense<0.000000e+00> : vector<128x128xf32>
    %317 = tpu.matmul %315, %316, %cst_156 {dimension_numbers = #tpu.dot_dimension_numbers<[1], [1], [0], [0], [0, 0, 1, 0], [], []>} : vector<128x32xbf16>, vector<128x32xbf16>, vector<128x128xf32> -> vector<128x128xf32>
    %cst_157 = arith.constant 0.176776692 : f32
    %318 = vector.broadcast %cst_157 : f32 to vector<128x128xf32>
    %319 = arith.mulf %317, %318 : vector<128x128xf32>
    %320 = arith.addf %319, %234 : vector<128x128xf32>
    %cst_158 = arith.constant dense<0xFF800000> : vector<128xf32>
    %321 = vector.multi_reduction <maximumf>, %320, %cst_158 [1] : vector<128x128xf32> to vector<128xf32>
    %322 = vector.shape_cast %321 : vector<128xf32> to vector<128x1xf32>
    %323 = vector.broadcast %322 : vector<128x1xf32> to vector<128x128xf32>
    %324 = arith.subf %320, %323 : vector<128x128xf32>
    %325 = math.exp %324 : vector<128x128xf32>
    %cst_159 = arith.constant dense<0.000000e+00> : vector<128xf32>
    %326 = vector.multi_reduction <add>, %325, %cst_159 [1] : vector<128x128xf32> to vector<128xf32>
    %327 = vector.shape_cast %326 : vector<128xf32> to vector<128x1xf32>
    %328 = tpu.reciprocal %327 {approx = true} : vector<128x1xf32> -> vector<128x1xf32>
    %329 = vector.broadcast %328 : vector<128x1xf32> to vector<128x128xf32>
    %330 = arith.mulf %325, %329 : vector<128x128xf32>
    %331 = arith.truncf %330 : vector<128x128xf32> to vector<128x128xbf16>
    %332 = arith.truncf %314 : vector<128x32xf32> to vector<128x32xbf16>
    %cst_160 = arith.constant dense<0.000000e+00> : vector<128x32xf32>
    %333 = tpu.matmul %331, %332, %cst_160 {dimension_numbers = #tpu.dot_dimension_numbers<[1], [0], [0], [1], [0, 0, 1, 1], [], []>} : vector<128x128xbf16>, vector<128x32xbf16>, vector<128x32xf32> -> vector<128x32xf32>
    %334 = vector.extract_strided_slice %262 {offsets = [32, 0], sizes = [32, 128], strides = [1, 1]} : vector<128x128xbf16> to vector<32x128xbf16>
    %335 = arith.truncf %333 : vector<128x32xf32> to vector<128x32xbf16>
    %cst_161 = arith.constant dense<0.000000e+00> : vector<128x128xf32>
    %336 = tpu.matmul %335, %334, %cst_161 {dimension_numbers = #tpu.dot_dimension_numbers<[1], [0], [0], [1], [0, 0, 1, 1], [], []>} : vector<128x32xbf16>, vector<32x128xbf16>, vector<128x128xf32> -> vector<128x128xf32>
    %337 = arith.addf %311, %336 : vector<128x128xf32>
    %338 = vector.extract_strided_slice %284 {offsets = [0, 64], sizes = [128, 32], strides = [1, 1]} : vector<128x384xf32> to vector<128x32xf32>
    %339 = vector.extract_strided_slice %284 {offsets = [0, 192], sizes = [128, 32], strides = [1, 1]} : vector<128x384xf32> to vector<128x32xf32>
    %340 = vector.extract_strided_slice %284 {offsets = [0, 320], sizes = [128, 32], strides = [1, 1]} : vector<128x384xf32> to vector<128x32xf32>
    %341 = arith.truncf %338 : vector<128x32xf32> to vector<128x32xbf16>
    %342 = arith.truncf %339 : vector<128x32xf32> to vector<128x32xbf16>
    %cst_162 = arith.constant dense<0.000000e+00> : vector<128x128xf32>
    %343 = tpu.matmul %341, %342, %cst_162 {dimension_numbers = #tpu.dot_dimension_numbers<[1], [1], [0], [0], [0, 0, 1, 0], [], []>} : vector<128x32xbf16>, vector<128x32xbf16>, vector<128x128xf32> -> vector<128x128xf32>
    %cst_163 = arith.constant 0.176776692 : f32
    %344 = vector.broadcast %cst_163 : f32 to vector<128x128xf32>
    %345 = arith.mulf %343, %344 : vector<128x128xf32>
    %346 = arith.addf %345, %234 : vector<128x128xf32>
    %cst_164 = arith.constant dense<0xFF800000> : vector<128xf32>
    %347 = vector.multi_reduction <maximumf>, %346, %cst_164 [1] : vector<128x128xf32> to vector<128xf32>
    %348 = vector.shape_cast %347 : vector<128xf32> to vector<128x1xf32>
    %349 = vector.broadcast %348 : vector<128x1xf32> to vector<128x128xf32>
    %350 = arith.subf %346, %349 : vector<128x128xf32>
    %351 = math.exp %350 : vector<128x128xf32>
    %cst_165 = arith.constant dense<0.000000e+00> : vector<128xf32>
    %352 = vector.multi_reduction <add>, %351, %cst_165 [1] : vector<128x128xf32> to vector<128xf32>
    %353 = vector.shape_cast %352 : vector<128xf32> to vector<128x1xf32>
    %354 = tpu.reciprocal %353 {approx = true} : vector<128x1xf32> -> vector<128x1xf32>
    %355 = vector.broadcast %354 : vector<128x1xf32> to vector<128x128xf32>
    %356 = arith.mulf %351, %355 : vector<128x128xf32>
    %357 = arith.truncf %356 : vector<128x128xf32> to vector<128x128xbf16>
    %358 = arith.truncf %340 : vector<128x32xf32> to vector<128x32xbf16>
    %cst_166 = arith.constant dense<0.000000e+00> : vector<128x32xf32>
    %359 = tpu.matmul %357, %358, %cst_166 {dimension_numbers = #tpu.dot_dimension_numbers<[1], [0], [0], [1], [0, 0, 1, 1], [], []>} : vector<128x128xbf16>, vector<128x32xbf16>, vector<128x32xf32> -> vector<128x32xf32>
    %360 = vector.extract_strided_slice %262 {offsets = [64, 0], sizes = [32, 128], strides = [1, 1]} : vector<128x128xbf16> to vector<32x128xbf16>
    %361 = arith.truncf %359 : vector<128x32xf32> to vector<128x32xbf16>
    %cst_167 = arith.constant dense<0.000000e+00> : vector<128x128xf32>
    %362 = tpu.matmul %361, %360, %cst_167 {dimension_numbers = #tpu.dot_dimension_numbers<[1], [0], [0], [1], [0, 0, 1, 1], [], []>} : vector<128x32xbf16>, vector<32x128xbf16>, vector<128x128xf32> -> vector<128x128xf32>
    %363 = arith.addf %337, %362 : vector<128x128xf32>
    %364 = vector.extract_strided_slice %284 {offsets = [0, 96], sizes = [128, 32], strides = [1, 1]} : vector<128x384xf32> to vector<128x32xf32>
    %365 = vector.extract_strided_slice %284 {offsets = [0, 224], sizes = [128, 32], strides = [1, 1]} : vector<128x384xf32> to vector<128x32xf32>
    %366 = vector.extract_strided_slice %284 {offsets = [0, 352], sizes = [128, 32], strides = [1, 1]} : vector<128x384xf32> to vector<128x32xf32>
    %367 = arith.truncf %364 : vector<128x32xf32> to vector<128x32xbf16>
    %368 = arith.truncf %365 : vector<128x32xf32> to vector<128x32xbf16>
    %cst_168 = arith.constant dense<0.000000e+00> : vector<128x128xf32>
    %369 = tpu.matmul %367, %368, %cst_168 {dimension_numbers = #tpu.dot_dimension_numbers<[1], [1], [0], [0], [0, 0, 1, 0], [], []>} : vector<128x32xbf16>, vector<128x32xbf16>, vector<128x128xf32> -> vector<128x128xf32>
    %cst_169 = arith.constant 0.176776692 : f32
    %370 = vector.broadcast %cst_169 : f32 to vector<128x128xf32>
    %371 = arith.mulf %369, %370 : vector<128x128xf32>
    %372 = arith.addf %371, %234 : vector<128x128xf32>
    %cst_170 = arith.constant dense<0xFF800000> : vector<128xf32>
    %373 = vector.multi_reduction <maximumf>, %372, %cst_170 [1] : vector<128x128xf32> to vector<128xf32>
    %374 = vector.shape_cast %373 : vector<128xf32> to vector<128x1xf32>
    %375 = vector.broadcast %374 : vector<128x1xf32> to vector<128x128xf32>
    %376 = arith.subf %372, %375 : vector<128x128xf32>
    %377 = math.exp %376 : vector<128x128xf32>
    %cst_171 = arith.constant dense<0.000000e+00> : vector<128xf32>
    %378 = vector.multi_reduction <add>, %377, %cst_171 [1] : vector<128x128xf32> to vector<128xf32>
    %379 = vector.shape_cast %378 : vector<128xf32> to vector<128x1xf32>
    %380 = tpu.reciprocal %379 {approx = true} : vector<128x1xf32> -> vector<128x1xf32>
    %381 = vector.broadcast %380 : vector<128x1xf32> to vector<128x128xf32>
    %382 = arith.mulf %377, %381 : vector<128x128xf32>
    %383 = arith.truncf %382 : vector<128x128xf32> to vector<128x128xbf16>
    %384 = arith.truncf %366 : vector<128x32xf32> to vector<128x32xbf16>
    %cst_172 = arith.constant dense<0.000000e+00> : vector<128x32xf32>
    %385 = tpu.matmul %383, %384, %cst_172 {dimension_numbers = #tpu.dot_dimension_numbers<[1], [0], [0], [1], [0, 0, 1, 1], [], []>} : vector<128x128xbf16>, vector<128x32xbf16>, vector<128x32xf32> -> vector<128x32xf32>
    %386 = vector.extract_strided_slice %262 {offsets = [96, 0], sizes = [32, 128], strides = [1, 1]} : vector<128x128xbf16> to vector<32x128xbf16>
    %387 = arith.truncf %385 : vector<128x32xf32> to vector<128x32xbf16>
    %cst_173 = arith.constant dense<0.000000e+00> : vector<128x128xf32>
    %388 = tpu.matmul %387, %386, %cst_173 {dimension_numbers = #tpu.dot_dimension_numbers<[1], [0], [0], [1], [0, 0, 1, 1], [], []>} : vector<128x32xbf16>, vector<32x128xbf16>, vector<128x128xf32> -> vector<128x128xf32>
    %389 = arith.addf %363, %388 : vector<128x128xf32>
    %390 = arith.addf %256, %389 : vector<128x128xf32>
    %391 = vector.broadcast %264 : vector<1x128xf32> to vector<128x128xf32>
    %392 = arith.addf %390, %391 : vector<128x128xf32>
    %cst_174 = arith.constant dense<0.000000e+00> : vector<128xf32>
    %393 = vector.multi_reduction <add>, %392, %cst_174 [1] : vector<128x128xf32> to vector<128xf32>
    %394 = vector.shape_cast %393 : vector<128xf32> to vector<128x1xf32>
    %cst_175 = arith.constant 1.280000e+02 : f32
    %395 = vector.broadcast %cst_175 : f32 to vector<128x1xf32>
    %396 = arith.divf %394, %395 : vector<128x1xf32>
    %397 = vector.broadcast %396 : vector<128x1xf32> to vector<128x128xf32>
    %398 = arith.subf %392, %397 : vector<128x128xf32>
    %399 = arith.mulf %398, %398 : vector<128x128xf32>
    %cst_176 = arith.constant dense<0.000000e+00> : vector<128xf32>
    %400 = vector.multi_reduction <add>, %399, %cst_176 [1] : vector<128x128xf32> to vector<128xf32>
    %401 = vector.shape_cast %400 : vector<128xf32> to vector<128x1xf32>
    %cst_177 = arith.constant 1.280000e+02 : f32
    %402 = vector.broadcast %cst_177 : f32 to vector<128x1xf32>
    %403 = arith.divf %401, %402 : vector<128x1xf32>
    %cst_178 = arith.constant 9.99999996E-13 : f32
    %404 = vector.broadcast %cst_178 : f32 to vector<128x1xf32>
    %405 = arith.addf %403, %404 : vector<128x1xf32>
    %406 = math.rsqrt %405 : vector<128x1xf32>
    %407 = vector.broadcast %406 : vector<128x1xf32> to vector<128x128xf32>
    %408 = arith.mulf %398, %407 : vector<128x128xf32>
    %409 = vector.broadcast %266 : vector<1x128xf32> to vector<128x128xf32>
    %410 = arith.mulf %408, %409 : vector<128x128xf32>
    %411 = vector.broadcast %268 : vector<1x128xf32> to vector<128x128xf32>
    %412 = arith.addf %410, %411 : vector<128x128xf32>
    %413 = arith.truncf %412 : vector<128x128xf32> to vector<128x128xbf16>
    %cst_179 = arith.constant dense<0.000000e+00> : vector<128x256xf32>
    %414 = tpu.matmul %413, %270, %cst_179 {dimension_numbers = #tpu.dot_dimension_numbers<[1], [0], [0], [1], [0, 0, 1, 1], [], []>} : vector<128x128xbf16>, vector<128x256xbf16>, vector<128x256xf32> -> vector<128x256xf32>
    %415 = vector.broadcast %272 : vector<1x256xf32> to vector<128x256xf32>
    %416 = arith.addf %414, %415 : vector<128x256xf32>
    %cst_180 = arith.constant 5.000000e-01 : f32
    %417 = vector.broadcast %cst_180 : f32 to vector<128x256xf32>
    %418 = arith.mulf %417, %416 : vector<128x256xf32>
    %cst_181 = arith.constant 4.471500e-02 : f32
    %419 = vector.broadcast %cst_181 : f32 to vector<128x256xf32>
    %420 = arith.mulf %419, %416 : vector<128x256xf32>
    %421 = arith.mulf %420, %416 : vector<128x256xf32>
    %422 = arith.mulf %421, %416 : vector<128x256xf32>
    %423 = arith.addf %416, %422 : vector<128x256xf32>
    %cst_182 = arith.constant 0.797884583 : f32
    %424 = vector.broadcast %cst_182 : f32 to vector<128x256xf32>
    %425 = arith.mulf %424, %423 : vector<128x256xf32>
    %426 = math.tanh %425 : vector<128x256xf32>
    %cst_183 = arith.constant 1.000000e+00 : f32
    %427 = vector.broadcast %cst_183 : f32 to vector<128x256xf32>
    %428 = arith.addf %427, %426 : vector<128x256xf32>
    %429 = arith.mulf %418, %428 : vector<128x256xf32>
    %430 = arith.truncf %429 : vector<128x256xf32> to vector<128x256xbf16>
    %cst_184 = arith.constant dense<0.000000e+00> : vector<128x128xf32>
    %431 = tpu.matmul %430, %274, %cst_184 {dimension_numbers = #tpu.dot_dimension_numbers<[1], [0], [0], [1], [0, 0, 1, 1], [], []>} : vector<128x256xbf16>, vector<256x128xbf16>, vector<128x128xf32> -> vector<128x128xf32>
    %432 = arith.addf %412, %431 : vector<128x128xf32>
    %433 = vector.broadcast %276 : vector<1x128xf32> to vector<128x128xf32>
    %434 = arith.addf %432, %433 : vector<128x128xf32>
    %cst_185 = arith.constant dense<0.000000e+00> : vector<128xf32>
    %435 = vector.multi_reduction <add>, %434, %cst_185 [1] : vector<128x128xf32> to vector<128xf32>
    %436 = vector.shape_cast %435 : vector<128xf32> to vector<128x1xf32>
    %cst_186 = arith.constant 1.280000e+02 : f32
    %437 = vector.broadcast %cst_186 : f32 to vector<128x1xf32>
    %438 = arith.divf %436, %437 : vector<128x1xf32>
    %439 = vector.broadcast %438 : vector<128x1xf32> to vector<128x128xf32>
    %440 = arith.subf %434, %439 : vector<128x128xf32>
    %441 = arith.mulf %440, %440 : vector<128x128xf32>
    %cst_187 = arith.constant dense<0.000000e+00> : vector<128xf32>
    %442 = vector.multi_reduction <add>, %441, %cst_187 [1] : vector<128x128xf32> to vector<128xf32>
    %443 = vector.shape_cast %442 : vector<128xf32> to vector<128x1xf32>
    %cst_188 = arith.constant 1.280000e+02 : f32
    %444 = vector.broadcast %cst_188 : f32 to vector<128x1xf32>
    %445 = arith.divf %443, %444 : vector<128x1xf32>
    %cst_189 = arith.constant 9.99999996E-13 : f32
    %446 = vector.broadcast %cst_189 : f32 to vector<128x1xf32>
    %447 = arith.addf %445, %446 : vector<128x1xf32>
    %448 = math.rsqrt %447 : vector<128x1xf32>
    %449 = vector.broadcast %448 : vector<128x1xf32> to vector<128x128xf32>
    %450 = arith.mulf %440, %449 : vector<128x128xf32>
    %451 = vector.broadcast %278 : vector<1x128xf32> to vector<128x128xf32>
    %452 = arith.mulf %450, %451 : vector<128x128xf32>
    %453 = vector.broadcast %280 : vector<1x128xf32> to vector<128x128xf32>
    %454 = arith.addf %452, %453 : vector<128x128xf32>
    %c0_190 = arith.constant 0 : index
    %c0_191 = arith.constant 0 : index
    %455 = vector.load %arg23[%c0_190, %c0_191] : memref<8x128xf32, #tpu.memory_space<vmem>>, vector<8x128xf32>
    %cst_192 = arith.constant dense<0.000000e+00> : vector<8x128xf32>
    %456 = tpu.matmul %455, %454, %cst_192 {dimension_numbers = #tpu.dot_dimension_numbers<[1], [0], [0], [1], [0, 0, 1, 1], [], []>} : vector<8x128xf32>, vector<128x128xf32>, vector<8x128xf32> -> vector<8x128xf32>
    %c0_193 = arith.constant 0 : index
    %c0_194 = arith.constant 0 : index
    %457 = vector.load %arg39[%c0_193, %c0_194] : memref<128x128xbf16, #tpu.memory_space<vmem>>, vector<128x128xbf16>
    %458 = arith.truncf %456 : vector<8x128xf32> to vector<8x128xbf16>
    %cst_195 = arith.constant dense<0.000000e+00> : vector<8x128xf32>
    %459 = tpu.matmul %458, %457, %cst_195 {dimension_numbers = #tpu.dot_dimension_numbers<[1], [0], [0], [1], [0, 0, 1, 1], [], []>} : vector<8x128xbf16>, vector<128x128xbf16>, vector<8x128xf32> -> vector<8x128xf32>
    %c0_196 = arith.constant 0 : index
    %c0_197 = arith.constant 0 : index
    %460 = vector.load %arg38[%c0_196, %c0_197] : memref<1x128xf32, #tpu.memory_space<vmem>>, vector<1x128xf32>
    %461 = vector.broadcast %460 : vector<1x128xf32> to vector<8x128xf32>
    %462 = arith.addf %459, %461 : vector<8x128xf32>
    %463 = math.tanh %462 : vector<8x128xf32>
    %464 = tpu.concatenate %231, %463 in 0 : vector<2x128xf32>, vector<8x128xf32> -> vector<10x128xf32>
    %c0_198 = arith.constant 0 : index
    %c0_199 = arith.constant 0 : index
    %465 = vector.load %arg21[%c0_198, %c0_199] : memref<10x10xf32, #tpu.memory_space<vmem>>, vector<10x10xf32>
    %cst_200 = arith.constant dense<0.000000e+00> : vector<10x128xf32>
    %466 = tpu.matmul %465, %464, %cst_200 {dimension_numbers = #tpu.dot_dimension_numbers<[1], [0], [0], [1], [0, 0, 1, 1], [], []>} : vector<10x10xf32>, vector<10x128xf32>, vector<10x128xf32> -> vector<10x128xf32>
    %c0_201 = arith.constant 0 : index
    %c0_202 = arith.constant 0 : index
    %467 = vector.load %arg20[%c0_201, %c0_202] : memref<10x128xf32, #tpu.memory_space<vmem>>, vector<10x128xf32>
    %468 = arith.addf %466, %467 : vector<10x128xf32>
    %469 = arith.addf %466, %468 : vector<10x128xf32>
    %c0_203 = arith.constant 0 : index
    %c0_204 = arith.constant 0 : index
    %470 = vector.load %arg7[%c0_203, %c0_204] : memref<1x128xf32, #tpu.memory_space<vmem>>, vector<1x128xf32>
    %c0_205 = arith.constant 0 : index
    %c0_206 = arith.constant 0 : index
    %471 = vector.load %arg6[%c0_205, %c0_206] : memref<1x128xf32, #tpu.memory_space<vmem>>, vector<1x128xf32>
    %cst_207 = arith.constant dense<0.000000e+00> : vector<10xf32>
    %472 = vector.multi_reduction <add>, %469, %cst_207 [1] : vector<10x128xf32> to vector<10xf32>
    %473 = vector.shape_cast %472 : vector<10xf32> to vector<10x1xf32>
    %cst_208 = arith.constant 1.280000e+02 : f32
    %474 = vector.broadcast %cst_208 : f32 to vector<10x1xf32>
    %475 = arith.divf %473, %474 : vector<10x1xf32>
    %476 = vector.broadcast %475 : vector<10x1xf32> to vector<10x128xf32>
    %477 = arith.subf %469, %476 : vector<10x128xf32>
    %478 = arith.mulf %477, %477 : vector<10x128xf32>
    %cst_209 = arith.constant dense<0.000000e+00> : vector<10xf32>
    %479 = vector.multi_reduction <add>, %478, %cst_209 [1] : vector<10x128xf32> to vector<10xf32>
    %480 = vector.shape_cast %479 : vector<10xf32> to vector<10x1xf32>
    %cst_210 = arith.constant 1.280000e+02 : f32
    %481 = vector.broadcast %cst_210 : f32 to vector<10x1xf32>
    %482 = arith.divf %480, %481 : vector<10x1xf32>
    %cst_211 = arith.constant 9.99999996E-13 : f32
    %483 = vector.broadcast %cst_211 : f32 to vector<10x1xf32>
    %484 = arith.addf %482, %483 : vector<10x1xf32>
    %485 = math.rsqrt %484 : vector<10x1xf32>
    %486 = vector.broadcast %485 : vector<10x1xf32> to vector<10x128xf32>
    %487 = arith.mulf %477, %486 : vector<10x128xf32>
    %488 = vector.broadcast %470 : vector<1x128xf32> to vector<10x128xf32>
    %489 = arith.mulf %487, %488 : vector<10x128xf32>
    %490 = vector.broadcast %471 : vector<1x128xf32> to vector<10x128xf32>
    %491 = arith.addf %489, %490 : vector<10x128xf32>
    %c0_212 = arith.constant 0 : index
    %c0_213 = arith.constant 0 : index
    %492 = vector.load %arg5[%c0_212, %c0_213] : memref<10x10xf32, #tpu.memory_space<vmem>>, vector<10x10xf32>
    %c0_214 = arith.constant 0 : index
    %c0_215 = arith.constant 0 : index
    %c0_216 = arith.constant 0 : index
    %493 = vector.load %arg19[%c0_214, %c0_215, %c0_216] : memref<1x128x384xbf16, #tpu.memory_space<vmem>>, vector<1x128x384xbf16>
    %494 = vector.shape_cast %493 : vector<1x128x384xbf16> to vector<128x384xbf16>
    %c0_217 = arith.constant 0 : index
    %c0_218 = arith.constant 0 : index
    %c0_219 = arith.constant 0 : index
    %495 = vector.load %arg11[%c0_217, %c0_218, %c0_219] : memref<1x1x384xf32, #tpu.memory_space<vmem>>, vector<1x1x384xf32>
    %496 = vector.shape_cast %495 : vector<1x1x384xf32> to vector<1x384xf32>
    %c0_220 = arith.constant 0 : index
    %c0_221 = arith.constant 0 : index
    %c0_222 = arith.constant 0 : index
    %497 = vector.load %arg18[%c0_220, %c0_221, %c0_222] : memref<1x128x128xbf16, #tpu.memory_space<vmem>>, vector<1x128x128xbf16>
    %498 = vector.shape_cast %497 : vector<1x128x128xbf16> to vector<128x128xbf16>
    %c0_223 = arith.constant 0 : index
    %c0_224 = arith.constant 0 : index
    %c0_225 = arith.constant 0 : index
    %499 = vector.load %arg10[%c0_223, %c0_224, %c0_225] : memref<1x1x128xf32, #tpu.memory_space<vmem>>, vector<1x1x128xf32>
    %500 = vector.shape_cast %499 : vector<1x1x128xf32> to vector<1x128xf32>
    %c0_226 = arith.constant 0 : index
    %c0_227 = arith.constant 0 : index
    %c0_228 = arith.constant 0 : index
    %501 = vector.load %arg13[%c0_226, %c0_227, %c0_228] : memref<1x1x128xf32, #tpu.memory_space<vmem>>, vector<1x1x128xf32>
    %502 = vector.shape_cast %501 : vector<1x1x128xf32> to vector<1x128xf32>
    %c0_229 = arith.constant 0 : index
    %c0_230 = arith.constant 0 : index
    %c0_231 = arith.constant 0 : index
    %503 = vector.load %arg12[%c0_229, %c0_230, %c0_231] : memref<1x1x128xf32, #tpu.memory_space<vmem>>, vector<1x1x128xf32>
    %504 = vector.shape_cast %503 : vector<1x1x128xf32> to vector<1x128xf32>
    %c0_232 = arith.constant 0 : index
    %c0_233 = arith.constant 0 : index
    %c0_234 = arith.constant 0 : index
    %505 = vector.load %arg16[%c0_232, %c0_233, %c0_234] : memref<1x128x256xbf16, #tpu.memory_space<vmem>>, vector<1x128x256xbf16>
    %506 = vector.shape_cast %505 : vector<1x128x256xbf16> to vector<128x256xbf16>
    %c0_235 = arith.constant 0 : index
    %c0_236 = arith.constant 0 : index
    %c0_237 = arith.constant 0 : index
    %507 = vector.load %arg8[%c0_235, %c0_236, %c0_237] : memref<1x1x256xf32, #tpu.memory_space<vmem>>, vector<1x1x256xf32>
    %508 = vector.shape_cast %507 : vector<1x1x256xf32> to vector<1x256xf32>
    %c0_238 = arith.constant 0 : index
    %c0_239 = arith.constant 0 : index
    %c0_240 = arith.constant 0 : index
    %509 = vector.load %arg17[%c0_238, %c0_239, %c0_240] : memref<1x256x128xbf16, #tpu.memory_space<vmem>>, vector<1x256x128xbf16>
    %510 = vector.shape_cast %509 : vector<1x256x128xbf16> to vector<256x128xbf16>
    %c0_241 = arith.constant 0 : index
    %c0_242 = arith.constant 0 : index
    %c0_243 = arith.constant 0 : index
    %511 = vector.load %arg9[%c0_241, %c0_242, %c0_243] : memref<1x1x128xf32, #tpu.memory_space<vmem>>, vector<1x1x128xf32>
    %512 = vector.shape_cast %511 : vector<1x1x128xf32> to vector<1x128xf32>
    %c0_244 = arith.constant 0 : index
    %c0_245 = arith.constant 0 : index
    %c0_246 = arith.constant 0 : index
    %513 = vector.load %arg15[%c0_244, %c0_245, %c0_246] : memref<1x1x128xf32, #tpu.memory_space<vmem>>, vector<1x1x128xf32>
    %514 = vector.shape_cast %513 : vector<1x1x128xf32> to vector<1x128xf32>
    %c0_247 = arith.constant 0 : index
    %c0_248 = arith.constant 0 : index
    %c0_249 = arith.constant 0 : index
    %515 = vector.load %arg14[%c0_247, %c0_248, %c0_249] : memref<1x1x128xf32, #tpu.memory_space<vmem>>, vector<1x1x128xf32>
    %516 = vector.shape_cast %515 : vector<1x1x128xf32> to vector<1x128xf32>
    %517 = arith.truncf %491 : vector<10x128xf32> to vector<10x128xbf16>
    %cst_250 = arith.constant dense<0.000000e+00> : vector<10x384xf32>
    %518 = tpu.matmul %517, %494, %cst_250 {dimension_numbers = #tpu.dot_dimension_numbers<[1], [0], [0], [1], [0, 0, 1, 1], [], []>} : vector<10x128xbf16>, vector<128x384xbf16>, vector<10x384xf32> -> vector<10x384xf32>
    %519 = vector.broadcast %496 : vector<1x384xf32> to vector<10x384xf32>
    %520 = arith.addf %518, %519 : vector<10x384xf32>
    %cst_251 = arith.constant 0.000000e+00 : f32
    %521 = vector.broadcast %cst_251 : f32 to vector<10x128xf32>
    %522 = vector.extract_strided_slice %520 {offsets = [0, 0], sizes = [10, 32], strides = [1, 1]} : vector<10x384xf32> to vector<10x32xf32>
    %523 = vector.extract_strided_slice %520 {offsets = [0, 128], sizes = [10, 32], strides = [1, 1]} : vector<10x384xf32> to vector<10x32xf32>
    %524 = vector.extract_strided_slice %520 {offsets = [0, 256], sizes = [10, 32], strides = [1, 1]} : vector<10x384xf32> to vector<10x32xf32>
    %525 = arith.truncf %522 : vector<10x32xf32> to vector<10x32xbf16>
    %526 = arith.truncf %523 : vector<10x32xf32> to vector<10x32xbf16>
    %cst_252 = arith.constant dense<0.000000e+00> : vector<10x10xf32>
    %527 = tpu.matmul %525, %526, %cst_252 {dimension_numbers = #tpu.dot_dimension_numbers<[1], [1], [0], [0], [0, 0, 1, 0], [], []>} : vector<10x32xbf16>, vector<10x32xbf16>, vector<10x10xf32> -> vector<10x10xf32>
    %cst_253 = arith.constant 0.176776692 : f32
    %528 = vector.broadcast %cst_253 : f32 to vector<10x10xf32>
    %529 = arith.mulf %527, %528 : vector<10x10xf32>
    %530 = arith.addf %529, %492 : vector<10x10xf32>
    %cst_254 = arith.constant dense<0xFF800000> : vector<10xf32>
    %531 = vector.multi_reduction <maximumf>, %530, %cst_254 [1] : vector<10x10xf32> to vector<10xf32>
    %532 = vector.shape_cast %531 : vector<10xf32> to vector<10x1xf32>
    %533 = vector.broadcast %532 : vector<10x1xf32> to vector<10x10xf32>
    %534 = arith.subf %530, %533 : vector<10x10xf32>
    %535 = math.exp %534 : vector<10x10xf32>
    %cst_255 = arith.constant dense<0.000000e+00> : vector<10xf32>
    %536 = vector.multi_reduction <add>, %535, %cst_255 [1] : vector<10x10xf32> to vector<10xf32>
    %537 = vector.shape_cast %536 : vector<10xf32> to vector<10x1xf32>
    %538 = tpu.reciprocal %537 {approx = true} : vector<10x1xf32> -> vector<10x1xf32>
    %539 = vector.broadcast %538 : vector<10x1xf32> to vector<10x10xf32>
    %540 = arith.mulf %535, %539 : vector<10x10xf32>
    %541 = arith.truncf %540 : vector<10x10xf32> to vector<10x10xbf16>
    %542 = arith.truncf %524 : vector<10x32xf32> to vector<10x32xbf16>
    %cst_256 = arith.constant dense<0.000000e+00> : vector<10x32xf32>
    %543 = tpu.matmul %541, %542, %cst_256 {dimension_numbers = #tpu.dot_dimension_numbers<[1], [0], [0], [1], [0, 0, 1, 1], [], []>} : vector<10x10xbf16>, vector<10x32xbf16>, vector<10x32xf32> -> vector<10x32xf32>
    %544 = vector.extract_strided_slice %498 {offsets = [0, 0], sizes = [32, 128], strides = [1, 1]} : vector<128x128xbf16> to vector<32x128xbf16>
    %545 = arith.truncf %543 : vector<10x32xf32> to vector<10x32xbf16>
    %cst_257 = arith.constant dense<0.000000e+00> : vector<10x128xf32>
    %546 = tpu.matmul %545, %544, %cst_257 {dimension_numbers = #tpu.dot_dimension_numbers<[1], [0], [0], [1], [0, 0, 1, 1], [], []>} : vector<10x32xbf16>, vector<32x128xbf16>, vector<10x128xf32> -> vector<10x128xf32>
    %547 = arith.addf %521, %546 : vector<10x128xf32>
    %548 = vector.extract_strided_slice %520 {offsets = [0, 32], sizes = [10, 32], strides = [1, 1]} : vector<10x384xf32> to vector<10x32xf32>
    %549 = vector.extract_strided_slice %520 {offsets = [0, 160], sizes = [10, 32], strides = [1, 1]} : vector<10x384xf32> to vector<10x32xf32>
    %550 = vector.extract_strided_slice %520 {offsets = [0, 288], sizes = [10, 32], strides = [1, 1]} : vector<10x384xf32> to vector<10x32xf32>
    %551 = arith.truncf %548 : vector<10x32xf32> to vector<10x32xbf16>
    %552 = arith.truncf %549 : vector<10x32xf32> to vector<10x32xbf16>
    %cst_258 = arith.constant dense<0.000000e+00> : vector<10x10xf32>
    %553 = tpu.matmul %551, %552, %cst_258 {dimension_numbers = #tpu.dot_dimension_numbers<[1], [1], [0], [0], [0, 0, 1, 0], [], []>} : vector<10x32xbf16>, vector<10x32xbf16>, vector<10x10xf32> -> vector<10x10xf32>
    %cst_259 = arith.constant 0.176776692 : f32
    %554 = vector.broadcast %cst_259 : f32 to vector<10x10xf32>
    %555 = arith.mulf %553, %554 : vector<10x10xf32>
    %556 = arith.addf %555, %492 : vector<10x10xf32>
    %cst_260 = arith.constant dense<0xFF800000> : vector<10xf32>
    %557 = vector.multi_reduction <maximumf>, %556, %cst_260 [1] : vector<10x10xf32> to vector<10xf32>
    %558 = vector.shape_cast %557 : vector<10xf32> to vector<10x1xf32>
    %559 = vector.broadcast %558 : vector<10x1xf32> to vector<10x10xf32>
    %560 = arith.subf %556, %559 : vector<10x10xf32>
    %561 = math.exp %560 : vector<10x10xf32>
    %cst_261 = arith.constant dense<0.000000e+00> : vector<10xf32>
    %562 = vector.multi_reduction <add>, %561, %cst_261 [1] : vector<10x10xf32> to vector<10xf32>
    %563 = vector.shape_cast %562 : vector<10xf32> to vector<10x1xf32>
    %564 = tpu.reciprocal %563 {approx = true} : vector<10x1xf32> -> vector<10x1xf32>
    %565 = vector.broadcast %564 : vector<10x1xf32> to vector<10x10xf32>
    %566 = arith.mulf %561, %565 : vector<10x10xf32>
    %567 = arith.truncf %566 : vector<10x10xf32> to vector<10x10xbf16>
    %568 = arith.truncf %550 : vector<10x32xf32> to vector<10x32xbf16>
    %cst_262 = arith.constant dense<0.000000e+00> : vector<10x32xf32>
    %569 = tpu.matmul %567, %568, %cst_262 {dimension_numbers = #tpu.dot_dimension_numbers<[1], [0], [0], [1], [0, 0, 1, 1], [], []>} : vector<10x10xbf16>, vector<10x32xbf16>, vector<10x32xf32> -> vector<10x32xf32>
    %570 = vector.extract_strided_slice %498 {offsets = [32, 0], sizes = [32, 128], strides = [1, 1]} : vector<128x128xbf16> to vector<32x128xbf16>
    %571 = arith.truncf %569 : vector<10x32xf32> to vector<10x32xbf16>
    %cst_263 = arith.constant dense<0.000000e+00> : vector<10x128xf32>
    %572 = tpu.matmul %571, %570, %cst_263 {dimension_numbers = #tpu.dot_dimension_numbers<[1], [0], [0], [1], [0, 0, 1, 1], [], []>} : vector<10x32xbf16>, vector<32x128xbf16>, vector<10x128xf32> -> vector<10x128xf32>
    %573 = arith.addf %547, %572 : vector<10x128xf32>
    %574 = vector.extract_strided_slice %520 {offsets = [0, 64], sizes = [10, 32], strides = [1, 1]} : vector<10x384xf32> to vector<10x32xf32>
    %575 = vector.extract_strided_slice %520 {offsets = [0, 192], sizes = [10, 32], strides = [1, 1]} : vector<10x384xf32> to vector<10x32xf32>
    %576 = vector.extract_strided_slice %520 {offsets = [0, 320], sizes = [10, 32], strides = [1, 1]} : vector<10x384xf32> to vector<10x32xf32>
    %577 = arith.truncf %574 : vector<10x32xf32> to vector<10x32xbf16>
    %578 = arith.truncf %575 : vector<10x32xf32> to vector<10x32xbf16>
    %cst_264 = arith.constant dense<0.000000e+00> : vector<10x10xf32>
    %579 = tpu.matmul %577, %578, %cst_264 {dimension_numbers = #tpu.dot_dimension_numbers<[1], [1], [0], [0], [0, 0, 1, 0], [], []>} : vector<10x32xbf16>, vector<10x32xbf16>, vector<10x10xf32> -> vector<10x10xf32>
    %cst_265 = arith.constant 0.176776692 : f32
    %580 = vector.broadcast %cst_265 : f32 to vector<10x10xf32>
    %581 = arith.mulf %579, %580 : vector<10x10xf32>
    %582 = arith.addf %581, %492 : vector<10x10xf32>
    %cst_266 = arith.constant dense<0xFF800000> : vector<10xf32>
    %583 = vector.multi_reduction <maximumf>, %582, %cst_266 [1] : vector<10x10xf32> to vector<10xf32>
    %584 = vector.shape_cast %583 : vector<10xf32> to vector<10x1xf32>
    %585 = vector.broadcast %584 : vector<10x1xf32> to vector<10x10xf32>
    %586 = arith.subf %582, %585 : vector<10x10xf32>
    %587 = math.exp %586 : vector<10x10xf32>
    %cst_267 = arith.constant dense<0.000000e+00> : vector<10xf32>
    %588 = vector.multi_reduction <add>, %587, %cst_267 [1] : vector<10x10xf32> to vector<10xf32>
    %589 = vector.shape_cast %588 : vector<10xf32> to vector<10x1xf32>
    %590 = tpu.reciprocal %589 {approx = true} : vector<10x1xf32> -> vector<10x1xf32>
    %591 = vector.broadcast %590 : vector<10x1xf32> to vector<10x10xf32>
    %592 = arith.mulf %587, %591 : vector<10x10xf32>
    %593 = arith.truncf %592 : vector<10x10xf32> to vector<10x10xbf16>
    %594 = arith.truncf %576 : vector<10x32xf32> to vector<10x32xbf16>
    %cst_268 = arith.constant dense<0.000000e+00> : vector<10x32xf32>
    %595 = tpu.matmul %593, %594, %cst_268 {dimension_numbers = #tpu.dot_dimension_numbers<[1], [0], [0], [1], [0, 0, 1, 1], [], []>} : vector<10x10xbf16>, vector<10x32xbf16>, vector<10x32xf32> -> vector<10x32xf32>
    %596 = vector.extract_strided_slice %498 {offsets = [64, 0], sizes = [32, 128], strides = [1, 1]} : vector<128x128xbf16> to vector<32x128xbf16>
    %597 = arith.truncf %595 : vector<10x32xf32> to vector<10x32xbf16>
    %cst_269 = arith.constant dense<0.000000e+00> : vector<10x128xf32>
    %598 = tpu.matmul %597, %596, %cst_269 {dimension_numbers = #tpu.dot_dimension_numbers<[1], [0], [0], [1], [0, 0, 1, 1], [], []>} : vector<10x32xbf16>, vector<32x128xbf16>, vector<10x128xf32> -> vector<10x128xf32>
    %599 = arith.addf %573, %598 : vector<10x128xf32>
    %600 = vector.extract_strided_slice %520 {offsets = [0, 96], sizes = [10, 32], strides = [1, 1]} : vector<10x384xf32> to vector<10x32xf32>
    %601 = vector.extract_strided_slice %520 {offsets = [0, 224], sizes = [10, 32], strides = [1, 1]} : vector<10x384xf32> to vector<10x32xf32>
    %602 = vector.extract_strided_slice %520 {offsets = [0, 352], sizes = [10, 32], strides = [1, 1]} : vector<10x384xf32> to vector<10x32xf32>
    %603 = arith.truncf %600 : vector<10x32xf32> to vector<10x32xbf16>
    %604 = arith.truncf %601 : vector<10x32xf32> to vector<10x32xbf16>
    %cst_270 = arith.constant dense<0.000000e+00> : vector<10x10xf32>
    %605 = tpu.matmul %603, %604, %cst_270 {dimension_numbers = #tpu.dot_dimension_numbers<[1], [1], [0], [0], [0, 0, 1, 0], [], []>} : vector<10x32xbf16>, vector<10x32xbf16>, vector<10x10xf32> -> vector<10x10xf32>
    %cst_271 = arith.constant 0.176776692 : f32
    %606 = vector.broadcast %cst_271 : f32 to vector<10x10xf32>
    %607 = arith.mulf %605, %606 : vector<10x10xf32>
    %608 = arith.addf %607, %492 : vector<10x10xf32>
    %cst_272 = arith.constant dense<0xFF800000> : vector<10xf32>
    %609 = vector.multi_reduction <maximumf>, %608, %cst_272 [1] : vector<10x10xf32> to vector<10xf32>
    %610 = vector.shape_cast %609 : vector<10xf32> to vector<10x1xf32>
    %611 = vector.broadcast %610 : vector<10x1xf32> to vector<10x10xf32>
    %612 = arith.subf %608, %611 : vector<10x10xf32>
    %613 = math.exp %612 : vector<10x10xf32>
    %cst_273 = arith.constant dense<0.000000e+00> : vector<10xf32>
    %614 = vector.multi_reduction <add>, %613, %cst_273 [1] : vector<10x10xf32> to vector<10xf32>
    %615 = vector.shape_cast %614 : vector<10xf32> to vector<10x1xf32>
    %616 = tpu.reciprocal %615 {approx = true} : vector<10x1xf32> -> vector<10x1xf32>
    %617 = vector.broadcast %616 : vector<10x1xf32> to vector<10x10xf32>
    %618 = arith.mulf %613, %617 : vector<10x10xf32>
    %619 = arith.truncf %618 : vector<10x10xf32> to vector<10x10xbf16>
    %620 = arith.truncf %602 : vector<10x32xf32> to vector<10x32xbf16>
    %cst_274 = arith.constant dense<0.000000e+00> : vector<10x32xf32>
    %621 = tpu.matmul %619, %620, %cst_274 {dimension_numbers = #tpu.dot_dimension_numbers<[1], [0], [0], [1], [0, 0, 1, 1], [], []>} : vector<10x10xbf16>, vector<10x32xbf16>, vector<10x32xf32> -> vector<10x32xf32>
    %622 = vector.extract_strided_slice %498 {offsets = [96, 0], sizes = [32, 128], strides = [1, 1]} : vector<128x128xbf16> to vector<32x128xbf16>
    %623 = arith.truncf %621 : vector<10x32xf32> to vector<10x32xbf16>
    %cst_275 = arith.constant dense<0.000000e+00> : vector<10x128xf32>
    %624 = tpu.matmul %623, %622, %cst_275 {dimension_numbers = #tpu.dot_dimension_numbers<[1], [0], [0], [1], [0, 0, 1, 1], [], []>} : vector<10x32xbf16>, vector<32x128xbf16>, vector<10x128xf32> -> vector<10x128xf32>
    %625 = arith.addf %599, %624 : vector<10x128xf32>
    %626 = arith.addf %491, %625 : vector<10x128xf32>
    %627 = vector.broadcast %500 : vector<1x128xf32> to vector<10x128xf32>
    %628 = arith.addf %626, %627 : vector<10x128xf32>
    %cst_276 = arith.constant dense<0.000000e+00> : vector<10xf32>
    %629 = vector.multi_reduction <add>, %628, %cst_276 [1] : vector<10x128xf32> to vector<10xf32>
    %630 = vector.shape_cast %629 : vector<10xf32> to vector<10x1xf32>
    %cst_277 = arith.constant 1.280000e+02 : f32
    %631 = vector.broadcast %cst_277 : f32 to vector<10x1xf32>
    %632 = arith.divf %630, %631 : vector<10x1xf32>
    %633 = vector.broadcast %632 : vector<10x1xf32> to vector<10x128xf32>
    %634 = arith.subf %628, %633 : vector<10x128xf32>
    %635 = arith.mulf %634, %634 : vector<10x128xf32>
    %cst_278 = arith.constant dense<0.000000e+00> : vector<10xf32>
    %636 = vector.multi_reduction <add>, %635, %cst_278 [1] : vector<10x128xf32> to vector<10xf32>
    %637 = vector.shape_cast %636 : vector<10xf32> to vector<10x1xf32>
    %cst_279 = arith.constant 1.280000e+02 : f32
    %638 = vector.broadcast %cst_279 : f32 to vector<10x1xf32>
    %639 = arith.divf %637, %638 : vector<10x1xf32>
    %cst_280 = arith.constant 9.99999996E-13 : f32
    %640 = vector.broadcast %cst_280 : f32 to vector<10x1xf32>
    %641 = arith.addf %639, %640 : vector<10x1xf32>
    %642 = math.rsqrt %641 : vector<10x1xf32>
    %643 = vector.broadcast %642 : vector<10x1xf32> to vector<10x128xf32>
    %644 = arith.mulf %634, %643 : vector<10x128xf32>
    %645 = vector.broadcast %502 : vector<1x128xf32> to vector<10x128xf32>
    %646 = arith.mulf %644, %645 : vector<10x128xf32>
    %647 = vector.broadcast %504 : vector<1x128xf32> to vector<10x128xf32>
    %648 = arith.addf %646, %647 : vector<10x128xf32>
    %649 = arith.truncf %648 : vector<10x128xf32> to vector<10x128xbf16>
    %cst_281 = arith.constant dense<0.000000e+00> : vector<10x256xf32>
    %650 = tpu.matmul %649, %506, %cst_281 {dimension_numbers = #tpu.dot_dimension_numbers<[1], [0], [0], [1], [0, 0, 1, 1], [], []>} : vector<10x128xbf16>, vector<128x256xbf16>, vector<10x256xf32> -> vector<10x256xf32>
    %651 = vector.broadcast %508 : vector<1x256xf32> to vector<10x256xf32>
    %652 = arith.addf %650, %651 : vector<10x256xf32>
    %cst_282 = arith.constant 5.000000e-01 : f32
    %653 = vector.broadcast %cst_282 : f32 to vector<10x256xf32>
    %654 = arith.mulf %653, %652 : vector<10x256xf32>
    %cst_283 = arith.constant 4.471500e-02 : f32
    %655 = vector.broadcast %cst_283 : f32 to vector<10x256xf32>
    %656 = arith.mulf %655, %652 : vector<10x256xf32>
    %657 = arith.mulf %656, %652 : vector<10x256xf32>
    %658 = arith.mulf %657, %652 : vector<10x256xf32>
    %659 = arith.addf %652, %658 : vector<10x256xf32>
    %cst_284 = arith.constant 0.797884583 : f32
    %660 = vector.broadcast %cst_284 : f32 to vector<10x256xf32>
    %661 = arith.mulf %660, %659 : vector<10x256xf32>
    %662 = math.tanh %661 : vector<10x256xf32>
    %cst_285 = arith.constant 1.000000e+00 : f32
    %663 = vector.broadcast %cst_285 : f32 to vector<10x256xf32>
    %664 = arith.addf %663, %662 : vector<10x256xf32>
    %665 = arith.mulf %654, %664 : vector<10x256xf32>
    %666 = arith.truncf %665 : vector<10x256xf32> to vector<10x256xbf16>
    %cst_286 = arith.constant dense<0.000000e+00> : vector<10x128xf32>
    %667 = tpu.matmul %666, %510, %cst_286 {dimension_numbers = #tpu.dot_dimension_numbers<[1], [0], [0], [1], [0, 0, 1, 1], [], []>} : vector<10x256xbf16>, vector<256x128xbf16>, vector<10x128xf32> -> vector<10x128xf32>
    %668 = arith.addf %648, %667 : vector<10x128xf32>
    %669 = vector.broadcast %512 : vector<1x128xf32> to vector<10x128xf32>
    %670 = arith.addf %668, %669 : vector<10x128xf32>
    %cst_287 = arith.constant dense<0.000000e+00> : vector<10xf32>
    %671 = vector.multi_reduction <add>, %670, %cst_287 [1] : vector<10x128xf32> to vector<10xf32>
    %672 = vector.shape_cast %671 : vector<10xf32> to vector<10x1xf32>
    %cst_288 = arith.constant 1.280000e+02 : f32
    %673 = vector.broadcast %cst_288 : f32 to vector<10x1xf32>
    %674 = arith.divf %672, %673 : vector<10x1xf32>
    %675 = vector.broadcast %674 : vector<10x1xf32> to vector<10x128xf32>
    %676 = arith.subf %670, %675 : vector<10x128xf32>
    %677 = arith.mulf %676, %676 : vector<10x128xf32>
    %cst_289 = arith.constant dense<0.000000e+00> : vector<10xf32>
    %678 = vector.multi_reduction <add>, %677, %cst_289 [1] : vector<10x128xf32> to vector<10xf32>
    %679 = vector.shape_cast %678 : vector<10xf32> to vector<10x1xf32>
    %cst_290 = arith.constant 1.280000e+02 : f32
    %680 = vector.broadcast %cst_290 : f32 to vector<10x1xf32>
    %681 = arith.divf %679, %680 : vector<10x1xf32>
    %cst_291 = arith.constant 9.99999996E-13 : f32
    %682 = vector.broadcast %cst_291 : f32 to vector<10x1xf32>
    %683 = arith.addf %681, %682 : vector<10x1xf32>
    %684 = math.rsqrt %683 : vector<10x1xf32>
    %685 = vector.broadcast %684 : vector<10x1xf32> to vector<10x128xf32>
    %686 = arith.mulf %676, %685 : vector<10x128xf32>
    %687 = vector.broadcast %514 : vector<1x128xf32> to vector<10x128xf32>
    %688 = arith.mulf %686, %687 : vector<10x128xf32>
    %689 = vector.broadcast %516 : vector<1x128xf32> to vector<10x128xf32>
    %690 = arith.addf %688, %689 : vector<10x128xf32>
    %c0_292 = arith.constant 0 : index
    %c0_293 = arith.constant 0 : index
    %691 = vector.load %arg22[%c0_292, %c0_293] : memref<2x10xf32, #tpu.memory_space<vmem>>, vector<2x10xf32>
    %cst_294 = arith.constant dense<0.000000e+00> : vector<2x128xf32>
    %692 = tpu.matmul %691, %690, %cst_294 {dimension_numbers = #tpu.dot_dimension_numbers<[1], [0], [0], [1], [0, 0, 1, 1], [], []>} : vector<2x10xf32>, vector<10x128xf32>, vector<2x128xf32> -> vector<2x128xf32>
    %c0_295 = arith.constant 0 : index
    %c0_296 = arith.constant 0 : index
    %693 = vector.load %arg41[%c0_295, %c0_296] : memref<128x256xbf16, #tpu.memory_space<vmem>>, vector<128x256xbf16>
    %694 = arith.truncf %692 : vector<2x128xf32> to vector<2x128xbf16>
    %cst_297 = arith.constant dense<0.000000e+00> : vector<2x256xf32>
    %695 = tpu.matmul %694, %693, %cst_297 {dimension_numbers = #tpu.dot_dimension_numbers<[1], [0], [0], [1], [0, 0, 1, 1], [], []>} : vector<2x128xbf16>, vector<128x256xbf16>, vector<2x256xf32> -> vector<2x256xf32>
    %c0_298 = arith.constant 0 : index
    %c0_299 = arith.constant 0 : index
    %696 = vector.load %arg40[%c0_298, %c0_299] : memref<1x256xf32, #tpu.memory_space<vmem>>, vector<1x256xf32>
    %697 = vector.broadcast %696 : vector<1x256xf32> to vector<2x256xf32>
    %698 = arith.addf %695, %697 : vector<2x256xf32>
    %cst_300 = arith.constant 0.000000e+00 : f32
    %699 = vector.broadcast %cst_300 : f32 to vector<2x256xf32>
    %700 = arith.maximumf %698, %699 : vector<2x256xf32>
    %c0_301 = arith.constant 0 : index
    %c0_302 = arith.constant 0 : index
    %701 = vector.load %arg43[%c0_301, %c0_302] : memref<256x128xbf16, #tpu.memory_space<vmem>>, vector<256x128xbf16>
    %702 = arith.truncf %700 : vector<2x256xf32> to vector<2x256xbf16>
    %cst_303 = arith.constant dense<0.000000e+00> : vector<2x128xf32>
    %703 = tpu.matmul %702, %701, %cst_303 {dimension_numbers = #tpu.dot_dimension_numbers<[1], [0], [0], [1], [0, 0, 1, 1], [], []>} : vector<2x256xbf16>, vector<256x128xbf16>, vector<2x128xf32> -> vector<2x128xf32>
    %c0_304 = arith.constant 0 : index
    %c0_305 = arith.constant 0 : index
    %704 = vector.load %arg42[%c0_304, %c0_305] : memref<1x128xf32, #tpu.memory_space<vmem>>, vector<1x128xf32>
    %705 = vector.broadcast %704 : vector<1x128xf32> to vector<2x128xf32>
    %706 = arith.addf %703, %705 : vector<2x128xf32>
    %c0_306 = arith.constant 0 : index
    %c0_307 = arith.constant 0 : index
    %c0_308 = arith.constant 0 : index
    %707 = vector.load %arg61[%c0_306, %c0_307, %c0_308] : memref<1x2x128xf32, #tpu.memory_space<vmem>>, vector<1x2x128xf32>
    %708 = vector.shape_cast %707 : vector<1x2x128xf32> to vector<2x128xf32>
    %709 = vector.shape_cast %706 : vector<2x128xf32> to vector<1x2x128xf32>
    tpu.vector_store %arg61[%c0_306, %c0_307, %c0_308], %709 {strides = array<i32>} : memref<1x2x128xf32, #tpu.memory_space<vmem>>, vector<1x2x128xf32>,
    return
  }
  func.func @transform_0(%arg0: i32) -> (i32, i32) {
    %c0_i32 = arith.constant 0 : i32
    %c0_i32_0 = arith.constant 0 : i32
    return %arg0, %c0_i32 : i32, i32
  }
  func.func @transform_1(%arg0: i32) -> (i32, i32, i32) {
    %c0_i32 = arith.constant 0 : i32
    %c0_i32_0 = arith.constant 0 : i32
    %c0_i32_1 = arith.constant 0 : i32
    return %arg0, %c0_i32, %c0_i32_0 : i32, i32, i32
  }
  func.func @transform_2(%arg0: i32) -> (i32, i32) {
    %c0_i32 = arith.constant 0 : i32
    %c0_i32_0 = arith.constant 0 : i32
    return %arg0, %c0_i32 : i32, i32
  }
  func.func @transform_3(%arg0: i32) -> (i32, i32, i32) {
    %c0_i32 = arith.constant 0 : i32
    %c0_i32_0 = arith.constant 0 : i32
    %c0_i32_1 = arith.constant 0 : i32
    return %arg0, %c0_i32, %c0_i32_0 : i32, i32, i32
  }
  func.func @transform_4(%arg0: i32) -> (i32, i32) {
    %c0_i32 = arith.constant 0 : i32
    %c0_i32_0 = arith.constant 0 : i32
    %c0_i32_1 = arith.constant 0 : i32
    return %c0_i32, %c0_i32_0 : i32, i32
  }
  func.func @transform_5(%arg0: i32) -> (i32, i32) {
    %c0_i32 = arith.constant 0 : i32
    %c0_i32_0 = arith.constant 0 : i32
    %c0_i32_1 = arith.constant 0 : i32
    return %c0_i32, %c0_i32_0 : i32, i32
  }
  func.func @transform_6(%arg0: i32) -> (i32, i32) {
    %c0_i32 = arith.constant 0 : i32
    %c0_i32_0 = arith.constant 0 : i32
    %c0_i32_1 = arith.constant 0 : i32
    return %c0_i32, %c0_i32_0 : i32, i32
  }
  func.func @transform_7(%arg0: i32) -> (i32, i32, i32) {
    %c0_i32 = arith.constant 0 : i32
    %c0_i32_0 = arith.constant 0 : i32
    %c0_i32_1 = arith.constant 0 : i32
    %c0_i32_2 = arith.constant 0 : i32
    return %c0_i32, %c0_i32_0, %c0_i32_1 : i32, i32, i32
  }
  func.func @transform_8(%arg0: i32) -> (i32, i32, i32) {
    %c0_i32 = arith.constant 0 : i32
    %c0_i32_0 = arith.constant 0 : i32
    %c0_i32_1 = arith.constant 0 : i32
    %c0_i32_2 = arith.constant 0 : i32
    return %c0_i32, %c0_i32_0, %c0_i32_1 : i32, i32, i32
  }
  func.func @transform_9(%arg0: i32) -> (i32, i32, i32) {
    %c0_i32 = arith.constant 0 : i32
    %c0_i32_0 = arith.constant 0 : i32
    %c0_i32_1 = arith.constant 0 : i32
    %c0_i32_2 = arith.constant 0 : i32
    return %c0_i32, %c0_i32_0, %c0_i32_1 : i32, i32, i32
  }
  func.func @transform_10(%arg0: i32) -> (i32, i32, i32) {
    %c0_i32 = arith.constant 0 : i32
    %c0_i32_0 = arith.constant 0 : i32
    %c0_i32_1 = arith.constant 0 : i32
    %c0_i32_2 = arith.constant 0 : i32
    return %c0_i32, %c0_i32_0, %c0_i32_1 : i32, i32, i32
  }
  func.func @transform_11(%arg0: i32) -> (i32, i32, i32) {
    %c0_i32 = arith.constant 0 : i32
    %c0_i32_0 = arith.constant 0 : i32
    %c0_i32_1 = arith.constant 0 : i32
    %c0_i32_2 = arith.constant 0 : i32
    return %c0_i32, %c0_i32_0, %c0_i32_1 : i32, i32, i32
  }
  func.func @transform_12(%arg0: i32) -> (i32, i32, i32) {
    %c0_i32 = arith.constant 0 : i32
    %c0_i32_0 = arith.constant 0 : i32
    %c0_i32_1 = arith.constant 0 : i32
    %c0_i32_2 = arith.constant 0 : i32
    return %c0_i32, %c0_i32_0, %c0_i32_1 : i32, i32, i32
  }
  func.func @transform_13(%arg0: i32) -> (i32, i32, i32) {
    %c0_i32 = arith.constant 0 : i32
    %c0_i32_0 = arith.constant 0 : i32
    %c0_i32_1 = arith.constant 0 : i32
    %c0_i32_2 = arith.constant 0 : i32
    return %c0_i32, %c0_i32_0, %c0_i32_1 : i32, i32, i32
  }
  func.func @transform_14(%arg0: i32) -> (i32, i32, i32) {
    %c0_i32 = arith.constant 0 : i32
    %c0_i32_0 = arith.constant 0 : i32
    %c0_i32_1 = arith.constant 0 : i32
    %c0_i32_2 = arith.constant 0 : i32
    return %c0_i32, %c0_i32_0, %c0_i32_1 : i32, i32, i32
  }
  func.func @transform_15(%arg0: i32) -> (i32, i32, i32) {
    %c0_i32 = arith.constant 0 : i32
    %c0_i32_0 = arith.constant 0 : i32
    %c0_i32_1 = arith.constant 0 : i32
    %c0_i32_2 = arith.constant 0 : i32
    return %c0_i32, %c0_i32_0, %c0_i32_1 : i32, i32, i32
  }
  func.func @transform_16(%arg0: i32) -> (i32, i32, i32) {
    %c0_i32 = arith.constant 0 : i32
    %c0_i32_0 = arith.constant 0 : i32
    %c0_i32_1 = arith.constant 0 : i32
    %c0_i32_2 = arith.constant 0 : i32
    return %c0_i32, %c0_i32_0, %c0_i32_1 : i32, i32, i32
  }
  func.func @transform_17(%arg0: i32) -> (i32, i32, i32) {
    %c0_i32 = arith.constant 0 : i32
    %c0_i32_0 = arith.constant 0 : i32
    %c0_i32_1 = arith.constant 0 : i32
    %c0_i32_2 = arith.constant 0 : i32
    return %c0_i32, %c0_i32_0, %c0_i32_1 : i32, i32, i32
  }
  func.func @transform_18(%arg0: i32) -> (i32, i32, i32) {
    %c0_i32 = arith.constant 0 : i32
    %c0_i32_0 = arith.constant 0 : i32
    %c0_i32_1 = arith.constant 0 : i32
    %c0_i32_2 = arith.constant 0 : i32
    return %c0_i32, %c0_i32_0, %c0_i32_1 : i32, i32, i32
  }
  func.func @transform_19(%arg0: i32) -> (i32, i32) {
    %c0_i32 = arith.constant 0 : i32
    %c0_i32_0 = arith.constant 0 : i32
    %c0_i32_1 = arith.constant 0 : i32
    return %c0_i32, %c0_i32_0 : i32, i32
  }
  func.func @transform_20(%arg0: i32) -> (i32, i32) {
    %c0_i32 = arith.constant 0 : i32
    %c0_i32_0 = arith.constant 0 : i32
    %c0_i32_1 = arith.constant 0 : i32
    return %c0_i32, %c0_i32_0 : i32, i32
  }
  func.func @transform_21(%arg0: i32) -> (i32, i32) {
    %c0_i32 = arith.constant 0 : i32
    %c0_i32_0 = arith.constant 0 : i32
    %c0_i32_1 = arith.constant 0 : i32
    return %c0_i32, %c0_i32_0 : i32, i32
  }
  func.func @transform_22(%arg0: i32) -> (i32, i32) {
    %c0_i32 = arith.constant 0 : i32
    %c0_i32_0 = arith.constant 0 : i32
    %c0_i32_1 = arith.constant 0 : i32
    return %c0_i32, %c0_i32_0 : i32, i32
  }
  func.func @transform_23(%arg0: i32) -> (i32, i32) {
    %c0_i32 = arith.constant 0 : i32
    %c0_i32_0 = arith.constant 0 : i32
    %c0_i32_1 = arith.constant 0 : i32
    return %c0_i32, %c0_i32_0 : i32, i32
  }
  func.func @transform_24(%arg0: i32) -> (i32, i32) {
    %c0_i32 = arith.constant 0 : i32
    %c0_i32_0 = arith.constant 0 : i32
    %c0_i32_1 = arith.constant 0 : i32
    return %c0_i32, %c0_i32_0 : i32, i32
  }
  func.func @transform_25(%arg0: i32) -> (i32, i32, i32) {
    %c0_i32 = arith.constant 0 : i32
    %c0_i32_0 = arith.constant 0 : i32
    %c0_i32_1 = arith.constant 0 : i32
    %c0_i32_2 = arith.constant 0 : i32
    return %c0_i32, %c0_i32_0, %c0_i32_1 : i32, i32, i32
  }
  func.func @transform_26(%arg0: i32) -> (i32, i32, i32) {
    %c0_i32 = arith.constant 0 : i32
    %c0_i32_0 = arith.constant 0 : i32
    %c0_i32_1 = arith.constant 0 : i32
    %c0_i32_2 = arith.constant 0 : i32
    return %c0_i32, %c0_i32_0, %c0_i32_1 : i32, i32, i32
  }
  func.func @transform_27(%arg0: i32) -> (i32, i32, i32) {
    %c0_i32 = arith.constant 0 : i32
    %c0_i32_0 = arith.constant 0 : i32
    %c0_i32_1 = arith.constant 0 : i32
    %c0_i32_2 = arith.constant 0 : i32
    return %c0_i32, %c0_i32_0, %c0_i32_1 : i32, i32, i32
  }
  func.func @transform_28(%arg0: i32) -> (i32, i32, i32) {
    %c0_i32 = arith.constant 0 : i32
    %c0_i32_0 = arith.constant 0 : i32
    %c0_i32_1 = arith.constant 0 : i32
    %c0_i32_2 = arith.constant 0 : i32
    return %c0_i32, %c0_i32_0, %c0_i32_1 : i32, i32, i32
  }
  func.func @transform_29(%arg0: i32) -> (i32, i32, i32) {
    %c0_i32 = arith.constant 0 : i32
    %c0_i32_0 = arith.constant 0 : i32
    %c0_i32_1 = arith.constant 0 : i32
    %c0_i32_2 = arith.constant 0 : i32
    return %c0_i32, %c0_i32_0, %c0_i32_1 : i32, i32, i32
  }
  func.func @transform_30(%arg0: i32) -> (i32, i32, i32) {
    %c0_i32 = arith.constant 0 : i32
    %c0_i32_0 = arith.constant 0 : i32
    %c0_i32_1 = arith.constant 0 : i32
    %c0_i32_2 = arith.constant 0 : i32
    return %c0_i32, %c0_i32_0, %c0_i32_1 : i32, i32, i32
  }
  func.func @transform_31(%arg0: i32) -> (i32, i32, i32) {
    %c0_i32 = arith.constant 0 : i32
    %c0_i32_0 = arith.constant 0 : i32
    %c0_i32_1 = arith.constant 0 : i32
    %c0_i32_2 = arith.constant 0 : i32
    return %c0_i32, %c0_i32_0, %c0_i32_1 : i32, i32, i32
  }
  func.func @transform_32(%arg0: i32) -> (i32, i32, i32) {
    %c0_i32 = arith.constant 0 : i32
    %c0_i32_0 = arith.constant 0 : i32
    %c0_i32_1 = arith.constant 0 : i32
    %c0_i32_2 = arith.constant 0 : i32
    return %c0_i32, %c0_i32_0, %c0_i32_1 : i32, i32, i32
  }
  func.func @transform_33(%arg0: i32) -> (i32, i32, i32) {
    %c0_i32 = arith.constant 0 : i32
    %c0_i32_0 = arith.constant 0 : i32
    %c0_i32_1 = arith.constant 0 : i32
    %c0_i32_2 = arith.constant 0 : i32
    return %c0_i32, %c0_i32_0, %c0_i32_1 : i32, i32, i32
  }
  func.func @transform_34(%arg0: i32) -> (i32, i32, i32) {
    %c0_i32 = arith.constant 0 : i32
    %c0_i32_0 = arith.constant 0 : i32
    %c0_i32_1 = arith.constant 0 : i32
    %c0_i32_2 = arith.constant 0 : i32
    return %c0_i32, %c0_i32_0, %c0_i32_1 : i32, i32, i32
  }
  func.func @transform_35(%arg0: i32) -> (i32, i32, i32) {
    %c0_i32 = arith.constant 0 : i32
    %c0_i32_0 = arith.constant 0 : i32
    %c0_i32_1 = arith.constant 0 : i32
    %c0_i32_2 = arith.constant 0 : i32
    return %c0_i32, %c0_i32_0, %c0_i32_1 : i32, i32, i32
  }
  func.func @transform_36(%arg0: i32) -> (i32, i32, i32) {
    %c0_i32 = arith.constant 0 : i32
    %c0_i32_0 = arith.constant 0 : i32
    %c0_i32_1 = arith.constant 0 : i32
    %c0_i32_2 = arith.constant 0 : i32
    return %c0_i32, %c0_i32_0, %c0_i32_1 : i32, i32, i32
  }
  func.func @transform_37(%arg0: i32) -> (i32, i32) {
    %c0_i32 = arith.constant 0 : i32
    %c0_i32_0 = arith.constant 0 : i32
    %c0_i32_1 = arith.constant 0 : i32
    return %c0_i32, %c0_i32_0 : i32, i32
  }
  func.func @transform_38(%arg0: i32) -> (i32, i32) {
    %c0_i32 = arith.constant 0 : i32
    %c0_i32_0 = arith.constant 0 : i32
    %c0_i32_1 = arith.constant 0 : i32
    return %c0_i32, %c0_i32_0 : i32, i32
  }
  func.func @transform_39(%arg0: i32) -> (i32, i32) {
    %c0_i32 = arith.constant 0 : i32
    %c0_i32_0 = arith.constant 0 : i32
    %c0_i32_1 = arith.constant 0 : i32
    return %c0_i32, %c0_i32_0 : i32, i32
  }
  func.func @transform_40(%arg0: i32) -> (i32, i32) {
    %c0_i32 = arith.constant 0 : i32
    %c0_i32_0 = arith.constant 0 : i32
    %c0_i32_1 = arith.constant 0 : i32
    return %c0_i32, %c0_i32_0 : i32, i32
  }
  func.func @transform_41(%arg0: i32) -> (i32, i32) {
    %c0_i32 = arith.constant 0 : i32
    %c0_i32_0 = arith.constant 0 : i32
    %c0_i32_1 = arith.constant 0 : i32
    return %c0_i32, %c0_i32_0 : i32, i32
  }
  func.func @transform_42(%arg0: i32) -> (i32, i32) {
    %c0_i32 = arith.constant 0 : i32
    %c0_i32_0 = arith.constant 0 : i32
    %c0_i32_1 = arith.constant 0 : i32
    return %c0_i32, %c0_i32_0 : i32, i32
  }
  func.func @transform_43(%arg0: i32) -> (i32, i32) {
    %c0_i32 = arith.constant 0 : i32
    %c0_i32_0 = arith.constant 0 : i32
    %c0_i32_1 = arith.constant 0 : i32
    return %c0_i32, %c0_i32_0 : i32, i32
  }
  func.func @transform_44(%arg0: i32) -> (i32, i32) {
    %c0_i32 = arith.constant 0 : i32
    %c0_i32_0 = arith.constant 0 : i32
    %c0_i32_1 = arith.constant 0 : i32
    return %c0_i32, %c0_i32_0 : i32, i32
  }
  func.func @transform_45(%arg0: i32) -> (i32, i32) {
    %c0_i32 = arith.constant 0 : i32
    %c0_i32_0 = arith.constant 0 : i32
    %c0_i32_1 = arith.constant 0 : i32
    return %c0_i32, %c0_i32_0 : i32, i32
  }
  func.func @transform_46(%arg0: i32) -> (i32, i32, i32) {
    %c0_i32 = arith.constant 0 : i32
    %c0_i32_0 = arith.constant 0 : i32
    %c0_i32_1 = arith.constant 0 : i32
    %c0_i32_2 = arith.constant 0 : i32
    return %c0_i32, %c0_i32_0, %c0_i32_1 : i32, i32, i32
  }
  func.func @transform_47(%arg0: i32) -> (i32, i32, i32) {
    %c0_i32 = arith.constant 0 : i32
    %c0_i32_0 = arith.constant 0 : i32
    %c0_i32_1 = arith.constant 0 : i32
    %c0_i32_2 = arith.constant 0 : i32
    return %c0_i32, %c0_i32_0, %c0_i32_1 : i32, i32, i32
  }
  func.func @transform_48(%arg0: i32) -> (i32, i32, i32) {
    %c0_i32 = arith.constant 0 : i32
    %c0_i32_0 = arith.constant 0 : i32
    %c0_i32_1 = arith.constant 0 : i32
    %c0_i32_2 = arith.constant 0 : i32
    return %c0_i32, %c0_i32_0, %c0_i32_1 : i32, i32, i32
  }
  func.func @transform_49(%arg0: i32) -> (i32, i32, i32) {
    %c0_i32 = arith.constant 0 : i32
    %c0_i32_0 = arith.constant 0 : i32
    %c0_i32_1 = arith.constant 0 : i32
    %c0_i32_2 = arith.constant 0 : i32
    return %c0_i32, %c0_i32_0, %c0_i32_1 : i32, i32, i32
  }
  func.func @transform_50(%arg0: i32) -> (i32, i32, i32) {
    %c0_i32 = arith.constant 0 : i32
    %c0_i32_0 = arith.constant 0 : i32
    %c0_i32_1 = arith.constant 0 : i32
    %c0_i32_2 = arith.constant 0 : i32
    return %c0_i32, %c0_i32_0, %c0_i32_1 : i32, i32, i32
  }
  func.func @transform_51(%arg0: i32) -> (i32, i32, i32) {
    %c0_i32 = arith.constant 0 : i32
    %c0_i32_0 = arith.constant 0 : i32
    %c0_i32_1 = arith.constant 0 : i32
    %c0_i32_2 = arith.constant 0 : i32
    return %c0_i32, %c0_i32_0, %c0_i32_1 : i32, i32, i32
  }
  func.func @transform_52(%arg0: i32) -> (i32, i32, i32) {
    %c0_i32 = arith.constant 0 : i32
    %c0_i32_0 = arith.constant 0 : i32
    %c0_i32_1 = arith.constant 0 : i32
    %c0_i32_2 = arith.constant 0 : i32
    return %c0_i32, %c0_i32_0, %c0_i32_1 : i32, i32, i32
  }
  func.func @transform_53(%arg0: i32) -> (i32, i32, i32) {
    %c0_i32 = arith.constant 0 : i32
    %c0_i32_0 = arith.constant 0 : i32
    %c0_i32_1 = arith.constant 0 : i32
    %c0_i32_2 = arith.constant 0 : i32
    return %c0_i32, %c0_i32_0, %c0_i32_1 : i32, i32, i32
  }
  func.func @transform_54(%arg0: i32) -> (i32, i32, i32) {
    %c0_i32 = arith.constant 0 : i32
    %c0_i32_0 = arith.constant 0 : i32
    %c0_i32_1 = arith.constant 0 : i32
    %c0_i32_2 = arith.constant 0 : i32
    return %c0_i32, %c0_i32_0, %c0_i32_1 : i32, i32, i32
  }
  func.func @transform_55(%arg0: i32) -> (i32, i32, i32) {
    %c0_i32 = arith.constant 0 : i32
    %c0_i32_0 = arith.constant 0 : i32
    %c0_i32_1 = arith.constant 0 : i32
    %c0_i32_2 = arith.constant 0 : i32
    return %c0_i32, %c0_i32_0, %c0_i32_1 : i32, i32, i32
  }
  func.func @transform_56(%arg0: i32) -> (i32, i32, i32) {
    %c0_i32 = arith.constant 0 : i32
    %c0_i32_0 = arith.constant 0 : i32
    %c0_i32_1 = arith.constant 0 : i32
    %c0_i32_2 = arith.constant 0 : i32
    return %c0_i32, %c0_i32_0, %c0_i32_1 : i32, i32, i32
  }
  func.func @transform_57(%arg0: i32) -> (i32, i32, i32) {
    %c0_i32 = arith.constant 0 : i32
    %c0_i32_0 = arith.constant 0 : i32
    %c0_i32_1 = arith.constant 0 : i32
    %c0_i32_2 = arith.constant 0 : i32
    return %c0_i32, %c0_i32_0, %c0_i32_1 : i32, i32, i32
  }
  func.func @transform_58(%arg0: i32) -> (i32, i32) {
    %c0_i32 = arith.constant 0 : i32
    %c0_i32_0 = arith.constant 0 : i32
    %c0_i32_1 = arith.constant 0 : i32
    return %c0_i32, %c0_i32_0 : i32, i32
  }
  func.func @transform_59(%arg0: i32) -> (i32, i32) {
    %c0_i32 = arith.constant 0 : i32
    %c0_i32_0 = arith.constant 0 : i32
    %c0_i32_1 = arith.constant 0 : i32
    return %c0_i32, %c0_i32_0 : i32, i32
  }
  func.func @transform_60(%arg0: i32) -> (i32, i32, i32) {
    %c0_i32 = arith.constant 0 : i32
    %c0_i32_0 = arith.constant 0 : i32
    %c0_i32_1 = arith.constant 0 : i32
    return %arg0, %c0_i32, %c0_i32_0 : i32, i32, i32
  }
}

</mosaic_0001>

<llo_original>
// kernel: tile.7
$region0: #{tile.7}
  %s0 = inlined_call_operand.vmem [shape: f32[2,5,128], index: 0, kind: input, shape index: {}]
  %s1 = inlined_call_operand.vmem [shape: f32[10,128], index: 1, kind: output, shape index: {}]
  %v2 = vld [vmem:[%s0] sm:$0x1f]
  %3 = vst [vmem:[%s1] sm:$0x1f] %v2
  %s4 = scalar_lea.vmem %s0, 8
  %v5 = vld [vmem:[%s4] sm:$0x1f]
  %s6 = scalar_lea.vmem %s1, 5
  %7 = vst [vmem:[%s6] sm:$0x1f] %v5

// kernel: _lambda_.1
$region0: #{_lambda_.1}
  #allocation0 [shape = 'u32[]', space=smem, size = 0x4, offset = 0x4, fixed_abs, tag = 'smem constant byte address 0x4 - core index']
  #allocation1 [shape = 'u32[72,128]{1,0:T(1,128)}', space=vmem, size = 0x9000, scoped, tag = 'internal scratch']
  %s0 = inlined_call_operand.smem [shape: u32[61], index: -1, kind: input, shape index: {}]
  %s1 = sld [smem:[%s0]]
  %s2 = scalar_lea.smem %s0, 1
  %s3 = sld [smem:[%s2]]
  %s4 = scalar_lea.smem %s0, 2
  %s5 = sld [smem:[%s4]]
  %s6 = scalar_lea.smem %s0, 3
  %s7 = sld [smem:[%s6]]
  %s8 = scalar_lea.smem %s0, 4
  %s9 = sld [smem:[%s8]]
  %s10 = scalar_lea.smem %s0, 5
  %s11 = sld [smem:[%s10]]
  %s12 = scalar_lea.smem %s0, 6
  %s13 = sld [smem:[%s12]]
  %s14 = scalar_lea.smem %s0, 7
  %s15 = sld [smem:[%s14]]
  %s16 = scalar_lea.smem %s0, 8
  %s17 = sld [smem:[%s16]]
  %s18 = scalar_lea.smem %s0, 9
  %s19 = sld [smem:[%s18]]
  %s20 = scalar_lea.smem %s0, 10
  %s21 = sld [smem:[%s20]]
  %s22 = scalar_lea.smem %s0, 11
  %s23 = sld [smem:[%s22]]
  %s24 = scalar_lea.smem %s0, 12
  %s25 = sld [smem:[%s24]]
  %s26 = scalar_lea.smem %s0, 13
  %s27 = sld [smem:[%s26]]
  %s28 = scalar_lea.smem %s0, 14
  %s29 = sld [smem:[%s28]]
  %s30 = scalar_lea.smem %s0, 15
  %s31 = sld [smem:[%s30]]
  %s32 = scalar_lea.smem %s0, 16
  %s33 = sld [smem:[%s32]]
  %s34 = scalar_lea.smem %s0, 17
  %s35 = sld [smem:[%s34]]
  %s36 = scalar_lea.smem %s0, 18
  %s37 = sld [smem:[%s36]]
  %s38 = scalar_lea.smem %s0, 19
  %s39 = sld [smem:[%s38]]
  %s40 = scalar_lea.smem %s0, 20
  %s41 = sld [smem:[%s40]]
  %s42 = scalar_lea.smem %s0, 21
  %s43 = sld [smem:[%s42]]
  %s44 = scalar_lea.smem %s0, 22
  %s45 = sld [smem:[%s44]]
  %s46 = scalar_lea.smem %s0, 23
  %s47 = sld [smem:[%s46]]
  %s48 = scalar_lea.smem %s0, 24
  %s49 = sld [smem:[%s48]]
  %s50 = scalar_lea.smem %s0, 25
  %s51 = sld [smem:[%s50]]
  %s52 = scalar_lea.smem %s0, 26
  %s53 = sld [smem:[%s52]]
  %s54 = scalar_lea.smem %s0, 27
  %s55 = sld [smem:[%s54]]
  %s56 = scalar_lea.smem %s0, 28
  %s57 = sld [smem:[%s56]]
  %s58 = scalar_lea.smem %s0, 29
  %s59 = sld [smem:[%s58]]
  %s60 = scalar_lea.smem %s0, 30
  %s61 = sld [smem:[%s60]]
  %s62 = scalar_lea.smem %s0, 31
  %s63 = sld [smem:[%s62]]
  %s64 = scalar_lea.smem %s0, 32
  %s65 = sld [smem:[%s64]]
  %s66 = scalar_lea.smem %s0, 33
  %s67 = sld [smem:[%s66]]
  %s68 = scalar_lea.smem %s0, 34
  %s69 = sld [smem:[%s68]]
  %s70 = scalar_lea.smem %s0, 35
  %s71 = sld [smem:[%s70]]
  %s72 = scalar_lea.smem %s0, 36
  %s73 = sld [smem:[%s72]]
  %s74 = scalar_lea.smem %s0, 37
  %s75 = sld [smem:[%s74]]
  %s76 = scalar_lea.smem %s0, 38
  %s77 = sld [smem:[%s76]]
  %s78 = scalar_lea.smem %s0, 39
  %s79 = sld [smem:[%s78]]
  %s80 = scalar_lea.smem %s0, 40
  %s81 = sld [smem:[%s80]]
  %s82 = scalar_lea.smem %s0, 41
  %s83 = sld [smem:[%s82]]
  %s84 = scalar_lea.smem %s0, 42
  %s85 = sld [smem:[%s84]]
  %s86 = scalar_lea.smem %s0, 43
  %s87 = sld [smem:[%s86]]
  %s88 = scalar_lea.smem %s0, 44
  %s89 = sld [smem:[%s88]]
  %s90 = scalar_lea.smem %s0, 45
  %s91 = sld [smem:[%s90]]
  %s92 = scalar_lea.smem %s0, 46
  %s93 = sld [smem:[%s92]]
  %s94 = scalar_lea.smem %s0, 47
  %s95 = sld [smem:[%s94]]
  %s96 = scalar_lea.smem %s0, 48
  %s97 = sld [smem:[%s96]]
  %s98 = scalar_lea.smem %s0, 49
  %s99 = sld [smem:[%s98]]
  %s100 = scalar_lea.smem %s0, 50
  %s101 = sld [smem:[%s100]]
  %s102 = scalar_lea.smem %s0, 51
  %s103 = sld [smem:[%s102]]
  %s104 = scalar_lea.smem %s0, 52
  %s105 = sld [smem:[%s104]]
  %s106 = scalar_lea.smem %s0, 53
  %s107 = sld [smem:[%s106]]
  %s108 = scalar_lea.smem %s0, 54
  %s109 = sld [smem:[%s108]]
  %s110 = scalar_lea.smem %s0, 55
  %s111 = sld [smem:[%s110]]
  %s112 = scalar_lea.smem %s0, 56
  %s113 = sld [smem:[%s112]]
  %s114 = scalar_lea.smem %s0, 57
  %s115 = sld [smem:[%s114]]
  %s116 = scalar_lea.smem %s0, 58
  %s117 = sld [smem:[%s116]]
  %s118 = scalar_lea.smem %s0, 59
  %s119 = sld [smem:[%s118]]
  %s120 = scalar_lea.smem %s0, 60
  %s121 = sld [smem:[%s120]]
  %s122 = sld [smem:[#allocation0]]
  $region258: #{_lambda_.1} parent=0
    _
  %s124 = ssub.s32 1, %s122
  %s125 = scalar_select 0, %s124, %s122
  $region1: #{_lambda_.1} parent=0
    #allocation2 [shape = 'u8[32768]{0}', space=vmem, size = 0x8000, scoped, tag = 'input window, operand 35, single buffered']
    #allocation3 [shape = 's32[1]{0}', space=sflag, size = 0x4, scoped, tag = 'scoped memory for _lambda_.1']
    #allocation4 [shape = 's32[1]{0}', space=sflag, size = 0x4, scoped, tag = 'scoped memory for _lambda_.1']
    #allocation5 [shape = 'u8[32768]{0}', space=vmem, size = 0x8000, scoped, tag = 'input window, operand 38, single buffered']
    #allocation6 [shape = 's32[1]{0}', space=sflag, size = 0x4, scoped, tag = 'scoped memory for _lambda_.1']
    #allocation7 [shape = 'u8[1024]{0}', space=vmem, size = 0x400, scoped, tag = 'output window, operand 0, single buffered']
    %126 = vsyncpa [#allocation3], 0
    %127 = vsyncpa [#allocation6], 0
    %128 = vsyncpa [#allocation4], 0
    // Predicated region
    $region2: #{_lambda_.1} parent=1 // pred_check
      _
    $region3: #{_lambda_.1} parent=1 // pred_check_branch
      %130 = sbr.rel (0) target = $region5
    $region4: #{_lambda_.1} parent=1 // pred_region
      _
    $region5: #{_lambda_.1} parent=1 // pred_fallthru
      _
    // Predicated region
    $region6: #{_lambda_.1} parent=1 // pred_check
      _
    $region7: #{_lambda_.1} parent=1 // pred_check_branch
      %132 = sbr.rel (0) target = $region9
    $region8: #{_lambda_.1} parent=1 // pred_region
      _
    $region9: #{_lambda_.1} parent=1 // pred_fallthru
      _
    // Predicated region
    $region10: #{_lambda_.1} parent=1 // pred_check
      _
    $region11: #{_lambda_.1} parent=1 // pred_check_branch
      %134 = sbr.rel (0) target = $region13
    $region12: #{_lambda_.1} parent=1 // pred_region
      _
    $region13: #{_lambda_.1} parent=1 // pred_fallthru
      _
    // Predicated region
    $region14: #{_lambda_.1} parent=1 // pred_check
      _
    $region15: #{_lambda_.1} parent=1 // pred_check_branch
      %136 = sbr.rel (0) target = $region17
    $region16: #{_lambda_.1} parent=1 // pred_region
      _
    $region17: #{_lambda_.1} parent=1 // pred_fallthru
      _
    // Predicated region
    $region18: #{_lambda_.1} parent=1 // pred_check
      _
    $region19: #{_lambda_.1} parent=1 // pred_check_branch
      %138 = sbr.rel (0) target = $region21
    $region20: #{_lambda_.1} parent=1 // pred_region
      _
    $region21: #{_lambda_.1} parent=1 // pred_fallthru
      _
    // Predicated region
    $region22: #{_lambda_.1} parent=1 // pred_check
      _
    $region23: #{_lambda_.1} parent=1 // pred_check_branch
      %140 = sbr.rel (0) target = $region25
    $region24: #{_lambda_.1} parent=1 // pred_region
      _
    $region25: #{_lambda_.1} parent=1 // pred_fallthru
      _
    // Predicated region
    $region26: #{_lambda_.1} parent=1 // pred_check
      _
    $region27: #{_lambda_.1} parent=1 // pred_check_branch
      %142 = sbr.rel (0) target = $region29
    $region28: #{_lambda_.1} parent=1 // pred_region
      _
    $region29: #{_lambda_.1} parent=1 // pred_fallthru
      _
    // Predicated region
    $region30: #{_lambda_.1} parent=1 // pred_check
      _
    $region31: #{_lambda_.1} parent=1 // pred_check_branch
      %144 = sbr.rel (0) target = $region33
    $region32: #{_lambda_.1} parent=1 // pred_region
      _
    $region33: #{_lambda_.1} parent=1 // pred_fallthru
      _
    // Predicated region
    $region34: #{_lambda_.1} parent=1 // pred_check
      _
    $region35: #{_lambda_.1} parent=1 // pred_check_branch
      %146 = sbr.rel (0) target = $region37
    $region36: #{_lambda_.1} parent=1 // pred_region
      _
    $region37: #{_lambda_.1} parent=1 // pred_fallthru
      _
    // Predicated region
    $region38: #{_lambda_.1} parent=1 // pred_check
      _
    $region39: #{_lambda_.1} parent=1 // pred_check_branch
      %148 = sbr.rel (0) target = $region41
    $region40: #{_lambda_.1} parent=1 // pred_region
      _
    $region41: #{_lambda_.1} parent=1 // pred_fallthru
      _
    // Predicated region
    $region42: #{_lambda_.1} parent=1 // pred_check
      _
    $region43: #{_lambda_.1} parent=1 // pred_check_branch
      %150 = sbr.rel (0) target = $region45
    $region44: #{_lambda_.1} parent=1 // pred_region
      _
    $region45: #{_lambda_.1} parent=1 // pred_fallthru
      _
    // Predicated region
    $region46: #{_lambda_.1} parent=1 // pred_check
      _
    $region47: #{_lambda_.1} parent=1 // pred_check_branch
      %152 = sbr.rel (0) target = $region49
    $region48: #{_lambda_.1} parent=1 // pred_region
      _
    $region49: #{_lambda_.1} parent=1 // pred_fallthru
      _
    // Predicated region
    $region50: #{_lambda_.1} parent=1 // pred_check
      _
    $region51: #{_lambda_.1} parent=1 // pred_check_branch
      %154 = sbr.rel (0) target = $region53
    $region52: #{_lambda_.1} parent=1 // pred_region
      _
    $region53: #{_lambda_.1} parent=1 // pred_fallthru
      _
    // Predicated region
    $region54: #{_lambda_.1} parent=1 // pred_check
      _
    $region55: #{_lambda_.1} parent=1 // pred_check_branch
      %156 = sbr.rel (0) target = $region57
    $region56: #{_lambda_.1} parent=1 // pred_region
      _
    $region57: #{_lambda_.1} parent=1 // pred_fallthru
      _
    // Predicated region
    $region58: #{_lambda_.1} parent=1 // pred_check
      _
    $region59: #{_lambda_.1} parent=1 // pred_check_branch
      %158 = sbr.rel (0) target = $region61
    $region60: #{_lambda_.1} parent=1 // pred_region
      _
    $region61: #{_lambda_.1} parent=1 // pred_fallthru
      _
    // Predicated region
    $region62: #{_lambda_.1} parent=1 // pred_check
      _
    $region63: #{_lambda_.1} parent=1 // pred_check_branch
      %160 = sbr.rel (0) target = $region65
    $region64: #{_lambda_.1} parent=1 // pred_region
      _
    $region65: #{_lambda_.1} parent=1 // pred_fallthru
      _
    // Predicated region
    $region66: #{_lambda_.1} parent=1 // pred_check
      _
    $region67: #{_lambda_.1} parent=1 // pred_check_branch
      %162 = sbr.rel (0) target = $region69
    $region68: #{_lambda_.1} parent=1 // pred_region
      _
    $region69: #{_lambda_.1} parent=1 // pred_fallthru
      _
    // Predicated region
    $region70: #{_lambda_.1} parent=1 // pred_check
      _
    $region71: #{_lambda_.1} parent=1 // pred_check_branch
      %164 = sbr.rel (0) target = $region73
    $region72: #{_lambda_.1} parent=1 // pred_region
      _
    $region73: #{_lambda_.1} parent=1 // pred_fallthru
      _
    // Predicated region
    $region74: #{_lambda_.1} parent=1 // pred_check
      _
    $region75: #{_lambda_.1} parent=1 // pred_check_branch
      %166 = sbr.rel (0) target = $region77
    $region76: #{_lambda_.1} parent=1 // pred_region
      _
    $region77: #{_lambda_.1} parent=1 // pred_fallthru
      _
    // Predicated region
    $region78: #{_lambda_.1} parent=1 // pred_check
      _
    $region79: #{_lambda_.1} parent=1 // pred_check_branch
      %168 = sbr.rel (0) target = $region81
    $region80: #{_lambda_.1} parent=1 // pred_region
      _
    $region81: #{_lambda_.1} parent=1 // pred_fallthru
      _
    // Predicated region
    $region82: #{_lambda_.1} parent=1 // pred_check
      _
    $region83: #{_lambda_.1} parent=1 // pred_check_branch
      %170 = sbr.rel (0) target = $region85
    $region84: #{_lambda_.1} parent=1 // pred_region
      _
    $region85: #{_lambda_.1} parent=1 // pred_fallthru
      _
    // Predicated region
    $region86: #{_lambda_.1} parent=1 // pred_check
      _
    $region87: #{_lambda_.1} parent=1 // pred_check_branch
      %172 = sbr.rel (0) target = $region89
    $region88: #{_lambda_.1} parent=1 // pred_region
      _
    $region89: #{_lambda_.1} parent=1 // pred_fallthru
      _
    // Predicated region
    $region90: #{_lambda_.1} parent=1 // pred_check
      _
    $region91: #{_lambda_.1} parent=1 // pred_check_branch
      %174 = sbr.rel (0) target = $region93
    $region92: #{_lambda_.1} parent=1 // pred_region
      _
    $region93: #{_lambda_.1} parent=1 // pred_fallthru
      _
    // Predicated region
    $region94: #{_lambda_.1} parent=1 // pred_check
      _
    $region95: #{_lambda_.1} parent=1 // pred_check_branch
      %176 = sbr.rel (0) target = $region97
    $region96: #{_lambda_.1} parent=1 // pred_region
      _
    $region97: #{_lambda_.1} parent=1 // pred_fallthru
      _
    // Predicated region
    $region98: #{_lambda_.1} parent=1 // pred_check
      _
    $region99: #{_lambda_.1} parent=1 // pred_check_branch
      %178 = sbr.rel (0) target = $region101
    $region100: #{_lambda_.1} parent=1 // pred_region
      _
    $region101: #{_lambda_.1} parent=1 // pred_fallthru
      _
    // Predicated region
    $region102: #{_lambda_.1} parent=1 // pred_check
      _
    $region103: #{_lambda_.1} parent=1 // pred_check_branch
      %180 = sbr.rel (0) target = $region105
    $region104: #{_lambda_.1} parent=1 // pred_region
      _
    $region105: #{_lambda_.1} parent=1 // pred_fallthru
      _
    // Predicated region
    $region106: #{_lambda_.1} parent=1 // pred_check
      _
    $region107: #{_lambda_.1} parent=1 // pred_check_branch
      %182 = sbr.rel (0) target = $region109
    $region108: #{_lambda_.1} parent=1 // pred_region
      _
    $region109: #{_lambda_.1} parent=1 // pred_fallthru
      _
    // Predicated region
    $region110: #{_lambda_.1} parent=1 // pred_check
      _
    $region111: #{_lambda_.1} parent=1 // pred_check_branch
      %184 = sbr.rel (0) target = $region113
    $region112: #{_lambda_.1} parent=1 // pred_region
      _
    $region113: #{_lambda_.1} parent=1 // pred_fallthru
      _
    // Predicated region
    $region114: #{_lambda_.1} parent=1 // pred_check
      _
    $region115: #{_lambda_.1} parent=1 // pred_check_branch
      %186 = sbr.rel (0) target = $region117
    $region116: #{_lambda_.1} parent=1 // pred_region
      _
    $region117: #{_lambda_.1} parent=1 // pred_fallthru
      _
    // Predicated region
    $region118: #{_lambda_.1} parent=1 // pred_check
      _
    $region119: #{_lambda_.1} parent=1 // pred_check_branch
      %188 = sbr.rel (0) target = $region121
    $region120: #{_lambda_.1} parent=1 // pred_region
      _
    $region121: #{_lambda_.1} parent=1 // pred_fallthru
      _
    // Predicated region
    $region122: #{_lambda_.1} parent=1 // pred_check
      _
    $region123: #{_lambda_.1} parent=1 // pred_check_branch
      %190 = sbr.rel (0) target = $region125
    $region124: #{_lambda_.1} parent=1 // pred_region
      _
    $region125: #{_lambda_.1} parent=1 // pred_fallthru
      _
    // Predicated region
    $region126: #{_lambda_.1} parent=1 // pred_check
      _
    $region127: #{_lambda_.1} parent=1 // pred_check_branch
      %192 = sbr.rel (0) target = $region129
    $region128: #{_lambda_.1} parent=1 // pred_region
      _
    $region129: #{_lambda_.1} parent=1 // pred_fallthru
      _
    // Predicated region
    $region130: #{_lambda_.1} parent=1 // pred_check
      _
    $region131: #{_lambda_.1} parent=1 // pred_check_branch
      %194 = sbr.rel (0) target = $region133
    $region132: #{_lambda_.1} parent=1 // pred_region
      _
    $region133: #{_lambda_.1} parent=1 // pred_fallthru
      _
    // Predicated region
    $region134: #{_lambda_.1} parent=1 // pred_check
      _
    $region135: #{_lambda_.1} parent=1 // pred_check_branch
      %196 = sbr.rel (0) target = $region137
    $region136: #{_lambda_.1} parent=1 // pred_region
      _
    $region137: #{_lambda_.1} parent=1 // pred_fallthru
      _
    // Predicated region
    $region138: #{_lambda_.1} parent=1 // pred_check
      _
    $region139: #{_lambda_.1} parent=1 // pred_check_branch
      %198 = sbr.rel (0) target = $region141
    $region140: #{_lambda_.1} parent=1 // pred_region
      _
    $region141: #{_lambda_.1} parent=1 // pred_fallthru
      _
    // Predicated region
    $region142: #{_lambda_.1} parent=1 // pred_check
      _
    $region143: #{_lambda_.1} parent=1 // pred_check_branch
      %200 = sbr.rel (0) target = $region145
    $region144: #{_lambda_.1} parent=1 // pred_region
      %202 = vsyncadd [#allocation3], 0
      %s203 = sshll.u32 %s71, 4
      %s204 = int_to_ptr.hbm [resolvable:$true] %s203
      %s205 = sshll.u32 [#allocation2], 4
      %s206 = int_to_ptr.vmem [resolvable:$true] %s205
      %211 = dma.hbm_to_vmem [thread:$0]  %s204, 1024, %s206, [#allocation3], 64, 64, 4
    $region145: #{_lambda_.1} parent=1 // pred_fallthru
      _
    // Predicated region
    $region146: #{_lambda_.1} parent=1 // pred_check
      _
    $region147: #{_lambda_.1} parent=1 // pred_check_branch
      %213 = sbr.rel (0) target = $region149
    $region148: #{_lambda_.1} parent=1 // pred_region
      _
    $region149: #{_lambda_.1} parent=1 // pred_fallthru
      _
    // Predicated region
    $region150: #{_lambda_.1} parent=1 // pred_check
      _
    $region151: #{_lambda_.1} parent=1 // pred_check_branch
      %215 = sbr.rel (0) target = $region153
    $region152: #{_lambda_.1} parent=1 // pred_region
      _
    $region153: #{_lambda_.1} parent=1 // pred_fallthru
      _
    // Predicated region
    $region154: #{_lambda_.1} parent=1 // pred_check
      _
    $region155: #{_lambda_.1} parent=1 // pred_check_branch
      %217 = sbr.rel (0) target = $region157
    $region156: #{_lambda_.1} parent=1 // pred_region
      %219 = vsyncadd [#allocation6], 0
      %s220 = sshll.u32 %s77, 4
      %s221 = int_to_ptr.hbm [resolvable:$true] %s220
      %s222 = sshll.u32 [#allocation5], 4
      %s223 = int_to_ptr.vmem [resolvable:$true] %s222
      %228 = dma.hbm_to_vmem [thread:$0]  %s221, 1024, %s223, [#allocation6], 64, 64, 4
    $region157: #{_lambda_.1} parent=1 // pred_fallthru
      _
    // Predicated region
    $region158: #{_lambda_.1} parent=1 // pred_check
      _
    $region159: #{_lambda_.1} parent=1 // pred_check_branch
      %230 = sbr.rel (0) target = $region161
    $region160: #{_lambda_.1} parent=1 // pred_region
      _
    $region161: #{_lambda_.1} parent=1 // pred_fallthru
      _
    // Predicated region
    $region162: #{_lambda_.1} parent=1 // pred_check
      _
    $region163: #{_lambda_.1} parent=1 // pred_check_branch
      %232 = sbr.rel (0) target = $region165
    $region164: #{_lambda_.1} parent=1 // pred_region
      _
    $region165: #{_lambda_.1} parent=1 // pred_fallthru
      _
    // Predicated region
    $region166: #{_lambda_.1} parent=1 // pred_check
      _
    $region167: #{_lambda_.1} parent=1 // pred_check_branch
      %234 = sbr.rel (0) target = $region169
    $region168: #{_lambda_.1} parent=1 // pred_region
      _
    $region169: #{_lambda_.1} parent=1 // pred_fallthru
      _
    // Predicated region
    $region170: #{_lambda_.1} parent=1 // pred_check
      _
    $region171: #{_lambda_.1} parent=1 // pred_check_branch
      %236 = sbr.rel (0) target = $region173
    $region172: #{_lambda_.1} parent=1 // pred_region
      _
    $region173: #{_lambda_.1} parent=1 // pred_fallthru
      _
    // Predicated region
    $region174: #{_lambda_.1} parent=1 // pred_check
      _
    $region175: #{_lambda_.1} parent=1 // pred_check_branch
      %238 = sbr.rel (0) target = $region177
    $region176: #{_lambda_.1} parent=1 // pred_region
      _
    $region177: #{_lambda_.1} parent=1 // pred_fallthru
      _
    // Predicated region
    $region178: #{_lambda_.1} parent=1 // pred_check
      _
    $region179: #{_lambda_.1} parent=1 // pred_check_branch
      %240 = sbr.rel (0) target = $region181
    $region180: #{_lambda_.1} parent=1 // pred_region
      _
    $region181: #{_lambda_.1} parent=1 // pred_fallthru
      _
    // Predicated region
    $region182: #{_lambda_.1} parent=1 // pred_check
      _
    $region183: #{_lambda_.1} parent=1 // pred_check_branch
      %242 = sbr.rel (0) target = $region185
    $region184: #{_lambda_.1} parent=1 // pred_region
      _
    $region185: #{_lambda_.1} parent=1 // pred_fallthru
      _
    // Predicated region
    $region186: #{_lambda_.1} parent=1 // pred_check
      _
    $region187: #{_lambda_.1} parent=1 // pred_check_branch
      %244 = sbr.rel (0) target = $region189
    $region188: #{_lambda_.1} parent=1 // pred_region
      _
    $region189: #{_lambda_.1} parent=1 // pred_fallthru
      _
    // Predicated region
    $region190: #{_lambda_.1} parent=1 // pred_check
      _
    $region191: #{_lambda_.1} parent=1 // pred_check_branch
      %246 = sbr.rel (0) target = $region193
    $region192: #{_lambda_.1} parent=1 // pred_region
      _
    $region193: #{_lambda_.1} parent=1 // pred_fallthru
      _
    // Predicated region
    $region194: #{_lambda_.1} parent=1 // pred_check
      _
    $region195: #{_lambda_.1} parent=1 // pred_check_branch
      %248 = sbr.rel (0) target = $region197
    $region196: #{_lambda_.1} parent=1 // pred_region
      _
    $region197: #{_lambda_.1} parent=1 // pred_fallthru
      _
    // Predicated region
    $region198: #{_lambda_.1} parent=1 // pred_check
      _
    $region199: #{_lambda_.1} parent=1 // pred_check_branch
      %250 = sbr.rel (0) target = $region201
    $region200: #{_lambda_.1} parent=1 // pred_region
      _
    $region201: #{_lambda_.1} parent=1 // pred_fallthru
      _
    // Predicated region
    $region202: #{_lambda_.1} parent=1 // pred_check
      _
    $region203: #{_lambda_.1} parent=1 // pred_check_branch
      %252 = sbr.rel (0) target = $region205
    $region204: #{_lambda_.1} parent=1 // pred_region
      _
    $region205: #{_lambda_.1} parent=1 // pred_fallthru
      _
    // Predicated region
    $region206: #{_lambda_.1} parent=1 // pred_check
      _
    $region207: #{_lambda_.1} parent=1 // pred_check_branch
      %254 = sbr.rel (0) target = $region209
    $region208: #{_lambda_.1} parent=1 // pred_region
      _
    $region209: #{_lambda_.1} parent=1 // pred_fallthru
      _
    // Predicated region
    $region210: #{_lambda_.1} parent=1 // pred_check
      _
    $region211: #{_lambda_.1} parent=1 // pred_check_branch
      %256 = sbr.rel (0) target = $region213
    $region212: #{_lambda_.1} parent=1 // pred_region
      _
    $region213: #{_lambda_.1} parent=1 // pred_fallthru
      _
    // Predicated region
    $region214: #{_lambda_.1} parent=1 // pred_check
      _
    $region215: #{_lambda_.1} parent=1 // pred_check_branch
      %258 = sbr.rel (0) target = $region217
    $region216: #{_lambda_.1} parent=1 // pred_region
      _
    $region217: #{_lambda_.1} parent=1 // pred_fallthru
      _
    // Predicated region
    $region218: #{_lambda_.1} parent=1 // pred_check
      _
    $region219: #{_lambda_.1} parent=1 // pred_check_branch
      %260 = sbr.rel (0) target = $region221
    $region220: #{_lambda_.1} parent=1 // pred_region
      _
    $region221: #{_lambda_.1} parent=1 // pred_fallthru
      _
    // Predicated region
    $region222: #{_lambda_.1} parent=1 // pred_check
      _
    $region223: #{_lambda_.1} parent=1 // pred_check_branch
      %262 = sbr.rel (0) target = $region225
    $region224: #{_lambda_.1} parent=1 // pred_region
      _
    $region225: #{_lambda_.1} parent=1 // pred_fallthru
      _
    // Predicated region
    $region226: #{_lambda_.1} parent=1 // pred_check
      _
    $region227: #{_lambda_.1} parent=1 // pred_check_branch
      %264 = sbr.rel (0) target = $region229
    $region228: #{_lambda_.1} parent=1 // pred_region
      _
    $region229: #{_lambda_.1} parent=1 // pred_fallthru
      _
    // Predicated region
    $region230: #{_lambda_.1} parent=1 // pred_check
      _
    $region231: #{_lambda_.1} parent=1 // pred_check_branch
      %266 = sbr.rel (0) target = $region233
    $region232: #{_lambda_.1} parent=1 // pred_region
      _
    $region233: #{_lambda_.1} parent=1 // pred_fallthru
      _
    // Predicated region
    $region234: #{_lambda_.1} parent=1 // pred_check
      _
    $region235: #{_lambda_.1} parent=1 // pred_check_branch
      %268 = sbr.rel (0) target = $region237
    $region236: #{_lambda_.1} parent=1 // pred_region
      _
    $region237: #{_lambda_.1} parent=1 // pred_fallthru
      _
    // Predicated region
    $region238: #{_lambda_.1} parent=1 // pred_check
      _
    $region239: #{_lambda_.1} parent=1 // pred_check_branch
      %270 = sbr.rel (0) target = $region241
    $region240: #{_lambda_.1} parent=1 // pred_region
      _
    $region241: #{_lambda_.1} parent=1 // pred_fallthru
      _
    // Predicated region
    $region242: #{_lambda_.1} parent=1 // pred_check
      _
    $region243: #{_lambda_.1} parent=1 // pred_check_branch
      %272 = sbr.rel (0) target = $region245
    $region244: #{_lambda_.1} parent=1 // pred_region
      %274 = dma.done [#allocation3], 1024
    $region245: #{_lambda_.1} parent=1 // pred_fallthru
      _
    // Predicated region
    $region246: #{_lambda_.1} parent=1 // pred_check
      _
    $region247: #{_lambda_.1} parent=1 // pred_check_branch
      %276 = sbr.rel (0) target = $region249
    $region248: #{_lambda_.1} parent=1 // pred_region
      %278 = dma.done [#allocation6], 1024
    $region249: #{_lambda_.1} parent=1 // pred_fallthru
      _
    %v280 = vld [vmem:[%s1] sm:$0xff]
    %v281 = vld [vmem:[%s1 + $0x8] sm:$0xff]
    %v282 = vld [vmem:[%s1 + $0x10] sm:$0xff]
    %v283 = vld [vmem:[%s1 + $0x18] sm:$0xff]
    %v284 = vld [vmem:[%s3] sm:$0xff]
    %v285 = vld [vmem:[%s3 + $0x8] sm:$0xff]
    %v286 = vld [vmem:[%s3 + $0x10] sm:$0xff]
    %v287 = vld [vmem:[%s3 + $0x18] sm:$0xff]
    %v288 = vld [vmem:[%s91] sm:$0x1]
    %v289 = vld [vmem:[%s89] sm:$0x1]
    %290 = vadd.xlane.f32.xlu0 %v280
    %v291 = vpop.xlane.xlu0 %290
    %292 = vadd.xlane.f32.xlu0 %v281
    %v293 = vpop.xlane.xlu0 %292
    %294 = vadd.xlane.f32.xlu0 %v282
    %v295 = vpop.xlane.xlu0 %294
    %296 = vadd.xlane.f32.xlu0 %v283
    %v297 = vpop.xlane.xlu0 %296
    %v298 = vrcp.pop 128.0
    %v299 = vmul.f32 128.0, %v298
    %v300 = vsub.f32 1.0, %v299
    %v301 = vmul.f32 %v298, %v300
    %v302 = vadd.f32 %v298, %v301
    %vm303 = vweird.f32 %v298
    %v304 = vsel %vm303, %v298, %v302
    %v305 = vmul.f32 %v291, %v304
    %v306 = vmul.f32 %v293, %v304
    %v307 = vmul.f32 %v295, %v304
    %v308 = vmul.f32 %v297, %v304
    %v309 = vsub.f32 %v280, %v305
    %v310 = vsub.f32 %v281, %v306
    %v311 = vsub.f32 %v282, %v307
    %v312 = vsub.f32 %v283, %v308
    %v313 = vmul.f32 %v309, %v309
    %v314 = vmul.f32 %v310, %v310
    %v315 = vmul.f32 %v311, %v311
    %v316 = vmul.f32 %v312, %v312
    %317 = vadd.xlane.f32.xlu0 %v313
    %v318 = vpop.xlane.xlu0 %317
    %319 = vadd.xlane.f32.xlu0 %v314
    %v320 = vpop.xlane.xlu0 %319
    %321 = vadd.xlane.f32.xlu0 %v315
    %v322 = vpop.xlane.xlu0 %321
    %323 = vadd.xlane.f32.xlu0 %v316
    %v324 = vpop.xlane.xlu0 %323
    %v325 = vmul.f32 %v318, %v304
    %v326 = vmul.f32 %v320, %v304
    %v327 = vmul.f32 %v322, %v304
    %v328 = vmul.f32 %v324, %v304
    %v329 = vadd.f32 %v325, 1e-12
    %v330 = vadd.f32 %v326, 1e-12
    %v331 = vadd.f32 %v327, 1e-12
    %v332 = vadd.f32 %v328, 1e-12
    %v333 = vrsqrt.pop %v329
    %v334 = vmul.f32 %v333, %v329
    %v335 = vmul.f32 %v334, %v333
    %v336 = vmul.f32 0.5, %v335
    %v337 = vsub.f32 1.5, %v336
    %v338 = vmul.f32 %v333, %v337
    %vm339 = vweird.f32 %v329
    %vm340 = vweird.f32 %v333
    %vm341 = vmor %vm339, %vm340
    %v342 = vsel %vm341, %v333, %v338
    %v343 = vrsqrt.pop %v330
    %v344 = vmul.f32 %v343, %v330
    %v345 = vmul.f32 %v344, %v343
    %v346 = vmul.f32 0.5, %v345
    %v347 = vsub.f32 1.5, %v346
    %v348 = vmul.f32 %v343, %v347
    %vm349 = vweird.f32 %v330
    %vm350 = vweird.f32 %v343
    %vm351 = vmor %vm349, %vm350
    %v352 = vsel %vm351, %v343, %v348
    %v353 = vrsqrt.pop %v331
    %v354 = vmul.f32 %v353, %v331
    %v355 = vmul.f32 %v354, %v353
    %v356 = vmul.f32 0.5, %v355
    %v357 = vsub.f32 1.5, %v356
    %v358 = vmul.f32 %v353, %v357
    %vm359 = vweird.f32 %v331
    %vm360 = vweird.f32 %v353
    %vm361 = vmor %vm359, %vm360
    %v362 = vsel %vm361, %v353, %v358
    %v363 = vrsqrt.pop %v332
    %v364 = vmul.f32 %v363, %v332
    %v365 = vmul.f32 %v364, %v363
    %v366 = vmul.f32 0.5, %v365
    %v367 = vsub.f32 1.5, %v366
    %v368 = vmul.f32 %v363, %v367
    %vm369 = vweird.f32 %v332
    %vm370 = vweird.f32 %v363
    %vm371 = vmor %vm369, %vm370
    %v372 = vsel %vm371, %v363, %v368
    %v373 = vmul.f32 %v309, %v342
    %v374 = vmul.f32 %v310, %v352
    %v375 = vmul.f32 %v311, %v362
    %v376 = vmul.f32 %v312, %v372
    %v378 = vperm.slane %v288, 0
    %v380 = vmul.f32 %v373, %v378
    %v381 = vmul.f32 %v374, %v378
    %v382 = vmul.f32 %v375, %v378
    %v383 = vmul.f32 %v376, %v378
    %v385 = vperm.slane %v289, 0
    %v387 = vadd.f32 %v380, %v385
    %v388 = vadd.f32 %v381, %v385
    %v389 = vadd.f32 %v382, %v385
    %v390 = vadd.f32 %v383, %v385
    %v391 = vld [vmem:[%s115] sm:$0xff]
    %v392 = vld [vmem:[%s115 + $0x8] sm:$0xf]
    %v393 = vld [vmem:[%s115 + $0xc] sm:$0xff]
    %v394 = vld [vmem:[%s115 + $0x14] sm:$0xf]
    %v395 = vld [vmem:[%s115 + $0x18] sm:$0xff]
    %v396 = vld [vmem:[%s115 + $0x20] sm:$0xf]
    %v397 = vld [vmem:[%s115 + $0x24] sm:$0xff]
    %v398 = vld [vmem:[%s115 + $0x2c] sm:$0xf]
    %v399 = vld [vmem:[%s115 + $0x30] sm:$0xff]
    %v400 = vld [vmem:[%s115 + $0x38] sm:$0xf]
    %v401 = vld [vmem:[%s115 + $0x3c] sm:$0xff]
    %v402 = vld [vmem:[%s115 + $0x44] sm:$0xf]
    %v403 = vld [vmem:[%s115 + $0x48] sm:$0xff]
    %v404 = vld [vmem:[%s115 + $0x50] sm:$0xf]
    %v405 = vld [vmem:[%s115 + $0x54] sm:$0xff]
    %v406 = vld [vmem:[%s115 + $0x5c] sm:$0xf]
    %v407 = vld [vmem:[%s115 + $0x60] sm:$0xff]
    %v408 = vld [vmem:[%s115 + $0x68] sm:$0xf]
    %v409 = vld [vmem:[%s115 + $0x6c] sm:$0xff]
    %v410 = vld [vmem:[%s115 + $0x74] sm:$0xf]
    %v411 = vld [vmem:[%s115 + $0x78] sm:$0xff]
    %v412 = vld [vmem:[%s115 + $0x80] sm:$0xf]
    %v413 = vld [vmem:[%s115 + $0x84] sm:$0xff]
    %v414 = vld [vmem:[%s115 + $0x8c] sm:$0xf]
    %v415 = vld [vmem:[%s115 + $0x90] sm:$0xff]
    %v416 = vld [vmem:[%s115 + $0x98] sm:$0xf]
    %v417 = vld [vmem:[%s115 + $0x9c] sm:$0xff]
    %v418 = vld [vmem:[%s115 + $0xa4] sm:$0xf]
    %v419 = vld [vmem:[%s115 + $0xa8] sm:$0xff]
    %v420 = vld [vmem:[%s115 + $0xb0] sm:$0xf]
    %v421 = vld [vmem:[%s115 + $0xb4] sm:$0xff]
    %v422 = vld [vmem:[%s115 + $0xbc] sm:$0xf]
    %v423 = vld [vmem:[%s99] sm:$0x7]
    %v424 = vld [vmem:[%s113] sm:$0xf]
    %v425 = vld [vmem:[%s113 + $0x4] sm:$0xf]
    %v426 = vld [vmem:[%s113 + $0x8] sm:$0xf]
    %v427 = vld [vmem:[%s113 + $0xc] sm:$0xf]
    %v428 = vld [vmem:[%s113 + $0x10] sm:$0xf]
    %v429 = vld [vmem:[%s113 + $0x14] sm:$0xf]
    %v430 = vld [vmem:[%s113 + $0x18] sm:$0xf]
    %v431 = vld [vmem:[%s113 + $0x1c] sm:$0xf]
    %v432 = vld [vmem:[%s113 + $0x20] sm:$0xf]
    %v433 = vld [vmem:[%s113 + $0x24] sm:$0xf]
    %v434 = vld [vmem:[%s113 + $0x28] sm:$0xf]
    %v435 = vld [vmem:[%s113 + $0x2c] sm:$0xf]
    %v436 = vld [vmem:[%s113 + $0x30] sm:$0xf]
    %v437 = vld [vmem:[%s113 + $0x34] sm:$0xf]
    %v438 = vld [vmem:[%s113 + $0x38] sm:$0xf]
    %v439 = vld [vmem:[%s113 + $0x3c] sm:$0xf]
    %v440 = vld [vmem:[%s97] sm:$0x1]
    %v441 = vld [vmem:[%s103] sm:$0x1]
    %v442 = vld [vmem:[%s101] sm:$0x1]
    %v443 = vld [vmem:[%s109] sm:$0xff]
    %v444 = vld [vmem:[%s109 + $0x8] sm:$0xff]
    %v445 = vld [vmem:[%s109 + $0x10] sm:$0xff]
    %v446 = vld [vmem:[%s109 + $0x18] sm:$0xff]
    %v447 = vld [vmem:[%s109 + $0x20] sm:$0xff]
    %v448 = vld [vmem:[%s109 + $0x28] sm:$0xff]
    %v449 = vld [vmem:[%s109 + $0x30] sm:$0xff]
    %v450 = vld [vmem:[%s109 + $0x38] sm:$0xff]
    %v451 = vld [vmem:[%s109 + $0x40] sm:$0xff]
    %v452 = vld [vmem:[%s109 + $0x48] sm:$0xff]
    %v453 = vld [vmem:[%s109 + $0x50] sm:$0xff]
    %v454 = vld [vmem:[%s109 + $0x58] sm:$0xff]
    %v455 = vld [vmem:[%s109 + $0x60] sm:$0xff]
    %v456 = vld [vmem:[%s109 + $0x68] sm:$0xff]
    %v457 = vld [vmem:[%s109 + $0x70] sm:$0xff]
    %v458 = vld [vmem:[%s109 + $0x78] sm:$0xff]
    %v459 = vld [vmem:[%s93] sm:$0x3]
    %v460 = vld [vmem:[%s111] sm:$0xf]
    %v461 = vld [vmem:[%s111 + $0x4] sm:$0xf]
    %v462 = vld [vmem:[%s111 + $0x8] sm:$0xf]
    %v463 = vld [vmem:[%s111 + $0xc] sm:$0xf]
    %v464 = vld [vmem:[%s111 + $0x10] sm:$0xf]
    %v465 = vld [vmem:[%s111 + $0x14] sm:$0xf]
    %v466 = vld [vmem:[%s111 + $0x18] sm:$0xf]
    %v467 = vld [vmem:[%s111 + $0x1c] sm:$0xf]
    %v468 = vld [vmem:[%s111 + $0x20] sm:$0xf]
    %v469 = vld [vmem:[%s111 + $0x24] sm:$0xf]
    %v470 = vld [vmem:[%s111 + $0x28] sm:$0xf]
    %v471 = vld [vmem:[%s111 + $0x2c] sm:$0xf]
    %v472 = vld [vmem:[%s111 + $0x30] sm:$0xf]
    %v473 = vld [vmem:[%s111 + $0x34] sm:$0xf]
    %v474 = vld [vmem:[%s111 + $0x38] sm:$0xf]
    %v475 = vld [vmem:[%s111 + $0x3c] sm:$0xf]
    %v476 = vld [vmem:[%s111 + $0x40] sm:$0xf]
    %v477 = vld [vmem:[%s111 + $0x44] sm:$0xf]
    %v478 = vld [vmem:[%s111 + $0x48] sm:$0xf]
    %v479 = vld [vmem:[%s111 + $0x4c] sm:$0xf]
    %v480 = vld [vmem:[%s111 + $0x50] sm:$0xf]
    %v481 = vld [vmem:[%s111 + $0x54] sm:$0xf]
    %v482 = vld [vmem:[%s111 + $0x58] sm:$0xf]
    %v483 = vld [vmem:[%s111 + $0x5c] sm:$0xf]
    %v484 = vld [vmem:[%s111 + $0x60] sm:$0xf]
    %v485 = vld [vmem:[%s111 + $0x64] sm:$0xf]
    %v486 = vld [vmem:[%s111 + $0x68] sm:$0xf]
    %v487 = vld [vmem:[%s111 + $0x6c] sm:$0xf]
    %v488 = vld [vmem:[%s111 + $0x70] sm:$0xf]
    %v489 = vld [vmem:[%s111 + $0x74] sm:$0xf]
    %v490 = vld [vmem:[%s111 + $0x78] sm:$0xf]
    %v491 = vld [vmem:[%s111 + $0x7c] sm:$0xf]
    %v492 = vld [vmem:[%s95] sm:$0x1]
    %v493 = vld [vmem:[%s107] sm:$0x1]
    %v494 = vld [vmem:[%s105] sm:$0x1]
    %v495 = vpack.c.bf16 %v388, %v387
    %v496 = vpack.c.bf16 %v390, %v389
    %v498 = vperm.slane %v423, 0
    %v499 = vperm.slane %v423, 1
    %v500 = vperm.slane %v423, 2
    %v536 = vunpack.c.l.b16 %v391
    %v537 = vunpack.c.h.b16 %v391
    %v538 = vunpack.c.l.b16 %v392
    %v539 = vunpack.c.l.b16 %v393
    %v540 = vunpack.c.h.b16 %v393
    %v541 = vunpack.c.l.b16 %v394
    %v542 = vunpack.c.l.b16 %v395
    %v543 = vunpack.c.h.b16 %v395
    %v544 = vunpack.c.l.b16 %v396
    %v545 = vunpack.c.l.b16 %v397
    %v546 = vunpack.c.h.b16 %v397
    %v547 = vunpack.c.l.b16 %v398
    %v548 = vunpack.c.l.b16 %v399
    %v549 = vunpack.c.h.b16 %v399
    %v550 = vunpack.c.l.b16 %v400
    %v551 = vunpack.c.l.b16 %v401
    %v552 = vunpack.c.h.b16 %v401
    %v553 = vunpack.c.l.b16 %v402
    %v554 = vunpack.c.l.b16 %v403
    %v555 = vunpack.c.h.b16 %v403
    %v556 = vunpack.c.l.b16 %v404
    %v557 = vunpack.c.l.b16 %v405
    %v558 = vunpack.c.h.b16 %v405
    %v559 = vunpack.c.l.b16 %v406
    %v560 = vunpack.c.l.b16 %v407
    %v561 = vunpack.c.h.b16 %v407
    %v562 = vunpack.c.l.b16 %v408
    %v563 = vunpack.c.l.b16 %v409
    %v564 = vunpack.c.h.b16 %v409
    %v565 = vunpack.c.l.b16 %v410
    %v566 = vunpack.c.l.b16 %v411
    %v567 = vunpack.c.h.b16 %v411
    %v568 = vunpack.c.l.b16 %v412
    %v569 = vunpack.c.l.b16 %v413
    %v570 = vunpack.c.h.b16 %v413
    %v571 = vunpack.c.l.b16 %v414
    %v572 = vunpack.c.l.b16 %v415
    %v573 = vunpack.c.h.b16 %v415
    %v574 = vunpack.c.l.b16 %v416
    %v575 = vunpack.c.l.b16 %v417
    %v576 = vunpack.c.h.b16 %v417
    %v577 = vunpack.c.l.b16 %v418
    %v578 = vunpack.c.l.b16 %v419
    %v579 = vunpack.c.h.b16 %v419
    %v580 = vunpack.c.l.b16 %v420
    %v581 = vunpack.c.l.b16 %v421
    %v582 = vunpack.c.h.b16 %v421
    %v583 = vunpack.c.l.b16 %v422
    %v584 = vpack.c.b16 %v539, %v536
    %v585 = vpack.c.b16 %v540, %v537
    %v586 = vpack.c.b16 %v541, %v538
    %v587 = vpack.c.b16 %v545, %v542
    %v588 = vpack.c.b16 %v546, %v543
    %v589 = vpack.c.b16 %v547, %v544
    %v590 = vpack.c.b16 %v551, %v548
    %v591 = vpack.c.b16 %v552, %v549
    %v592 = vpack.c.b16 %v553, %v550
    %v593 = vpack.c.b16 %v557, %v554
    %v594 = vpack.c.b16 %v558, %v555
    %v595 = vpack.c.b16 %v559, %v556
    %v596 = vpack.c.b16 %v563, %v560
    %v597 = vpack.c.b16 %v564, %v561
    %v598 = vpack.c.b16 %v565, %v562
    %v599 = vpack.c.b16 %v569, %v566
    %v600 = vpack.c.b16 %v570, %v567
    %v601 = vpack.c.b16 %v571, %v568
    %v602 = vpack.c.b16 %v575, %v572
    %v603 = vpack.c.b16 %v576, %v573
    %v604 = vpack.c.b16 %v577, %v574
    %v605 = vpack.c.b16 %v581, %v578
    %v606 = vpack.c.b16 %v582, %v579
    %v607 = vpack.c.b16 %v583, %v580
    %632 = vmatpush.bf16.msra.mxu0 %v605
    %633 = vmatpush.bf16.msra.mxu0 %v602
    %634 = vmatpush.bf16.msra.mxu0 %v599
    %635 = vmatpush.bf16.msra.mxu0 %v596
    %636 = vmatpush.bf16.msra.mxu0 %v593
    %637 = vmatpush.bf16.msra.mxu0 %v590
    %638 = vmatpush.bf16.msra.mxu0 %v587
    %639 = vmatpush.bf16.msra.mxu0 %v584
    %640 = vmatmul.bf16.gmra.mxu0 %v495
    %v641 = vpop.f32.mrf.mxu0
    %v642 = vadd.f32 %v498, %v641
    %v643 = vpop.f32.mrf.mxu0
    %v644 = vadd.f32 %v498, %v643
    %645 = vmatmul.bf16.gmra.mxu0 %v496
    %v646 = vpop.f32.mrf.mxu0
    %v647 = vadd.f32 %v498, %v646
    %v648 = vpop.f32.mrf.mxu0
    %v649 = vadd.f32 %v498, %v648
    %650 = vdwg.mxu0
    %651 = vmatpush.bf16.msra.mxu0 %v606
    %652 = vmatpush.bf16.msra.mxu0 %v603
    %653 = vmatpush.bf16.msra.mxu0 %v600
    %654 = vmatpush.bf16.msra.mxu0 %v597
    %655 = vmatpush.bf16.msra.mxu0 %v594
    %656 = vmatpush.bf16.msra.mxu0 %v591
    %657 = vmatpush.bf16.msra.mxu0 %v588
    %658 = vmatpush.bf16.msra.mxu0 %v585
    %659 = vmatmul.bf16.gmra.mxu0 %v495
    %v660 = vpop.f32.mrf.mxu0
    %v661 = vadd.f32 %v499, %v660
    %v662 = vpop.f32.mrf.mxu0
    %v663 = vadd.f32 %v499, %v662
    %664 = vmatmul.bf16.gmra.mxu0 %v496
    %v665 = vpop.f32.mrf.mxu0
    %v666 = vadd.f32 %v499, %v665
    %v667 = vpop.f32.mrf.mxu0
    %v668 = vadd.f32 %v499, %v667
    %669 = vdwg.mxu0
    %670 = vmatpush.bf16.msra.mxu0 %v607
    %671 = vmatpush.bf16.msra.mxu0 %v604
    %672 = vmatpush.bf16.msra.mxu0 %v601
    %673 = vmatpush.bf16.msra.mxu0 %v598
    %674 = vmatpush.bf16.msra.mxu0 %v595
    %675 = vmatpush.bf16.msra.mxu0 %v592
    %676 = vmatpush.bf16.msra.mxu0 %v589
    %677 = vmatpush.bf16.msra.mxu0 %v586
    %678 = vmatmul.bf16.gmra.mxu0 %v495
    %v679 = vpop.f32.mrf.mxu0
    %v680 = vadd.f32 %v500, %v679
    %v681 = vpop.f32.mrf.mxu0
    %v682 = vadd.f32 %v500, %v681
    %683 = vmatmul.bf16.gmra.mxu0 %v496
    %v684 = vpop.f32.mrf.mxu0
    %v685 = vadd.f32 %v500, %v684
    %v686 = vpop.f32.mrf.mxu0
    %v687 = vadd.f32 %v500, %v686
    %688 = vdwg.mxu0
    %v689 = vpack.c.bf16 %v644, %v642
    %v690 = vpack.c.bf16 %v649, %v647
    %v691 = vpack.c.bf16 %v663, %v661
    %v692 = vpack.c.bf16 %v668, %v666
    %vm693 = vcmask 261120
    %v695 = vsel %vm693, %v689, 0
    %v698 = vsel %vm693, %v690, 0
    %v701 = vsel %vm693, %v691, 0
    %v704 = vsel %vm693, %v692, 0
    %706 = vmatpush.bf16.xpose.msra.mxu0 0
    %707 = vmatpush.bf16.xpose.msra.mxu0 0
    %708 = vmatpush.bf16.xpose.msra.mxu0 0
    %709 = vmatpush.bf16.xpose.msra.mxu0 0
    %710 = vmatpush.bf16.xpose.msra.mxu0 0
    %711 = vmatpush.bf16.xpose.msra.mxu0 0
    %712 = vmatpush.bf16.xpose.msra.mxu0 %v704
    %713 = vmatpush.bf16.xpose.msra.mxu0 %v701
    %714 = vmatmul.bf16.gmra.mxu0 %v695
    %v715 = vpop.f32.mrf.mxu0
    %v716 = vadd.f32 0.0, %v715
    %v717 = vpop.f32.mrf.mxu0
    %v718 = vadd.f32 0.0, %v717
    %719 = vmatmul.bf16.gmra.mxu0 %v698
    %v720 = vpop.f32.mrf.mxu0
    %v721 = vadd.f32 0.0, %v720
    %v722 = vpop.f32.mrf.mxu0
    %v723 = vadd.f32 0.0, %v722
    %724 = vdwg.mxu0
    %v725 = vmul.f32 %v716, 0.17677669
    %v726 = vmul.f32 %v718, 0.17677669
    %v727 = vmul.f32 %v721, 0.17677669
    %v728 = vmul.f32 %v723, 0.17677669
    %v729 = vadd.f32 %v725, %v284
    %v730 = vadd.f32 %v726, %v285
    %v731 = vadd.f32 %v727, %v286
    %v732 = vadd.f32 %v728, %v287
    %v733 = vsel %vm693, %v729, -inf
    %734 = vmax.xlane.f32.xlu0 %v733
    %v735 = vpop.xlane.xlu0 %734
    %v736 = vsel %vm693, %v730, -inf
    %737 = vmax.xlane.f32.xlu0 %v736
    %v738 = vpop.xlane.xlu0 %737
    %v739 = vsel %vm693, %v731, -inf
    %740 = vmax.xlane.f32.xlu0 %v739
    %v741 = vpop.xlane.xlu0 %740
    %v742 = vsel %vm693, %v732, -inf
    %743 = vmax.xlane.f32.xlu0 %v742
    %v744 = vpop.xlane.xlu0 %743
    %v745 = vsub.f32 %v729, %v735
    %v746 = vsub.f32 %v730, %v738
    %v747 = vsub.f32 %v731, %v741
    %v748 = vsub.f32 %v732, %v744
    %v749 = vmul.f32 %v745, 1.442695
    %v750 = vpow.pop %v749
    %v751 = vmul.f32 %v746, 1.442695
    %v752 = vpow.pop %v751
    %v753 = vmul.f32 %v747, 1.442695
    %v754 = vpow.pop %v753
    %v755 = vmul.f32 %v748, 1.442695
    %v756 = vpow.pop %v755
    %v757 = vsel %vm693, %v750, 0.0
    %758 = vadd.xlane.f32.xlu0 %v757
    %v759 = vpop.xlane.xlu0 %758
    %v760 = vsel %vm693, %v752, 0.0
    %761 = vadd.xlane.f32.xlu0 %v760
    %v762 = vpop.xlane.xlu0 %761
    %v763 = vsel %vm693, %v754, 0.0
    %764 = vadd.xlane.f32.xlu0 %v763
    %v765 = vpop.xlane.xlu0 %764
    %v766 = vsel %vm693, %v756, 0.0
    %767 = vadd.xlane.f32.xlu0 %v766
    %v768 = vpop.xlane.xlu0 %767
    %v769 = vrcp.pop %v759
    %v770 = vrcp.pop %v762
    %v771 = vrcp.pop %v765
    %v772 = vrcp.pop %v768
    %v773 = vmul.f32 %v750, %v769
    %v774 = vmul.f32 %v752, %v770
    %v775 = vmul.f32 %v754, %v771
    %v776 = vmul.f32 %v756, %v772
    %v777 = vpack.c.bf16 %v774, %v773
    %v778 = vpack.c.bf16 %v776, %v775
    %v779 = vpack.c.bf16 %v682, %v680
    %v780 = vpack.c.bf16 %v687, %v685
    %v782 = vsel %vm693, %v777, 0
    %v785 = vsel %vm693, %v778, 0
    %787 = vmatpush.bf16.msra.mxu0 0
    %788 = vmatpush.bf16.msra.mxu0 0
    %789 = vmatpush.bf16.msra.mxu0 0
    %790 = vmatpush.bf16.msra.mxu0 0
    %791 = vmatpush.bf16.msra.mxu0 0
    %792 = vmatpush.bf16.msra.mxu0 0
    %793 = vmatpush.bf16.msra.mxu0 %v780
    %794 = vmatpush.bf16.msra.mxu0 %v779
    %795 = vmatmul.bf16.gmra.mxu0 %v782
    %v796 = vpop.f32.mrf.mxu0
    %v797 = vadd.f32 0.0, %v796
    %v798 = vpop.f32.mrf.mxu0
    %v799 = vadd.f32 0.0, %v798
    %800 = vmatmul.bf16.gmra.mxu0 %v785
    %v801 = vpop.f32.mrf.mxu0
    %v802 = vadd.f32 0.0, %v801
    %v803 = vpop.f32.mrf.mxu0
    %v804 = vadd.f32 0.0, %v803
    %805 = vdwg.mxu0
    %v806 = vpack.c.bf16 %v799, %v797
    %v807 = vpack.c.bf16 %v804, %v802
    %810 = vrot.lane.b32.xlu0 %v689, 96
    %v811 = vpop.permute.xlu0 %810
    %812 = vrot.lane.b32.xlu0 %v690, 96
    %v813 = vpop.permute.xlu0 %812
    %816 = vrot.lane.b32.xlu0 %v691, 96
    %v817 = vpop.permute.xlu0 %816
    %818 = vrot.lane.b32.xlu0 %v692, 96
    %v819 = vpop.permute.xlu0 %818
    %v821 = vsel %vm693, %v811, 0
    %v824 = vsel %vm693, %v813, 0
    %v827 = vsel %vm693, %v817, 0
    %v830 = vsel %vm693, %v819, 0
    %832 = vmatpush.bf16.xpose.msra.mxu0 0
    %833 = vmatpush.bf16.xpose.msra.mxu0 0
    %834 = vmatpush.bf16.xpose.msra.mxu0 0
    %835 = vmatpush.bf16.xpose.msra.mxu0 0
    %836 = vmatpush.bf16.xpose.msra.mxu0 0
    %837 = vmatpush.bf16.xpose.msra.mxu0 0
    %838 = vmatpush.bf16.xpose.msra.mxu0 %v830
    %839 = vmatpush.bf16.xpose.msra.mxu0 %v827
    %840 = vmatmul.bf16.gmra.mxu0 %v821
    %v841 = vpop.f32.mrf.mxu0
    %v842 = vadd.f32 0.0, %v841
    %v843 = vpop.f32.mrf.mxu0
    %v844 = vadd.f32 0.0, %v843
    %845 = vmatmul.bf16.gmra.mxu0 %v824
    %v846 = vpop.f32.mrf.mxu0
    %v847 = vadd.f32 0.0, %v846
    %v848 = vpop.f32.mrf.mxu0
    %v849 = vadd.f32 0.0, %v848
    %850 = vdwg.mxu0
    %v851 = vmul.f32 %v842, 0.17677669
    %v852 = vmul.f32 %v844, 0.17677669
    %v853 = vmul.f32 %v847, 0.17677669
    %v854 = vmul.f32 %v849, 0.17677669
    %v855 = vadd.f32 %v851, %v284
    %v856 = vadd.f32 %v852, %v285
    %v857 = vadd.f32 %v853, %v286
    %v858 = vadd.f32 %v854, %v287
    %v859 = vsel %vm693, %v855, -inf
    %860 = vmax.xlane.f32.xlu0 %v859
    %v861 = vpop.xlane.xlu0 %860
    %v862 = vsel %vm693, %v856, -inf
    %863 = vmax.xlane.f32.xlu0 %v862
    %v864 = vpop.xlane.xlu0 %863
    %v865 = vsel %vm693, %v857, -inf
    %866 = vmax.xlane.f32.xlu0 %v865
    %v867 = vpop.xlane.xlu0 %866
    %v868 = vsel %vm693, %v858, -inf
    %869 = vmax.xlane.f32.xlu0 %v868
    %v870 = vpop.xlane.xlu0 %869
    %v871 = vsub.f32 %v855, %v861
    %v872 = vsub.f32 %v856, %v864
    %v873 = vsub.f32 %v857, %v867
    %v874 = vsub.f32 %v858, %v870
    %v875 = vmul.f32 %v871, 1.442695
    %v876 = vpow.pop %v875
    %v877 = vmul.f32 %v872, 1.442695
    %v878 = vpow.pop %v877
    %v879 = vmul.f32 %v873, 1.442695
    %v880 = vpow.pop %v879
    %v881 = vmul.f32 %v874, 1.442695
    %v882 = vpow.pop %v881
    %v883 = vsel %vm693, %v876, 0.0
    %884 = vadd.xlane.f32.xlu0 %v883
    %v885 = vpop.xlane.xlu0 %884
    %v886 = vsel %vm693, %v878, 0.0
    %887 = vadd.xlane.f32.xlu0 %v886
    %v888 = vpop.xlane.xlu0 %887
    %v889 = vsel %vm693, %v880, 0.0
    %890 = vadd.xlane.f32.xlu0 %v889
    %v891 = vpop.xlane.xlu0 %890
    %v892 = vsel %vm693, %v882, 0.0
    %893 = vadd.xlane.f32.xlu0 %v892
    %v894 = vpop.xlane.xlu0 %893
    %v895 = vrcp.pop %v885
    %v896 = vrcp.pop %v888
    %v897 = vrcp.pop %v891
    %v898 = vrcp.pop %v894
    %v899 = vmul.f32 %v876, %v895
    %v900 = vmul.f32 %v878, %v896
    %v901 = vmul.f32 %v880, %v897
    %v902 = vmul.f32 %v882, %v898
    %v903 = vpack.c.bf16 %v900, %v899
    %v904 = vpack.c.bf16 %v902, %v901
    %907 = vrot.lane.b32.xlu0 %v779, 96
    %v908 = vpop.permute.xlu0 %907
    %909 = vrot.lane.b32.xlu0 %v780, 96
    %v910 = vpop.permute.xlu0 %909
    %v914 = vsel %vm693, %v903, 0
    %v917 = vsel %vm693, %v904, 0
    %919 = vmatpush.bf16.msra.mxu0 0
    %920 = vmatpush.bf16.msra.mxu0 0
    %921 = vmatpush.bf16.msra.mxu0 0
    %922 = vmatpush.bf16.msra.mxu0 0
    %923 = vmatpush.bf16.msra.mxu0 0
    %924 = vmatpush.bf16.msra.mxu0 0
    %925 = vmatpush.bf16.msra.mxu0 %v910
    %926 = vmatpush.bf16.msra.mxu0 %v908
    %927 = vmatmul.bf16.gmra.mxu0 %v914
    %v928 = vpop.f32.mrf.mxu0
    %v929 = vadd.f32 0.0, %v928
    %v930 = vpop.f32.mrf.mxu0
    %v931 = vadd.f32 0.0, %v930
    %932 = vmatmul.bf16.gmra.mxu0 %v917
    %v933 = vpop.f32.mrf.mxu0
    %v934 = vadd.f32 0.0, %v933
    %v935 = vpop.f32.mrf.mxu0
    %v936 = vadd.f32 0.0, %v935
    %937 = vdwg.mxu0
    %v938 = vpack.c.bf16 %v931, %v929
    %v939 = vpack.c.bf16 %v936, %v934
    %v944 = vunpack.c.l.b16 %v428
    %v945 = vunpack.c.l.b16 %v429
    %v946 = vunpack.c.l.b16 %v430
    %v947 = vunpack.c.l.b16 %v431
    %v948 = vpack.c.b16 %v945, %v944
    %v949 = vpack.c.b16 %v947, %v946
    %v953 = vsel %vm693, %v938, 0
    %v956 = vsel %vm693, %v939, 0
    %958 = vmatpush.bf16.msra.mxu0 0
    %959 = vmatpush.bf16.msra.mxu0 0
    %960 = vmatpush.bf16.msra.mxu0 0
    %961 = vmatpush.bf16.msra.mxu0 0
    %962 = vmatpush.bf16.msra.mxu0 0
    %963 = vmatpush.bf16.msra.mxu0 0
    %964 = vmatpush.bf16.msra.mxu0 %v949
    %965 = vmatpush.bf16.msra.mxu0 %v948
    %966 = vmatmul.bf16.gmra.mxu0 %v953
    %v967 = vpop.f32.mrf.mxu0
    %v968 = vadd.f32 0.0, %v967
    %v969 = vpop.f32.mrf.mxu0
    %v970 = vadd.f32 0.0, %v969
    %971 = vmatmul.bf16.gmra.mxu0 %v956
    %v972 = vpop.f32.mrf.mxu0
    %v973 = vadd.f32 0.0, %v972
    %v974 = vpop.f32.mrf.mxu0
    %v975 = vadd.f32 0.0, %v974
    %976 = vdwg.mxu0
    %v981 = vunpack.c.l.b16 %v424
    %v982 = vunpack.c.l.b16 %v425
    %v983 = vunpack.c.l.b16 %v426
    %v984 = vunpack.c.l.b16 %v427
    %v985 = vpack.c.b16 %v982, %v981
    %v986 = vpack.c.b16 %v984, %v983
    %v990 = vsel %vm693, %v806, 0
    %v993 = vsel %vm693, %v807, 0
    %995 = vmatpush.bf16.msra.mxu0 0
    %996 = vmatpush.bf16.msra.mxu0 0
    %997 = vmatpush.bf16.msra.mxu0 0
    %998 = vmatpush.bf16.msra.mxu0 0
    %999 = vmatpush.bf16.msra.mxu0 0
    %1000 = vmatpush.bf16.msra.mxu0 0
    %1001 = vmatpush.bf16.msra.mxu0 %v986
    %1002 = vmatpush.bf16.msra.mxu0 %v985
    %1003 = vmatmul.bf16.gmra.mxu0 %v990
    %v1004 = vpop.f32.mrf.mxu0
    %v1005 = vadd.f32 %v968, %v1004
    %v1006 = vpop.f32.mrf.mxu0
    %v1007 = vadd.f32 %v970, %v1006
    %1008 = vmatmul.bf16.gmra.mxu0 %v993
    %v1009 = vpop.f32.mrf.mxu0
    %v1010 = vadd.f32 %v973, %v1009
    %v1011 = vpop.f32.mrf.mxu0
    %v1012 = vadd.f32 %v975, %v1011
    %1013 = vdwg.mxu0
    %1014 = vrot.lane.b32.xlu0 %v689, 64
    %v1015 = vpop.permute.xlu0 %1014
    %1016 = vrot.lane.b32.xlu0 %v690, 64
    %v1017 = vpop.permute.xlu0 %1016
    %1018 = vrot.lane.b32.xlu0 %v691, 64
    %v1019 = vpop.permute.xlu0 %1018
    %1020 = vrot.lane.b32.xlu0 %v692, 64
    %v1021 = vpop.permute.xlu0 %1020
    %v1023 = vsel %vm693, %v1015, 0
    %v1026 = vsel %vm693, %v1017, 0
    %v1029 = vsel %vm693, %v1019, 0
    %v1032 = vsel %vm693, %v1021, 0
    %1034 = vmatpush.bf16.xpose.msra.mxu0 0
    %1035 = vmatpush.bf16.xpose.msra.mxu0 0
    %1036 = vmatpush.bf16.xpose.msra.mxu0 0
    %1037 = vmatpush.bf16.xpose.msra.mxu0 0
    %1038 = vmatpush.bf16.xpose.msra.mxu0 0
    %1039 = vmatpush.bf16.xpose.msra.mxu0 0
    %1040 = vmatpush.bf16.xpose.msra.mxu0 %v1032
    %1041 = vmatpush.bf16.xpose.msra.mxu0 %v1029
    %1042 = vmatmul.bf16.gmra.mxu0 %v1023
    %v1043 = vpop.f32.mrf.mxu0
    %v1044 = vadd.f32 0.0, %v1043
    %v1045 = vpop.f32.mrf.mxu0
    %v1046 = vadd.f32 0.0, %v1045
    %1047 = vmatmul.bf16.gmra.mxu0 %v1026
    %v1048 = vpop.f32.mrf.mxu0
    %v1049 = vadd.f32 0.0, %v1048
    %v1050 = vpop.f32.mrf.mxu0
    %v1051 = vadd.f32 0.0, %v1050
    %1052 = vdwg.mxu0
    %v1053 = vmul.f32 %v1044, 0.17677669
    %v1054 = vmul.f32 %v1046, 0.17677669
    %v1055 = vmul.f32 %v1049, 0.17677669
    %v1056 = vmul.f32 %v1051, 0.17677669
    %v1057 = vadd.f32 %v1053, %v284
    %v1058 = vadd.f32 %v1054, %v285
    %v1059 = vadd.f32 %v1055, %v286
    %v1060 = vadd.f32 %v1056, %v287
    %v1061 = vsel %vm693, %v1057, -inf
    %1062 = vmax.xlane.f32.xlu0 %v1061
    %v1063 = vpop.xlane.xlu0 %1062
    %v1064 = vsel %vm693, %v1058, -inf
    %1065 = vmax.xlane.f32.xlu0 %v1064
    %v1066 = vpop.xlane.xlu0 %1065
    %v1067 = vsel %vm693, %v1059, -inf
    %1068 = vmax.xlane.f32.xlu0 %v1067
    %v1069 = vpop.xlane.xlu0 %1068
    %v1070 = vsel %vm693, %v1060, -inf
    %1071 = vmax.xlane.f32.xlu0 %v1070
    %v1072 = vpop.xlane.xlu0 %1071
    %v1073 = vsub.f32 %v1057, %v1063
    %v1074 = vsub.f32 %v1058, %v1066
    %v1075 = vsub.f32 %v1059, %v1069
    %v1076 = vsub.f32 %v1060, %v1072
    %v1077 = vmul.f32 %v1073, 1.442695
    %v1078 = vpow.pop %v1077
    %v1079 = vmul.f32 %v1074, 1.442695
    %v1080 = vpow.pop %v1079
    %v1081 = vmul.f32 %v1075, 1.442695
    %v1082 = vpow.pop %v1081
    %v1083 = vmul.f32 %v1076, 1.442695
    %v1084 = vpow.pop %v1083
    %v1085 = vsel %vm693, %v1078, 0.0
    %1086 = vadd.xlane.f32.xlu0 %v1085
    %v1087 = vpop.xlane.xlu0 %1086
    %v1088 = vsel %vm693, %v1080, 0.0
    %1089 = vadd.xlane.f32.xlu0 %v1088
    %v1090 = vpop.xlane.xlu0 %1089
    %v1091 = vsel %vm693, %v1082, 0.0
    %1092 = vadd.xlane.f32.xlu0 %v1091
    %v1093 = vpop.xlane.xlu0 %1092
    %v1094 = vsel %vm693, %v1084, 0.0
    %1095 = vadd.xlane.f32.xlu0 %v1094
    %v1096 = vpop.xlane.xlu0 %1095
    %v1097 = vrcp.pop %v1087
    %v1098 = vrcp.pop %v1090
    %v1099 = vrcp.pop %v1093
    %v1100 = vrcp.pop %v1096
    %v1101 = vmul.f32 %v1078, %v1097
    %v1102 = vmul.f32 %v1080, %v1098
    %v1103 = vmul.f32 %v1082, %v1099
    %v1104 = vmul.f32 %v1084, %v1100
    %v1105 = vpack.c.bf16 %v1102, %v1101
    %v1106 = vpack.c.bf16 %v1104, %v1103
    %1107 = vrot.lane.b32.xlu0 %v779, 64
    %v1108 = vpop.permute.xlu0 %1107
    %1109 = vrot.lane.b32.xlu0 %v780, 64
    %v1110 = vpop.permute.xlu0 %1109
    %v1114 = vsel %vm693, %v1105, 0
    %v1117 = vsel %vm693, %v1106, 0
    %1119 = vmatpush.bf16.msra.mxu0 0
    %1120 = vmatpush.bf16.msra.mxu0 0
    %1121 = vmatpush.bf16.msra.mxu0 0
    %1122 = vmatpush.bf16.msra.mxu0 0
    %1123 = vmatpush.bf16.msra.mxu0 0
    %1124 = vmatpush.bf16.msra.mxu0 0
    %1125 = vmatpush.bf16.msra.mxu0 %v1110
    %1126 = vmatpush.bf16.msra.mxu0 %v1108
    %1127 = vmatmul.bf16.gmra.mxu0 %v1114
    %v1128 = vpop.f32.mrf.mxu0
    %v1129 = vadd.f32 0.0, %v1128
    %v1130 = vpop.f32.mrf.mxu0
    %v1131 = vadd.f32 0.0, %v1130
    %1132 = vmatmul.bf16.gmra.mxu0 %v1117
    %v1133 = vpop.f32.mrf.mxu0
    %v1134 = vadd.f32 0.0, %v1133
    %v1135 = vpop.f32.mrf.mxu0
    %v1136 = vadd.f32 0.0, %v1135
    %1137 = vdwg.mxu0
    %v1138 = vpack.c.bf16 %v1131, %v1129
    %v1139 = vpack.c.bf16 %v1136, %v1134
    %v1144 = vunpack.c.l.b16 %v432
    %v1145 = vunpack.c.l.b16 %v433
    %v1146 = vunpack.c.l.b16 %v434
    %v1147 = vunpack.c.l.b16 %v435
    %v1148 = vpack.c.b16 %v1145, %v1144
    %v1149 = vpack.c.b16 %v1147, %v1146
    %v1153 = vsel %vm693, %v1138, 0
    %v1156 = vsel %vm693, %v1139, 0
    %1158 = vmatpush.bf16.msra.mxu0 0
    %1159 = vmatpush.bf16.msra.mxu0 0
    %1160 = vmatpush.bf16.msra.mxu0 0
    %1161 = vmatpush.bf16.msra.mxu0 0
    %1162 = vmatpush.bf16.msra.mxu0 0
    %1163 = vmatpush.bf16.msra.mxu0 0
    %1164 = vmatpush.bf16.msra.mxu0 %v1149
    %1165 = vmatpush.bf16.msra.mxu0 %v1148
    %1166 = vmatmul.bf16.gmra.mxu0 %v1153
    %v1167 = vpop.f32.mrf.mxu0
    %v1168 = vadd.f32 0.0, %v1167
    %v1169 = vpop.f32.mrf.mxu0
    %v1170 = vadd.f32 0.0, %v1169
    %1171 = vmatmul.bf16.gmra.mxu0 %v1156
    %v1172 = vpop.f32.mrf.mxu0
    %v1173 = vadd.f32 0.0, %v1172
    %v1174 = vpop.f32.mrf.mxu0
    %v1175 = vadd.f32 0.0, %v1174
    %1176 = vdwg.mxu0
    %v1177 = vadd.f32 %v1005, %v1168
    %v1178 = vadd.f32 %v1007, %v1170
    %v1179 = vadd.f32 %v1010, %v1173
    %v1180 = vadd.f32 %v1012, %v1175
    %1181 = vrot.lane.b32.xlu0 %v689, 32
    %v1182 = vpop.permute.xlu0 %1181
    %1183 = vrot.lane.b32.xlu0 %v690, 32
    %v1184 = vpop.permute.xlu0 %1183
    %1185 = vrot.lane.b32.xlu0 %v691, 32
    %v1186 = vpop.permute.xlu0 %1185
    %1187 = vrot.lane.b32.xlu0 %v692, 32
    %v1188 = vpop.permute.xlu0 %1187
    %v1190 = vsel %vm693, %v1182, 0
    %v1193 = vsel %vm693, %v1184, 0
    %v1196 = vsel %vm693, %v1186, 0
    %v1199 = vsel %vm693, %v1188, 0
    %1201 = vmatpush.bf16.xpose.msra.mxu0 0
    %1202 = vmatpush.bf16.xpose.msra.mxu0 0
    %1203 = vmatpush.bf16.xpose.msra.mxu0 0
    %1204 = vmatpush.bf16.xpose.msra.mxu0 0
    %1205 = vmatpush.bf16.xpose.msra.mxu0 0
    %1206 = vmatpush.bf16.xpose.msra.mxu0 0
    %1207 = vmatpush.bf16.xpose.msra.mxu0 %v1199
    %1208 = vmatpush.bf16.xpose.msra.mxu0 %v1196
    %1209 = vmatmul.bf16.gmra.mxu0 %v1190
    %v1210 = vpop.f32.mrf.mxu0
    %v1211 = vadd.f32 0.0, %v1210
    %v1212 = vpop.f32.mrf.mxu0
    %v1213 = vadd.f32 0.0, %v1212
    %1214 = vmatmul.bf16.gmra.mxu0 %v1193
    %v1215 = vpop.f32.mrf.mxu0
    %v1216 = vadd.f32 0.0, %v1215
    %v1217 = vpop.f32.mrf.mxu0
    %v1218 = vadd.f32 0.0, %v1217
    %1219 = vdwg.mxu0
    %v1220 = vmul.f32 %v1211, 0.17677669
    %v1221 = vmul.f32 %v1213, 0.17677669
    %v1222 = vmul.f32 %v1216, 0.17677669
    %v1223 = vmul.f32 %v1218, 0.17677669
    %v1224 = vadd.f32 %v1220, %v284
    %v1225 = vadd.f32 %v1221, %v285
    %v1226 = vadd.f32 %v1222, %v286
    %v1227 = vadd.f32 %v1223, %v287
    %v1228 = vsel %vm693, %v1224, -inf
    %1229 = vmax.xlane.f32.xlu0 %v1228
    %v1230 = vpop.xlane.xlu0 %1229
    %v1231 = vsel %vm693, %v1225, -inf
    %1232 = vmax.xlane.f32.xlu0 %v1231
    %v1233 = vpop.xlane.xlu0 %1232
    %v1234 = vsel %vm693, %v1226, -inf
    %1235 = vmax.xlane.f32.xlu0 %v1234
    %v1236 = vpop.xlane.xlu0 %1235
    %v1237 = vsel %vm693, %v1227, -inf
    %1238 = vmax.xlane.f32.xlu0 %v1237
    %v1239 = vpop.xlane.xlu0 %1238
    %v1240 = vsub.f32 %v1224, %v1230
    %v1241 = vsub.f32 %v1225, %v1233
    %v1242 = vsub.f32 %v1226, %v1236
    %v1243 = vsub.f32 %v1227, %v1239
    %v1244 = vmul.f32 %v1240, 1.442695
    %v1245 = vpow.pop %v1244
    %v1246 = vmul.f32 %v1241, 1.442695
    %v1247 = vpow.pop %v1246
    %v1248 = vmul.f32 %v1242, 1.442695
    %v1249 = vpow.pop %v1248
    %v1250 = vmul.f32 %v1243, 1.442695
    %v1251 = vpow.pop %v1250
    %v1252 = vsel %vm693, %v1245, 0.0
    %1253 = vadd.xlane.f32.xlu0 %v1252
    %v1254 = vpop.xlane.xlu0 %1253
    %v1255 = vsel %vm693, %v1247, 0.0
    %1256 = vadd.xlane.f32.xlu0 %v1255
    %v1257 = vpop.xlane.xlu0 %1256
    %v1258 = vsel %vm693, %v1249, 0.0
    %1259 = vadd.xlane.f32.xlu0 %v1258
    %v1260 = vpop.xlane.xlu0 %1259
    %v1261 = vsel %vm693, %v1251, 0.0
    %1262 = vadd.xlane.f32.xlu0 %v1261
    %v1263 = vpop.xlane.xlu0 %1262
    %v1264 = vrcp.pop %v1254
    %v1265 = vrcp.pop %v1257
    %v1266 = vrcp.pop %v1260
    %v1267 = vrcp.pop %v1263
    %v1268 = vmul.f32 %v1245, %v1264
    %v1269 = vmul.f32 %v1247, %v1265
    %v1270 = vmul.f32 %v1249, %v1266
    %v1271 = vmul.f32 %v1251, %v1267
    %v1272 = vpack.c.bf16 %v1269, %v1268
    %v1273 = vpack.c.bf16 %v1271, %v1270
    %1274 = vrot.lane.b32.xlu0 %v779, 32
    %v1275 = vpop.permute.xlu0 %1274
    %1276 = vrot.lane.b32.xlu0 %v780, 32
    %v1277 = vpop.permute.xlu0 %1276
    %v1281 = vsel %vm693, %v1272, 0
    %v1284 = vsel %vm693, %v1273, 0
    %1286 = vmatpush.bf16.msra.mxu0 0
    %1287 = vmatpush.bf16.msra.mxu0 0
    %1288 = vmatpush.bf16.msra.mxu0 0
    %1289 = vmatpush.bf16.msra.mxu0 0
    %1290 = vmatpush.bf16.msra.mxu0 0
    %1291 = vmatpush.bf16.msra.mxu0 0
    %1292 = vmatpush.bf16.msra.mxu0 %v1277
    %1293 = vmatpush.bf16.msra.mxu0 %v1275
    %1294 = vmatmul.bf16.gmra.mxu0 %v1281
    %v1295 = vpop.f32.mrf.mxu0
    %v1296 = vadd.f32 0.0, %v1295
    %v1297 = vpop.f32.mrf.mxu0
    %v1298 = vadd.f32 0.0, %v1297
    %1299 = vmatmul.bf16.gmra.mxu0 %v1284
    %v1300 = vpop.f32.mrf.mxu0
    %v1301 = vadd.f32 0.0, %v1300
    %v1302 = vpop.f32.mrf.mxu0
    %v1303 = vadd.f32 0.0, %v1302
    %1304 = vdwg.mxu0
    %v1305 = vpack.c.bf16 %v1298, %v1296
    %v1306 = vpack.c.bf16 %v1303, %v1301
    %v1311 = vunpack.c.l.b16 %v436
    %v1312 = vunpack.c.l.b16 %v437
    %v1313 = vunpack.c.l.b16 %v438
    %v1314 = vunpack.c.l.b16 %v439
    %v1315 = vpack.c.b16 %v1312, %v1311
    %v1316 = vpack.c.b16 %v1314, %v1313
    %v1320 = vsel %vm693, %v1305, 0
    %v1323 = vsel %vm693, %v1306, 0
    %1325 = vmatpush.bf16.msra.mxu0 0
    %1326 = vmatpush.bf16.msra.mxu0 0
    %1327 = vmatpush.bf16.msra.mxu0 0
    %1328 = vmatpush.bf16.msra.mxu0 0
    %1329 = vmatpush.bf16.msra.mxu0 0
    %1330 = vmatpush.bf16.msra.mxu0 0
    %1331 = vmatpush.bf16.msra.mxu0 %v1316
    %1332 = vmatpush.bf16.msra.mxu0 %v1315
    %1333 = vmatmul.bf16.gmra.mxu0 %v1320
    %v1334 = vpop.f32.mrf.mxu0
    %v1335 = vadd.f32 0.0, %v1334
    %v1336 = vpop.f32.mrf.mxu0
    %v1337 = vadd.f32 0.0, %v1336
    %1338 = vmatmul.bf16.gmra.mxu0 %v1323
    %v1339 = vpop.f32.mrf.mxu0
    %v1340 = vadd.f32 0.0, %v1339
    %v1341 = vpop.f32.mrf.mxu0
    %v1342 = vadd.f32 0.0, %v1341
    %1343 = vdwg.mxu0
    %v1344 = vadd.f32 %v1177, %v1335
    %v1345 = vadd.f32 %v1178, %v1337
    %v1346 = vadd.f32 %v1179, %v1340
    %v1347 = vadd.f32 %v1180, %v1342
    %v1348 = vadd.f32 %v387, %v1344
    %v1349 = vadd.f32 %v388, %v1345
    %v1350 = vadd.f32 %v389, %v1346
    %v1351 = vadd.f32 %v390, %v1347
    %v1353 = vperm.slane %v440, 0
    %v1355 = vadd.f32 %v1348, %v1353
    %v1356 = vadd.f32 %v1349, %v1353
    %v1357 = vadd.f32 %v1350, %v1353
    %v1358 = vadd.f32 %v1351, %v1353
    %1359 = vadd.xlane.f32.xlu0 %v1355
    %v1360 = vpop.xlane.xlu0 %1359
    %1361 = vadd.xlane.f32.xlu0 %v1356
    %v1362 = vpop.xlane.xlu0 %1361
    %1363 = vadd.xlane.f32.xlu0 %v1357
    %v1364 = vpop.xlane.xlu0 %1363
    %1365 = vadd.xlane.f32.xlu0 %v1358
    %v1366 = vpop.xlane.xlu0 %1365
    %v1367 = vmul.f32 %v1360, %v304
    %v1368 = vmul.f32 %v1362, %v304
    %v1369 = vmul.f32 %v1364, %v304
    %v1370 = vmul.f32 %v1366, %v304
    %v1371 = vsub.f32 %v1355, %v1367
    %v1372 = vsub.f32 %v1356, %v1368
    %v1373 = vsub.f32 %v1357, %v1369
    %v1374 = vsub.f32 %v1358, %v1370
    %v1375 = vmul.f32 %v1371, %v1371
    %v1376 = vmul.f32 %v1372, %v1372
    %v1377 = vmul.f32 %v1373, %v1373
    %v1378 = vmul.f32 %v1374, %v1374
    %1379 = vadd.xlane.f32.xlu0 %v1375
    %v1380 = vpop.xlane.xlu0 %1379
    %1381 = vadd.xlane.f32.xlu0 %v1376
    %v1382 = vpop.xlane.xlu0 %1381
    %1383 = vadd.xlane.f32.xlu0 %v1377
    %v1384 = vpop.xlane.xlu0 %1383
    %1385 = vadd.xlane.f32.xlu0 %v1378
    %v1386 = vpop.xlane.xlu0 %1385
    %v1387 = vmul.f32 %v1380, %v304
    %v1388 = vmul.f32 %v1382, %v304
    %v1389 = vmul.f32 %v1384, %v304
    %v1390 = vmul.f32 %v1386, %v304
    %v1391 = vadd.f32 %v1387, 1e-12
    %v1392 = vadd.f32 %v1388, 1e-12
    %v1393 = vadd.f32 %v1389, 1e-12
    %v1394 = vadd.f32 %v1390, 1e-12
    %v1395 = vrsqrt.pop %v1391
    %v1396 = vmul.f32 %v1395, %v1391
    %v1397 = vmul.f32 %v1396, %v1395
    %v1398 = vmul.f32 0.5, %v1397
    %v1399 = vsub.f32 1.5, %v1398
    %v1400 = vmul.f32 %v1395, %v1399
    %vm1401 = vweird.f32 %v1391
    %vm1402 = vweird.f32 %v1395
    %vm1403 = vmor %vm1401, %vm1402
    %v1404 = vsel %vm1403, %v1395, %v1400
    %v1405 = vrsqrt.pop %v1392
    %v1406 = vmul.f32 %v1405, %v1392
    %v1407 = vmul.f32 %v1406, %v1405
    %v1408 = vmul.f32 0.5, %v1407
    %v1409 = vsub.f32 1.5, %v1408
    %v1410 = vmul.f32 %v1405, %v1409
    %vm1411 = vweird.f32 %v1392
    %vm1412 = vweird.f32 %v1405
    %vm1413 = vmor %vm1411, %vm1412
    %v1414 = vsel %vm1413, %v1405, %v1410
    %v1415 = vrsqrt.pop %v1393
    %v1416 = vmul.f32 %v1415, %v1393
    %v1417 = vmul.f32 %v1416, %v1415
    %v1418 = vmul.f32 0.5, %v1417
    %v1419 = vsub.f32 1.5, %v1418
    %v1420 = vmul.f32 %v1415, %v1419
    %vm1421 = vweird.f32 %v1393
    %vm1422 = vweird.f32 %v1415
    %vm1423 = vmor %vm1421, %vm1422
    %v1424 = vsel %vm1423, %v1415, %v1420
    %v1425 = vrsqrt.pop %v1394
    %v1426 = vmul.f32 %v1425, %v1394
    %v1427 = vmul.f32 %v1426, %v1425
    %v1428 = vmul.f32 0.5, %v1427
    %v1429 = vsub.f32 1.5, %v1428
    %v1430 = vmul.f32 %v1425, %v1429
    %vm1431 = vweird.f32 %v1394
    %vm1432 = vweird.f32 %v1425
    %vm1433 = vmor %vm1431, %vm1432
    %v1434 = vsel %vm1433, %v1425, %v1430
    %v1435 = vmul.f32 %v1371, %v1404
    %v1436 = vmul.f32 %v1372, %v1414
    %v1437 = vmul.f32 %v1373, %v1424
    %v1438 = vmul.f32 %v1374, %v1434
    %v1440 = vperm.slane %v441, 0
    %v1442 = vmul.f32 %v1435, %v1440
    %v1443 = vmul.f32 %v1436, %v1440
    %v1444 = vmul.f32 %v1437, %v1440
    %v1445 = vmul.f32 %v1438, %v1440
    %v1447 = vperm.slane %v442, 0
    %v1449 = vadd.f32 %v1442, %v1447
    %v1450 = vadd.f32 %v1443, %v1447
    %v1451 = vadd.f32 %v1444, %v1447
    %v1452 = vadd.f32 %v1445, %v1447
    %v1453 = vpack.c.bf16 %v1450, %v1449
    %v1454 = vpack.c.bf16 %v1452, %v1451
    %v1456 = vperm.slane %v459, 0
    %v1457 = vperm.slane %v459, 1
    %v1476 = vunpack.c.l.b16 %v443
    %v1477 = vunpack.c.h.b16 %v443
    %v1478 = vunpack.c.l.b16 %v444
    %v1479 = vunpack.c.h.b16 %v444
    %v1480 = vunpack.c.l.b16 %v445
    %v1481 = vunpack.c.h.b16 %v445
    %v1482 = vunpack.c.l.b16 %v446
    %v1483 = vunpack.c.h.b16 %v446
    %v1484 = vunpack.c.l.b16 %v447
    %v1485 = vunpack.c.h.b16 %v447
    %v1486 = vunpack.c.l.b16 %v448
    %v1487 = vunpack.c.h.b16 %v448
    %v1488 = vunpack.c.l.b16 %v449
    %v1489 = vunpack.c.h.b16 %v449
    %v1490 = vunpack.c.l.b16 %v450
    %v1491 = vunpack.c.h.b16 %v450
    %v1492 = vunpack.c.l.b16 %v451
    %v1493 = vunpack.c.h.b16 %v451
    %v1494 = vunpack.c.l.b16 %v452
    %v1495 = vunpack.c.h.b16 %v452
    %v1496 = vunpack.c.l.b16 %v453
    %v1497 = vunpack.c.h.b16 %v453
    %v1498 = vunpack.c.l.b16 %v454
    %v1499 = vunpack.c.h.b16 %v454
    %v1500 = vunpack.c.l.b16 %v455
    %v1501 = vunpack.c.h.b16 %v455
    %v1502 = vunpack.c.l.b16 %v456
    %v1503 = vunpack.c.h.b16 %v456
    %v1504 = vunpack.c.l.b16 %v457
    %v1505 = vunpack.c.h.b16 %v457
    %v1506 = vunpack.c.l.b16 %v458
    %v1507 = vunpack.c.h.b16 %v458
    %v1508 = vpack.c.b16 %v1478, %v1476
    %v1509 = vpack.c.b16 %v1479, %v1477
    %v1510 = vpack.c.b16 %v1482, %v1480
    %v1511 = vpack.c.b16 %v1483, %v1481
    %v1512 = vpack.c.b16 %v1486, %v1484
    %v1513 = vpack.c.b16 %v1487, %v1485
    %v1514 = vpack.c.b16 %v1490, %v1488
    %v1515 = vpack.c.b16 %v1491, %v1489
    %v1516 = vpack.c.b16 %v1494, %v1492
    %v1517 = vpack.c.b16 %v1495, %v1493
    %v1518 = vpack.c.b16 %v1498, %v1496
    %v1519 = vpack.c.b16 %v1499, %v1497
    %v1520 = vpack.c.b16 %v1502, %v1500
    %v1521 = vpack.c.b16 %v1503, %v1501
    %v1522 = vpack.c.b16 %v1506, %v1504
    %v1523 = vpack.c.b16 %v1507, %v1505
    %1540 = vmatpush.bf16.msra.mxu0 %v1522
    %1541 = vmatpush.bf16.msra.mxu0 %v1520
    %1542 = vmatpush.bf16.msra.mxu0 %v1518
    %1543 = vmatpush.bf16.msra.mxu0 %v1516
    %1544 = vmatpush.bf16.msra.mxu0 %v1514
    %1545 = vmatpush.bf16.msra.mxu0 %v1512
    %1546 = vmatpush.bf16.msra.mxu0 %v1510
    %1547 = vmatpush.bf16.msra.mxu0 %v1508
    %1548 = vmatmul.bf16.gmra.mxu0 %v1453
    %v1549 = vpop.f32.mrf.mxu0
    %v1550 = vadd.f32 %v1456, %v1549
    %v1551 = vpop.f32.mrf.mxu0
    %v1552 = vadd.f32 %v1456, %v1551
    %1553 = vmatmul.bf16.gmra.mxu0 %v1454
    %v1554 = vpop.f32.mrf.mxu0
    %v1555 = vadd.f32 %v1456, %v1554
    %v1556 = vpop.f32.mrf.mxu0
    %v1557 = vadd.f32 %v1456, %v1556
    %1558 = vdwg.mxu0
    %1559 = vmatpush.bf16.msra.mxu0 %v1523
    %1560 = vmatpush.bf16.msra.mxu0 %v1521
    %1561 = vmatpush.bf16.msra.mxu0 %v1519
    %1562 = vmatpush.bf16.msra.mxu0 %v1517
    %1563 = vmatpush.bf16.msra.mxu0 %v1515
    %1564 = vmatpush.bf16.msra.mxu0 %v1513
    %1565 = vmatpush.bf16.msra.mxu0 %v1511
    %1566 = vmatpush.bf16.msra.mxu0 %v1509
    %1567 = vmatmul.bf16.gmra.mxu0 %v1453
    %v1568 = vpop.f32.mrf.mxu0
    %v1569 = vadd.f32 %v1457, %v1568
    %v1570 = vpop.f32.mrf.mxu0
    %v1571 = vadd.f32 %v1457, %v1570
    %1572 = vmatmul.bf16.gmra.mxu0 %v1454
    %v1573 = vpop.f32.mrf.mxu0
    %v1574 = vadd.f32 %v1457, %v1573
    %v1575 = vpop.f32.mrf.mxu0
    %v1576 = vadd.f32 %v1457, %v1575
    %1577 = vdwg.mxu0
    %v1578 = vmul.f32 %v1550, 0.5
    %v1579 = vmul.f32 %v1569, 0.5
    %v1580 = vmul.f32 %v1552, 0.5
    %v1581 = vmul.f32 %v1571, 0.5
    %v1582 = vmul.f32 %v1555, 0.5
    %v1583 = vmul.f32 %v1574, 0.5
    %v1584 = vmul.f32 %v1557, 0.5
    %v1585 = vmul.f32 %v1576, 0.5
    %v1586 = vmul.f32 %v1550, 0.044715
    %v1587 = vmul.f32 %v1569, 0.044715
    %v1588 = vmul.f32 %v1552, 0.044715
    %v1589 = vmul.f32 %v1571, 0.044715
    %v1590 = vmul.f32 %v1555, 0.044715
    %v1591 = vmul.f32 %v1574, 0.044715
    %v1592 = vmul.f32 %v1557, 0.044715
    %v1593 = vmul.f32 %v1576, 0.044715
    %v1594 = vmul.f32 %v1586, %v1550
    %v1595 = vmul.f32 %v1587, %v1569
    %v1596 = vmul.f32 %v1588, %v1552
    %v1597 = vmul.f32 %v1589, %v1571
    %v1598 = vmul.f32 %v1590, %v1555
    %v1599 = vmul.f32 %v1591, %v1574
    %v1600 = vmul.f32 %v1592, %v1557
    %v1601 = vmul.f32 %v1593, %v1576
    %v1602 = vmul.f32 %v1594, %v1550
    %v1603 = vmul.f32 %v1595, %v1569
    %v1604 = vmul.f32 %v1596, %v1552
    %v1605 = vmul.f32 %v1597, %v1571
    %v1606 = vmul.f32 %v1598, %v1555
    %v1607 = vmul.f32 %v1599, %v1574
    %v1608 = vmul.f32 %v1600, %v1557
    %v1609 = vmul.f32 %v1601, %v1576
    %v1610 = vadd.f32 %v1550, %v1602
    %v1611 = vadd.f32 %v1569, %v1603
    %v1612 = vadd.f32 %v1552, %v1604
    %v1613 = vadd.f32 %v1571, %v1605
    %v1614 = vadd.f32 %v1555, %v1606
    %v1615 = vadd.f32 %v1574, %v1607
    %v1616 = vadd.f32 %v1557, %v1608
    %v1617 = vadd.f32 %v1576, %v1609
    %v1618 = vmul.f32 %v1610, 0.7978846
    %v1619 = vmul.f32 %v1611, 0.7978846
    %v1620 = vmul.f32 %v1612, 0.7978846
    %v1621 = vmul.f32 %v1613, 0.7978846
    %v1622 = vmul.f32 %v1614, 0.7978846
    %v1623 = vmul.f32 %v1615, 0.7978846
    %v1624 = vmul.f32 %v1616, 0.7978846
    %v1625 = vmul.f32 %v1617, 0.7978846
    %v1626 = vtanh.pop %v1618
    %v1627 = vtanh.pop %v1619
    %v1628 = vtanh.pop %v1620
    %v1629 = vtanh.pop %v1621
    %v1630 = vtanh.pop %v1622
    %v1631 = vtanh.pop %v1623
    %v1632 = vtanh.pop %v1624
    %v1633 = vtanh.pop %v1625
    %v1634 = vadd.f32 %v1626, 1.0
    %v1635 = vadd.f32 %v1627, 1.0
    %v1636 = vadd.f32 %v1628, 1.0
    %v1637 = vadd.f32 %v1629, 1.0
    %v1638 = vadd.f32 %v1630, 1.0
    %v1639 = vadd.f32 %v1631, 1.0
    %v1640 = vadd.f32 %v1632, 1.0
    %v1641 = vadd.f32 %v1633, 1.0
    %v1642 = vmul.f32 %v1578, %v1634
    %v1643 = vmul.f32 %v1579, %v1635
    %v1644 = vmul.f32 %v1580, %v1636
    %v1645 = vmul.f32 %v1581, %v1637
    %v1646 = vmul.f32 %v1582, %v1638
    %v1647 = vmul.f32 %v1583, %v1639
    %v1648 = vmul.f32 %v1584, %v1640
    %v1649 = vmul.f32 %v1585, %v1641
    %v1650 = vpack.c.bf16 %v1644, %v1642
    %v1651 = vpack.c.bf16 %v1645, %v1643
    %v1652 = vpack.c.bf16 %v1648, %v1646
    %v1653 = vpack.c.bf16 %v1649, %v1647
    %v1686 = vunpack.c.l.b16 %v460
    %v1687 = vunpack.c.l.b16 %v461
    %v1688 = vunpack.c.l.b16 %v462
    %v1689 = vunpack.c.l.b16 %v463
    %v1690 = vunpack.c.l.b16 %v464
    %v1691 = vunpack.c.l.b16 %v465
    %v1692 = vunpack.c.l.b16 %v466
    %v1693 = vunpack.c.l.b16 %v467
    %v1694 = vunpack.c.l.b16 %v468
    %v1695 = vunpack.c.l.b16 %v469
    %v1696 = vunpack.c.l.b16 %v470
    %v1697 = vunpack.c.l.b16 %v471
    %v1698 = vunpack.c.l.b16 %v472
    %v1699 = vunpack.c.l.b16 %v473
    %v1700 = vunpack.c.l.b16 %v474
    %v1701 = vunpack.c.l.b16 %v475
    %v1702 = vunpack.c.l.b16 %v476
    %v1703 = vunpack.c.l.b16 %v477
    %v1704 = vunpack.c.l.b16 %v478
    %v1705 = vunpack.c.l.b16 %v479
    %v1706 = vunpack.c.l.b16 %v480
    %v1707 = vunpack.c.l.b16 %v481
    %v1708 = vunpack.c.l.b16 %v482
    %v1709 = vunpack.c.l.b16 %v483
    %v1710 = vunpack.c.l.b16 %v484
    %v1711 = vunpack.c.l.b16 %v485
    %v1712 = vunpack.c.l.b16 %v486
    %v1713 = vunpack.c.l.b16 %v487
    %v1714 = vunpack.c.l.b16 %v488
    %v1715 = vunpack.c.l.b16 %v489
    %v1716 = vunpack.c.l.b16 %v490
    %v1717 = vunpack.c.l.b16 %v491
    %v1718 = vpack.c.b16 %v1687, %v1686
    %v1719 = vpack.c.b16 %v1689, %v1688
    %v1720 = vpack.c.b16 %v1691, %v1690
    %v1721 = vpack.c.b16 %v1693, %v1692
    %v1722 = vpack.c.b16 %v1695, %v1694
    %v1723 = vpack.c.b16 %v1697, %v1696
    %v1724 = vpack.c.b16 %v1699, %v1698
    %v1725 = vpack.c.b16 %v1701, %v1700
    %v1726 = vpack.c.b16 %v1703, %v1702
    %v1727 = vpack.c.b16 %v1705, %v1704
    %v1728 = vpack.c.b16 %v1707, %v1706
    %v1729 = vpack.c.b16 %v1709, %v1708
    %v1730 = vpack.c.b16 %v1711, %v1710
    %v1731 = vpack.c.b16 %v1713, %v1712
    %v1732 = vpack.c.b16 %v1715, %v1714
    %v1733 = vpack.c.b16 %v1717, %v1716
    %1750 = vmatpush.bf16.msra.mxu0 %v1725
    %1751 = vmatpush.bf16.msra.mxu0 %v1724
    %1752 = vmatpush.bf16.msra.mxu0 %v1723
    %1753 = vmatpush.bf16.msra.mxu0 %v1722
    %1754 = vmatpush.bf16.msra.mxu0 %v1721
    %1755 = vmatpush.bf16.msra.mxu0 %v1720
    %1756 = vmatpush.bf16.msra.mxu0 %v1719
    %1757 = vmatpush.bf16.msra.mxu0 %v1718
    %1758 = vmatmul.bf16.gmra.mxu0 %v1650
    %v1759 = vpop.f32.mrf.mxu0
    %v1760 = vadd.f32 0.0, %v1759
    %v1761 = vpop.f32.mrf.mxu0
    %v1762 = vadd.f32 0.0, %v1761
    %1763 = vmatmul.bf16.gmra.mxu0 %v1652
    %v1764 = vpop.f32.mrf.mxu0
    %v1765 = vadd.f32 0.0, %v1764
    %v1766 = vpop.f32.mrf.mxu0
    %v1767 = vadd.f32 0.0, %v1766
    %1768 = vdwg.mxu0
    %1769 = vmatpush.bf16.msra.mxu0 %v1733
    %1770 = vmatpush.bf16.msra.mxu0 %v1732
    %1771 = vmatpush.bf16.msra.mxu0 %v1731
    %1772 = vmatpush.bf16.msra.mxu0 %v1730
    %1773 = vmatpush.bf16.msra.mxu0 %v1729
    %1774 = vmatpush.bf16.msra.mxu0 %v1728
    %1775 = vmatpush.bf16.msra.mxu0 %v1727
    %1776 = vmatpush.bf16.msra.mxu0 %v1726
    %1777 = vmatmul.bf16.gmra.mxu0 %v1651
    %v1778 = vpop.f32.mrf.mxu0
    %v1779 = vadd.f32 %v1760, %v1778
    %v1780 = vpop.f32.mrf.mxu0
    %v1781 = vadd.f32 %v1762, %v1780
    %1782 = vmatmul.bf16.gmra.mxu0 %v1653
    %v1783 = vpop.f32.mrf.mxu0
    %v1784 = vadd.f32 %v1765, %v1783
    %v1785 = vpop.f32.mrf.mxu0
    %v1786 = vadd.f32 %v1767, %v1785
    %1787 = vdwg.mxu0
    %v1788 = vadd.f32 %v1449, %v1779
    %v1789 = vadd.f32 %v1450, %v1781
    %v1790 = vadd.f32 %v1451, %v1784
    %v1791 = vadd.f32 %v1452, %v1786
    %v1793 = vperm.slane %v492, 0
    %v1795 = vadd.f32 %v1788, %v1793
    %v1796 = vadd.f32 %v1789, %v1793
    %v1797 = vadd.f32 %v1790, %v1793
    %v1798 = vadd.f32 %v1791, %v1793
    %1799 = vadd.xlane.f32.xlu0 %v1795
    %v1800 = vpop.xlane.xlu0 %1799
    %1801 = vadd.xlane.f32.xlu0 %v1796
    %v1802 = vpop.xlane.xlu0 %1801
    %1803 = vadd.xlane.f32.xlu0 %v1797
    %v1804 = vpop.xlane.xlu0 %1803
    %1805 = vadd.xlane.f32.xlu0 %v1798
    %v1806 = vpop.xlane.xlu0 %1805
    %v1807 = vmul.f32 %v1800, %v304
    %v1808 = vmul.f32 %v1802, %v304
    %v1809 = vmul.f32 %v1804, %v304
    %v1810 = vmul.f32 %v1806, %v304
    %v1811 = vsub.f32 %v1795, %v1807
    %v1812 = vsub.f32 %v1796, %v1808
    %v1813 = vsub.f32 %v1797, %v1809
    %v1814 = vsub.f32 %v1798, %v1810
    %v1815 = vmul.f32 %v1811, %v1811
    %v1816 = vmul.f32 %v1812, %v1812
    %v1817 = vmul.f32 %v1813, %v1813
    %v1818 = vmul.f32 %v1814, %v1814
    %1819 = vadd.xlane.f32.xlu0 %v1815
    %v1820 = vpop.xlane.xlu0 %1819
    %1821 = vadd.xlane.f32.xlu0 %v1816
    %v1822 = vpop.xlane.xlu0 %1821
    %1823 = vadd.xlane.f32.xlu0 %v1817
    %v1824 = vpop.xlane.xlu0 %1823
    %1825 = vadd.xlane.f32.xlu0 %v1818
    %v1826 = vpop.xlane.xlu0 %1825
    %v1827 = vmul.f32 %v1820, %v304
    %v1828 = vmul.f32 %v1822, %v304
    %v1829 = vmul.f32 %v1824, %v304
    %v1830 = vmul.f32 %v1826, %v304
    %v1831 = vadd.f32 %v1827, 1e-12
    %v1832 = vadd.f32 %v1828, 1e-12
    %v1833 = vadd.f32 %v1829, 1e-12
    %v1834 = vadd.f32 %v1830, 1e-12
    %v1835 = vrsqrt.pop %v1831
    %v1836 = vmul.f32 %v1835, %v1831
    %v1837 = vmul.f32 %v1836, %v1835
    %v1838 = vmul.f32 0.5, %v1837
    %v1839 = vsub.f32 1.5, %v1838
    %v1840 = vmul.f32 %v1835, %v1839
    %vm1841 = vweird.f32 %v1831
    %vm1842 = vweird.f32 %v1835
    %vm1843 = vmor %vm1841, %vm1842
    %v1844 = vsel %vm1843, %v1835, %v1840
    %v1845 = vrsqrt.pop %v1832
    %v1846 = vmul.f32 %v1845, %v1832
    %v1847 = vmul.f32 %v1846, %v1845
    %v1848 = vmul.f32 0.5, %v1847
    %v1849 = vsub.f32 1.5, %v1848
    %v1850 = vmul.f32 %v1845, %v1849
    %vm1851 = vweird.f32 %v1832
    %vm1852 = vweird.f32 %v1845
    %vm1853 = vmor %vm1851, %vm1852
    %v1854 = vsel %vm1853, %v1845, %v1850
    %v1855 = vrsqrt.pop %v1833
    %v1856 = vmul.f32 %v1855, %v1833
    %v1857 = vmul.f32 %v1856, %v1855
    %v1858 = vmul.f32 0.5, %v1857
    %v1859 = vsub.f32 1.5, %v1858
    %v1860 = vmul.f32 %v1855, %v1859
    %vm1861 = vweird.f32 %v1833
    %vm1862 = vweird.f32 %v1855
    %vm1863 = vmor %vm1861, %vm1862
    %v1864 = vsel %vm1863, %v1855, %v1860
    %v1865 = vrsqrt.pop %v1834
    %v1866 = vmul.f32 %v1865, %v1834
    %v1867 = vmul.f32 %v1866, %v1865
    %v1868 = vmul.f32 0.5, %v1867
    %v1869 = vsub.f32 1.5, %v1868
    %v1870 = vmul.f32 %v1865, %v1869
    %vm1871 = vweird.f32 %v1834
    %vm1872 = vweird.f32 %v1865
    %vm1873 = vmor %vm1871, %vm1872
    %v1874 = vsel %vm1873, %v1865, %v1870
    %v1875 = vmul.f32 %v1811, %v1844
    %v1876 = vmul.f32 %v1812, %v1854
    %v1877 = vmul.f32 %v1813, %v1864
    %v1878 = vmul.f32 %v1814, %v1874
    %v1880 = vperm.slane %v493, 0
    %v1882 = vmul.f32 %v1875, %v1880
    %v1883 = vmul.f32 %v1876, %v1880
    %v1884 = vmul.f32 %v1877, %v1880
    %v1885 = vmul.f32 %v1878, %v1880
    %v1887 = vperm.slane %v494, 0
    %v1889 = vadd.f32 %v1882, %v1887
    %v1890 = vadd.f32 %v1883, %v1887
    %v1891 = vadd.f32 %v1884, %v1887
    %v1892 = vadd.f32 %v1885, %v1887
    %v1893 = vld [vmem:[%s87] sm:$0x3]
    %v1895 = vsel %vm693, %v1893, 0
    %1897 = vmatpush.msra.mxu0 0.0
    %1898 = vmatpush.msra.mxu0 0.0
    %1899 = vmatpush.msra.mxu0 0.0
    %1900 = vmatpush.msra.mxu0 0.0
    %1901 = vmatpush.msra.mxu0 0.0
    %1902 = vmatpush.msra.mxu0 0.0
    %1903 = vmatpush.msra.mxu0 0.0
    %1904 = vmatpush.msra.mxu0 0.0
    %1905 = vmatpush.msra.mxu0 0.0
    %1906 = vmatpush.msra.mxu0 0.0
    %1907 = vmatpush.msra.mxu0 0.0
    %1908 = vmatpush.msra.mxu0 0.0
    %1909 = vmatpush.msra.mxu0 %v1892
    %1910 = vmatpush.msra.mxu0 %v1891
    %1911 = vmatpush.msra.mxu0 %v1890
    %1912 = vmatpush.msra.mxu0 %v1889
    %1913 = vmatmul.f32.gmra.mxu0 %v1895
    %v1914 = vpop.f32.mrf.mxu0
    %v1915 = vadd.f32 0.0, %v1914
    %1916 = vdwg.mxu0
    %v1917 = vld [vmem:[%s119] sm:$0xf]
    %v1918 = vld [vmem:[%s119 + $0x4] sm:$0xf]
    %v1919 = vld [vmem:[%s119 + $0x8] sm:$0xf]
    %v1920 = vld [vmem:[%s119 + $0xc] sm:$0xf]
    %v1921 = vld [vmem:[%s119 + $0x10] sm:$0xf]
    %v1922 = vld [vmem:[%s119 + $0x14] sm:$0xf]
    %v1923 = vld [vmem:[%s119 + $0x18] sm:$0xf]
    %v1924 = vld [vmem:[%s119 + $0x1c] sm:$0xf]
    %v1925 = vld [vmem:[%s119 + $0x20] sm:$0xf]
    %v1926 = vld [vmem:[%s119 + $0x24] sm:$0xf]
    %v1927 = vld [vmem:[%s119 + $0x28] sm:$0xf]
    %v1928 = vld [vmem:[%s119 + $0x2c] sm:$0xf]
    %v1929 = vld [vmem:[%s119 + $0x30] sm:$0xf]
    %v1930 = vld [vmem:[%s119 + $0x34] sm:$0xf]
    %v1931 = vld [vmem:[%s119 + $0x38] sm:$0xf]
    %v1932 = vld [vmem:[%s119 + $0x3c] sm:$0xf]
    %v1933 = vpack.c.bf16 %v1915, %v1915
    %v1934 = vld [vmem:[%s117] sm:$0x1]
    %v1936 = vperm.slane %v1934, 0
    %v1954 = vunpack.c.l.b16 %v1917
    %v1955 = vunpack.c.l.b16 %v1918
    %v1956 = vunpack.c.l.b16 %v1919
    %v1957 = vunpack.c.l.b16 %v1920
    %v1958 = vunpack.c.l.b16 %v1921
    %v1959 = vunpack.c.l.b16 %v1922
    %v1960 = vunpack.c.l.b16 %v1923
    %v1961 = vunpack.c.l.b16 %v1924
    %v1962 = vunpack.c.l.b16 %v1925
    %v1963 = vunpack.c.l.b16 %v1926
    %v1964 = vunpack.c.l.b16 %v1927
    %v1965 = vunpack.c.l.b16 %v1928
    %v1966 = vunpack.c.l.b16 %v1929
    %v1967 = vunpack.c.l.b16 %v1930
    %v1968 = vunpack.c.l.b16 %v1931
    %v1969 = vunpack.c.l.b16 %v1932
    %v1970 = vpack.c.b16 %v1955, %v1954
    %v1971 = vpack.c.b16 %v1957, %v1956
    %v1972 = vpack.c.b16 %v1959, %v1958
    %v1973 = vpack.c.b16 %v1961, %v1960
    %v1974 = vpack.c.b16 %v1963, %v1962
    %v1975 = vpack.c.b16 %v1965, %v1964
    %v1976 = vpack.c.b16 %v1967, %v1966
    %v1977 = vpack.c.b16 %v1969, %v1968
    %1986 = vmatpush.bf16.msra.mxu0 %v1977
    %1987 = vmatpush.bf16.msra.mxu0 %v1976
    %1988 = vmatpush.bf16.msra.mxu0 %v1975
    %1989 = vmatpush.bf16.msra.mxu0 %v1974
    %1990 = vmatpush.bf16.msra.mxu0 %v1973
    %1991 = vmatpush.bf16.msra.mxu0 %v1972
    %1992 = vmatpush.bf16.msra.mxu0 %v1971
    %1993 = vmatpush.bf16.msra.mxu0 %v1970
    %1994 = vmatmul.bf16.gmra.mxu0 %v1933
    %v1995 = vpop.f32.mrf.mxu0
    %v1996 = vadd.f32 %v1936, %v1995
    %v1997 = vpop.f32.mrf.mxu0
    %1998 = vdwg.mxu0
    %v1999 = vtanh.pop %v1996
    %v2000 = vld [vmem:[%s5] sm:$0xff]
    %v2001 = vld [vmem:[%s5 + $0x8] sm:$0xff]
    %v2002 = vld [vmem:[%s5 + $0x10] sm:$0xff]
    %v2003 = vld [vmem:[%s5 + $0x18] sm:$0xff]
    %v2004 = vld [vmem:[%s5 + $0x20] sm:$0xff]
    %v2005 = vld [vmem:[%s5 + $0x28] sm:$0xff]
    %v2006 = vld [vmem:[%s5 + $0x30] sm:$0xff]
    %v2007 = vld [vmem:[%s5 + $0x38] sm:$0xff]
    %v2008 = vld [vmem:[%s5 + $0x40] sm:$0xff]
    %v2009 = vld [vmem:[%s5 + $0x48] sm:$0xff]
    %v2010 = vld [vmem:[%s5 + $0x50] sm:$0xff]
    %v2011 = vld [vmem:[%s5 + $0x58] sm:$0xff]
    %v2012 = vld [vmem:[%s5 + $0x60] sm:$0xff]
    %v2013 = vld [vmem:[%s5 + $0x68] sm:$0xff]
    %v2014 = vld [vmem:[%s5 + $0x70] sm:$0xff]
    %v2015 = vld [vmem:[%s5 + $0x78] sm:$0xff]
    %v2016 = vld [vmem:[%s7] sm:$0xff]
    %v2017 = vld [vmem:[%s7 + $0x8] sm:$0xff]
    %v2018 = vld [vmem:[%s7 + $0x10] sm:$0xff]
    %v2019 = vld [vmem:[%s7 + $0x18] sm:$0xff]
    %v2020 = vld [vmem:[%s7 + $0x20] sm:$0xff]
    %v2021 = vld [vmem:[%s7 + $0x28] sm:$0xff]
    %v2022 = vld [vmem:[%s7 + $0x30] sm:$0xff]
    %v2023 = vld [vmem:[%s7 + $0x38] sm:$0xff]
    %v2024 = vld [vmem:[%s7 + $0x40] sm:$0xff]
    %v2025 = vld [vmem:[%s7 + $0x48] sm:$0xff]
    %v2026 = vld [vmem:[%s7 + $0x50] sm:$0xff]
    %v2027 = vld [vmem:[%s7 + $0x58] sm:$0xff]
    %v2028 = vld [vmem:[%s7 + $0x60] sm:$0xff]
    %v2029 = vld [vmem:[%s7 + $0x68] sm:$0xff]
    %v2030 = vld [vmem:[%s7 + $0x70] sm:$0xff]
    %v2031 = vld [vmem:[%s7 + $0x78] sm:$0xff]
    %v2032 = vld [vmem:[%s49] sm:$0x1]
    %v2033 = vld [vmem:[%s47] sm:$0x1]
    %2034 = vadd.xlane.f32.xlu0 %v2000
    %v2035 = vpop.xlane.xlu0 %2034
    %2036 = vadd.xlane.f32.xlu0 %v2001
    %v2037 = vpop.xlane.xlu0 %2036
    %2038 = vadd.xlane.f32.xlu0 %v2002
    %v2039 = vpop.xlane.xlu0 %2038
    %2040 = vadd.xlane.f32.xlu0 %v2003
    %v2041 = vpop.xlane.xlu0 %2040
    %2042 = vadd.xlane.f32.xlu0 %v2004
    %v2043 = vpop.xlane.xlu0 %2042
    %2044 = vadd.xlane.f32.xlu0 %v2005
    %v2045 = vpop.xlane.xlu0 %2044
    %2046 = vadd.xlane.f32.xlu0 %v2006
    %v2047 = vpop.xlane.xlu0 %2046
    %2048 = vadd.xlane.f32.xlu0 %v2007
    %v2049 = vpop.xlane.xlu0 %2048
    %2050 = vadd.xlane.f32.xlu0 %v2008
    %v2051 = vpop.xlane.xlu0 %2050
    %2052 = vadd.xlane.f32.xlu0 %v2009
    %v2053 = vpop.xlane.xlu0 %2052
    %2054 = vadd.xlane.f32.xlu0 %v2010
    %v2055 = vpop.xlane.xlu0 %2054
    %2056 = vadd.xlane.f32.xlu0 %v2011
    %v2057 = vpop.xlane.xlu0 %2056
    %2058 = vadd.xlane.f32.xlu0 %v2012
    %v2059 = vpop.xlane.xlu0 %2058
    %2060 = vadd.xlane.f32.xlu0 %v2013
    %v2061 = vpop.xlane.xlu0 %2060
    %2062 = vadd.xlane.f32.xlu0 %v2014
    %v2063 = vpop.xlane.xlu0 %2062
    %2064 = vadd.xlane.f32.xlu0 %v2015
    %v2065 = vpop.xlane.xlu0 %2064
    %v2066 = vmul.f32 %v2035, %v304
    %v2067 = vmul.f32 %v2037, %v304
    %v2068 = vmul.f32 %v2039, %v304
    %v2069 = vmul.f32 %v2041, %v304
    %v2070 = vmul.f32 %v2043, %v304
    %v2071 = vmul.f32 %v2045, %v304
    %v2072 = vmul.f32 %v2047, %v304
    %v2073 = vmul.f32 %v2049, %v304
    %v2074 = vmul.f32 %v2051, %v304
    %v2075 = vmul.f32 %v2053, %v304
    %v2076 = vmul.f32 %v2055, %v304
    %v2077 = vmul.f32 %v2057, %v304
    %v2078 = vmul.f32 %v2059, %v304
    %v2079 = vmul.f32 %v2061, %v304
    %v2080 = vmul.f32 %v2063, %v304
    %v2081 = vmul.f32 %v2065, %v304
    %v2082 = vsub.f32 %v2000, %v2066
    %v2083 = vsub.f32 %v2001, %v2067
    %v2084 = vsub.f32 %v2002, %v2068
    %v2085 = vsub.f32 %v2003, %v2069
    %v2086 = vsub.f32 %v2004, %v2070
    %v2087 = vsub.f32 %v2005, %v2071
    %v2088 = vsub.f32 %v2006, %v2072
    %v2089 = vsub.f32 %v2007, %v2073
    %v2090 = vsub.f32 %v2008, %v2074
    %v2091 = vsub.f32 %v2009, %v2075
    %v2092 = vsub.f32 %v2010, %v2076
    %v2093 = vsub.f32 %v2011, %v2077
    %v2094 = vsub.f32 %v2012, %v2078
    %v2095 = vsub.f32 %v2013, %v2079
    %v2096 = vsub.f32 %v2014, %v2080
    %v2097 = vsub.f32 %v2015, %v2081
    %v2098 = vmul.f32 %v2082, %v2082
    %v2099 = vmul.f32 %v2083, %v2083
    %v2100 = vmul.f32 %v2084, %v2084
    %v2101 = vmul.f32 %v2085, %v2085
    %v2102 = vmul.f32 %v2086, %v2086
    %v2103 = vmul.f32 %v2087, %v2087
    %v2104 = vmul.f32 %v2088, %v2088
    %v2105 = vmul.f32 %v2089, %v2089
    %v2106 = vmul.f32 %v2090, %v2090
    %v2107 = vmul.f32 %v2091, %v2091
    %v2108 = vmul.f32 %v2092, %v2092
    %v2109 = vmul.f32 %v2093, %v2093
    %v2110 = vmul.f32 %v2094, %v2094
    %v2111 = vmul.f32 %v2095, %v2095
    %v2112 = vmul.f32 %v2096, %v2096
    %v2113 = vmul.f32 %v2097, %v2097
    %2114 = vadd.xlane.f32.xlu0 %v2098
    %v2115 = vpop.xlane.xlu0 %2114
    %2116 = vadd.xlane.f32.xlu0 %v2099
    %v2117 = vpop.xlane.xlu0 %2116
    %2118 = vadd.xlane.f32.xlu0 %v2100
    %v2119 = vpop.xlane.xlu0 %2118
    %2120 = vadd.xlane.f32.xlu0 %v2101
    %v2121 = vpop.xlane.xlu0 %2120
    %2122 = vadd.xlane.f32.xlu0 %v2102
    %v2123 = vpop.xlane.xlu0 %2122
    %2124 = vadd.xlane.f32.xlu0 %v2103
    %v2125 = vpop.xlane.xlu0 %2124
    %2126 = vadd.xlane.f32.xlu0 %v2104
    %v2127 = vpop.xlane.xlu0 %2126
    %2128 = vadd.xlane.f32.xlu0 %v2105
    %v2129 = vpop.xlane.xlu0 %2128
    %2130 = vadd.xlane.f32.xlu0 %v2106
    %v2131 = vpop.xlane.xlu0 %2130
    %2132 = vadd.xlane.f32.xlu0 %v2107
    %v2133 = vpop.xlane.xlu0 %2132
    %2134 = vadd.xlane.f32.xlu0 %v2108
    %v2135 = vpop.xlane.xlu0 %2134
    %2136 = vadd.xlane.f32.xlu0 %v2109
    %v2137 = vpop.xlane.xlu0 %2136
    %2138 = vadd.xlane.f32.xlu0 %v2110
    %v2139 = vpop.xlane.xlu0 %2138
    %2140 = vadd.xlane.f32.xlu0 %v2111
    %v2141 = vpop.xlane.xlu0 %2140
    %2142 = vadd.xlane.f32.xlu0 %v2112
    %v2143 = vpop.xlane.xlu0 %2142
    %2144 = vadd.xlane.f32.xlu0 %v2113
    %v2145 = vpop.xlane.xlu0 %2144
    %v2146 = vmul.f32 %v2115, %v304
    %v2147 = vmul.f32 %v2117, %v304
    %v2148 = vmul.f32 %v2119, %v304
    %v2149 = vmul.f32 %v2121, %v304
    %v2150 = vmul.f32 %v2123, %v304
    %v2151 = vmul.f32 %v2125, %v304
    %v2152 = vmul.f32 %v2127, %v304
    %v2153 = vmul.f32 %v2129, %v304
    %v2154 = vmul.f32 %v2131, %v304
    %v2155 = vmul.f32 %v2133, %v304
    %v2156 = vmul.f32 %v2135, %v304
    %v2157 = vmul.f32 %v2137, %v304
    %v2158 = vmul.f32 %v2139, %v304
    %v2159 = vmul.f32 %v2141, %v304
    %v2160 = vmul.f32 %v2143, %v304
    %v2161 = vmul.f32 %v2145, %v304
    %v2162 = vadd.f32 %v2146, 1e-12
    %v2163 = vadd.f32 %v2147, 1e-12
    %v2164 = vadd.f32 %v2148, 1e-12
    %v2165 = vadd.f32 %v2149, 1e-12
    %v2166 = vadd.f32 %v2150, 1e-12
    %v2167 = vadd.f32 %v2151, 1e-12
    %v2168 = vadd.f32 %v2152, 1e-12
    %v2169 = vadd.f32 %v2153, 1e-12
    %v2170 = vadd.f32 %v2154, 1e-12
    %v2171 = vadd.f32 %v2155, 1e-12
    %v2172 = vadd.f32 %v2156, 1e-12
    %v2173 = vadd.f32 %v2157, 1e-12
    %v2174 = vadd.f32 %v2158, 1e-12
    %v2175 = vadd.f32 %v2159, 1e-12
    %v2176 = vadd.f32 %v2160, 1e-12
    %v2177 = vadd.f32 %v2161, 1e-12
    %v2178 = vrsqrt.pop %v2162
    %v2179 = vmul.f32 %v2178, %v2162
    %v2180 = vmul.f32 %v2179, %v2178
    %v2181 = vmul.f32 0.5, %v2180
    %v2182 = vsub.f32 1.5, %v2181
    %v2183 = vmul.f32 %v2178, %v2182
    %vm2184 = vweird.f32 %v2162
    %vm2185 = vweird.f32 %v2178
    %vm2186 = vmor %vm2184, %vm2185
    %v2187 = vsel %vm2186, %v2178, %v2183
    %v2188 = vrsqrt.pop %v2163
    %v2189 = vmul.f32 %v2188, %v2163
    %v2190 = vmul.f32 %v2189, %v2188
    %v2191 = vmul.f32 0.5, %v2190
    %v2192 = vsub.f32 1.5, %v2191
    %v2193 = vmul.f32 %v2188, %v2192
    %vm2194 = vweird.f32 %v2163
    %vm2195 = vweird.f32 %v2188
    %vm2196 = vmor %vm2194, %vm2195
    %v2197 = vsel %vm2196, %v2188, %v2193
    %v2198 = vrsqrt.pop %v2164
    %v2199 = vmul.f32 %v2198, %v2164
    %v2200 = vmul.f32 %v2199, %v2198
    %v2201 = vmul.f32 0.5, %v2200
    %v2202 = vsub.f32 1.5, %v2201
    %v2203 = vmul.f32 %v2198, %v2202
    %vm2204 = vweird.f32 %v2164
    %vm2205 = vweird.f32 %v2198
    %vm2206 = vmor %vm2204, %vm2205
    %v2207 = vsel %vm2206, %v2198, %v2203
    %v2208 = vrsqrt.pop %v2165
    %v2209 = vmul.f32 %v2208, %v2165
    %v2210 = vmul.f32 %v2209, %v2208
    %v2211 = vmul.f32 0.5, %v2210
    %v2212 = vsub.f32 1.5, %v2211
    %v2213 = vmul.f32 %v2208, %v2212
    %vm2214 = vweird.f32 %v2165
    %vm2215 = vweird.f32 %v2208
    %vm2216 = vmor %vm2214, %vm2215
    %v2217 = vsel %vm2216, %v2208, %v2213
    %v2218 = vrsqrt.pop %v2166
    %v2219 = vmul.f32 %v2218, %v2166
    %v2220 = vmul.f32 %v2219, %v2218
    %v2221 = vmul.f32 0.5, %v2220
    %v2222 = vsub.f32 1.5, %v2221
    %v2223 = vmul.f32 %v2218, %v2222
    %vm2224 = vweird.f32 %v2166
    %vm2225 = vweird.f32 %v2218
    %vm2226 = vmor %vm2224, %vm2225
    %v2227 = vsel %vm2226, %v2218, %v2223
    %v2228 = vrsqrt.pop %v2167
    %v2229 = vmul.f32 %v2228, %v2167
    %v2230 = vmul.f32 %v2229, %v2228
    %v2231 = vmul.f32 0.5, %v2230
    %v2232 = vsub.f32 1.5, %v2231
    %v2233 = vmul.f32 %v2228, %v2232
    %vm2234 = vweird.f32 %v2167
    %vm2235 = vweird.f32 %v2228
    %vm2236 = vmor %vm2234, %vm2235
    %v2237 = vsel %vm2236, %v2228, %v2233
    %v2238 = vrsqrt.pop %v2168
    %v2239 = vmul.f32 %v2238, %v2168
    %v2240 = vmul.f32 %v2239, %v2238
    %v2241 = vmul.f32 0.5, %v2240
    %v2242 = vsub.f32 1.5, %v2241
    %v2243 = vmul.f32 %v2238, %v2242
    %vm2244 = vweird.f32 %v2168
    %vm2245 = vweird.f32 %v2238
    %vm2246 = vmor %vm2244, %vm2245
    %v2247 = vsel %vm2246, %v2238, %v2243
    %v2248 = vrsqrt.pop %v2169
    %v2249 = vmul.f32 %v2248, %v2169
    %v2250 = vmul.f32 %v2249, %v2248
    %v2251 = vmul.f32 0.5, %v2250
    %v2252 = vsub.f32 1.5, %v2251
    %v2253 = vmul.f32 %v2248, %v2252
    %vm2254 = vweird.f32 %v2169
    %vm2255 = vweird.f32 %v2248
    %vm2256 = vmor %vm2254, %vm2255
    %v2257 = vsel %vm2256, %v2248, %v2253
    %v2258 = vrsqrt.pop %v2170
    %v2259 = vmul.f32 %v2258, %v2170
    %v2260 = vmul.f32 %v2259, %v2258
    %v2261 = vmul.f32 0.5, %v2260
    %v2262 = vsub.f32 1.5, %v2261
    %v2263 = vmul.f32 %v2258, %v2262
    %vm2264 = vweird.f32 %v2170
    %vm2265 = vweird.f32 %v2258
    %vm2266 = vmor %vm2264, %vm2265
    %v2267 = vsel %vm2266, %v2258, %v2263
    %v2268 = vrsqrt.pop %v2171
    %v2269 = vmul.f32 %v2268, %v2171
    %v2270 = vmul.f32 %v2269, %v2268
    %v2271 = vmul.f32 0.5, %v2270
    %v2272 = vsub.f32 1.5, %v2271
    %v2273 = vmul.f32 %v2268, %v2272
    %vm2274 = vweird.f32 %v2171
    %vm2275 = vweird.f32 %v2268
    %vm2276 = vmor %vm2274, %vm2275
    %v2277 = vsel %vm2276, %v2268, %v2273
    %v2278 = vrsqrt.pop %v2172
    %v2279 = vmul.f32 %v2278, %v2172
    %v2280 = vmul.f32 %v2279, %v2278
    %v2281 = vmul.f32 0.5, %v2280
    %v2282 = vsub.f32 1.5, %v2281
    %v2283 = vmul.f32 %v2278, %v2282
    %vm2284 = vweird.f32 %v2172
    %vm2285 = vweird.f32 %v2278
    %vm2286 = vmor %vm2284, %vm2285
    %v2287 = vsel %vm2286, %v2278, %v2283
    %v2288 = vrsqrt.pop %v2173
    %v2289 = vmul.f32 %v2288, %v2173
    %v2290 = vmul.f32 %v2289, %v2288
    %v2291 = vmul.f32 0.5, %v2290
    %v2292 = vsub.f32 1.5, %v2291
    %v2293 = vmul.f32 %v2288, %v2292
    %vm2294 = vweird.f32 %v2173
    %vm2295 = vweird.f32 %v2288
    %vm2296 = vmor %vm2294, %vm2295
    %v2297 = vsel %vm2296, %v2288, %v2293
    %v2298 = vrsqrt.pop %v2174
    %v2299 = vmul.f32 %v2298, %v2174
    %v2300 = vmul.f32 %v2299, %v2298
    %v2301 = vmul.f32 0.5, %v2300
    %v2302 = vsub.f32 1.5, %v2301
    %v2303 = vmul.f32 %v2298, %v2302
    %vm2304 = vweird.f32 %v2174
    %vm2305 = vweird.f32 %v2298
    %vm2306 = vmor %vm2304, %vm2305
    %v2307 = vsel %vm2306, %v2298, %v2303
    %v2308 = vrsqrt.pop %v2175
    %v2309 = vmul.f32 %v2308, %v2175
    %v2310 = vmul.f32 %v2309, %v2308
    %v2311 = vmul.f32 0.5, %v2310
    %v2312 = vsub.f32 1.5, %v2311
    %v2313 = vmul.f32 %v2308, %v2312
    %vm2314 = vweird.f32 %v2175
    %vm2315 = vweird.f32 %v2308
    %vm2316 = vmor %vm2314, %vm2315
    %v2317 = vsel %vm2316, %v2308, %v2313
    %v2318 = vrsqrt.pop %v2176
    %v2319 = vmul.f32 %v2318, %v2176
    %v2320 = vmul.f32 %v2319, %v2318
    %v2321 = vmul.f32 0.5, %v2320
    %v2322 = vsub.f32 1.5, %v2321
    %v2323 = vmul.f32 %v2318, %v2322
    %vm2324 = vweird.f32 %v2176
    %vm2325 = vweird.f32 %v2318
    %vm2326 = vmor %vm2324, %vm2325
    %v2327 = vsel %vm2326, %v2318, %v2323
    %v2328 = vrsqrt.pop %v2177
    %v2329 = vmul.f32 %v2328, %v2177
    %v2330 = vmul.f32 %v2329, %v2328
    %v2331 = vmul.f32 0.5, %v2330
    %v2332 = vsub.f32 1.5, %v2331
    %v2333 = vmul.f32 %v2328, %v2332
    %vm2334 = vweird.f32 %v2177
    %vm2335 = vweird.f32 %v2328
    %vm2336 = vmor %vm2334, %vm2335
    %v2337 = vsel %vm2336, %v2328, %v2333
    %v2338 = vmul.f32 %v2082, %v2187
    %v2339 = vmul.f32 %v2083, %v2197
    %v2340 = vmul.f32 %v2084, %v2207
    %v2341 = vmul.f32 %v2085, %v2217
    %v2342 = vmul.f32 %v2086, %v2227
    %v2343 = vmul.f32 %v2087, %v2237
    %v2344 = vmul.f32 %v2088, %v2247
    %v2345 = vmul.f32 %v2089, %v2257
    %v2346 = vmul.f32 %v2090, %v2267
    %v2347 = vmul.f32 %v2091, %v2277
    %v2348 = vmul.f32 %v2092, %v2287
    %v2349 = vmul.f32 %v2093, %v2297
    %v2350 = vmul.f32 %v2094, %v2307
    %v2351 = vmul.f32 %v2095, %v2317
    %v2352 = vmul.f32 %v2096, %v2327
    %v2353 = vmul.f32 %v2097, %v2337
    %v2355 = vperm.slane %v2032, 0
    %v2357 = vmul.f32 %v2338, %v2355
    %v2358 = vmul.f32 %v2339, %v2355
    %v2359 = vmul.f32 %v2340, %v2355
    %v2360 = vmul.f32 %v2341, %v2355
    %v2361 = vmul.f32 %v2342, %v2355
    %v2362 = vmul.f32 %v2343, %v2355
    %v2363 = vmul.f32 %v2344, %v2355
    %v2364 = vmul.f32 %v2345, %v2355
    %v2365 = vmul.f32 %v2346, %v2355
    %v2366 = vmul.f32 %v2347, %v2355
    %v2367 = vmul.f32 %v2348, %v2355
    %v2368 = vmul.f32 %v2349, %v2355
    %v2369 = vmul.f32 %v2350, %v2355
    %v2370 = vmul.f32 %v2351, %v2355
    %v2371 = vmul.f32 %v2352, %v2355
    %v2372 = vmul.f32 %v2353, %v2355
    %v2374 = vperm.slane %v2033, 0
    %v2376 = vadd.f32 %v2357, %v2374
    %v2377 = vadd.f32 %v2358, %v2374
    %v2378 = vadd.f32 %v2359, %v2374
    %v2379 = vadd.f32 %v2360, %v2374
    %v2380 = vadd.f32 %v2361, %v2374
    %v2381 = vadd.f32 %v2362, %v2374
    %v2382 = vadd.f32 %v2363, %v2374
    %v2383 = vadd.f32 %v2364, %v2374
    %v2384 = vadd.f32 %v2365, %v2374
    %v2385 = vadd.f32 %v2366, %v2374
    %v2386 = vadd.f32 %v2367, %v2374
    %v2387 = vadd.f32 %v2368, %v2374
    %v2388 = vadd.f32 %v2369, %v2374
    %v2389 = vadd.f32 %v2370, %v2374
    %v2390 = vadd.f32 %v2371, %v2374
    %v2391 = vadd.f32 %v2372, %v2374
    %v2392 = vld [vmem:[%s73] sm:$0xff]
    %v2393 = vld [vmem:[%s73 + $0x8] sm:$0xf]
    %v2394 = vld [vmem:[%s73 + $0xc] sm:$0xff]
    %v2395 = vld [vmem:[%s73 + $0x14] sm:$0xf]
    %v2396 = vld [vmem:[%s73 + $0x18] sm:$0xff]
    %v2397 = vld [vmem:[%s73 + $0x20] sm:$0xf]
    %v2398 = vld [vmem:[%s73 + $0x24] sm:$0xff]
    %v2399 = vld [vmem:[%s73 + $0x2c] sm:$0xf]
    %v2400 = vld [vmem:[%s73 + $0x30] sm:$0xff]
    %v2401 = vld [vmem:[%s73 + $0x38] sm:$0xf]
    %v2402 = vld [vmem:[%s73 + $0x3c] sm:$0xff]
    %v2403 = vld [vmem:[%s73 + $0x44] sm:$0xf]
    %v2404 = vld [vmem:[%s73 + $0x48] sm:$0xff]
    %v2405 = vld [vmem:[%s73 + $0x50] sm:$0xf]
    %v2406 = vld [vmem:[%s73 + $0x54] sm:$0xff]
    %v2407 = vld [vmem:[%s73 + $0x5c] sm:$0xf]
    %v2408 = vld [vmem:[%s73 + $0x60] sm:$0xff]
    %v2409 = vld [vmem:[%s73 + $0x68] sm:$0xf]
    %v2410 = vld [vmem:[%s73 + $0x6c] sm:$0xff]
    %v2411 = vld [vmem:[%s73 + $0x74] sm:$0xf]
    %v2412 = vld [vmem:[%s73 + $0x78] sm:$0xff]
    %v2413 = vld [vmem:[%s73 + $0x80] sm:$0xf]
    %v2414 = vld [vmem:[%s73 + $0x84] sm:$0xff]
    %v2415 = vld [vmem:[%s73 + $0x8c] sm:$0xf]
    %v2416 = vld [vmem:[%s73 + $0x90] sm:$0xff]
    %v2417 = vld [vmem:[%s73 + $0x98] sm:$0xf]
    %v2418 = vld [vmem:[%s73 + $0x9c] sm:$0xff]
    %v2419 = vld [vmem:[%s73 + $0xa4] sm:$0xf]
    %v2420 = vld [vmem:[%s73 + $0xa8] sm:$0xff]
    %v2421 = vld [vmem:[%s73 + $0xb0] sm:$0xf]
    %v2422 = vld [vmem:[%s73 + $0xb4] sm:$0xff]
    %v2423 = vld [vmem:[%s73 + $0xbc] sm:$0xf]
    %v2424 = vld [vmem:[%s57] sm:$0x7]
    %v2425 = vld [vmem:[#allocation2] sm:$0xf]
    %v2426 = vld [vmem:[#allocation2 + $0x4] sm:$0xf]
    %v2427 = vld [vmem:[#allocation2 + $0x8] sm:$0xf]
    %v2428 = vld [vmem:[#allocation2 + $0xc] sm:$0xf]
    %v2429 = vld [vmem:[#allocation2 + $0x10] sm:$0xf]
    %v2430 = vld [vmem:[#allocation2 + $0x14] sm:$0xf]
    %v2431 = vld [vmem:[#allocation2 + $0x18] sm:$0xf]
    %v2432 = vld [vmem:[#allocation2 + $0x1c] sm:$0xf]
    %v2433 = vld [vmem:[#allocation2 + $0x20] sm:$0xf]
    %v2434 = vld [vmem:[#allocation2 + $0x24] sm:$0xf]
    %v2435 = vld [vmem:[#allocation2 + $0x28] sm:$0xf]
    %v2436 = vld [vmem:[#allocation2 + $0x2c] sm:$0xf]
    %v2437 = vld [vmem:[#allocation2 + $0x30] sm:$0xf]
    %v2438 = vld [vmem:[#allocation2 + $0x34] sm:$0xf]
    %v2439 = vld [vmem:[#allocation2 + $0x38] sm:$0xf]
    %v2440 = vld [vmem:[#allocation2 + $0x3c] sm:$0xf]
    %v2441 = vld [vmem:[%s55] sm:$0x1]
    %v2442 = vld [vmem:[%s61] sm:$0x1]
    %v2443 = vld [vmem:[%s59] sm:$0x1]
    %v2444 = vld [vmem:[%s67] sm:$0xff]
    %v2445 = vld [vmem:[%s67 + $0x8] sm:$0xff]
    %v2446 = vld [vmem:[%s67 + $0x10] sm:$0xff]
    %v2447 = vld [vmem:[%s67 + $0x18] sm:$0xff]
    %v2448 = vld [vmem:[%s67 + $0x20] sm:$0xff]
    %v2449 = vld [vmem:[%s67 + $0x28] sm:$0xff]
    %v2450 = vld [vmem:[%s67 + $0x30] sm:$0xff]
    %v2451 = vld [vmem:[%s67 + $0x38] sm:$0xff]
    %v2452 = vld [vmem:[%s67 + $0x40] sm:$0xff]
    %v2453 = vld [vmem:[%s67 + $0x48] sm:$0xff]
    %v2454 = vld [vmem:[%s67 + $0x50] sm:$0xff]
    %v2455 = vld [vmem:[%s67 + $0x58] sm:$0xff]
    %v2456 = vld [vmem:[%s67 + $0x60] sm:$0xff]
    %v2457 = vld [vmem:[%s67 + $0x68] sm:$0xff]
    %v2458 = vld [vmem:[%s67 + $0x70] sm:$0xff]
    %v2459 = vld [vmem:[%s67 + $0x78] sm:$0xff]
    %v2460 = vld [vmem:[%s51] sm:$0x3]
    %v2461 = vld [vmem:[%s69] sm:$0xf]
    %v2462 = vld [vmem:[%s69 + $0x4] sm:$0xf]
    %v2463 = vld [vmem:[%s69 + $0x8] sm:$0xf]
    %v2464 = vld [vmem:[%s69 + $0xc] sm:$0xf]
    %v2465 = vld [vmem:[%s69 + $0x10] sm:$0xf]
    %v2466 = vld [vmem:[%s69 + $0x14] sm:$0xf]
    %v2467 = vld [vmem:[%s69 + $0x18] sm:$0xf]
    %v2468 = vld [vmem:[%s69 + $0x1c] sm:$0xf]
    %v2469 = vld [vmem:[%s69 + $0x20] sm:$0xf]
    %v2470 = vld [vmem:[%s69 + $0x24] sm:$0xf]
    %v2471 = vld [vmem:[%s69 + $0x28] sm:$0xf]
    %v2472 = vld [vmem:[%s69 + $0x2c] sm:$0xf]
    %v2473 = vld [vmem:[%s69 + $0x30] sm:$0xf]
    %v2474 = vld [vmem:[%s69 + $0x34] sm:$0xf]
    %v2475 = vld [vmem:[%s69 + $0x38] sm:$0xf]
    %v2476 = vld [vmem:[%s69 + $0x3c] sm:$0xf]
    %v2477 = vld [vmem:[%s69 + $0x40] sm:$0xf]
    %v2478 = vld [vmem:[%s69 + $0x44] sm:$0xf]
    %v2479 = vld [vmem:[%s69 + $0x48] sm:$0xf]
    %v2480 = vld [vmem:[%s69 + $0x4c] sm:$0xf]
    %v2481 = vld [vmem:[%s69 + $0x50] sm:$0xf]
    %v2482 = vld [vmem:[%s69 + $0x54] sm:$0xf]
    %v2483 = vld [vmem:[%s69 + $0x58] sm:$0xf]
    %v2484 = vld [vmem:[%s69 + $0x5c] sm:$0xf]
    %v2485 = vld [vmem:[%s69 + $0x60] sm:$0xf]
    %v2486 = vld [vmem:[%s69 + $0x64] sm:$0xf]
    %v2487 = vld [vmem:[%s69 + $0x68] sm:$0xf]
    %v2488 = vld [vmem:[%s69 + $0x6c] sm:$0xf]
    %v2489 = vld [vmem:[%s69 + $0x70] sm:$0xf]
    %v2490 = vld [vmem:[%s69 + $0x74] sm:$0xf]
    %v2491 = vld [vmem:[%s69 + $0x78] sm:$0xf]
    %v2492 = vld [vmem:[%s69 + $0x7c] sm:$0xf]
    %v2493 = vld [vmem:[%s53] sm:$0x1]
    %v2494 = vld [vmem:[%s65] sm:$0x1]
    %v2495 = vld [vmem:[%s63] sm:$0x1]
    %v2496 = vpack.c.bf16 %v2377, %v2376
    %v2497 = vpack.c.bf16 %v2379, %v2378
    %v2498 = vpack.c.bf16 %v2381, %v2380
    %v2499 = vpack.c.bf16 %v2383, %v2382
    %v2500 = vpack.c.bf16 %v2385, %v2384
    %v2501 = vpack.c.bf16 %v2387, %v2386
    %v2502 = vpack.c.bf16 %v2389, %v2388
    %v2503 = vpack.c.bf16 %v2391, %v2390
    %v2505 = vperm.slane %v2424, 0
    %v2506 = vperm.slane %v2424, 1
    %v2507 = vperm.slane %v2424, 2
    %v2543 = vunpack.c.l.b16 %v2392
    %v2544 = vunpack.c.h.b16 %v2392
    %v2545 = vunpack.c.l.b16 %v2393
    %v2546 = vunpack.c.l.b16 %v2394
    %v2547 = vunpack.c.h.b16 %v2394
    %v2548 = vunpack.c.l.b16 %v2395
    %v2549 = vunpack.c.l.b16 %v2396
    %v2550 = vunpack.c.h.b16 %v2396
    %v2551 = vunpack.c.l.b16 %v2397
    %v2552 = vunpack.c.l.b16 %v2398
    %v2553 = vunpack.c.h.b16 %v2398
    %v2554 = vunpack.c.l.b16 %v2399
    %v2555 = vunpack.c.l.b16 %v2400
    %v2556 = vunpack.c.h.b16 %v2400
    %v2557 = vunpack.c.l.b16 %v2401
    %v2558 = vunpack.c.l.b16 %v2402
    %v2559 = vunpack.c.h.b16 %v2402
    %v2560 = vunpack.c.l.b16 %v2403
    %v2561 = vunpack.c.l.b16 %v2404
    %v2562 = vunpack.c.h.b16 %v2404
    %v2563 = vunpack.c.l.b16 %v2405
    %v2564 = vunpack.c.l.b16 %v2406
    %v2565 = vunpack.c.h.b16 %v2406
    %v2566 = vunpack.c.l.b16 %v2407
    %v2567 = vunpack.c.l.b16 %v2408
    %v2568 = vunpack.c.h.b16 %v2408
    %v2569 = vunpack.c.l.b16 %v2409
    %v2570 = vunpack.c.l.b16 %v2410
    %v2571 = vunpack.c.h.b16 %v2410
    %v2572 = vunpack.c.l.b16 %v2411
    %v2573 = vunpack.c.l.b16 %v2412
    %v2574 = vunpack.c.h.b16 %v2412
    %v2575 = vunpack.c.l.b16 %v2413
    %v2576 = vunpack.c.l.b16 %v2414
    %v2577 = vunpack.c.h.b16 %v2414
    %v2578 = vunpack.c.l.b16 %v2415
    %v2579 = vunpack.c.l.b16 %v2416
    %v2580 = vunpack.c.h.b16 %v2416
    %v2581 = vunpack.c.l.b16 %v2417
    %v2582 = vunpack.c.l.b16 %v2418
    %v2583 = vunpack.c.h.b16 %v2418
    %v2584 = vunpack.c.l.b16 %v2419
    %v2585 = vunpack.c.l.b16 %v2420
    %v2586 = vunpack.c.h.b16 %v2420
    %v2587 = vunpack.c.l.b16 %v2421
    %v2588 = vunpack.c.l.b16 %v2422
    %v2589 = vunpack.c.h.b16 %v2422
    %v2590 = vunpack.c.l.b16 %v2423
    %v2591 = vpack.c.b16 %v2546, %v2543
    %v2592 = vpack.c.b16 %v2547, %v2544
    %v2593 = vpack.c.b16 %v2548, %v2545
    %v2594 = vpack.c.b16 %v2552, %v2549
    %v2595 = vpack.c.b16 %v2553, %v2550
    %v2596 = vpack.c.b16 %v2554, %v2551
    %v2597 = vpack.c.b16 %v2558, %v2555
    %v2598 = vpack.c.b16 %v2559, %v2556
    %v2599 = vpack.c.b16 %v2560, %v2557
    %v2600 = vpack.c.b16 %v2564, %v2561
    %v2601 = vpack.c.b16 %v2565, %v2562
    %v2602 = vpack.c.b16 %v2566, %v2563
    %v2603 = vpack.c.b16 %v2570, %v2567
    %v2604 = vpack.c.b16 %v2571, %v2568
    %v2605 = vpack.c.b16 %v2572, %v2569
    %v2606 = vpack.c.b16 %v2576, %v2573
    %v2607 = vpack.c.b16 %v2577, %v2574
    %v2608 = vpack.c.b16 %v2578, %v2575
    %v2609 = vpack.c.b16 %v2582, %v2579
    %v2610 = vpack.c.b16 %v2583, %v2580
    %v2611 = vpack.c.b16 %v2584, %v2581
    %v2612 = vpack.c.b16 %v2588, %v2585
    %v2613 = vpack.c.b16 %v2589, %v2586
    %v2614 = vpack.c.b16 %v2590, %v2587
    %2639 = vmatpush.bf16.msra.mxu0 %v2612
    %2640 = vmatpush.bf16.msra.mxu0 %v2609
    %2641 = vmatpush.bf16.msra.mxu0 %v2606
    %2642 = vmatpush.bf16.msra.mxu0 %v2603
    %2643 = vmatpush.bf16.msra.mxu0 %v2600
    %2644 = vmatpush.bf16.msra.mxu0 %v2597
    %2645 = vmatpush.bf16.msra.mxu0 %v2594
    %2646 = vmatpush.bf16.msra.mxu0 %v2591
    %2647 = vmatmul.bf16.gmra.mxu0 %v2496
    %v2648 = vpop.f32.mrf.mxu0
    %v2649 = vadd.f32 %v2505, %v2648
    %v2650 = vpop.f32.mrf.mxu0
    %v2651 = vadd.f32 %v2505, %v2650
    %2652 = vmatmul.bf16.gmra.mxu0 %v2497
    %v2653 = vpop.f32.mrf.mxu0
    %v2654 = vadd.f32 %v2505, %v2653
    %v2655 = vpop.f32.mrf.mxu0
    %v2656 = vadd.f32 %v2505, %v2655
    %2657 = vmatmul.bf16.gmra.mxu0 %v2498
    %v2658 = vpop.f32.mrf.mxu0
    %v2659 = vadd.f32 %v2505, %v2658
    %v2660 = vpop.f32.mrf.mxu0
    %v2661 = vadd.f32 %v2505, %v2660
    %2662 = vmatmul.bf16.gmra.mxu0 %v2499
    %v2663 = vpop.f32.mrf.mxu0
    %v2664 = vadd.f32 %v2505, %v2663
    %v2665 = vpop.f32.mrf.mxu0
    %v2666 = vadd.f32 %v2505, %v2665
    %2667 = vmatmul.bf16.gmra.mxu0 %v2500
    %v2668 = vpop.f32.mrf.mxu0
    %v2669 = vadd.f32 %v2505, %v2668
    %v2670 = vpop.f32.mrf.mxu0
    %v2671 = vadd.f32 %v2505, %v2670
    %2672 = vmatmul.bf16.gmra.mxu0 %v2501
    %v2673 = vpop.f32.mrf.mxu0
    %v2674 = vadd.f32 %v2505, %v2673
    %v2675 = vpop.f32.mrf.mxu0
    %v2676 = vadd.f32 %v2505, %v2675
    %2677 = vmatmul.bf16.gmra.mxu0 %v2502
    %v2678 = vpop.f32.mrf.mxu0
    %v2679 = vadd.f32 %v2505, %v2678
    %v2680 = vpop.f32.mrf.mxu0
    %v2681 = vadd.f32 %v2505, %v2680
    %2682 = vmatmul.bf16.gmra.mxu0 %v2503
    %v2683 = vpop.f32.mrf.mxu0
    %v2684 = vadd.f32 %v2505, %v2683
    %v2685 = vpop.f32.mrf.mxu0
    %v2686 = vadd.f32 %v2505, %v2685
    %2687 = vdwg.mxu0
    %2688 = vmatpush.bf16.msra.mxu0 %v2613
    %2689 = vmatpush.bf16.msra.mxu0 %v2610
    %2690 = vmatpush.bf16.msra.mxu0 %v2607
    %2691 = vmatpush.bf16.msra.mxu0 %v2604
    %2692 = vmatpush.bf16.msra.mxu0 %v2601
    %2693 = vmatpush.bf16.msra.mxu0 %v2598
    %2694 = vmatpush.bf16.msra.mxu0 %v2595
    %2695 = vmatpush.bf16.msra.mxu0 %v2592
    %2696 = vmatmul.bf16.gmra.mxu0 %v2496
    %v2697 = vpop.f32.mrf.mxu0
    %v2698 = vadd.f32 %v2506, %v2697
    %v2699 = vpop.f32.mrf.mxu0
    %v2700 = vadd.f32 %v2506, %v2699
    %2701 = vmatmul.bf16.gmra.mxu0 %v2497
    %v2702 = vpop.f32.mrf.mxu0
    %v2703 = vadd.f32 %v2506, %v2702
    %v2704 = vpop.f32.mrf.mxu0
    %v2705 = vadd.f32 %v2506, %v2704
    %2706 = vmatmul.bf16.gmra.mxu0 %v2498
    %v2707 = vpop.f32.mrf.mxu0
    %v2708 = vadd.f32 %v2506, %v2707
    %v2709 = vpop.f32.mrf.mxu0
    %v2710 = vadd.f32 %v2506, %v2709
    %2711 = vmatmul.bf16.gmra.mxu0 %v2499
    %v2712 = vpop.f32.mrf.mxu0
    %v2713 = vadd.f32 %v2506, %v2712
    %v2714 = vpop.f32.mrf.mxu0
    %v2715 = vadd.f32 %v2506, %v2714
    %2716 = vmatmul.bf16.gmra.mxu0 %v2500
    %v2717 = vpop.f32.mrf.mxu0
    %v2718 = vadd.f32 %v2506, %v2717
    %v2719 = vpop.f32.mrf.mxu0
    %v2720 = vadd.f32 %v2506, %v2719
    %2721 = vmatmul.bf16.gmra.mxu0 %v2501
    %v2722 = vpop.f32.mrf.mxu0
    %v2723 = vadd.f32 %v2506, %v2722
    %v2724 = vpop.f32.mrf.mxu0
    %v2725 = vadd.f32 %v2506, %v2724
    %2726 = vmatmul.bf16.gmra.mxu0 %v2502
    %v2727 = vpop.f32.mrf.mxu0
    %v2728 = vadd.f32 %v2506, %v2727
    %v2729 = vpop.f32.mrf.mxu0
    %v2730 = vadd.f32 %v2506, %v2729
    %2731 = vmatmul.bf16.gmra.mxu0 %v2503
    %v2732 = vpop.f32.mrf.mxu0
    %v2733 = vadd.f32 %v2506, %v2732
    %v2734 = vpop.f32.mrf.mxu0
    %v2735 = vadd.f32 %v2506, %v2734
    %2736 = vdwg.mxu0
    %2737 = vmatpush.bf16.msra.mxu0 %v2614
    %2738 = vmatpush.bf16.msra.mxu0 %v2611
    %2739 = vmatpush.bf16.msra.mxu0 %v2608
    %2740 = vmatpush.bf16.msra.mxu0 %v2605
    %2741 = vmatpush.bf16.msra.mxu0 %v2602
    %2742 = vmatpush.bf16.msra.mxu0 %v2599
    %2743 = vmatpush.bf16.msra.mxu0 %v2596
    %2744 = vmatpush.bf16.msra.mxu0 %v2593
    %2745 = vmatmul.bf16.gmra.mxu0 %v2496
    %v2746 = vpop.f32.mrf.mxu0
    %v2747 = vadd.f32 %v2507, %v2746
    %v2748 = vpop.f32.mrf.mxu0
    %v2749 = vadd.f32 %v2507, %v2748
    %2750 = vmatmul.bf16.gmra.mxu0 %v2497
    %v2751 = vpop.f32.mrf.mxu0
    %v2752 = vadd.f32 %v2507, %v2751
    %v2753 = vpop.f32.mrf.mxu0
    %v2754 = vadd.f32 %v2507, %v2753
    %2755 = vmatmul.bf16.gmra.mxu0 %v2498
    %v2756 = vpop.f32.mrf.mxu0
    %v2757 = vadd.f32 %v2507, %v2756
    %v2758 = vpop.f32.mrf.mxu0
    %v2759 = vadd.f32 %v2507, %v2758
    %2760 = vmatmul.bf16.gmra.mxu0 %v2499
    %v2761 = vpop.f32.mrf.mxu0
    %v2762 = vadd.f32 %v2507, %v2761
    %v2763 = vpop.f32.mrf.mxu0
    %v2764 = vadd.f32 %v2507, %v2763
    %2765 = vmatmul.bf16.gmra.mxu0 %v2500
    %v2766 = vpop.f32.mrf.mxu0
    %v2767 = vadd.f32 %v2507, %v2766
    %v2768 = vpop.f32.mrf.mxu0
    %v2769 = vadd.f32 %v2507, %v2768
    %2770 = vmatmul.bf16.gmra.mxu0 %v2501
    %v2771 = vpop.f32.mrf.mxu0
    %v2772 = vadd.f32 %v2507, %v2771
    %v2773 = vpop.f32.mrf.mxu0
    %v2774 = vadd.f32 %v2507, %v2773
    %2775 = vmatmul.bf16.gmra.mxu0 %v2502
    %v2776 = vpop.f32.mrf.mxu0
    %v2777 = vadd.f32 %v2507, %v2776
    %v2778 = vpop.f32.mrf.mxu0
    %v2779 = vadd.f32 %v2507, %v2778
    %2780 = vmatmul.bf16.gmra.mxu0 %v2503
    %v2781 = vpop.f32.mrf.mxu0
    %v2782 = vadd.f32 %v2507, %v2781
    %v2783 = vpop.f32.mrf.mxu0
    %v2784 = vadd.f32 %v2507, %v2783
    %2785 = vdwg.mxu0
    %v2786 = vpack.c.bf16 %v2651, %v2649
    %v2787 = vpack.c.bf16 %v2656, %v2654
    %v2788 = vpack.c.bf16 %v2661, %v2659
    %v2789 = vpack.c.bf16 %v2666, %v2664
    %v2790 = vpack.c.bf16 %v2671, %v2669
    %v2791 = vpack.c.bf16 %v2676, %v2674
    %v2792 = vpack.c.bf16 %v2681, %v2679
    %v2793 = vpack.c.bf16 %v2686, %v2684
    %v2794 = vpack.c.bf16 %v2700, %v2698
    %v2795 = vpack.c.bf16 %v2705, %v2703
    %v2796 = vpack.c.bf16 %v2710, %v2708
    %v2797 = vpack.c.bf16 %v2715, %v2713
    %v2798 = vpack.c.bf16 %v2720, %v2718
    %v2799 = vpack.c.bf16 %v2725, %v2723
    %v2800 = vpack.c.bf16 %v2730, %v2728
    %v2801 = vpack.c.bf16 %v2735, %v2733
    %v2803 = vsel %vm693, %v2786, 0
    %v2806 = vsel %vm693, %v2787, 0
    %v2809 = vsel %vm693, %v2788, 0
    %v2812 = vsel %vm693, %v2789, 0
    %v2815 = vsel %vm693, %v2790, 0
    %v2818 = vsel %vm693, %v2791, 0
    %v2821 = vsel %vm693, %v2792, 0
    %v2824 = vsel %vm693, %v2793, 0
    %v2827 = vsel %vm693, %v2794, 0
    %v2830 = vsel %vm693, %v2795, 0
    %v2833 = vsel %vm693, %v2796, 0
    %v2836 = vsel %vm693, %v2797, 0
    %v2839 = vsel %vm693, %v2798, 0
    %v2842 = vsel %vm693, %v2799, 0
    %v2845 = vsel %vm693, %v2800, 0
    %v2848 = vsel %vm693, %v2801, 0
    %2850 = vmatpush.bf16.xpose.msra.mxu0 %v2848
    %2851 = vmatpush.bf16.xpose.msra.mxu0 %v2845
    %2852 = vmatpush.bf16.xpose.msra.mxu0 %v2842
    %2853 = vmatpush.bf16.xpose.msra.mxu0 %v2839
    %2854 = vmatpush.bf16.xpose.msra.mxu0 %v2836
    %2855 = vmatpush.bf16.xpose.msra.mxu0 %v2833
    %2856 = vmatpush.bf16.xpose.msra.mxu0 %v2830
    %2857 = vmatpush.bf16.xpose.msra.mxu0 %v2827
    %2858 = vmatmul.bf16.gmra.mxu0 %v2803
    %v2859 = vpop.f32.mrf.mxu0
    %v2860 = vadd.f32 0.0, %v2859
    %v2861 = vpop.f32.mrf.mxu0
    %v2862 = vadd.f32 0.0, %v2861
    %2863 = vmatmul.bf16.gmra.mxu0 %v2806
    %v2864 = vpop.f32.mrf.mxu0
    %v2865 = vadd.f32 0.0, %v2864
    %v2866 = vpop.f32.mrf.mxu0
    %v2867 = vadd.f32 0.0, %v2866
    %2868 = vmatmul.bf16.gmra.mxu0 %v2809
    %v2869 = vpop.f32.mrf.mxu0
    %v2870 = vadd.f32 0.0, %v2869
    %v2871 = vpop.f32.mrf.mxu0
    %v2872 = vadd.f32 0.0, %v2871
    %2873 = vmatmul.bf16.gmra.mxu0 %v2812
    %v2874 = vpop.f32.mrf.mxu0
    %v2875 = vadd.f32 0.0, %v2874
    %v2876 = vpop.f32.mrf.mxu0
    %v2877 = vadd.f32 0.0, %v2876
    %2878 = vmatmul.bf16.gmra.mxu0 %v2815
    %v2879 = vpop.f32.mrf.mxu0
    %v2880 = vadd.f32 0.0, %v2879
    %v2881 = vpop.f32.mrf.mxu0
    %v2882 = vadd.f32 0.0, %v2881
    %2883 = vmatmul.bf16.gmra.mxu0 %v2818
    %v2884 = vpop.f32.mrf.mxu0
    %v2885 = vadd.f32 0.0, %v2884
    %v2886 = vpop.f32.mrf.mxu0
    %v2887 = vadd.f32 0.0, %v2886
    %2888 = vmatmul.bf16.gmra.mxu0 %v2821
    %v2889 = vpop.f32.mrf.mxu0
    %v2890 = vadd.f32 0.0, %v2889
    %v2891 = vpop.f32.mrf.mxu0
    %v2892 = vadd.f32 0.0, %v2891
    %2893 = vmatmul.bf16.gmra.mxu0 %v2824
    %v2894 = vpop.f32.mrf.mxu0
    %v2895 = vadd.f32 0.0, %v2894
    %v2896 = vpop.f32.mrf.mxu0
    %v2897 = vadd.f32 0.0, %v2896
    %2898 = vdwg.mxu0
    %v2899 = vmul.f32 %v2860, 0.17677669
    %v2900 = vmul.f32 %v2862, 0.17677669
    %v2901 = vmul.f32 %v2865, 0.17677669
    %v2902 = vmul.f32 %v2867, 0.17677669
    %v2903 = vmul.f32 %v2870, 0.17677669
    %v2904 = vmul.f32 %v2872, 0.17677669
    %v2905 = vmul.f32 %v2875, 0.17677669
    %v2906 = vmul.f32 %v2877, 0.17677669
    %v2907 = vmul.f32 %v2880, 0.17677669
    %v2908 = vmul.f32 %v2882, 0.17677669
    %v2909 = vmul.f32 %v2885, 0.17677669
    %v2910 = vmul.f32 %v2887, 0.17677669
    %v2911 = vmul.f32 %v2890, 0.17677669
    %v2912 = vmul.f32 %v2892, 0.17677669
    %v2913 = vmul.f32 %v2895, 0.17677669
    %v2914 = vmul.f32 %v2897, 0.17677669
    %v2915 = vadd.f32 %v2899, %v2016
    %v2916 = vadd.f32 %v2900, %v2017
    %v2917 = vadd.f32 %v2901, %v2018
    %v2918 = vadd.f32 %v2902, %v2019
    %v2919 = vadd.f32 %v2903, %v2020
    %v2920 = vadd.f32 %v2904, %v2021
    %v2921 = vadd.f32 %v2905, %v2022
    %v2922 = vadd.f32 %v2906, %v2023
    %v2923 = vadd.f32 %v2907, %v2024
    %v2924 = vadd.f32 %v2908, %v2025
    %v2925 = vadd.f32 %v2909, %v2026
    %v2926 = vadd.f32 %v2910, %v2027
    %v2927 = vadd.f32 %v2911, %v2028
    %v2928 = vadd.f32 %v2912, %v2029
    %v2929 = vadd.f32 %v2913, %v2030
    %v2930 = vadd.f32 %v2914, %v2031
    %2931 = vmax.xlane.f32.xlu0 %v2915
    %v2932 = vpop.xlane.xlu0 %2931
    %2933 = vmax.xlane.f32.xlu0 %v2916
    %v2934 = vpop.xlane.xlu0 %2933
    %2935 = vmax.xlane.f32.xlu0 %v2917
    %v2936 = vpop.xlane.xlu0 %2935
    %2937 = vmax.xlane.f32.xlu0 %v2918
    %v2938 = vpop.xlane.xlu0 %2937
    %2939 = vmax.xlane.f32.xlu0 %v2919
    %v2940 = vpop.xlane.xlu0 %2939
    %2941 = vmax.xlane.f32.xlu0 %v2920
    %v2942 = vpop.xlane.xlu0 %2941
    %2943 = vmax.xlane.f32.xlu0 %v2921
    %v2944 = vpop.xlane.xlu0 %2943
    %2945 = vmax.xlane.f32.xlu0 %v2922
    %v2946 = vpop.xlane.xlu0 %2945
    %2947 = vmax.xlane.f32.xlu0 %v2923
    %v2948 = vpop.xlane.xlu0 %2947
    %2949 = vmax.xlane.f32.xlu0 %v2924
    %v2950 = vpop.xlane.xlu0 %2949
    %2951 = vmax.xlane.f32.xlu0 %v2925
    %v2952 = vpop.xlane.xlu0 %2951
    %2953 = vmax.xlane.f32.xlu0 %v2926
    %v2954 = vpop.xlane.xlu0 %2953
    %2955 = vmax.xlane.f32.xlu0 %v2927
    %v2956 = vpop.xlane.xlu0 %2955
    %2957 = vmax.xlane.f32.xlu0 %v2928
    %v2958 = vpop.xlane.xlu0 %2957
    %2959 = vmax.xlane.f32.xlu0 %v2929
    %v2960 = vpop.xlane.xlu0 %2959
    %2961 = vmax.xlane.f32.xlu0 %v2930
    %v2962 = vpop.xlane.xlu0 %2961
    %v2963 = vsub.f32 %v2915, %v2932
    %v2964 = vsub.f32 %v2916, %v2934
    %v2965 = vsub.f32 %v2917, %v2936
    %v2966 = vsub.f32 %v2918, %v2938
    %v2967 = vsub.f32 %v2919, %v2940
    %v2968 = vsub.f32 %v2920, %v2942
    %v2969 = vsub.f32 %v2921, %v2944
    %v2970 = vsub.f32 %v2922, %v2946
    %v2971 = vsub.f32 %v2923, %v2948
    %v2972 = vsub.f32 %v2924, %v2950
    %v2973 = vsub.f32 %v2925, %v2952
    %v2974 = vsub.f32 %v2926, %v2954
    %v2975 = vsub.f32 %v2927, %v2956
    %v2976 = vsub.f32 %v2928, %v2958
    %v2977 = vsub.f32 %v2929, %v2960
    %v2978 = vsub.f32 %v2930, %v2962
    %v2979 = vmul.f32 %v2963, 1.442695
    %v2980 = vpow.pop %v2979
    %v2981 = vmul.f32 %v2964, 1.442695
    %v2982 = vpow.pop %v2981
    %v2983 = vmul.f32 %v2965, 1.442695
    %v2984 = vpow.pop %v2983
    %v2985 = vmul.f32 %v2966, 1.442695
    %v2986 = vpow.pop %v2985
    %v2987 = vmul.f32 %v2967, 1.442695
    %v2988 = vpow.pop %v2987
    %v2989 = vmul.f32 %v2968, 1.442695
    %v2990 = vpow.pop %v2989
    %v2991 = vmul.f32 %v2969, 1.442695
    %v2992 = vpow.pop %v2991
    %v2993 = vmul.f32 %v2970, 1.442695
    %v2994 = vpow.pop %v2993
    %v2995 = vmul.f32 %v2971, 1.442695
    %v2996 = vpow.pop %v2995
    %v2997 = vmul.f32 %v2972, 1.442695
    %v2998 = vpow.pop %v2997
    %v2999 = vmul.f32 %v2973, 1.442695
    %v3000 = vpow.pop %v2999
    %v3001 = vmul.f32 %v2974, 1.442695
    %v3002 = vpow.pop %v3001
    %v3003 = vmul.f32 %v2975, 1.442695
    %v3004 = vpow.pop %v3003
    %v3005 = vmul.f32 %v2976, 1.442695
    %v3006 = vpow.pop %v3005
    %v3007 = vmul.f32 %v2977, 1.442695
    %v3008 = vpow.pop %v3007
    %v3009 = vmul.f32 %v2978, 1.442695
    %v3010 = vpow.pop %v3009
    %3011 = vadd.xlane.f32.xlu0 %v2980
    %v3012 = vpop.xlane.xlu0 %3011
    %3013 = vadd.xlane.f32.xlu0 %v2982
    %v3014 = vpop.xlane.xlu0 %3013
    %3015 = vadd.xlane.f32.xlu0 %v2984
    %v3016 = vpop.xlane.xlu0 %3015
    %3017 = vadd.xlane.f32.xlu0 %v2986
    %v3018 = vpop.xlane.xlu0 %3017
    %3019 = vadd.xlane.f32.xlu0 %v2988
    %v3020 = vpop.xlane.xlu0 %3019
    %3021 = vadd.xlane.f32.xlu0 %v2990
    %v3022 = vpop.xlane.xlu0 %3021
    %3023 = vadd.xlane.f32.xlu0 %v2992
    %v3024 = vpop.xlane.xlu0 %3023
    %3025 = vadd.xlane.f32.xlu0 %v2994
    %v3026 = vpop.xlane.xlu0 %3025
    %3027 = vadd.xlane.f32.xlu0 %v2996
    %v3028 = vpop.xlane.xlu0 %3027
    %3029 = vadd.xlane.f32.xlu0 %v2998
    %v3030 = vpop.xlane.xlu0 %3029
    %3031 = vadd.xlane.f32.xlu0 %v3000
    %v3032 = vpop.xlane.xlu0 %3031
    %3033 = vadd.xlane.f32.xlu0 %v3002
    %v3034 = vpop.xlane.xlu0 %3033
    %3035 = vadd.xlane.f32.xlu0 %v3004
    %v3036 = vpop.xlane.xlu0 %3035
    %3037 = vadd.xlane.f32.xlu0 %v3006
    %v3038 = vpop.xlane.xlu0 %3037
    %3039 = vadd.xlane.f32.xlu0 %v3008
    %v3040 = vpop.xlane.xlu0 %3039
    %3041 = vadd.xlane.f32.xlu0 %v3010
    %v3042 = vpop.xlane.xlu0 %3041
    %v3043 = vrcp.pop %v3012
    %v3044 = vrcp.pop %v3014
    %v3045 = vrcp.pop %v3016
    %v3046 = vrcp.pop %v3018
    %v3047 = vrcp.pop %v3020
    %v3048 = vrcp.pop %v3022
    %v3049 = vrcp.pop %v3024
    %v3050 = vrcp.pop %v3026
    %v3051 = vrcp.pop %v3028
    %v3052 = vrcp.pop %v3030
    %v3053 = vrcp.pop %v3032
    %v3054 = vrcp.pop %v3034
    %v3055 = vrcp.pop %v3036
    %v3056 = vrcp.pop %v3038
    %v3057 = vrcp.pop %v3040
    %v3058 = vrcp.pop %v3042
    %v3059 = vmul.f32 %v2980, %v3043
    %v3060 = vmul.f32 %v2982, %v3044
    %v3061 = vmul.f32 %v2984, %v3045
    %v3062 = vmul.f32 %v2986, %v3046
    %v3063 = vmul.f32 %v2988, %v3047
    %v3064 = vmul.f32 %v2990, %v3048
    %v3065 = vmul.f32 %v2992, %v3049
    %v3066 = vmul.f32 %v2994, %v3050
    %v3067 = vmul.f32 %v2996, %v3051
    %v3068 = vmul.f32 %v2998, %v3052
    %v3069 = vmul.f32 %v3000, %v3053
    %v3070 = vmul.f32 %v3002, %v3054
    %v3071 = vmul.f32 %v3004, %v3055
    %v3072 = vmul.f32 %v3006, %v3056
    %v3073 = vmul.f32 %v3008, %v3057
    %v3074 = vmul.f32 %v3010, %v3058
    %v3075 = vpack.c.bf16 %v3060, %v3059
    %v3076 = vpack.c.bf16 %v3062, %v3061
    %v3077 = vpack.c.bf16 %v3064, %v3063
    %v3078 = vpack.c.bf16 %v3066, %v3065
    %v3079 = vpack.c.bf16 %v3068, %v3067
    %v3080 = vpack.c.bf16 %v3070, %v3069
    %v3081 = vpack.c.bf16 %v3072, %v3071
    %v3082 = vpack.c.bf16 %v3074, %v3073
    %v3083 = vpack.c.bf16 %v2749, %v2747
    %v3084 = vpack.c.bf16 %v2754, %v2752
    %v3085 = vpack.c.bf16 %v2759, %v2757
    %v3086 = vpack.c.bf16 %v2764, %v2762
    %v3087 = vpack.c.bf16 %v2769, %v2767
    %v3088 = vpack.c.bf16 %v2774, %v2772
    %v3089 = vpack.c.bf16 %v2779, %v2777
    %v3090 = vpack.c.bf16 %v2784, %v2782
    %3091 = vmatpush.bf16.msra.mxu0 %v3090
    %3092 = vmatpush.bf16.msra.mxu0 %v3089
    %3093 = vmatpush.bf16.msra.mxu0 %v3088
    %3094 = vmatpush.bf16.msra.mxu0 %v3087
    %3095 = vmatpush.bf16.msra.mxu0 %v3086
    %3096 = vmatpush.bf16.msra.mxu0 %v3085
    %3097 = vmatpush.bf16.msra.mxu0 %v3084
    %3098 = vmatpush.bf16.msra.mxu0 %v3083
    %3099 = vmatmul.bf16.gmra.mxu0 %v3075
    %v3100 = vpop.f32.mrf.mxu0
    %v3101 = vadd.f32 0.0, %v3100
    %v3102 = vpop.f32.mrf.mxu0
    %v3103 = vadd.f32 0.0, %v3102
    %3104 = vmatmul.bf16.gmra.mxu0 %v3076
    %v3105 = vpop.f32.mrf.mxu0
    %v3106 = vadd.f32 0.0, %v3105
    %v3107 = vpop.f32.mrf.mxu0
    %v3108 = vadd.f32 0.0, %v3107
    %3109 = vmatmul.bf16.gmra.mxu0 %v3077
    %v3110 = vpop.f32.mrf.mxu0
    %v3111 = vadd.f32 0.0, %v3110
    %v3112 = vpop.f32.mrf.mxu0
    %v3113 = vadd.f32 0.0, %v3112
    %3114 = vmatmul.bf16.gmra.mxu0 %v3078
    %v3115 = vpop.f32.mrf.mxu0
    %v3116 = vadd.f32 0.0, %v3115
    %v3117 = vpop.f32.mrf.mxu0
    %v3118 = vadd.f32 0.0, %v3117
    %3119 = vmatmul.bf16.gmra.mxu0 %v3079
    %v3120 = vpop.f32.mrf.mxu0
    %v3121 = vadd.f32 0.0, %v3120
    %v3122 = vpop.f32.mrf.mxu0
    %v3123 = vadd.f32 0.0, %v3122
    %3124 = vmatmul.bf16.gmra.mxu0 %v3080
    %v3125 = vpop.f32.mrf.mxu0
    %v3126 = vadd.f32 0.0, %v3125
    %v3127 = vpop.f32.mrf.mxu0
    %v3128 = vadd.f32 0.0, %v3127
    %3129 = vmatmul.bf16.gmra.mxu0 %v3081
    %v3130 = vpop.f32.mrf.mxu0
    %v3131 = vadd.f32 0.0, %v3130
    %v3132 = vpop.f32.mrf.mxu0
    %v3133 = vadd.f32 0.0, %v3132
    %3134 = vmatmul.bf16.gmra.mxu0 %v3082
    %v3135 = vpop.f32.mrf.mxu0
    %v3136 = vadd.f32 0.0, %v3135
    %v3137 = vpop.f32.mrf.mxu0
    %v3138 = vadd.f32 0.0, %v3137
    %3139 = vdwg.mxu0
    %v3140 = vpack.c.bf16 %v3103, %v3101
    %v3141 = vpack.c.bf16 %v3108, %v3106
    %v3142 = vpack.c.bf16 %v3113, %v3111
    %v3143 = vpack.c.bf16 %v3118, %v3116
    %v3144 = vpack.c.bf16 %v3123, %v3121
    %v3145 = vpack.c.bf16 %v3128, %v3126
    %v3146 = vpack.c.bf16 %v3133, %v3131
    %v3147 = vpack.c.bf16 %v3138, %v3136
    %3156 = vrot.lane.b32.xlu0 %v2786, 96
    %v3157 = vpop.permute.xlu0 %3156
    %3158 = vrot.lane.b32.xlu0 %v2787, 96
    %v3159 = vpop.permute.xlu0 %3158
    %3160 = vrot.lane.b32.xlu0 %v2788, 96
    %v3161 = vpop.permute.xlu0 %3160
    %3162 = vrot.lane.b32.xlu0 %v2789, 96
    %v3163 = vpop.permute.xlu0 %3162
    %3164 = vrot.lane.b32.xlu0 %v2790, 96
    %v3165 = vpop.permute.xlu0 %3164
    %3166 = vrot.lane.b32.xlu0 %v2791, 96
    %v3167 = vpop.permute.xlu0 %3166
    %3168 = vrot.lane.b32.xlu0 %v2792, 96
    %v3169 = vpop.permute.xlu0 %3168
    %3170 = vrot.lane.b32.xlu0 %v2793, 96
    %v3171 = vpop.permute.xlu0 %3170
    %3180 = vrot.lane.b32.xlu0 %v2794, 96
    %v3181 = vpop.permute.xlu0 %3180
    %3182 = vrot.lane.b32.xlu0 %v2795, 96
    %v3183 = vpop.permute.xlu0 %3182
    %3184 = vrot.lane.b32.xlu0 %v2796, 96
    %v3185 = vpop.permute.xlu0 %3184
    %3186 = vrot.lane.b32.xlu0 %v2797, 96
    %v3187 = vpop.permute.xlu0 %3186
    %3188 = vrot.lane.b32.xlu0 %v2798, 96
    %v3189 = vpop.permute.xlu0 %3188
    %3190 = vrot.lane.b32.xlu0 %v2799, 96
    %v3191 = vpop.permute.xlu0 %3190
    %3192 = vrot.lane.b32.xlu0 %v2800, 96
    %v3193 = vpop.permute.xlu0 %3192
    %3194 = vrot.lane.b32.xlu0 %v2801, 96
    %v3195 = vpop.permute.xlu0 %3194
    %v3197 = vsel %vm693, %v3157, 0
    %v3200 = vsel %vm693, %v3159, 0
    %v3203 = vsel %vm693, %v3161, 0
    %v3206 = vsel %vm693, %v3163, 0
    %v3209 = vsel %vm693, %v3165, 0
    %v3212 = vsel %vm693, %v3167, 0
    %v3215 = vsel %vm693, %v3169, 0
    %v3218 = vsel %vm693, %v3171, 0
    %v3221 = vsel %vm693, %v3181, 0
    %v3224 = vsel %vm693, %v3183, 0
    %v3227 = vsel %vm693, %v3185, 0
    %v3230 = vsel %vm693, %v3187, 0
    %v3233 = vsel %vm693, %v3189, 0
    %v3236 = vsel %vm693, %v3191, 0
    %v3239 = vsel %vm693, %v3193, 0
    %v3242 = vsel %vm693, %v3195, 0
    %3244 = vmatpush.bf16.xpose.msra.mxu0 %v3242
    %3245 = vmatpush.bf16.xpose.msra.mxu0 %v3239
    %3246 = vmatpush.bf16.xpose.msra.mxu0 %v3236
    %3247 = vmatpush.bf16.xpose.msra.mxu0 %v3233
    %3248 = vmatpush.bf16.xpose.msra.mxu0 %v3230
    %3249 = vmatpush.bf16.xpose.msra.mxu0 %v3227
    %3250 = vmatpush.bf16.xpose.msra.mxu0 %v3224
    %3251 = vmatpush.bf16.xpose.msra.mxu0 %v3221
    %3252 = vmatmul.bf16.gmra.mxu0 %v3197
    %v3253 = vpop.f32.mrf.mxu0
    %v3254 = vadd.f32 0.0, %v3253
    %v3255 = vpop.f32.mrf.mxu0
    %v3256 = vadd.f32 0.0, %v3255
    %3257 = vmatmul.bf16.gmra.mxu0 %v3200
    %v3258 = vpop.f32.mrf.mxu0
    %v3259 = vadd.f32 0.0, %v3258
    %v3260 = vpop.f32.mrf.mxu0
    %v3261 = vadd.f32 0.0, %v3260
    %3262 = vmatmul.bf16.gmra.mxu0 %v3203
    %v3263 = vpop.f32.mrf.mxu0
    %v3264 = vadd.f32 0.0, %v3263
    %v3265 = vpop.f32.mrf.mxu0
    %v3266 = vadd.f32 0.0, %v3265
    %3267 = vmatmul.bf16.gmra.mxu0 %v3206
    %v3268 = vpop.f32.mrf.mxu0
    %v3269 = vadd.f32 0.0, %v3268
    %v3270 = vpop.f32.mrf.mxu0
    %v3271 = vadd.f32 0.0, %v3270
    %3272 = vmatmul.bf16.gmra.mxu0 %v3209
    %v3273 = vpop.f32.mrf.mxu0
    %v3274 = vadd.f32 0.0, %v3273
    %v3275 = vpop.f32.mrf.mxu0
    %v3276 = vadd.f32 0.0, %v3275
    %3277 = vmatmul.bf16.gmra.mxu0 %v3212
    %v3278 = vpop.f32.mrf.mxu0
    %v3279 = vadd.f32 0.0, %v3278
    %v3280 = vpop.f32.mrf.mxu0
    %v3281 = vadd.f32 0.0, %v3280
    %3282 = vmatmul.bf16.gmra.mxu0 %v3215
    %v3283 = vpop.f32.mrf.mxu0
    %v3284 = vadd.f32 0.0, %v3283
    %v3285 = vpop.f32.mrf.mxu0
    %v3286 = vadd.f32 0.0, %v3285
    %3287 = vmatmul.bf16.gmra.mxu0 %v3218
    %v3288 = vpop.f32.mrf.mxu0
    %v3289 = vadd.f32 0.0, %v3288
    %v3290 = vpop.f32.mrf.mxu0
    %v3291 = vadd.f32 0.0, %v3290
    %3292 = vdwg.mxu0
    %v3293 = vmul.f32 %v3254, 0.17677669
    %v3294 = vmul.f32 %v3256, 0.17677669
    %v3295 = vmul.f32 %v3259, 0.17677669
    %v3296 = vmul.f32 %v3261, 0.17677669
    %v3297 = vmul.f32 %v3264, 0.17677669
    %v3298 = vmul.f32 %v3266, 0.17677669
    %v3299 = vmul.f32 %v3269, 0.17677669
    %v3300 = vmul.f32 %v3271, 0.17677669
    %v3301 = vmul.f32 %v3274, 0.17677669
    %v3302 = vmul.f32 %v3276, 0.17677669
    %v3303 = vmul.f32 %v3279, 0.17677669
    %v3304 = vmul.f32 %v3281, 0.17677669
    %v3305 = vmul.f32 %v3284, 0.17677669
    %v3306 = vmul.f32 %v3286, 0.17677669
    %v3307 = vmul.f32 %v3289, 0.17677669
    %v3308 = vmul.f32 %v3291, 0.17677669
    %v3309 = vadd.f32 %v3293, %v2016
    %v3310 = vadd.f32 %v3294, %v2017
    %v3311 = vadd.f32 %v3295, %v2018
    %v3312 = vadd.f32 %v3296, %v2019
    %v3313 = vadd.f32 %v3297, %v2020
    %v3314 = vadd.f32 %v3298, %v2021
    %v3315 = vadd.f32 %v3299, %v2022
    %v3316 = vadd.f32 %v3300, %v2023
    %v3317 = vadd.f32 %v3301, %v2024
    %v3318 = vadd.f32 %v3302, %v2025
    %v3319 = vadd.f32 %v3303, %v2026
    %v3320 = vadd.f32 %v3304, %v2027
    %v3321 = vadd.f32 %v3305, %v2028
    %v3322 = vadd.f32 %v3306, %v2029
    %v3323 = vadd.f32 %v3307, %v2030
    %v3324 = vadd.f32 %v3308, %v2031
    %3325 = vmax.xlane.f32.xlu0 %v3309
    %v3326 = vpop.xlane.xlu0 %3325
    %3327 = vmax.xlane.f32.xlu0 %v3310
    %v3328 = vpop.xlane.xlu0 %3327
    %3329 = vmax.xlane.f32.xlu0 %v3311
    %v3330 = vpop.xlane.xlu0 %3329
    %3331 = vmax.xlane.f32.xlu0 %v3312
    %v3332 = vpop.xlane.xlu0 %3331
    %3333 = vmax.xlane.f32.xlu0 %v3313
    %v3334 = vpop.xlane.xlu0 %3333
    %3335 = vmax.xlane.f32.xlu0 %v3314
    %v3336 = vpop.xlane.xlu0 %3335
    %3337 = vmax.xlane.f32.xlu0 %v3315
    %v3338 = vpop.xlane.xlu0 %3337
    %3339 = vmax.xlane.f32.xlu0 %v3316
    %v3340 = vpop.xlane.xlu0 %3339
    %3341 = vmax.xlane.f32.xlu0 %v3317
    %v3342 = vpop.xlane.xlu0 %3341
    %3343 = vmax.xlane.f32.xlu0 %v3318
    %v3344 = vpop.xlane.xlu0 %3343
    %3345 = vmax.xlane.f32.xlu0 %v3319
    %v3346 = vpop.xlane.xlu0 %3345
    %3347 = vmax.xlane.f32.xlu0 %v3320
    %v3348 = vpop.xlane.xlu0 %3347
    %3349 = vmax.xlane.f32.xlu0 %v3321
    %v3350 = vpop.xlane.xlu0 %3349
    %3351 = vmax.xlane.f32.xlu0 %v3322
    %v3352 = vpop.xlane.xlu0 %3351
    %3353 = vmax.xlane.f32.xlu0 %v3323
    %v3354 = vpop.xlane.xlu0 %3353
    %3355 = vmax.xlane.f32.xlu0 %v3324
    %v3356 = vpop.xlane.xlu0 %3355
    %v3357 = vsub.f32 %v3309, %v3326
    %v3358 = vsub.f32 %v3310, %v3328
    %v3359 = vsub.f32 %v3311, %v3330
    %v3360 = vsub.f32 %v3312, %v3332
    %v3361 = vsub.f32 %v3313, %v3334
    %v3362 = vsub.f32 %v3314, %v3336
    %v3363 = vsub.f32 %v3315, %v3338
    %v3364 = vsub.f32 %v3316, %v3340
    %v3365 = vsub.f32 %v3317, %v3342
    %v3366 = vsub.f32 %v3318, %v3344
    %v3367 = vsub.f32 %v3319, %v3346
    %v3368 = vsub.f32 %v3320, %v3348
    %v3369 = vsub.f32 %v3321, %v3350
    %v3370 = vsub.f32 %v3322, %v3352
    %v3371 = vsub.f32 %v3323, %v3354
    %v3372 = vsub.f32 %v3324, %v3356
    %v3373 = vmul.f32 %v3357, 1.442695
    %v3374 = vpow.pop %v3373
    %v3375 = vmul.f32 %v3358, 1.442695
    %v3376 = vpow.pop %v3375
    %v3377 = vmul.f32 %v3359, 1.442695
    %v3378 = vpow.pop %v3377
    %v3379 = vmul.f32 %v3360, 1.442695
    %v3380 = vpow.pop %v3379
    %v3381 = vmul.f32 %v3361, 1.442695
    %v3382 = vpow.pop %v3381
    %v3383 = vmul.f32 %v3362, 1.442695
    %v3384 = vpow.pop %v3383
    %v3385 = vmul.f32 %v3363, 1.442695
    %v3386 = vpow.pop %v3385
    %v3387 = vmul.f32 %v3364, 1.442695
    %v3388 = vpow.pop %v3387
    %v3389 = vmul.f32 %v3365, 1.442695
    %v3390 = vpow.pop %v3389
    %v3391 = vmul.f32 %v3366, 1.442695
    %v3392 = vpow.pop %v3391
    %v3393 = vmul.f32 %v3367, 1.442695
    %v3394 = vpow.pop %v3393
    %v3395 = vmul.f32 %v3368, 1.442695
    %v3396 = vpow.pop %v3395
    %v3397 = vmul.f32 %v3369, 1.442695
    %v3398 = vpow.pop %v3397
    %v3399 = vmul.f32 %v3370, 1.442695
    %v3400 = vpow.pop %v3399
    %v3401 = vmul.f32 %v3371, 1.442695
    %v3402 = vpow.pop %v3401
    %v3403 = vmul.f32 %v3372, 1.442695
    %v3404 = vpow.pop %v3403
    %3405 = vadd.xlane.f32.xlu0 %v3374
    %v3406 = vpop.xlane.xlu0 %3405
    %3407 = vadd.xlane.f32.xlu0 %v3376
    %v3408 = vpop.xlane.xlu0 %3407
    %3409 = vadd.xlane.f32.xlu0 %v3378
    %v3410 = vpop.xlane.xlu0 %3409
    %3411 = vadd.xlane.f32.xlu0 %v3380
    %v3412 = vpop.xlane.xlu0 %3411
    %3413 = vadd.xlane.f32.xlu0 %v3382
    %v3414 = vpop.xlane.xlu0 %3413
    %3415 = vadd.xlane.f32.xlu0 %v3384
    %v3416 = vpop.xlane.xlu0 %3415
    %3417 = vadd.xlane.f32.xlu0 %v3386
    %v3418 = vpop.xlane.xlu0 %3417
    %3419 = vadd.xlane.f32.xlu0 %v3388
    %v3420 = vpop.xlane.xlu0 %3419
    %3421 = vadd.xlane.f32.xlu0 %v3390
    %v3422 = vpop.xlane.xlu0 %3421
    %3423 = vadd.xlane.f32.xlu0 %v3392
    %v3424 = vpop.xlane.xlu0 %3423
    %3425 = vadd.xlane.f32.xlu0 %v3394
    %v3426 = vpop.xlane.xlu0 %3425
    %3427 = vadd.xlane.f32.xlu0 %v3396
    %v3428 = vpop.xlane.xlu0 %3427
    %3429 = vadd.xlane.f32.xlu0 %v3398
    %v3430 = vpop.xlane.xlu0 %3429
    %3431 = vadd.xlane.f32.xlu0 %v3400
    %v3432 = vpop.xlane.xlu0 %3431
    %3433 = vadd.xlane.f32.xlu0 %v3402
    %v3434 = vpop.xlane.xlu0 %3433
    %3435 = vadd.xlane.f32.xlu0 %v3404
    %v3436 = vpop.xlane.xlu0 %3435
    %v3437 = vrcp.pop %v3406
    %v3438 = vrcp.pop %v3408
    %v3439 = vrcp.pop %v3410
    %v3440 = vrcp.pop %v3412
    %v3441 = vrcp.pop %v3414
    %v3442 = vrcp.pop %v3416
    %v3443 = vrcp.pop %v3418
    %v3444 = vrcp.pop %v3420
    %v3445 = vrcp.pop %v3422
    %v3446 = vrcp.pop %v3424
    %v3447 = vrcp.pop %v3426
    %v3448 = vrcp.pop %v3428
    %v3449 = vrcp.pop %v3430
    %v3450 = vrcp.pop %v3432
    %v3451 = vrcp.pop %v3434
    %v3452 = vrcp.pop %v3436
    %v3453 = vmul.f32 %v3374, %v3437
    %v3454 = vmul.f32 %v3376, %v3438
    %v3455 = vmul.f32 %v3378, %v3439
    %v3456 = vmul.f32 %v3380, %v3440
    %v3457 = vmul.f32 %v3382, %v3441
    %v3458 = vmul.f32 %v3384, %v3442
    %v3459 = vmul.f32 %v3386, %v3443
    %v3460 = vmul.f32 %v3388, %v3444
    %v3461 = vmul.f32 %v3390, %v3445
    %v3462 = vmul.f32 %v3392, %v3446
    %v3463 = vmul.f32 %v3394, %v3447
    %v3464 = vmul.f32 %v3396, %v3448
    %v3465 = vmul.f32 %v3398, %v3449
    %v3466 = vmul.f32 %v3400, %v3450
    %v3467 = vmul.f32 %v3402, %v3451
    %v3468 = vmul.f32 %v3404, %v3452
    %v3469 = vpack.c.bf16 %v3454, %v3453
    %v3470 = vpack.c.bf16 %v3456, %v3455
    %v3471 = vpack.c.bf16 %v3458, %v3457
    %v3472 = vpack.c.bf16 %v3460, %v3459
    %v3473 = vpack.c.bf16 %v3462, %v3461
    %v3474 = vpack.c.bf16 %v3464, %v3463
    %v3475 = vpack.c.bf16 %v3466, %v3465
    %v3476 = vpack.c.bf16 %v3468, %v3467
    %3485 = vrot.lane.b32.xlu0 %v3083, 96
    %v3486 = vpop.permute.xlu0 %3485
    %3487 = vrot.lane.b32.xlu0 %v3084, 96
    %v3488 = vpop.permute.xlu0 %3487
    %3489 = vrot.lane.b32.xlu0 %v3085, 96
    %v3490 = vpop.permute.xlu0 %3489
    %3491 = vrot.lane.b32.xlu0 %v3086, 96
    %v3492 = vpop.permute.xlu0 %3491
    %3493 = vrot.lane.b32.xlu0 %v3087, 96
    %v3494 = vpop.permute.xlu0 %3493
    %3495 = vrot.lane.b32.xlu0 %v3088, 96
    %v3496 = vpop.permute.xlu0 %3495
    %3497 = vrot.lane.b32.xlu0 %v3089, 96
    %v3498 = vpop.permute.xlu0 %3497
    %3499 = vrot.lane.b32.xlu0 %v3090, 96
    %v3500 = vpop.permute.xlu0 %3499
    %3509 = vmatpush.bf16.msra.mxu0 %v3500
    %3510 = vmatpush.bf16.msra.mxu0 %v3498
    %3511 = vmatpush.bf16.msra.mxu0 %v3496
    %3512 = vmatpush.bf16.msra.mxu0 %v3494
    %3513 = vmatpush.bf16.msra.mxu0 %v3492
    %3514 = vmatpush.bf16.msra.mxu0 %v3490
    %3515 = vmatpush.bf16.msra.mxu0 %v3488
    %3516 = vmatpush.bf16.msra.mxu0 %v3486
    %3517 = vmatmul.bf16.gmra.mxu0 %v3469
    %v3518 = vpop.f32.mrf.mxu0
    %v3519 = vadd.f32 0.0, %v3518
    %v3520 = vpop.f32.mrf.mxu0
    %v3521 = vadd.f32 0.0, %v3520
    %3522 = vmatmul.bf16.gmra.mxu0 %v3470
    %v3523 = vpop.f32.mrf.mxu0
    %v3524 = vadd.f32 0.0, %v3523
    %v3525 = vpop.f32.mrf.mxu0
    %v3526 = vadd.f32 0.0, %v3525
    %3527 = vmatmul.bf16.gmra.mxu0 %v3471
    %v3528 = vpop.f32.mrf.mxu0
    %v3529 = vadd.f32 0.0, %v3528
    %v3530 = vpop.f32.mrf.mxu0
    %v3531 = vadd.f32 0.0, %v3530
    %3532 = vmatmul.bf16.gmra.mxu0 %v3472
    %v3533 = vpop.f32.mrf.mxu0
    %v3534 = vadd.f32 0.0, %v3533
    %v3535 = vpop.f32.mrf.mxu0
    %v3536 = vadd.f32 0.0, %v3535
    %3537 = vmatmul.bf16.gmra.mxu0 %v3473
    %v3538 = vpop.f32.mrf.mxu0
    %v3539 = vadd.f32 0.0, %v3538
    %v3540 = vpop.f32.mrf.mxu0
    %v3541 = vadd.f32 0.0, %v3540
    %3542 = vmatmul.bf16.gmra.mxu0 %v3474
    %v3543 = vpop.f32.mrf.mxu0
    %v3544 = vadd.f32 0.0, %v3543
    %v3545 = vpop.f32.mrf.mxu0
    %v3546 = vadd.f32 0.0, %v3545
    %3547 = vmatmul.bf16.gmra.mxu0 %v3475
    %v3548 = vpop.f32.mrf.mxu0
    %v3549 = vadd.f32 0.0, %v3548
    %v3550 = vpop.f32.mrf.mxu0
    %v3551 = vadd.f32 0.0, %v3550
    %3552 = vmatmul.bf16.gmra.mxu0 %v3476
    %v3553 = vpop.f32.mrf.mxu0
    %v3554 = vadd.f32 0.0, %v3553
    %v3555 = vpop.f32.mrf.mxu0
    %v3556 = vadd.f32 0.0, %v3555
    %3557 = vdwg.mxu0
    %v3558 = vpack.c.bf16 %v3521, %v3519
    %v3559 = vpack.c.bf16 %v3526, %v3524
    %v3560 = vpack.c.bf16 %v3531, %v3529
    %v3561 = vpack.c.bf16 %v3536, %v3534
    %v3562 = vpack.c.bf16 %v3541, %v3539
    %v3563 = vpack.c.bf16 %v3546, %v3544
    %v3564 = vpack.c.bf16 %v3551, %v3549
    %v3565 = vpack.c.bf16 %v3556, %v3554
    %v3570 = vunpack.c.l.b16 %v2429
    %v3571 = vunpack.c.l.b16 %v2430
    %v3572 = vunpack.c.l.b16 %v2431
    %v3573 = vunpack.c.l.b16 %v2432
    %v3574 = vpack.c.b16 %v3571, %v3570
    %v3575 = vpack.c.b16 %v3573, %v3572
    %v3579 = vsel %vm693, %v3558, 0
    %v3582 = vsel %vm693, %v3559, 0
    %v3585 = vsel %vm693, %v3560, 0
    %v3588 = vsel %vm693, %v3561, 0
    %v3591 = vsel %vm693, %v3562, 0
    %v3594 = vsel %vm693, %v3563, 0
    %v3597 = vsel %vm693, %v3564, 0
    %v3600 = vsel %vm693, %v3565, 0
    %3602 = vmatpush.bf16.msra.mxu0 0
    %3603 = vmatpush.bf16.msra.mxu0 0
    %3604 = vmatpush.bf16.msra.mxu0 0
    %3605 = vmatpush.bf16.msra.mxu0 0
    %3606 = vmatpush.bf16.msra.mxu0 0
    %3607 = vmatpush.bf16.msra.mxu0 0
    %3608 = vmatpush.bf16.msra.mxu0 %v3575
    %3609 = vmatpush.bf16.msra.mxu0 %v3574
    %3610 = vmatmul.bf16.gmra.mxu0 %v3579
    %v3611 = vpop.f32.mrf.mxu0
    %v3612 = vadd.f32 0.0, %v3611
    %v3613 = vpop.f32.mrf.mxu0
    %v3614 = vadd.f32 0.0, %v3613
    %3615 = vmatmul.bf16.gmra.mxu0 %v3582
    %v3616 = vpop.f32.mrf.mxu0
    %v3617 = vadd.f32 0.0, %v3616
    %v3618 = vpop.f32.mrf.mxu0
    %v3619 = vadd.f32 0.0, %v3618
    %3620 = vmatmul.bf16.gmra.mxu0 %v3585
    %v3621 = vpop.f32.mrf.mxu0
    %v3622 = vadd.f32 0.0, %v3621
    %v3623 = vpop.f32.mrf.mxu0
    %v3624 = vadd.f32 0.0, %v3623
    %3625 = vmatmul.bf16.gmra.mxu0 %v3588
    %v3626 = vpop.f32.mrf.mxu0
    %v3627 = vadd.f32 0.0, %v3626
    %v3628 = vpop.f32.mrf.mxu0
    %v3629 = vadd.f32 0.0, %v3628
    %3630 = vmatmul.bf16.gmra.mxu0 %v3591
    %v3631 = vpop.f32.mrf.mxu0
    %v3632 = vadd.f32 0.0, %v3631
    %v3633 = vpop.f32.mrf.mxu0
    %v3634 = vadd.f32 0.0, %v3633
    %3635 = vmatmul.bf16.gmra.mxu0 %v3594
    %v3636 = vpop.f32.mrf.mxu0
    %v3637 = vadd.f32 0.0, %v3636
    %v3638 = vpop.f32.mrf.mxu0
    %v3639 = vadd.f32 0.0, %v3638
    %3640 = vmatmul.bf16.gmra.mxu0 %v3597
    %v3641 = vpop.f32.mrf.mxu0
    %v3642 = vadd.f32 0.0, %v3641
    %v3643 = vpop.f32.mrf.mxu0
    %v3644 = vadd.f32 0.0, %v3643
    %3645 = vmatmul.bf16.gmra.mxu0 %v3600
    %v3646 = vpop.f32.mrf.mxu0
    %v3647 = vadd.f32 0.0, %v3646
    %v3648 = vpop.f32.mrf.mxu0
    %v3649 = vadd.f32 0.0, %v3648
    %3650 = vdwg.mxu0
    %v3655 = vunpack.c.l.b16 %v2425
    %v3656 = vunpack.c.l.b16 %v2426
    %v3657 = vunpack.c.l.b16 %v2427
    %v3658 = vunpack.c.l.b16 %v2428
    %v3659 = vpack.c.b16 %v3656, %v3655
    %v3660 = vpack.c.b16 %v3658, %v3657
    %v3664 = vsel %vm693, %v3140, 0
    %v3667 = vsel %vm693, %v3141, 0
    %v3670 = vsel %vm693, %v3142, 0
    %v3673 = vsel %vm693, %v3143, 0
    %v3676 = vsel %vm693, %v3144, 0
    %v3679 = vsel %vm693, %v3145, 0
    %v3682 = vsel %vm693, %v3146, 0
    %v3685 = vsel %vm693, %v3147, 0
    %3687 = vmatpush.bf16.msra.mxu0 0
    %3688 = vmatpush.bf16.msra.mxu0 0
    %3689 = vmatpush.bf16.msra.mxu0 0
    %3690 = vmatpush.bf16.msra.mxu0 0
    %3691 = vmatpush.bf16.msra.mxu0 0
    %3692 = vmatpush.bf16.msra.mxu0 0
    %3693 = vmatpush.bf16.msra.mxu0 %v3660
    %3694 = vmatpush.bf16.msra.mxu0 %v3659
    %3695 = vmatmul.bf16.gmra.mxu0 %v3664
    %v3696 = vpop.f32.mrf.mxu0
    %v3697 = vadd.f32 %v3612, %v3696
    %v3698 = vpop.f32.mrf.mxu0
    %v3699 = vadd.f32 %v3614, %v3698
    %3700 = vmatmul.bf16.gmra.mxu0 %v3667
    %v3701 = vpop.f32.mrf.mxu0
    %v3702 = vadd.f32 %v3617, %v3701
    %v3703 = vpop.f32.mrf.mxu0
    %v3704 = vadd.f32 %v3619, %v3703
    %3705 = vmatmul.bf16.gmra.mxu0 %v3670
    %v3706 = vpop.f32.mrf.mxu0
    %v3707 = vadd.f32 %v3622, %v3706
    %v3708 = vpop.f32.mrf.mxu0
    %v3709 = vadd.f32 %v3624, %v3708
    %3710 = vmatmul.bf16.gmra.mxu0 %v3673
    %v3711 = vpop.f32.mrf.mxu0
    %v3712 = vadd.f32 %v3627, %v3711
    %v3713 = vpop.f32.mrf.mxu0
    %v3714 = vadd.f32 %v3629, %v3713
    %3715 = vmatmul.bf16.gmra.mxu0 %v3676
    %v3716 = vpop.f32.mrf.mxu0
    %v3717 = vadd.f32 %v3632, %v3716
    %v3718 = vpop.f32.mrf.mxu0
    %v3719 = vadd.f32 %v3634, %v3718
    %3720 = vmatmul.bf16.gmra.mxu0 %v3679
    %v3721 = vpop.f32.mrf.mxu0
    %v3722 = vadd.f32 %v3637, %v3721
    %v3723 = vpop.f32.mrf.mxu0
    %v3724 = vadd.f32 %v3639, %v3723
    %3725 = vmatmul.bf16.gmra.mxu0 %v3682
    %v3726 = vpop.f32.mrf.mxu0
    %v3727 = vadd.f32 %v3642, %v3726
    %v3728 = vpop.f32.mrf.mxu0
    %v3729 = vadd.f32 %v3644, %v3728
    %3730 = vmatmul.bf16.gmra.mxu0 %v3685
    %v3731 = vpop.f32.mrf.mxu0
    %v3732 = vadd.f32 %v3647, %v3731
    %v3733 = vpop.f32.mrf.mxu0
    %v3734 = vadd.f32 %v3649, %v3733
    %3735 = vdwg.mxu0
    %3736 = vrot.lane.b32.xlu0 %v2786, 64
    %v3737 = vpop.permute.xlu0 %3736
    %3738 = vrot.lane.b32.xlu0 %v2787, 64
    %v3739 = vpop.permute.xlu0 %3738
    %3740 = vrot.lane.b32.xlu0 %v2788, 64
    %v3741 = vpop.permute.xlu0 %3740
    %3742 = vrot.lane.b32.xlu0 %v2789, 64
    %v3743 = vpop.permute.xlu0 %3742
    %3744 = vrot.lane.b32.xlu0 %v2790, 64
    %v3745 = vpop.permute.xlu0 %3744
    %3746 = vrot.lane.b32.xlu0 %v2791, 64
    %v3747 = vpop.permute.xlu0 %3746
    %3748 = vrot.lane.b32.xlu0 %v2792, 64
    %v3749 = vpop.permute.xlu0 %3748
    %3750 = vrot.lane.b32.xlu0 %v2793, 64
    %v3751 = vpop.permute.xlu0 %3750
    %3752 = vrot.lane.b32.xlu0 %v2794, 64
    %v3753 = vpop.permute.xlu0 %3752
    %3754 = vrot.lane.b32.xlu0 %v2795, 64
    %v3755 = vpop.permute.xlu0 %3754
    %3756 = vrot.lane.b32.xlu0 %v2796, 64
    %v3757 = vpop.permute.xlu0 %3756
    %3758 = vrot.lane.b32.xlu0 %v2797, 64
    %v3759 = vpop.permute.xlu0 %3758
    %3760 = vrot.lane.b32.xlu0 %v2798, 64
    %v3761 = vpop.permute.xlu0 %3760
    %3762 = vrot.lane.b32.xlu0 %v2799, 64
    %v3763 = vpop.permute.xlu0 %3762
    %3764 = vrot.lane.b32.xlu0 %v2800, 64
    %v3765 = vpop.permute.xlu0 %3764
    %3766 = vrot.lane.b32.xlu0 %v2801, 64
    %v3767 = vpop.permute.xlu0 %3766
    %v3769 = vsel %vm693, %v3737, 0
    %v3772 = vsel %vm693, %v3739, 0
    %v3775 = vsel %vm693, %v3741, 0
    %v3778 = vsel %vm693, %v3743, 0
    %v3781 = vsel %vm693, %v3745, 0
    %v3784 = vsel %vm693, %v3747, 0
    %v3787 = vsel %vm693, %v3749, 0
    %v3790 = vsel %vm693, %v3751, 0
    %v3793 = vsel %vm693, %v3753, 0
    %v3796 = vsel %vm693, %v3755, 0
    %v3799 = vsel %vm693, %v3757, 0
    %v3802 = vsel %vm693, %v3759, 0
    %v3805 = vsel %vm693, %v3761, 0
    %v3808 = vsel %vm693, %v3763, 0
    %v3811 = vsel %vm693, %v3765, 0
    %v3814 = vsel %vm693, %v3767, 0
    %3816 = vmatpush.bf16.xpose.msra.mxu0 %v3814
    %3817 = vmatpush.bf16.xpose.msra.mxu0 %v3811
    %3818 = vmatpush.bf16.xpose.msra.mxu0 %v3808
    %3819 = vmatpush.bf16.xpose.msra.mxu0 %v3805
    %3820 = vmatpush.bf16.xpose.msra.mxu0 %v3802
    %3821 = vmatpush.bf16.xpose.msra.mxu0 %v3799
    %3822 = vmatpush.bf16.xpose.msra.mxu0 %v3796
    %3823 = vmatpush.bf16.xpose.msra.mxu0 %v3793
    %3824 = vmatmul.bf16.gmra.mxu0 %v3769
    %v3825 = vpop.f32.mrf.mxu0
    %v3826 = vadd.f32 0.0, %v3825
    %v3827 = vpop.f32.mrf.mxu0
    %v3828 = vadd.f32 0.0, %v3827
    %3829 = vmatmul.bf16.gmra.mxu0 %v3772
    %v3830 = vpop.f32.mrf.mxu0
    %v3831 = vadd.f32 0.0, %v3830
    %v3832 = vpop.f32.mrf.mxu0
    %v3833 = vadd.f32 0.0, %v3832
    %3834 = vmatmul.bf16.gmra.mxu0 %v3775
    %v3835 = vpop.f32.mrf.mxu0
    %v3836 = vadd.f32 0.0, %v3835
    %v3837 = vpop.f32.mrf.mxu0
    %v3838 = vadd.f32 0.0, %v3837
    %3839 = vmatmul.bf16.gmra.mxu0 %v3778
    %v3840 = vpop.f32.mrf.mxu0
    %v3841 = vadd.f32 0.0, %v3840
    %v3842 = vpop.f32.mrf.mxu0
    %v3843 = vadd.f32 0.0, %v3842
    %3844 = vmatmul.bf16.gmra.mxu0 %v3781
    %v3845 = vpop.f32.mrf.mxu0
    %v3846 = vadd.f32 0.0, %v3845
    %v3847 = vpop.f32.mrf.mxu0
    %v3848 = vadd.f32 0.0, %v3847
    %3849 = vmatmul.bf16.gmra.mxu0 %v3784
    %v3850 = vpop.f32.mrf.mxu0
    %v3851 = vadd.f32 0.0, %v3850
    %v3852 = vpop.f32.mrf.mxu0
    %v3853 = vadd.f32 0.0, %v3852
    %3854 = vmatmul.bf16.gmra.mxu0 %v3787
    %v3855 = vpop.f32.mrf.mxu0
    %v3856 = vadd.f32 0.0, %v3855
    %v3857 = vpop.f32.mrf.mxu0
    %v3858 = vadd.f32 0.0, %v3857
    %3859 = vmatmul.bf16.gmra.mxu0 %v3790
    %v3860 = vpop.f32.mrf.mxu0
    %v3861 = vadd.f32 0.0, %v3860
    %v3862 = vpop.f32.mrf.mxu0
    %v3863 = vadd.f32 0.0, %v3862
    %3864 = vdwg.mxu0
    %v3865 = vmul.f32 %v3826, 0.17677669
    %v3866 = vmul.f32 %v3828, 0.17677669
    %v3867 = vmul.f32 %v3831, 0.17677669
    %v3868 = vmul.f32 %v3833, 0.17677669
    %v3869 = vmul.f32 %v3836, 0.17677669
    %v3870 = vmul.f32 %v3838, 0.17677669
    %v3871 = vmul.f32 %v3841, 0.17677669
    %v3872 = vmul.f32 %v3843, 0.17677669
    %v3873 = vmul.f32 %v3846, 0.17677669
    %v3874 = vmul.f32 %v3848, 0.17677669
    %v3875 = vmul.f32 %v3851, 0.17677669
    %v3876 = vmul.f32 %v3853, 0.17677669
    %v3877 = vmul.f32 %v3856, 0.17677669
    %v3878 = vmul.f32 %v3858, 0.17677669
    %v3879 = vmul.f32 %v3861, 0.17677669
    %v3880 = vmul.f32 %v3863, 0.17677669
    %v3881 = vadd.f32 %v3865, %v2016
    %v3882 = vadd.f32 %v3866, %v2017
    %v3883 = vadd.f32 %v3867, %v2018
    %v3884 = vadd.f32 %v3868, %v2019
    %v3885 = vadd.f32 %v3869, %v2020
    %v3886 = vadd.f32 %v3870, %v2021
    %v3887 = vadd.f32 %v3871, %v2022
    %v3888 = vadd.f32 %v3872, %v2023
    %v3889 = vadd.f32 %v3873, %v2024
    %v3890 = vadd.f32 %v3874, %v2025
    %v3891 = vadd.f32 %v3875, %v2026
    %v3892 = vadd.f32 %v3876, %v2027
    %v3893 = vadd.f32 %v3877, %v2028
    %v3894 = vadd.f32 %v3878, %v2029
    %v3895 = vadd.f32 %v3879, %v2030
    %v3896 = vadd.f32 %v3880, %v2031
    %3897 = vmax.xlane.f32.xlu0 %v3881
    %v3898 = vpop.xlane.xlu0 %3897
    %3899 = vmax.xlane.f32.xlu0 %v3882
    %v3900 = vpop.xlane.xlu0 %3899
    %3901 = vmax.xlane.f32.xlu0 %v3883
    %v3902 = vpop.xlane.xlu0 %3901
    %3903 = vmax.xlane.f32.xlu0 %v3884
    %v3904 = vpop.xlane.xlu0 %3903
    %3905 = vmax.xlane.f32.xlu0 %v3885
    %v3906 = vpop.xlane.xlu0 %3905
    %3907 = vmax.xlane.f32.xlu0 %v3886
    %v3908 = vpop.xlane.xlu0 %3907
    %3909 = vmax.xlane.f32.xlu0 %v3887
    %v3910 = vpop.xlane.xlu0 %3909
    %3911 = vmax.xlane.f32.xlu0 %v3888
    %v3912 = vpop.xlane.xlu0 %3911
    %3913 = vmax.xlane.f32.xlu0 %v3889
    %v3914 = vpop.xlane.xlu0 %3913
    %3915 = vmax.xlane.f32.xlu0 %v3890
    %v3916 = vpop.xlane.xlu0 %3915
    %3917 = vmax.xlane.f32.xlu0 %v3891
    %v3918 = vpop.xlane.xlu0 %3917
    %3919 = vmax.xlane.f32.xlu0 %v3892
    %v3920 = vpop.xlane.xlu0 %3919
    %3921 = vmax.xlane.f32.xlu0 %v3893
    %v3922 = vpop.xlane.xlu0 %3921
    %3923 = vmax.xlane.f32.xlu0 %v3894
    %v3924 = vpop.xlane.xlu0 %3923
    %3925 = vmax.xlane.f32.xlu0 %v3895
    %v3926 = vpop.xlane.xlu0 %3925
    %3927 = vmax.xlane.f32.xlu0 %v3896
    %v3928 = vpop.xlane.xlu0 %3927
    %v3929 = vsub.f32 %v3881, %v3898
    %v3930 = vsub.f32 %v3882, %v3900
    %v3931 = vsub.f32 %v3883, %v3902
    %v3932 = vsub.f32 %v3884, %v3904
    %v3933 = vsub.f32 %v3885, %v3906
    %v3934 = vsub.f32 %v3886, %v3908
    %v3935 = vsub.f32 %v3887, %v3910
    %v3936 = vsub.f32 %v3888, %v3912
    %v3937 = vsub.f32 %v3889, %v3914
    %v3938 = vsub.f32 %v3890, %v3916
    %v3939 = vsub.f32 %v3891, %v3918
    %v3940 = vsub.f32 %v3892, %v3920
    %v3941 = vsub.f32 %v3893, %v3922
    %v3942 = vsub.f32 %v3894, %v3924
    %v3943 = vsub.f32 %v3895, %v3926
    %v3944 = vsub.f32 %v3896, %v3928
    %v3945 = vmul.f32 %v3929, 1.442695
    %v3946 = vpow.pop %v3945
    %v3947 = vmul.f32 %v3930, 1.442695
    %v3948 = vpow.pop %v3947
    %v3949 = vmul.f32 %v3931, 1.442695
    %v3950 = vpow.pop %v3949
    %v3951 = vmul.f32 %v3932, 1.442695
    %v3952 = vpow.pop %v3951
    %v3953 = vmul.f32 %v3933, 1.442695
    %v3954 = vpow.pop %v3953
    %v3955 = vmul.f32 %v3934, 1.442695
    %v3956 = vpow.pop %v3955
    %v3957 = vmul.f32 %v3935, 1.442695
    %v3958 = vpow.pop %v3957
    %v3959 = vmul.f32 %v3936, 1.442695
    %v3960 = vpow.pop %v3959
    %v3961 = vmul.f32 %v3937, 1.442695
    %v3962 = vpow.pop %v3961
    %v3963 = vmul.f32 %v3938, 1.442695
    %v3964 = vpow.pop %v3963
    %v3965 = vmul.f32 %v3939, 1.442695
    %v3966 = vpow.pop %v3965
    %v3967 = vmul.f32 %v3940, 1.442695
    %v3968 = vpow.pop %v3967
    %v3969 = vmul.f32 %v3941, 1.442695
    %v3970 = vpow.pop %v3969
    %v3971 = vmul.f32 %v3942, 1.442695
    %v3972 = vpow.pop %v3971
    %v3973 = vmul.f32 %v3943, 1.442695
    %v3974 = vpow.pop %v3973
    %v3975 = vmul.f32 %v3944, 1.442695
    %v3976 = vpow.pop %v3975
    %3977 = vadd.xlane.f32.xlu0 %v3946
    %v3978 = vpop.xlane.xlu0 %3977
    %3979 = vadd.xlane.f32.xlu0 %v3948
    %v3980 = vpop.xlane.xlu0 %3979
    %3981 = vadd.xlane.f32.xlu0 %v3950
    %v3982 = vpop.xlane.xlu0 %3981
    %3983 = vadd.xlane.f32.xlu0 %v3952
    %v3984 = vpop.xlane.xlu0 %3983
    %3985 = vadd.xlane.f32.xlu0 %v3954
    %v3986 = vpop.xlane.xlu0 %3985
    %3987 = vadd.xlane.f32.xlu0 %v3956
    %v3988 = vpop.xlane.xlu0 %3987
    %3989 = vadd.xlane.f32.xlu0 %v3958
    %v3990 = vpop.xlane.xlu0 %3989
    %3991 = vadd.xlane.f32.xlu0 %v3960
    %v3992 = vpop.xlane.xlu0 %3991
    %3993 = vadd.xlane.f32.xlu0 %v3962
    %v3994 = vpop.xlane.xlu0 %3993
    %3995 = vadd.xlane.f32.xlu0 %v3964
    %v3996 = vpop.xlane.xlu0 %3995
    %3997 = vadd.xlane.f32.xlu0 %v3966
    %v3998 = vpop.xlane.xlu0 %3997
    %3999 = vadd.xlane.f32.xlu0 %v3968
    %v4000 = vpop.xlane.xlu0 %3999
    %4001 = vadd.xlane.f32.xlu0 %v3970
    %v4002 = vpop.xlane.xlu0 %4001
    %4003 = vadd.xlane.f32.xlu0 %v3972
    %v4004 = vpop.xlane.xlu0 %4003
    %4005 = vadd.xlane.f32.xlu0 %v3974
    %v4006 = vpop.xlane.xlu0 %4005
    %4007 = vadd.xlane.f32.xlu0 %v3976
    %v4008 = vpop.xlane.xlu0 %4007
    %v4009 = vrcp.pop %v3978
    %v4010 = vrcp.pop %v3980
    %v4011 = vrcp.pop %v3982
    %v4012 = vrcp.pop %v3984
    %v4013 = vrcp.pop %v3986
    %v4014 = vrcp.pop %v3988
    %v4015 = vrcp.pop %v3990
    %v4016 = vrcp.pop %v3992
    %v4017 = vrcp.pop %v3994
    %v4018 = vrcp.pop %v3996
    %v4019 = vrcp.pop %v3998
    %v4020 = vrcp.pop %v4000
    %v4021 = vrcp.pop %v4002
    %v4022 = vrcp.pop %v4004
    %v4023 = vrcp.pop %v4006
    %v4024 = vrcp.pop %v4008
    %v4025 = vmul.f32 %v3946, %v4009
    %v4026 = vmul.f32 %v3948, %v4010
    %v4027 = vmul.f32 %v3950, %v4011
    %v4028 = vmul.f32 %v3952, %v4012
    %v4029 = vmul.f32 %v3954, %v4013
    %v4030 = vmul.f32 %v3956, %v4014
    %v4031 = vmul.f32 %v3958, %v4015
    %v4032 = vmul.f32 %v3960, %v4016
    %v4033 = vmul.f32 %v3962, %v4017
    %v4034 = vmul.f32 %v3964, %v4018
    %v4035 = vmul.f32 %v3966, %v4019
    %v4036 = vmul.f32 %v3968, %v4020
    %v4037 = vmul.f32 %v3970, %v4021
    %v4038 = vmul.f32 %v3972, %v4022
    %v4039 = vmul.f32 %v3974, %v4023
    %v4040 = vmul.f32 %v3976, %v4024
    %v4041 = vpack.c.bf16 %v4026, %v4025
    %v4042 = vpack.c.bf16 %v4028, %v4027
    %v4043 = vpack.c.bf16 %v4030, %v4029
    %v4044 = vpack.c.bf16 %v4032, %v4031
    %v4045 = vpack.c.bf16 %v4034, %v4033
    %v4046 = vpack.c.bf16 %v4036, %v4035
    %v4047 = vpack.c.bf16 %v4038, %v4037
    %v4048 = vpack.c.bf16 %v4040, %v4039
    %4049 = vrot.lane.b32.xlu0 %v3083, 64
    %v4050 = vpop.permute.xlu0 %4049
    %4051 = vrot.lane.b32.xlu0 %v3084, 64
    %v4052 = vpop.permute.xlu0 %4051
    %4053 = vrot.lane.b32.xlu0 %v3085, 64
    %v4054 = vpop.permute.xlu0 %4053
    %4055 = vrot.lane.b32.xlu0 %v3086, 64
    %v4056 = vpop.permute.xlu0 %4055
    %4057 = vrot.lane.b32.xlu0 %v3087, 64
    %v4058 = vpop.permute.xlu0 %4057
    %4059 = vrot.lane.b32.xlu0 %v3088, 64
    %v4060 = vpop.permute.xlu0 %4059
    %4061 = vrot.lane.b32.xlu0 %v3089, 64
    %v4062 = vpop.permute.xlu0 %4061
    %4063 = vrot.lane.b32.xlu0 %v3090, 64
    %v4064 = vpop.permute.xlu0 %4063
    %4073 = vmatpush.bf16.msra.mxu0 %v4064
    %4074 = vmatpush.bf16.msra.mxu0 %v4062
    %4075 = vmatpush.bf16.msra.mxu0 %v4060
    %4076 = vmatpush.bf16.msra.mxu0 %v4058
    %4077 = vmatpush.bf16.msra.mxu0 %v4056
    %4078 = vmatpush.bf16.msra.mxu0 %v4054
    %4079 = vmatpush.bf16.msra.mxu0 %v4052
    %4080 = vmatpush.bf16.msra.mxu0 %v4050
    %4081 = vmatmul.bf16.gmra.mxu0 %v4041
    %v4082 = vpop.f32.mrf.mxu0
    %v4083 = vadd.f32 0.0, %v4082
    %v4084 = vpop.f32.mrf.mxu0
    %v4085 = vadd.f32 0.0, %v4084
    %4086 = vmatmul.bf16.gmra.mxu0 %v4042
    %v4087 = vpop.f32.mrf.mxu0
    %v4088 = vadd.f32 0.0, %v4087
    %v4089 = vpop.f32.mrf.mxu0
    %v4090 = vadd.f32 0.0, %v4089
    %4091 = vmatmul.bf16.gmra.mxu0 %v4043
    %v4092 = vpop.f32.mrf.mxu0
    %v4093 = vadd.f32 0.0, %v4092
    %v4094 = vpop.f32.mrf.mxu0
    %v4095 = vadd.f32 0.0, %v4094
    %4096 = vmatmul.bf16.gmra.mxu0 %v4044
    %v4097 = vpop.f32.mrf.mxu0
    %v4098 = vadd.f32 0.0, %v4097
    %v4099 = vpop.f32.mrf.mxu0
    %v4100 = vadd.f32 0.0, %v4099
    %4101 = vmatmul.bf16.gmra.mxu0 %v4045
    %v4102 = vpop.f32.mrf.mxu0
    %v4103 = vadd.f32 0.0, %v4102
    %v4104 = vpop.f32.mrf.mxu0
    %v4105 = vadd.f32 0.0, %v4104
    %4106 = vmatmul.bf16.gmra.mxu0 %v4046
    %v4107 = vpop.f32.mrf.mxu0
    %v4108 = vadd.f32 0.0, %v4107
    %v4109 = vpop.f32.mrf.mxu0
    %v4110 = vadd.f32 0.0, %v4109
    %4111 = vmatmul.bf16.gmra.mxu0 %v4047
    %v4112 = vpop.f32.mrf.mxu0
    %v4113 = vadd.f32 0.0, %v4112
    %v4114 = vpop.f32.mrf.mxu0
    %v4115 = vadd.f32 0.0, %v4114
    %4116 = vmatmul.bf16.gmra.mxu0 %v4048
    %v4117 = vpop.f32.mrf.mxu0
    %v4118 = vadd.f32 0.0, %v4117
    %v4119 = vpop.f32.mrf.mxu0
    %v4120 = vadd.f32 0.0, %v4119
    %4121 = vdwg.mxu0
    %v4122 = vpack.c.bf16 %v4085, %v4083
    %v4123 = vpack.c.bf16 %v4090, %v4088
    %v4124 = vpack.c.bf16 %v4095, %v4093
    %v4125 = vpack.c.bf16 %v4100, %v4098
    %v4126 = vpack.c.bf16 %v4105, %v4103
    %v4127 = vpack.c.bf16 %v4110, %v4108
    %v4128 = vpack.c.bf16 %v4115, %v4113
    %v4129 = vpack.c.bf16 %v4120, %v4118
    %v4134 = vunpack.c.l.b16 %v2433
    %v4135 = vunpack.c.l.b16 %v2434
    %v4136 = vunpack.c.l.b16 %v2435
    %v4137 = vunpack.c.l.b16 %v2436
    %v4138 = vpack.c.b16 %v4135, %v4134
    %v4139 = vpack.c.b16 %v4137, %v4136
    %v4143 = vsel %vm693, %v4122, 0
    %v4146 = vsel %vm693, %v4123, 0
    %v4149 = vsel %vm693, %v4124, 0
    %v4152 = vsel %vm693, %v4125, 0
    %v4155 = vsel %vm693, %v4126, 0
    %v4158 = vsel %vm693, %v4127, 0
    %v4161 = vsel %vm693, %v4128, 0
    %v4164 = vsel %vm693, %v4129, 0
    %4166 = vmatpush.bf16.msra.mxu0 0
    %4167 = vmatpush.bf16.msra.mxu0 0
    %4168 = vmatpush.bf16.msra.mxu0 0
    %4169 = vmatpush.bf16.msra.mxu0 0
    %4170 = vmatpush.bf16.msra.mxu0 0
    %4171 = vmatpush.bf16.msra.mxu0 0
    %4172 = vmatpush.bf16.msra.mxu0 %v4139
    %4173 = vmatpush.bf16.msra.mxu0 %v4138
    %4174 = vmatmul.bf16.gmra.mxu0 %v4143
    %v4175 = vpop.f32.mrf.mxu0
    %v4176 = vadd.f32 0.0, %v4175
    %v4177 = vpop.f32.mrf.mxu0
    %v4178 = vadd.f32 0.0, %v4177
    %4179 = vmatmul.bf16.gmra.mxu0 %v4146
    %v4180 = vpop.f32.mrf.mxu0
    %v4181 = vadd.f32 0.0, %v4180
    %v4182 = vpop.f32.mrf.mxu0
    %v4183 = vadd.f32 0.0, %v4182
    %4184 = vmatmul.bf16.gmra.mxu0 %v4149
    %v4185 = vpop.f32.mrf.mxu0
    %v4186 = vadd.f32 0.0, %v4185
    %v4187 = vpop.f32.mrf.mxu0
    %v4188 = vadd.f32 0.0, %v4187
    %4189 = vmatmul.bf16.gmra.mxu0 %v4152
    %v4190 = vpop.f32.mrf.mxu0
    %v4191 = vadd.f32 0.0, %v4190
    %v4192 = vpop.f32.mrf.mxu0
    %v4193 = vadd.f32 0.0, %v4192
    %4194 = vmatmul.bf16.gmra.mxu0 %v4155
    %v4195 = vpop.f32.mrf.mxu0
    %v4196 = vadd.f32 0.0, %v4195
    %v4197 = vpop.f32.mrf.mxu0
    %v4198 = vadd.f32 0.0, %v4197
    %4199 = vmatmul.bf16.gmra.mxu0 %v4158
    %v4200 = vpop.f32.mrf.mxu0
    %v4201 = vadd.f32 0.0, %v4200
    %v4202 = vpop.f32.mrf.mxu0
    %v4203 = vadd.f32 0.0, %v4202
    %4204 = vmatmul.bf16.gmra.mxu0 %v4161
    %v4205 = vpop.f32.mrf.mxu0
    %v4206 = vadd.f32 0.0, %v4205
    %v4207 = vpop.f32.mrf.mxu0
    %v4208 = vadd.f32 0.0, %v4207
    %4209 = vmatmul.bf16.gmra.mxu0 %v4164
    %v4210 = vpop.f32.mrf.mxu0
    %v4211 = vadd.f32 0.0, %v4210
    %v4212 = vpop.f32.mrf.mxu0
    %v4213 = vadd.f32 0.0, %v4212
    %4214 = vdwg.mxu0
    %v4215 = vadd.f32 %v3697, %v4176
    %v4216 = vadd.f32 %v3699, %v4178
    %v4217 = vadd.f32 %v3702, %v4181
    %v4218 = vadd.f32 %v3704, %v4183
    %v4219 = vadd.f32 %v3707, %v4186
    %v4220 = vadd.f32 %v3709, %v4188
    %v4221 = vadd.f32 %v3712, %v4191
    %v4222 = vadd.f32 %v3714, %v4193
    %v4223 = vadd.f32 %v3717, %v4196
    %v4224 = vadd.f32 %v3719, %v4198
    %v4225 = vadd.f32 %v3722, %v4201
    %v4226 = vadd.f32 %v3724, %v4203
    %v4227 = vadd.f32 %v3727, %v4206
    %v4228 = vadd.f32 %v3729, %v4208
    %v4229 = vadd.f32 %v3732, %v4211
    %v4230 = vadd.f32 %v3734, %v4213
    %4231 = vrot.lane.b32.xlu0 %v2786, 32
    %v4232 = vpop.permute.xlu0 %4231
    %4233 = vrot.lane.b32.xlu0 %v2787, 32
    %v4234 = vpop.permute.xlu0 %4233
    %4235 = vrot.lane.b32.xlu0 %v2788, 32
    %v4236 = vpop.permute.xlu0 %4235
    %4237 = vrot.lane.b32.xlu0 %v2789, 32
    %v4238 = vpop.permute.xlu0 %4237
    %4239 = vrot.lane.b32.xlu0 %v2790, 32
    %v4240 = vpop.permute.xlu0 %4239
    %4241 = vrot.lane.b32.xlu0 %v2791, 32
    %v4242 = vpop.permute.xlu0 %4241
    %4243 = vrot.lane.b32.xlu0 %v2792, 32
    %v4244 = vpop.permute.xlu0 %4243
    %4245 = vrot.lane.b32.xlu0 %v2793, 32
    %v4246 = vpop.permute.xlu0 %4245
    %4247 = vrot.lane.b32.xlu0 %v2794, 32
    %v4248 = vpop.permute.xlu0 %4247
    %4249 = vrot.lane.b32.xlu0 %v2795, 32
    %v4250 = vpop.permute.xlu0 %4249
    %4251 = vrot.lane.b32.xlu0 %v2796, 32
    %v4252 = vpop.permute.xlu0 %4251
    %4253 = vrot.lane.b32.xlu0 %v2797, 32
    %v4254 = vpop.permute.xlu0 %4253
    %4255 = vrot.lane.b32.xlu0 %v2798, 32
    %v4256 = vpop.permute.xlu0 %4255
    %4257 = vrot.lane.b32.xlu0 %v2799, 32
    %v4258 = vpop.permute.xlu0 %4257
    %4259 = vrot.lane.b32.xlu0 %v2800, 32
    %v4260 = vpop.permute.xlu0 %4259
    %4261 = vrot.lane.b32.xlu0 %v2801, 32
    %v4262 = vpop.permute.xlu0 %4261
    %v4264 = vsel %vm693, %v4232, 0
    %v4267 = vsel %vm693, %v4234, 0
    %v4270 = vsel %vm693, %v4236, 0
    %v4273 = vsel %vm693, %v4238, 0
    %v4276 = vsel %vm693, %v4240, 0
    %v4279 = vsel %vm693, %v4242, 0
    %v4282 = vsel %vm693, %v4244, 0
    %v4285 = vsel %vm693, %v4246, 0
    %v4288 = vsel %vm693, %v4248, 0
    %v4291 = vsel %vm693, %v4250, 0
    %v4294 = vsel %vm693, %v4252, 0
    %v4297 = vsel %vm693, %v4254, 0
    %v4300 = vsel %vm693, %v4256, 0
    %v4303 = vsel %vm693, %v4258, 0
    %v4306 = vsel %vm693, %v4260, 0
    %v4309 = vsel %vm693, %v4262, 0
    %4311 = vmatpush.bf16.xpose.msra.mxu0 %v4309
    %4312 = vmatpush.bf16.xpose.msra.mxu0 %v4306
    %4313 = vmatpush.bf16.xpose.msra.mxu0 %v4303
    %4314 = vmatpush.bf16.xpose.msra.mxu0 %v4300
    %4315 = vmatpush.bf16.xpose.msra.mxu0 %v4297
    %4316 = vmatpush.bf16.xpose.msra.mxu0 %v4294
    %4317 = vmatpush.bf16.xpose.msra.mxu0 %v4291
    %4318 = vmatpush.bf16.xpose.msra.mxu0 %v4288
    %4319 = vmatmul.bf16.gmra.mxu0 %v4264
    %v4320 = vpop.f32.mrf.mxu0
    %v4321 = vadd.f32 0.0, %v4320
    %v4322 = vpop.f32.mrf.mxu0
    %v4323 = vadd.f32 0.0, %v4322
    %4324 = vmatmul.bf16.gmra.mxu0 %v4267
    %v4325 = vpop.f32.mrf.mxu0
    %v4326 = vadd.f32 0.0, %v4325
    %v4327 = vpop.f32.mrf.mxu0
    %v4328 = vadd.f32 0.0, %v4327
    %4329 = vmatmul.bf16.gmra.mxu0 %v4270
    %v4330 = vpop.f32.mrf.mxu0
    %v4331 = vadd.f32 0.0, %v4330
    %v4332 = vpop.f32.mrf.mxu0
    %v4333 = vadd.f32 0.0, %v4332
    %4334 = vmatmul.bf16.gmra.mxu0 %v4273
    %v4335 = vpop.f32.mrf.mxu0
    %v4336 = vadd.f32 0.0, %v4335
    %v4337 = vpop.f32.mrf.mxu0
    %v4338 = vadd.f32 0.0, %v4337
    %4339 = vmatmul.bf16.gmra.mxu0 %v4276
    %v4340 = vpop.f32.mrf.mxu0
    %v4341 = vadd.f32 0.0, %v4340
    %v4342 = vpop.f32.mrf.mxu0
    %v4343 = vadd.f32 0.0, %v4342
    %4344 = vmatmul.bf16.gmra.mxu0 %v4279
    %v4345 = vpop.f32.mrf.mxu0
    %v4346 = vadd.f32 0.0, %v4345
    %v4347 = vpop.f32.mrf.mxu0
    %v4348 = vadd.f32 0.0, %v4347
    %4349 = vmatmul.bf16.gmra.mxu0 %v4282
    %v4350 = vpop.f32.mrf.mxu0
    %v4351 = vadd.f32 0.0, %v4350
    %v4352 = vpop.f32.mrf.mxu0
    %v4353 = vadd.f32 0.0, %v4352
    %4354 = vmatmul.bf16.gmra.mxu0 %v4285
    %v4355 = vpop.f32.mrf.mxu0
    %v4356 = vadd.f32 0.0, %v4355
    %v4357 = vpop.f32.mrf.mxu0
    %v4358 = vadd.f32 0.0, %v4357
    %4359 = vdwg.mxu0
    %v4360 = vmul.f32 %v4321, 0.17677669
    %v4361 = vmul.f32 %v4323, 0.17677669
    %v4362 = vmul.f32 %v4326, 0.17677669
    %v4363 = vmul.f32 %v4328, 0.17677669
    %v4364 = vmul.f32 %v4331, 0.17677669
    %v4365 = vmul.f32 %v4333, 0.17677669
    %v4366 = vmul.f32 %v4336, 0.17677669
    %v4367 = vmul.f32 %v4338, 0.17677669
    %v4368 = vmul.f32 %v4341, 0.17677669
    %v4369 = vmul.f32 %v4343, 0.17677669
    %v4370 = vmul.f32 %v4346, 0.17677669
    %v4371 = vmul.f32 %v4348, 0.17677669
    %v4372 = vmul.f32 %v4351, 0.17677669
    %v4373 = vmul.f32 %v4353, 0.17677669
    %v4374 = vmul.f32 %v4356, 0.17677669
    %v4375 = vmul.f32 %v4358, 0.17677669
    %v4376 = vadd.f32 %v4360, %v2016
    %v4377 = vadd.f32 %v4361, %v2017
    %v4378 = vadd.f32 %v4362, %v2018
    %v4379 = vadd.f32 %v4363, %v2019
    %v4380 = vadd.f32 %v4364, %v2020
    %v4381 = vadd.f32 %v4365, %v2021
    %v4382 = vadd.f32 %v4366, %v2022
    %v4383 = vadd.f32 %v4367, %v2023
    %v4384 = vadd.f32 %v4368, %v2024
    %v4385 = vadd.f32 %v4369, %v2025
    %v4386 = vadd.f32 %v4370, %v2026
    %v4387 = vadd.f32 %v4371, %v2027
    %v4388 = vadd.f32 %v4372, %v2028
    %v4389 = vadd.f32 %v4373, %v2029
    %v4390 = vadd.f32 %v4374, %v2030
    %v4391 = vadd.f32 %v4375, %v2031
    %4392 = vmax.xlane.f32.xlu0 %v4376
    %v4393 = vpop.xlane.xlu0 %4392
    %4394 = vmax.xlane.f32.xlu0 %v4377
    %v4395 = vpop.xlane.xlu0 %4394
    %4396 = vmax.xlane.f32.xlu0 %v4378
    %v4397 = vpop.xlane.xlu0 %4396
    %4398 = vmax.xlane.f32.xlu0 %v4379
    %v4399 = vpop.xlane.xlu0 %4398
    %4400 = vmax.xlane.f32.xlu0 %v4380
    %v4401 = vpop.xlane.xlu0 %4400
    %4402 = vmax.xlane.f32.xlu0 %v4381
    %v4403 = vpop.xlane.xlu0 %4402
    %4404 = vmax.xlane.f32.xlu0 %v4382
    %v4405 = vpop.xlane.xlu0 %4404
    %4406 = vmax.xlane.f32.xlu0 %v4383
    %v4407 = vpop.xlane.xlu0 %4406
    %4408 = vmax.xlane.f32.xlu0 %v4384
    %v4409 = vpop.xlane.xlu0 %4408
    %4410 = vmax.xlane.f32.xlu0 %v4385
    %v4411 = vpop.xlane.xlu0 %4410
    %4412 = vmax.xlane.f32.xlu0 %v4386
    %v4413 = vpop.xlane.xlu0 %4412
    %4414 = vmax.xlane.f32.xlu0 %v4387
    %v4415 = vpop.xlane.xlu0 %4414
    %4416 = vmax.xlane.f32.xlu0 %v4388
    %v4417 = vpop.xlane.xlu0 %4416
    %4418 = vmax.xlane.f32.xlu0 %v4389
    %v4419 = vpop.xlane.xlu0 %4418
    %4420 = vmax.xlane.f32.xlu0 %v4390
    %v4421 = vpop.xlane.xlu0 %4420
    %4422 = vmax.xlane.f32.xlu0 %v4391
    %v4423 = vpop.xlane.xlu0 %4422
    %v4424 = vsub.f32 %v4376, %v4393
    %v4425 = vsub.f32 %v4377, %v4395
    %v4426 = vsub.f32 %v4378, %v4397
    %v4427 = vsub.f32 %v4379, %v4399
    %v4428 = vsub.f32 %v4380, %v4401
    %v4429 = vsub.f32 %v4381, %v4403
    %v4430 = vsub.f32 %v4382, %v4405
    %v4431 = vsub.f32 %v4383, %v4407
    %v4432 = vsub.f32 %v4384, %v4409
    %v4433 = vsub.f32 %v4385, %v4411
    %v4434 = vsub.f32 %v4386, %v4413
    %v4435 = vsub.f32 %v4387, %v4415
    %v4436 = vsub.f32 %v4388, %v4417
    %v4437 = vsub.f32 %v4389, %v4419
    %v4438 = vsub.f32 %v4390, %v4421
    %v4439 = vsub.f32 %v4391, %v4423
    %v4440 = vmul.f32 %v4424, 1.442695
    %v4441 = vpow.pop %v4440
    %v4442 = vmul.f32 %v4425, 1.442695
    %v4443 = vpow.pop %v4442
    %v4444 = vmul.f32 %v4426, 1.442695
    %v4445 = vpow.pop %v4444
    %v4446 = vmul.f32 %v4427, 1.442695
    %v4447 = vpow.pop %v4446
    %v4448 = vmul.f32 %v4428, 1.442695
    %v4449 = vpow.pop %v4448
    %v4450 = vmul.f32 %v4429, 1.442695
    %v4451 = vpow.pop %v4450
    %v4452 = vmul.f32 %v4430, 1.442695
    %v4453 = vpow.pop %v4452
    %v4454 = vmul.f32 %v4431, 1.442695
    %v4455 = vpow.pop %v4454
    %v4456 = vmul.f32 %v4432, 1.442695
    %v4457 = vpow.pop %v4456
    %v4458 = vmul.f32 %v4433, 1.442695
    %v4459 = vpow.pop %v4458
    %v4460 = vmul.f32 %v4434, 1.442695
    %v4461 = vpow.pop %v4460
    %v4462 = vmul.f32 %v4435, 1.442695
    %v4463 = vpow.pop %v4462
    %v4464 = vmul.f32 %v4436, 1.442695
    %v4465 = vpow.pop %v4464
    %v4466 = vmul.f32 %v4437, 1.442695
    %v4467 = vpow.pop %v4466
    %v4468 = vmul.f32 %v4438, 1.442695
    %v4469 = vpow.pop %v4468
    %v4470 = vmul.f32 %v4439, 1.442695
    %v4471 = vpow.pop %v4470
    %4472 = vadd.xlane.f32.xlu0 %v4441
    %v4473 = vpop.xlane.xlu0 %4472
    %4474 = vadd.xlane.f32.xlu0 %v4443
    %v4475 = vpop.xlane.xlu0 %4474
    %4476 = vadd.xlane.f32.xlu0 %v4445
    %v4477 = vpop.xlane.xlu0 %4476
    %4478 = vadd.xlane.f32.xlu0 %v4447
    %v4479 = vpop.xlane.xlu0 %4478
    %4480 = vadd.xlane.f32.xlu0 %v4449
    %v4481 = vpop.xlane.xlu0 %4480
    %4482 = vadd.xlane.f32.xlu0 %v4451
    %v4483 = vpop.xlane.xlu0 %4482
    %4484 = vadd.xlane.f32.xlu0 %v4453
    %v4485 = vpop.xlane.xlu0 %4484
    %4486 = vadd.xlane.f32.xlu0 %v4455
    %v4487 = vpop.xlane.xlu0 %4486
    %4488 = vadd.xlane.f32.xlu0 %v4457
    %v4489 = vpop.xlane.xlu0 %4488
    %4490 = vadd.xlane.f32.xlu0 %v4459
    %v4491 = vpop.xlane.xlu0 %4490
    %4492 = vadd.xlane.f32.xlu0 %v4461
    %v4493 = vpop.xlane.xlu0 %4492
    %4494 = vadd.xlane.f32.xlu0 %v4463
    %v4495 = vpop.xlane.xlu0 %4494
    %4496 = vadd.xlane.f32.xlu0 %v4465
    %v4497 = vpop.xlane.xlu0 %4496
    %4498 = vadd.xlane.f32.xlu0 %v4467
    %v4499 = vpop.xlane.xlu0 %4498
    %4500 = vadd.xlane.f32.xlu0 %v4469
    %v4501 = vpop.xlane.xlu0 %4500
    %4502 = vadd.xlane.f32.xlu0 %v4471
    %v4503 = vpop.xlane.xlu0 %4502
    %v4504 = vrcp.pop %v4473
    %v4505 = vrcp.pop %v4475
    %v4506 = vrcp.pop %v4477
    %v4507 = vrcp.pop %v4479
    %v4508 = vrcp.pop %v4481
    %v4509 = vrcp.pop %v4483
    %v4510 = vrcp.pop %v4485
    %v4511 = vrcp.pop %v4487
    %v4512 = vrcp.pop %v4489
    %v4513 = vrcp.pop %v4491
    %v4514 = vrcp.pop %v4493
    %v4515 = vrcp.pop %v4495
    %v4516 = vrcp.pop %v4497
    %v4517 = vrcp.pop %v4499
    %v4518 = vrcp.pop %v4501
    %v4519 = vrcp.pop %v4503
    %v4520 = vmul.f32 %v4441, %v4504
    %v4521 = vmul.f32 %v4443, %v4505
    %v4522 = vmul.f32 %v4445, %v4506
    %v4523 = vmul.f32 %v4447, %v4507
    %v4524 = vmul.f32 %v4449, %v4508
    %v4525 = vmul.f32 %v4451, %v4509
    %v4526 = vmul.f32 %v4453, %v4510
    %v4527 = vmul.f32 %v4455, %v4511
    %v4528 = vmul.f32 %v4457, %v4512
    %v4529 = vmul.f32 %v4459, %v4513
    %v4530 = vmul.f32 %v4461, %v4514
    %v4531 = vmul.f32 %v4463, %v4515
    %v4532 = vmul.f32 %v4465, %v4516
    %v4533 = vmul.f32 %v4467, %v4517
    %v4534 = vmul.f32 %v4469, %v4518
    %v4535 = vmul.f32 %v4471, %v4519
    %v4536 = vpack.c.bf16 %v4521, %v4520
    %v4537 = vpack.c.bf16 %v4523, %v4522
    %v4538 = vpack.c.bf16 %v4525, %v4524
    %v4539 = vpack.c.bf16 %v4527, %v4526
    %v4540 = vpack.c.bf16 %v4529, %v4528
    %v4541 = vpack.c.bf16 %v4531, %v4530
    %v4542 = vpack.c.bf16 %v4533, %v4532
    %v4543 = vpack.c.bf16 %v4535, %v4534
    %4544 = vrot.lane.b32.xlu0 %v3083, 32
    %v4545 = vpop.permute.xlu0 %4544
    %4546 = vrot.lane.b32.xlu0 %v3084, 32
    %v4547 = vpop.permute.xlu0 %4546
    %4548 = vrot.lane.b32.xlu0 %v3085, 32
    %v4549 = vpop.permute.xlu0 %4548
    %4550 = vrot.lane.b32.xlu0 %v3086, 32
    %v4551 = vpop.permute.xlu0 %4550
    %4552 = vrot.lane.b32.xlu0 %v3087, 32
    %v4553 = vpop.permute.xlu0 %4552
    %4554 = vrot.lane.b32.xlu0 %v3088, 32
    %v4555 = vpop.permute.xlu0 %4554
    %4556 = vrot.lane.b32.xlu0 %v3089, 32
    %v4557 = vpop.permute.xlu0 %4556
    %4558 = vrot.lane.b32.xlu0 %v3090, 32
    %v4559 = vpop.permute.xlu0 %4558
    %4568 = vmatpush.bf16.msra.mxu0 %v4559
    %4569 = vmatpush.bf16.msra.mxu0 %v4557
    %4570 = vmatpush.bf16.msra.mxu0 %v4555
    %4571 = vmatpush.bf16.msra.mxu0 %v4553
    %4572 = vmatpush.bf16.msra.mxu0 %v4551
    %4573 = vmatpush.bf16.msra.mxu0 %v4549
    %4574 = vmatpush.bf16.msra.mxu0 %v4547
    %4575 = vmatpush.bf16.msra.mxu0 %v4545
    %4576 = vmatmul.bf16.gmra.mxu0 %v4536
    %v4577 = vpop.f32.mrf.mxu0
    %v4578 = vadd.f32 0.0, %v4577
    %v4579 = vpop.f32.mrf.mxu0
    %v4580 = vadd.f32 0.0, %v4579
    %4581 = vmatmul.bf16.gmra.mxu0 %v4537
    %v4582 = vpop.f32.mrf.mxu0
    %v4583 = vadd.f32 0.0, %v4582
    %v4584 = vpop.f32.mrf.mxu0
    %v4585 = vadd.f32 0.0, %v4584
    %4586 = vmatmul.bf16.gmra.mxu0 %v4538
    %v4587 = vpop.f32.mrf.mxu0
    %v4588 = vadd.f32 0.0, %v4587
    %v4589 = vpop.f32.mrf.mxu0
    %v4590 = vadd.f32 0.0, %v4589
    %4591 = vmatmul.bf16.gmra.mxu0 %v4539
    %v4592 = vpop.f32.mrf.mxu0
    %v4593 = vadd.f32 0.0, %v4592
    %v4594 = vpop.f32.mrf.mxu0
    %v4595 = vadd.f32 0.0, %v4594
    %4596 = vmatmul.bf16.gmra.mxu0 %v4540
    %v4597 = vpop.f32.mrf.mxu0
    %v4598 = vadd.f32 0.0, %v4597
    %v4599 = vpop.f32.mrf.mxu0
    %v4600 = vadd.f32 0.0, %v4599
    %4601 = vmatmul.bf16.gmra.mxu0 %v4541
    %v4602 = vpop.f32.mrf.mxu0
    %v4603 = vadd.f32 0.0, %v4602
    %v4604 = vpop.f32.mrf.mxu0
    %v4605 = vadd.f32 0.0, %v4604
    %4606 = vmatmul.bf16.gmra.mxu0 %v4542
    %v4607 = vpop.f32.mrf.mxu0
    %v4608 = vadd.f32 0.0, %v4607
    %v4609 = vpop.f32.mrf.mxu0
    %v4610 = vadd.f32 0.0, %v4609
    %4611 = vmatmul.bf16.gmra.mxu0 %v4543
    %v4612 = vpop.f32.mrf.mxu0
    %v4613 = vadd.f32 0.0, %v4612
    %v4614 = vpop.f32.mrf.mxu0
    %v4615 = vadd.f32 0.0, %v4614
    %4616 = vdwg.mxu0
    %v4617 = vpack.c.bf16 %v4580, %v4578
    %v4618 = vpack.c.bf16 %v4585, %v4583
    %v4619 = vpack.c.bf16 %v4590, %v4588
    %v4620 = vpack.c.bf16 %v4595, %v4593
    %v4621 = vpack.c.bf16 %v4600, %v4598
    %v4622 = vpack.c.bf16 %v4605, %v4603
    %v4623 = vpack.c.bf16 %v4610, %v4608
    %v4624 = vpack.c.bf16 %v4615, %v4613
    %v4629 = vunpack.c.l.b16 %v2437
    %v4630 = vunpack.c.l.b16 %v2438
    %v4631 = vunpack.c.l.b16 %v2439
    %v4632 = vunpack.c.l.b16 %v2440
    %v4633 = vpack.c.b16 %v4630, %v4629
    %v4634 = vpack.c.b16 %v4632, %v4631
    %v4638 = vsel %vm693, %v4617, 0
    %v4641 = vsel %vm693, %v4618, 0
    %v4644 = vsel %vm693, %v4619, 0
    %v4647 = vsel %vm693, %v4620, 0
    %v4650 = vsel %vm693, %v4621, 0
    %v4653 = vsel %vm693, %v4622, 0
    %v4656 = vsel %vm693, %v4623, 0
    %v4659 = vsel %vm693, %v4624, 0
    %4661 = vmatpush.bf16.msra.mxu0 0
    %4662 = vmatpush.bf16.msra.mxu0 0
    %4663 = vmatpush.bf16.msra.mxu0 0
    %4664 = vmatpush.bf16.msra.mxu0 0
    %4665 = vmatpush.bf16.msra.mxu0 0
    %4666 = vmatpush.bf16.msra.mxu0 0
    %4667 = vmatpush.bf16.msra.mxu0 %v4634
    %4668 = vmatpush.bf16.msra.mxu0 %v4633
    %4669 = vmatmul.bf16.gmra.mxu0 %v4638
    %v4670 = vpop.f32.mrf.mxu0
    %v4671 = vadd.f32 0.0, %v4670
    %v4672 = vpop.f32.mrf.mxu0
    %v4673 = vadd.f32 0.0, %v4672
    %4674 = vmatmul.bf16.gmra.mxu0 %v4641
    %v4675 = vpop.f32.mrf.mxu0
    %v4676 = vadd.f32 0.0, %v4675
    %v4677 = vpop.f32.mrf.mxu0
    %v4678 = vadd.f32 0.0, %v4677
    %4679 = vmatmul.bf16.gmra.mxu0 %v4644
    %v4680 = vpop.f32.mrf.mxu0
    %v4681 = vadd.f32 0.0, %v4680
    %v4682 = vpop.f32.mrf.mxu0
    %v4683 = vadd.f32 0.0, %v4682
    %4684 = vmatmul.bf16.gmra.mxu0 %v4647
    %v4685 = vpop.f32.mrf.mxu0
    %v4686 = vadd.f32 0.0, %v4685
    %v4687 = vpop.f32.mrf.mxu0
    %v4688 = vadd.f32 0.0, %v4687
    %4689 = vmatmul.bf16.gmra.mxu0 %v4650
    %v4690 = vpop.f32.mrf.mxu0
    %v4691 = vadd.f32 0.0, %v4690
    %v4692 = vpop.f32.mrf.mxu0
    %v4693 = vadd.f32 0.0, %v4692
    %4694 = vmatmul.bf16.gmra.mxu0 %v4653
    %v4695 = vpop.f32.mrf.mxu0
    %v4696 = vadd.f32 0.0, %v4695
    %v4697 = vpop.f32.mrf.mxu0
    %v4698 = vadd.f32 0.0, %v4697
    %4699 = vmatmul.bf16.gmra.mxu0 %v4656
    %v4700 = vpop.f32.mrf.mxu0
    %v4701 = vadd.f32 0.0, %v4700
    %v4702 = vpop.f32.mrf.mxu0
    %v4703 = vadd.f32 0.0, %v4702
    %4704 = vmatmul.bf16.gmra.mxu0 %v4659
    %v4705 = vpop.f32.mrf.mxu0
    %v4706 = vadd.f32 0.0, %v4705
    %v4707 = vpop.f32.mrf.mxu0
    %v4708 = vadd.f32 0.0, %v4707
    %4709 = vdwg.mxu0
    %v4710 = vadd.f32 %v4215, %v4671
    %v4711 = vadd.f32 %v4216, %v4673
    %v4712 = vadd.f32 %v4217, %v4676
    %v4713 = vadd.f32 %v4218, %v4678
    %v4714 = vadd.f32 %v4219, %v4681
    %v4715 = vadd.f32 %v4220, %v4683
    %v4716 = vadd.f32 %v4221, %v4686
    %v4717 = vadd.f32 %v4222, %v4688
    %v4718 = vadd.f32 %v4223, %v4691
    %v4719 = vadd.f32 %v4224, %v4693
    %v4720 = vadd.f32 %v4225, %v4696
    %v4721 = vadd.f32 %v4226, %v4698
    %v4722 = vadd.f32 %v4227, %v4701
    %v4723 = vadd.f32 %v4228, %v4703
    %v4724 = vadd.f32 %v4229, %v4706
    %v4725 = vadd.f32 %v4230, %v4708
    %v4726 = vadd.f32 %v2376, %v4710
    %v4727 = vadd.f32 %v2377, %v4711
    %v4728 = vadd.f32 %v2378, %v4712
    %v4729 = vadd.f32 %v2379, %v4713
    %v4730 = vadd.f32 %v2380, %v4714
    %v4731 = vadd.f32 %v2381, %v4715
    %v4732 = vadd.f32 %v2382, %v4716
    %v4733 = vadd.f32 %v2383, %v4717
    %v4734 = vadd.f32 %v2384, %v4718
    %v4735 = vadd.f32 %v2385, %v4719
    %v4736 = vadd.f32 %v2386, %v4720
    %v4737 = vadd.f32 %v2387, %v4721
    %v4738 = vadd.f32 %v2388, %v4722
    %v4739 = vadd.f32 %v2389, %v4723
    %v4740 = vadd.f32 %v2390, %v4724
    %v4741 = vadd.f32 %v2391, %v4725
    %v4743 = vperm.slane %v2441, 0
    %v4745 = vadd.f32 %v4726, %v4743
    %v4746 = vadd.f32 %v4727, %v4743
    %v4747 = vadd.f32 %v4728, %v4743
    %v4748 = vadd.f32 %v4729, %v4743
    %v4749 = vadd.f32 %v4730, %v4743
    %v4750 = vadd.f32 %v4731, %v4743
    %v4751 = vadd.f32 %v4732, %v4743
    %v4752 = vadd.f32 %v4733, %v4743
    %v4753 = vadd.f32 %v4734, %v4743
    %v4754 = vadd.f32 %v4735, %v4743
    %v4755 = vadd.f32 %v4736, %v4743
    %v4756 = vadd.f32 %v4737, %v4743
    %v4757 = vadd.f32 %v4738, %v4743
    %v4758 = vadd.f32 %v4739, %v4743
    %v4759 = vadd.f32 %v4740, %v4743
    %v4760 = vadd.f32 %v4741, %v4743
    %4761 = vadd.xlane.f32.xlu0 %v4745
    %v4762 = vpop.xlane.xlu0 %4761
    %4763 = vadd.xlane.f32.xlu0 %v4746
    %v4764 = vpop.xlane.xlu0 %4763
    %4765 = vadd.xlane.f32.xlu0 %v4747
    %v4766 = vpop.xlane.xlu0 %4765
    %4767 = vadd.xlane.f32.xlu0 %v4748
    %v4768 = vpop.xlane.xlu0 %4767
    %4769 = vadd.xlane.f32.xlu0 %v4749
    %v4770 = vpop.xlane.xlu0 %4769
    %4771 = vadd.xlane.f32.xlu0 %v4750
    %v4772 = vpop.xlane.xlu0 %4771
    %4773 = vadd.xlane.f32.xlu0 %v4751
    %v4774 = vpop.xlane.xlu0 %4773
    %4775 = vadd.xlane.f32.xlu0 %v4752
    %v4776 = vpop.xlane.xlu0 %4775
    %4777 = vadd.xlane.f32.xlu0 %v4753
    %v4778 = vpop.xlane.xlu0 %4777
    %4779 = vadd.xlane.f32.xlu0 %v4754
    %v4780 = vpop.xlane.xlu0 %4779
    %4781 = vadd.xlane.f32.xlu0 %v4755
    %v4782 = vpop.xlane.xlu0 %4781
    %4783 = vadd.xlane.f32.xlu0 %v4756
    %v4784 = vpop.xlane.xlu0 %4783
    %4785 = vadd.xlane.f32.xlu0 %v4757
    %v4786 = vpop.xlane.xlu0 %4785
    %4787 = vadd.xlane.f32.xlu0 %v4758
    %v4788 = vpop.xlane.xlu0 %4787
    %4789 = vadd.xlane.f32.xlu0 %v4759
    %v4790 = vpop.xlane.xlu0 %4789
    %4791 = vadd.xlane.f32.xlu0 %v4760
    %v4792 = vpop.xlane.xlu0 %4791
    %v4793 = vmul.f32 %v4762, %v304
    %v4794 = vmul.f32 %v4764, %v304
    %v4795 = vmul.f32 %v4766, %v304
    %v4796 = vmul.f32 %v4768, %v304
    %v4797 = vmul.f32 %v4770, %v304
    %v4798 = vmul.f32 %v4772, %v304
    %v4799 = vmul.f32 %v4774, %v304
    %v4800 = vmul.f32 %v4776, %v304
    %v4801 = vmul.f32 %v4778, %v304
    %v4802 = vmul.f32 %v4780, %v304
    %v4803 = vmul.f32 %v4782, %v304
    %v4804 = vmul.f32 %v4784, %v304
    %v4805 = vmul.f32 %v4786, %v304
    %v4806 = vmul.f32 %v4788, %v304
    %v4807 = vmul.f32 %v4790, %v304
    %v4808 = vmul.f32 %v4792, %v304
    %v4809 = vsub.f32 %v4745, %v4793
    %v4810 = vsub.f32 %v4746, %v4794
    %v4811 = vsub.f32 %v4747, %v4795
    %v4812 = vsub.f32 %v4748, %v4796
    %v4813 = vsub.f32 %v4749, %v4797
    %v4814 = vsub.f32 %v4750, %v4798
    %v4815 = vsub.f32 %v4751, %v4799
    %v4816 = vsub.f32 %v4752, %v4800
    %v4817 = vsub.f32 %v4753, %v4801
    %v4818 = vsub.f32 %v4754, %v4802
    %v4819 = vsub.f32 %v4755, %v4803
    %v4820 = vsub.f32 %v4756, %v4804
    %v4821 = vsub.f32 %v4757, %v4805
    %v4822 = vsub.f32 %v4758, %v4806
    %v4823 = vsub.f32 %v4759, %v4807
    %v4824 = vsub.f32 %v4760, %v4808
    %v4825 = vmul.f32 %v4809, %v4809
    %v4826 = vmul.f32 %v4810, %v4810
    %v4827 = vmul.f32 %v4811, %v4811
    %v4828 = vmul.f32 %v4812, %v4812
    %v4829 = vmul.f32 %v4813, %v4813
    %v4830 = vmul.f32 %v4814, %v4814
    %v4831 = vmul.f32 %v4815, %v4815
    %v4832 = vmul.f32 %v4816, %v4816
    %v4833 = vmul.f32 %v4817, %v4817
    %v4834 = vmul.f32 %v4818, %v4818
    %v4835 = vmul.f32 %v4819, %v4819
    %v4836 = vmul.f32 %v4820, %v4820
    %v4837 = vmul.f32 %v4821, %v4821
    %v4838 = vmul.f32 %v4822, %v4822
    %v4839 = vmul.f32 %v4823, %v4823
    %v4840 = vmul.f32 %v4824, %v4824
    %4841 = vadd.xlane.f32.xlu0 %v4825
    %v4842 = vpop.xlane.xlu0 %4841
    %4843 = vadd.xlane.f32.xlu0 %v4826
    %v4844 = vpop.xlane.xlu0 %4843
    %4845 = vadd.xlane.f32.xlu0 %v4827
    %v4846 = vpop.xlane.xlu0 %4845
    %4847 = vadd.xlane.f32.xlu0 %v4828
    %v4848 = vpop.xlane.xlu0 %4847
    %4849 = vadd.xlane.f32.xlu0 %v4829
    %v4850 = vpop.xlane.xlu0 %4849
    %4851 = vadd.xlane.f32.xlu0 %v4830
    %v4852 = vpop.xlane.xlu0 %4851
    %4853 = vadd.xlane.f32.xlu0 %v4831
    %v4854 = vpop.xlane.xlu0 %4853
    %4855 = vadd.xlane.f32.xlu0 %v4832
    %v4856 = vpop.xlane.xlu0 %4855
    %4857 = vadd.xlane.f32.xlu0 %v4833
    %v4858 = vpop.xlane.xlu0 %4857
    %4859 = vadd.xlane.f32.xlu0 %v4834
    %v4860 = vpop.xlane.xlu0 %4859
    %4861 = vadd.xlane.f32.xlu0 %v4835
    %v4862 = vpop.xlane.xlu0 %4861
    %4863 = vadd.xlane.f32.xlu0 %v4836
    %v4864 = vpop.xlane.xlu0 %4863
    %4865 = vadd.xlane.f32.xlu0 %v4837
    %v4866 = vpop.xlane.xlu0 %4865
    %4867 = vadd.xlane.f32.xlu0 %v4838
    %v4868 = vpop.xlane.xlu0 %4867
    %4869 = vadd.xlane.f32.xlu0 %v4839
    %v4870 = vpop.xlane.xlu0 %4869
    %4871 = vadd.xlane.f32.xlu0 %v4840
    %v4872 = vpop.xlane.xlu0 %4871
    %v4873 = vmul.f32 %v4842, %v304
    %v4874 = vmul.f32 %v4844, %v304
    %v4875 = vmul.f32 %v4846, %v304
    %v4876 = vmul.f32 %v4848, %v304
    %v4877 = vmul.f32 %v4850, %v304
    %v4878 = vmul.f32 %v4852, %v304
    %v4879 = vmul.f32 %v4854, %v304
    %v4880 = vmul.f32 %v4856, %v304
    %v4881 = vmul.f32 %v4858, %v304
    %v4882 = vmul.f32 %v4860, %v304
    %v4883 = vmul.f32 %v4862, %v304
    %v4884 = vmul.f32 %v4864, %v304
    %v4885 = vmul.f32 %v4866, %v304
    %v4886 = vmul.f32 %v4868, %v304
    %v4887 = vmul.f32 %v4870, %v304
    %v4888 = vmul.f32 %v4872, %v304
    %v4889 = vadd.f32 %v4873, 1e-12
    %v4890 = vadd.f32 %v4874, 1e-12
    %v4891 = vadd.f32 %v4875, 1e-12
    %v4892 = vadd.f32 %v4876, 1e-12
    %v4893 = vadd.f32 %v4877, 1e-12
    %v4894 = vadd.f32 %v4878, 1e-12
    %v4895 = vadd.f32 %v4879, 1e-12
    %v4896 = vadd.f32 %v4880, 1e-12
    %v4897 = vadd.f32 %v4881, 1e-12
    %v4898 = vadd.f32 %v4882, 1e-12
    %v4899 = vadd.f32 %v4883, 1e-12
    %v4900 = vadd.f32 %v4884, 1e-12
    %v4901 = vadd.f32 %v4885, 1e-12
    %v4902 = vadd.f32 %v4886, 1e-12
    %v4903 = vadd.f32 %v4887, 1e-12
    %v4904 = vadd.f32 %v4888, 1e-12
    %v4905 = vrsqrt.pop %v4889
    %v4906 = vmul.f32 %v4905, %v4889
    %v4907 = vmul.f32 %v4906, %v4905
    %v4908 = vmul.f32 0.5, %v4907
    %v4909 = vsub.f32 1.5, %v4908
    %v4910 = vmul.f32 %v4905, %v4909
    %vm4911 = vweird.f32 %v4889
    %vm4912 = vweird.f32 %v4905
    %vm4913 = vmor %vm4911, %vm4912
    %v4914 = vsel %vm4913, %v4905, %v4910
    %v4915 = vrsqrt.pop %v4890
    %v4916 = vmul.f32 %v4915, %v4890
    %v4917 = vmul.f32 %v4916, %v4915
    %v4918 = vmul.f32 0.5, %v4917
    %v4919 = vsub.f32 1.5, %v4918
    %v4920 = vmul.f32 %v4915, %v4919
    %vm4921 = vweird.f32 %v4890
    %vm4922 = vweird.f32 %v4915
    %vm4923 = vmor %vm4921, %vm4922
    %v4924 = vsel %vm4923, %v4915, %v4920
    %v4925 = vrsqrt.pop %v4891
    %v4926 = vmul.f32 %v4925, %v4891
    %v4927 = vmul.f32 %v4926, %v4925
    %v4928 = vmul.f32 0.5, %v4927
    %v4929 = vsub.f32 1.5, %v4928
    %v4930 = vmul.f32 %v4925, %v4929
    %vm4931 = vweird.f32 %v4891
    %vm4932 = vweird.f32 %v4925
    %vm4933 = vmor %vm4931, %vm4932
    %v4934 = vsel %vm4933, %v4925, %v4930
    %v4935 = vrsqrt.pop %v4892
    %v4936 = vmul.f32 %v4935, %v4892
    %v4937 = vmul.f32 %v4936, %v4935
    %v4938 = vmul.f32 0.5, %v4937
    %v4939 = vsub.f32 1.5, %v4938
    %v4940 = vmul.f32 %v4935, %v4939
    %vm4941 = vweird.f32 %v4892
    %vm4942 = vweird.f32 %v4935
    %vm4943 = vmor %vm4941, %vm4942
    %v4944 = vsel %vm4943, %v4935, %v4940
    %v4945 = vrsqrt.pop %v4893
    %v4946 = vmul.f32 %v4945, %v4893
    %v4947 = vmul.f32 %v4946, %v4945
    %v4948 = vmul.f32 0.5, %v4947
    %v4949 = vsub.f32 1.5, %v4948
    %v4950 = vmul.f32 %v4945, %v4949
    %vm4951 = vweird.f32 %v4893
    %vm4952 = vweird.f32 %v4945
    %vm4953 = vmor %vm4951, %vm4952
    %v4954 = vsel %vm4953, %v4945, %v4950
    %v4955 = vrsqrt.pop %v4894
    %v4956 = vmul.f32 %v4955, %v4894
    %v4957 = vmul.f32 %v4956, %v4955
    %v4958 = vmul.f32 0.5, %v4957
    %v4959 = vsub.f32 1.5, %v4958
    %v4960 = vmul.f32 %v4955, %v4959
    %vm4961 = vweird.f32 %v4894
    %vm4962 = vweird.f32 %v4955
    %vm4963 = vmor %vm4961, %vm4962
    %v4964 = vsel %vm4963, %v4955, %v4960
    %v4965 = vrsqrt.pop %v4895
    %v4966 = vmul.f32 %v4965, %v4895
    %v4967 = vmul.f32 %v4966, %v4965
    %v4968 = vmul.f32 0.5, %v4967
    %v4969 = vsub.f32 1.5, %v4968
    %v4970 = vmul.f32 %v4965, %v4969
    %vm4971 = vweird.f32 %v4895
    %vm4972 = vweird.f32 %v4965
    %vm4973 = vmor %vm4971, %vm4972
    %v4974 = vsel %vm4973, %v4965, %v4970
    %v4975 = vrsqrt.pop %v4896
    %v4976 = vmul.f32 %v4975, %v4896
    %v4977 = vmul.f32 %v4976, %v4975
    %v4978 = vmul.f32 0.5, %v4977
    %v4979 = vsub.f32 1.5, %v4978
    %v4980 = vmul.f32 %v4975, %v4979
    %vm4981 = vweird.f32 %v4896
    %vm4982 = vweird.f32 %v4975
    %vm4983 = vmor %vm4981, %vm4982
    %v4984 = vsel %vm4983, %v4975, %v4980
    %v4985 = vrsqrt.pop %v4897
    %v4986 = vmul.f32 %v4985, %v4897
    %v4987 = vmul.f32 %v4986, %v4985
    %v4988 = vmul.f32 0.5, %v4987
    %v4989 = vsub.f32 1.5, %v4988
    %v4990 = vmul.f32 %v4985, %v4989
    %vm4991 = vweird.f32 %v4897
    %vm4992 = vweird.f32 %v4985
    %vm4993 = vmor %vm4991, %vm4992
    %v4994 = vsel %vm4993, %v4985, %v4990
    %v4995 = vrsqrt.pop %v4898
    %v4996 = vmul.f32 %v4995, %v4898
    %v4997 = vmul.f32 %v4996, %v4995
    %v4998 = vmul.f32 0.5, %v4997
    %v4999 = vsub.f32 1.5, %v4998
    %v5000 = vmul.f32 %v4995, %v4999
    %vm5001 = vweird.f32 %v4898
    %vm5002 = vweird.f32 %v4995
    %vm5003 = vmor %vm5001, %vm5002
    %v5004 = vsel %vm5003, %v4995, %v5000
    %v5005 = vrsqrt.pop %v4899
    %v5006 = vmul.f32 %v5005, %v4899
    %v5007 = vmul.f32 %v5006, %v5005
    %v5008 = vmul.f32 0.5, %v5007
    %v5009 = vsub.f32 1.5, %v5008
    %v5010 = vmul.f32 %v5005, %v5009
    %vm5011 = vweird.f32 %v4899
    %vm5012 = vweird.f32 %v5005
    %vm5013 = vmor %vm5011, %vm5012
    %v5014 = vsel %vm5013, %v5005, %v5010
    %v5015 = vrsqrt.pop %v4900
    %v5016 = vmul.f32 %v5015, %v4900
    %v5017 = vmul.f32 %v5016, %v5015
    %v5018 = vmul.f32 0.5, %v5017
    %v5019 = vsub.f32 1.5, %v5018
    %v5020 = vmul.f32 %v5015, %v5019
    %vm5021 = vweird.f32 %v4900
    %vm5022 = vweird.f32 %v5015
    %vm5023 = vmor %vm5021, %vm5022
    %v5024 = vsel %vm5023, %v5015, %v5020
    %v5025 = vrsqrt.pop %v4901
    %v5026 = vmul.f32 %v5025, %v4901
    %v5027 = vmul.f32 %v5026, %v5025
    %v5028 = vmul.f32 0.5, %v5027
    %v5029 = vsub.f32 1.5, %v5028
    %v5030 = vmul.f32 %v5025, %v5029
    %vm5031 = vweird.f32 %v4901
    %vm5032 = vweird.f32 %v5025
    %vm5033 = vmor %vm5031, %vm5032
    %v5034 = vsel %vm5033, %v5025, %v5030
    %v5035 = vrsqrt.pop %v4902
    %v5036 = vmul.f32 %v5035, %v4902
    %v5037 = vmul.f32 %v5036, %v5035
    %v5038 = vmul.f32 0.5, %v5037
    %v5039 = vsub.f32 1.5, %v5038
    %v5040 = vmul.f32 %v5035, %v5039
    %vm5041 = vweird.f32 %v4902
    %vm5042 = vweird.f32 %v5035
    %vm5043 = vmor %vm5041, %vm5042
    %v5044 = vsel %vm5043, %v5035, %v5040
    %v5045 = vrsqrt.pop %v4903
    %v5046 = vmul.f32 %v5045, %v4903
    %v5047 = vmul.f32 %v5046, %v5045
    %v5048 = vmul.f32 0.5, %v5047
    %v5049 = vsub.f32 1.5, %v5048
    %v5050 = vmul.f32 %v5045, %v5049
    %vm5051 = vweird.f32 %v4903
    %vm5052 = vweird.f32 %v5045
    %vm5053 = vmor %vm5051, %vm5052
    %v5054 = vsel %vm5053, %v5045, %v5050
    %v5055 = vrsqrt.pop %v4904
    %v5056 = vmul.f32 %v5055, %v4904
    %v5057 = vmul.f32 %v5056, %v5055
    %v5058 = vmul.f32 0.5, %v5057
    %v5059 = vsub.f32 1.5, %v5058
    %v5060 = vmul.f32 %v5055, %v5059
    %vm5061 = vweird.f32 %v4904
    %vm5062 = vweird.f32 %v5055
    %vm5063 = vmor %vm5061, %vm5062
    %v5064 = vsel %vm5063, %v5055, %v5060
    %v5065 = vmul.f32 %v4809, %v4914
    %v5066 = vmul.f32 %v4810, %v4924
    %v5067 = vmul.f32 %v4811, %v4934
    %v5068 = vmul.f32 %v4812, %v4944
    %v5069 = vmul.f32 %v4813, %v4954
    %v5070 = vmul.f32 %v4814, %v4964
    %v5071 = vmul.f32 %v4815, %v4974
    %v5072 = vmul.f32 %v4816, %v4984
    %v5073 = vmul.f32 %v4817, %v4994
    %v5074 = vmul.f32 %v4818, %v5004
    %v5075 = vmul.f32 %v4819, %v5014
    %v5076 = vmul.f32 %v4820, %v5024
    %v5077 = vmul.f32 %v4821, %v5034
    %v5078 = vmul.f32 %v4822, %v5044
    %v5079 = vmul.f32 %v4823, %v5054
    %v5080 = vmul.f32 %v4824, %v5064
    %v5082 = vperm.slane %v2442, 0
    %v5084 = vmul.f32 %v5065, %v5082
    %v5085 = vmul.f32 %v5066, %v5082
    %v5086 = vmul.f32 %v5067, %v5082
    %v5087 = vmul.f32 %v5068, %v5082
    %v5088 = vmul.f32 %v5069, %v5082
    %v5089 = vmul.f32 %v5070, %v5082
    %v5090 = vmul.f32 %v5071, %v5082
    %v5091 = vmul.f32 %v5072, %v5082
    %v5092 = vmul.f32 %v5073, %v5082
    %v5093 = vmul.f32 %v5074, %v5082
    %v5094 = vmul.f32 %v5075, %v5082
    %v5095 = vmul.f32 %v5076, %v5082
    %v5096 = vmul.f32 %v5077, %v5082
    %v5097 = vmul.f32 %v5078, %v5082
    %v5098 = vmul.f32 %v5079, %v5082
    %v5099 = vmul.f32 %v5080, %v5082
    %v5101 = vperm.slane %v2443, 0
    %v5103 = vadd.f32 %v5084, %v5101
    %v5104 = vadd.f32 %v5085, %v5101
    %v5105 = vadd.f32 %v5086, %v5101
    %v5106 = vadd.f32 %v5087, %v5101
    %v5107 = vadd.f32 %v5088, %v5101
    %v5108 = vadd.f32 %v5089, %v5101
    %v5109 = vadd.f32 %v5090, %v5101
    %v5110 = vadd.f32 %v5091, %v5101
    %v5111 = vadd.f32 %v5092, %v5101
    %v5112 = vadd.f32 %v5093, %v5101
    %v5113 = vadd.f32 %v5094, %v5101
    %v5114 = vadd.f32 %v5095, %v5101
    %v5115 = vadd.f32 %v5096, %v5101
    %v5116 = vadd.f32 %v5097, %v5101
    %v5117 = vadd.f32 %v5098, %v5101
    %v5118 = vadd.f32 %v5099, %v5101
    %v5119 = vpack.c.bf16 %v5104, %v5103
    %v5120 = vpack.c.bf16 %v5106, %v5105
    %v5121 = vpack.c.bf16 %v5108, %v5107
    %v5122 = vpack.c.bf16 %v5110, %v5109
    %v5123 = vpack.c.bf16 %v5112, %v5111
    %v5124 = vpack.c.bf16 %v5114, %v5113
    %v5125 = vpack.c.bf16 %v5116, %v5115
    %v5126 = vpack.c.bf16 %v5118, %v5117
    %v5128 = vperm.slane %v2460, 0
    %v5129 = vperm.slane %v2460, 1
    %v5148 = vunpack.c.l.b16 %v2444
    %v5149 = vunpack.c.h.b16 %v2444
    %v5150 = vunpack.c.l.b16 %v2445
    %v5151 = vunpack.c.h.b16 %v2445
    %v5152 = vunpack.c.l.b16 %v2446
    %v5153 = vunpack.c.h.b16 %v2446
    %v5154 = vunpack.c.l.b16 %v2447
    %v5155 = vunpack.c.h.b16 %v2447
    %v5156 = vunpack.c.l.b16 %v2448
    %v5157 = vunpack.c.h.b16 %v2448
    %v5158 = vunpack.c.l.b16 %v2449
    %v5159 = vunpack.c.h.b16 %v2449
    %v5160 = vunpack.c.l.b16 %v2450
    %v5161 = vunpack.c.h.b16 %v2450
    %v5162 = vunpack.c.l.b16 %v2451
    %v5163 = vunpack.c.h.b16 %v2451
    %v5164 = vunpack.c.l.b16 %v2452
    %v5165 = vunpack.c.h.b16 %v2452
    %v5166 = vunpack.c.l.b16 %v2453
    %v5167 = vunpack.c.h.b16 %v2453
    %v5168 = vunpack.c.l.b16 %v2454
    %v5169 = vunpack.c.h.b16 %v2454
    %v5170 = vunpack.c.l.b16 %v2455
    %v5171 = vunpack.c.h.b16 %v2455
    %v5172 = vunpack.c.l.b16 %v2456
    %v5173 = vunpack.c.h.b16 %v2456
    %v5174 = vunpack.c.l.b16 %v2457
    %v5175 = vunpack.c.h.b16 %v2457
    %v5176 = vunpack.c.l.b16 %v2458
    %v5177 = vunpack.c.h.b16 %v2458
    %v5178 = vunpack.c.l.b16 %v2459
    %v5179 = vunpack.c.h.b16 %v2459
    %v5180 = vpack.c.b16 %v5150, %v5148
    %v5181 = vpack.c.b16 %v5151, %v5149
    %v5182 = vpack.c.b16 %v5154, %v5152
    %v5183 = vpack.c.b16 %v5155, %v5153
    %v5184 = vpack.c.b16 %v5158, %v5156
    %v5185 = vpack.c.b16 %v5159, %v5157
    %v5186 = vpack.c.b16 %v5162, %v5160
    %v5187 = vpack.c.b16 %v5163, %v5161
    %v5188 = vpack.c.b16 %v5166, %v5164
    %v5189 = vpack.c.b16 %v5167, %v5165
    %v5190 = vpack.c.b16 %v5170, %v5168
    %v5191 = vpack.c.b16 %v5171, %v5169
    %v5192 = vpack.c.b16 %v5174, %v5172
    %v5193 = vpack.c.b16 %v5175, %v5173
    %v5194 = vpack.c.b16 %v5178, %v5176
    %v5195 = vpack.c.b16 %v5179, %v5177
    %5212 = vmatpush.bf16.msra.mxu0 %v5194
    %5213 = vmatpush.bf16.msra.mxu0 %v5192
    %5214 = vmatpush.bf16.msra.mxu0 %v5190
    %5215 = vmatpush.bf16.msra.mxu0 %v5188
    %5216 = vmatpush.bf16.msra.mxu0 %v5186
    %5217 = vmatpush.bf16.msra.mxu0 %v5184
    %5218 = vmatpush.bf16.msra.mxu0 %v5182
    %5219 = vmatpush.bf16.msra.mxu0 %v5180
    %5220 = vmatmul.bf16.gmra.mxu0 %v5119
    %v5221 = vpop.f32.mrf.mxu0
    %v5222 = vadd.f32 %v5128, %v5221
    %v5223 = vpop.f32.mrf.mxu0
    %v5224 = vadd.f32 %v5128, %v5223
    %5225 = vmatmul.bf16.gmra.mxu0 %v5120
    %v5226 = vpop.f32.mrf.mxu0
    %v5227 = vadd.f32 %v5128, %v5226
    %v5228 = vpop.f32.mrf.mxu0
    %v5229 = vadd.f32 %v5128, %v5228
    %5230 = vmatmul.bf16.gmra.mxu0 %v5121
    %v5231 = vpop.f32.mrf.mxu0
    %v5232 = vadd.f32 %v5128, %v5231
    %v5233 = vpop.f32.mrf.mxu0
    %v5234 = vadd.f32 %v5128, %v5233
    %5235 = vmatmul.bf16.gmra.mxu0 %v5122
    %v5236 = vpop.f32.mrf.mxu0
    %v5237 = vadd.f32 %v5128, %v5236
    %v5238 = vpop.f32.mrf.mxu0
    %v5239 = vadd.f32 %v5128, %v5238
    %5240 = vmatmul.bf16.gmra.mxu0 %v5123
    %v5241 = vpop.f32.mrf.mxu0
    %v5242 = vadd.f32 %v5128, %v5241
    %v5243 = vpop.f32.mrf.mxu0
    %v5244 = vadd.f32 %v5128, %v5243
    %5245 = vmatmul.bf16.gmra.mxu0 %v5124
    %v5246 = vpop.f32.mrf.mxu0
    %v5247 = vadd.f32 %v5128, %v5246
    %v5248 = vpop.f32.mrf.mxu0
    %v5249 = vadd.f32 %v5128, %v5248
    %5250 = vmatmul.bf16.gmra.mxu0 %v5125
    %v5251 = vpop.f32.mrf.mxu0
    %v5252 = vadd.f32 %v5128, %v5251
    %v5253 = vpop.f32.mrf.mxu0
    %v5254 = vadd.f32 %v5128, %v5253
    %5255 = vmatmul.bf16.gmra.mxu0 %v5126
    %v5256 = vpop.f32.mrf.mxu0
    %v5257 = vadd.f32 %v5128, %v5256
    %v5258 = vpop.f32.mrf.mxu0
    %v5259 = vadd.f32 %v5128, %v5258
    %5260 = vdwg.mxu0
    %5261 = vmatpush.bf16.msra.mxu0 %v5195
    %5262 = vmatpush.bf16.msra.mxu0 %v5193
    %5263 = vmatpush.bf16.msra.mxu0 %v5191
    %5264 = vmatpush.bf16.msra.mxu0 %v5189
    %5265 = vmatpush.bf16.msra.mxu0 %v5187
    %5266 = vmatpush.bf16.msra.mxu0 %v5185
    %5267 = vmatpush.bf16.msra.mxu0 %v5183
    %5268 = vmatpush.bf16.msra.mxu0 %v5181
    %5269 = vmatmul.bf16.gmra.mxu0 %v5119
    %v5270 = vpop.f32.mrf.mxu0
    %v5271 = vadd.f32 %v5129, %v5270
    %v5272 = vpop.f32.mrf.mxu0
    %v5273 = vadd.f32 %v5129, %v5272
    %5274 = vmatmul.bf16.gmra.mxu0 %v5120
    %v5275 = vpop.f32.mrf.mxu0
    %v5276 = vadd.f32 %v5129, %v5275
    %v5277 = vpop.f32.mrf.mxu0
    %v5278 = vadd.f32 %v5129, %v5277
    %5279 = vmatmul.bf16.gmra.mxu0 %v5121
    %v5280 = vpop.f32.mrf.mxu0
    %v5281 = vadd.f32 %v5129, %v5280
    %v5282 = vpop.f32.mrf.mxu0
    %v5283 = vadd.f32 %v5129, %v5282
    %5284 = vmatmul.bf16.gmra.mxu0 %v5122
    %v5285 = vpop.f32.mrf.mxu0
    %v5286 = vadd.f32 %v5129, %v5285
    %v5287 = vpop.f32.mrf.mxu0
    %v5288 = vadd.f32 %v5129, %v5287
    %5289 = vmatmul.bf16.gmra.mxu0 %v5123
    %v5290 = vpop.f32.mrf.mxu0
    %v5291 = vadd.f32 %v5129, %v5290
    %v5292 = vpop.f32.mrf.mxu0
    %v5293 = vadd.f32 %v5129, %v5292
    %5294 = vmatmul.bf16.gmra.mxu0 %v5124
    %v5295 = vpop.f32.mrf.mxu0
    %v5296 = vadd.f32 %v5129, %v5295
    %v5297 = vpop.f32.mrf.mxu0
    %v5298 = vadd.f32 %v5129, %v5297
    %5299 = vmatmul.bf16.gmra.mxu0 %v5125
    %v5300 = vpop.f32.mrf.mxu0
    %v5301 = vadd.f32 %v5129, %v5300
    %v5302 = vpop.f32.mrf.mxu0
    %v5303 = vadd.f32 %v5129, %v5302
    %5304 = vmatmul.bf16.gmra.mxu0 %v5126
    %v5305 = vpop.f32.mrf.mxu0
    %v5306 = vadd.f32 %v5129, %v5305
    %v5307 = vpop.f32.mrf.mxu0
    %v5308 = vadd.f32 %v5129, %v5307
    %5309 = vdwg.mxu0
    %v5310 = vmul.f32 %v5222, 0.5
    %v5311 = vmul.f32 %v5271, 0.5
    %v5312 = vmul.f32 %v5224, 0.5
    %v5313 = vmul.f32 %v5273, 0.5
    %v5314 = vmul.f32 %v5227, 0.5
    %v5315 = vmul.f32 %v5276, 0.5
    %v5316 = vmul.f32 %v5229, 0.5
    %v5317 = vmul.f32 %v5278, 0.5
    %v5318 = vmul.f32 %v5232, 0.5
    %v5319 = vmul.f32 %v5281, 0.5
    %v5320 = vmul.f32 %v5234, 0.5
    %v5321 = vmul.f32 %v5283, 0.5
    %v5322 = vmul.f32 %v5237, 0.5
    %v5323 = vmul.f32 %v5286, 0.5
    %v5324 = vmul.f32 %v5239, 0.5
    %v5325 = vmul.f32 %v5288, 0.5
    %v5326 = vmul.f32 %v5242, 0.5
    %v5327 = vmul.f32 %v5291, 0.5
    %v5328 = vmul.f32 %v5244, 0.5
    %v5329 = vmul.f32 %v5293, 0.5
    %v5330 = vmul.f32 %v5247, 0.5
    %v5331 = vmul.f32 %v5296, 0.5
    %v5332 = vmul.f32 %v5249, 0.5
    %v5333 = vmul.f32 %v5298, 0.5
    %v5334 = vmul.f32 %v5252, 0.5
    %v5335 = vmul.f32 %v5301, 0.5
    %v5336 = vmul.f32 %v5254, 0.5
    %v5337 = vmul.f32 %v5303, 0.5
    %v5338 = vmul.f32 %v5257, 0.5
    %v5339 = vmul.f32 %v5306, 0.5
    %v5340 = vmul.f32 %v5259, 0.5
    %v5341 = vmul.f32 %v5308, 0.5
    %v5342 = vmul.f32 %v5222, 0.044715
    %v5343 = vmul.f32 %v5271, 0.044715
    %v5344 = vmul.f32 %v5224, 0.044715
    %v5345 = vmul.f32 %v5273, 0.044715
    %v5346 = vmul.f32 %v5227, 0.044715
    %v5347 = vmul.f32 %v5276, 0.044715
    %v5348 = vmul.f32 %v5229, 0.044715
    %v5349 = vmul.f32 %v5278, 0.044715
    %v5350 = vmul.f32 %v5232, 0.044715
    %v5351 = vmul.f32 %v5281, 0.044715
    %v5352 = vmul.f32 %v5234, 0.044715
    %v5353 = vmul.f32 %v5283, 0.044715
    %v5354 = vmul.f32 %v5237, 0.044715
    %v5355 = vmul.f32 %v5286, 0.044715
    %v5356 = vmul.f32 %v5239, 0.044715
    %v5357 = vmul.f32 %v5288, 0.044715
    %v5358 = vmul.f32 %v5242, 0.044715
    %v5359 = vmul.f32 %v5291, 0.044715
    %v5360 = vmul.f32 %v5244, 0.044715
    %v5361 = vmul.f32 %v5293, 0.044715
    %v5362 = vmul.f32 %v5247, 0.044715
    %v5363 = vmul.f32 %v5296, 0.044715
    %v5364 = vmul.f32 %v5249, 0.044715
    %v5365 = vmul.f32 %v5298, 0.044715
    %v5366 = vmul.f32 %v5252, 0.044715
    %v5367 = vmul.f32 %v5301, 0.044715
    %v5368 = vmul.f32 %v5254, 0.044715
    %v5369 = vmul.f32 %v5303, 0.044715
    %v5370 = vmul.f32 %v5257, 0.044715
    %v5371 = vmul.f32 %v5306, 0.044715
    %v5372 = vmul.f32 %v5259, 0.044715
    %v5373 = vmul.f32 %v5308, 0.044715
    %v5374 = vmul.f32 %v5342, %v5222
    %v5375 = vmul.f32 %v5343, %v5271
    %v5376 = vmul.f32 %v5344, %v5224
    %v5377 = vmul.f32 %v5345, %v5273
    %v5378 = vmul.f32 %v5346, %v5227
    %v5379 = vmul.f32 %v5347, %v5276
    %v5380 = vmul.f32 %v5348, %v5229
    %v5381 = vmul.f32 %v5349, %v5278
    %v5382 = vmul.f32 %v5350, %v5232
    %v5383 = vmul.f32 %v5351, %v5281
    %v5384 = vmul.f32 %v5352, %v5234
    %v5385 = vmul.f32 %v5353, %v5283
    %v5386 = vmul.f32 %v5354, %v5237
    %v5387 = vmul.f32 %v5355, %v5286
    %v5388 = vmul.f32 %v5356, %v5239
    %v5389 = vmul.f32 %v5357, %v5288
    %v5390 = vmul.f32 %v5358, %v5242
    %v5391 = vmul.f32 %v5359, %v5291
    %v5392 = vmul.f32 %v5360, %v5244
    %v5393 = vmul.f32 %v5361, %v5293
    %v5394 = vmul.f32 %v5362, %v5247
    %v5395 = vmul.f32 %v5363, %v5296
    %v5396 = vmul.f32 %v5364, %v5249
    %v5397 = vmul.f32 %v5365, %v5298
    %v5398 = vmul.f32 %v5366, %v5252
    %v5399 = vmul.f32 %v5367, %v5301
    %v5400 = vmul.f32 %v5368, %v5254
    %v5401 = vmul.f32 %v5369, %v5303
    %v5402 = vmul.f32 %v5370, %v5257
    %v5403 = vmul.f32 %v5371, %v5306
    %v5404 = vmul.f32 %v5372, %v5259
    %v5405 = vmul.f32 %v5373, %v5308
    %v5406 = vmul.f32 %v5374, %v5222
    %v5407 = vmul.f32 %v5375, %v5271
    %v5408 = vmul.f32 %v5376, %v5224
    %v5409 = vmul.f32 %v5377, %v5273
    %v5410 = vmul.f32 %v5378, %v5227
    %v5411 = vmul.f32 %v5379, %v5276
    %v5412 = vmul.f32 %v5380, %v5229
    %v5413 = vmul.f32 %v5381, %v5278
    %v5414 = vmul.f32 %v5382, %v5232
    %v5415 = vmul.f32 %v5383, %v5281
    %v5416 = vmul.f32 %v5384, %v5234
    %v5417 = vmul.f32 %v5385, %v5283
    %v5418 = vmul.f32 %v5386, %v5237
    %v5419 = vmul.f32 %v5387, %v5286
    %v5420 = vmul.f32 %v5388, %v5239
    %v5421 = vmul.f32 %v5389, %v5288
    %v5422 = vmul.f32 %v5390, %v5242
    %v5423 = vmul.f32 %v5391, %v5291
    %v5424 = vmul.f32 %v5392, %v5244
    %v5425 = vmul.f32 %v5393, %v5293
    %v5426 = vmul.f32 %v5394, %v5247
    %v5427 = vmul.f32 %v5395, %v5296
    %v5428 = vmul.f32 %v5396, %v5249
    %v5429 = vmul.f32 %v5397, %v5298
    %v5430 = vmul.f32 %v5398, %v5252
    %v5431 = vmul.f32 %v5399, %v5301
    %v5432 = vmul.f32 %v5400, %v5254
    %v5433 = vmul.f32 %v5401, %v5303
    %v5434 = vmul.f32 %v5402, %v5257
    %v5435 = vmul.f32 %v5403, %v5306
    %v5436 = vmul.f32 %v5404, %v5259
    %v5437 = vmul.f32 %v5405, %v5308
    %v5438 = vadd.f32 %v5222, %v5406
    %v5439 = vadd.f32 %v5271, %v5407
    %v5440 = vadd.f32 %v5224, %v5408
    %v5441 = vadd.f32 %v5273, %v5409
    %v5442 = vadd.f32 %v5227, %v5410
    %v5443 = vadd.f32 %v5276, %v5411
    %v5444 = vadd.f32 %v5229, %v5412
    %v5445 = vadd.f32 %v5278, %v5413
    %v5446 = vadd.f32 %v5232, %v5414
    %v5447 = vadd.f32 %v5281, %v5415
    %v5448 = vadd.f32 %v5234, %v5416
    %v5449 = vadd.f32 %v5283, %v5417
    %v5450 = vadd.f32 %v5237, %v5418
    %v5451 = vadd.f32 %v5286, %v5419
    %v5452 = vadd.f32 %v5239, %v5420
    %v5453 = vadd.f32 %v5288, %v5421
    %v5454 = vadd.f32 %v5242, %v5422
    %v5455 = vadd.f32 %v5291, %v5423
    %v5456 = vadd.f32 %v5244, %v5424
    %v5457 = vadd.f32 %v5293, %v5425
    %v5458 = vadd.f32 %v5247, %v5426
    %v5459 = vadd.f32 %v5296, %v5427
    %v5460 = vadd.f32 %v5249, %v5428
    %v5461 = vadd.f32 %v5298, %v5429
    %v5462 = vadd.f32 %v5252, %v5430
    %v5463 = vadd.f32 %v5301, %v5431
    %v5464 = vadd.f32 %v5254, %v5432
    %v5465 = vadd.f32 %v5303, %v5433
    %v5466 = vadd.f32 %v5257, %v5434
    %v5467 = vadd.f32 %v5306, %v5435
    %v5468 = vadd.f32 %v5259, %v5436
    %v5469 = vadd.f32 %v5308, %v5437
    %v5470 = vmul.f32 %v5438, 0.7978846
    %v5471 = vmul.f32 %v5439, 0.7978846
    %v5472 = vmul.f32 %v5440, 0.7978846
    %v5473 = vmul.f32 %v5441, 0.7978846
    %v5474 = vmul.f32 %v5442, 0.7978846
    %v5475 = vmul.f32 %v5443, 0.7978846
    %v5476 = vmul.f32 %v5444, 0.7978846
    %v5477 = vmul.f32 %v5445, 0.7978846
    %v5478 = vmul.f32 %v5446, 0.7978846
    %v5479 = vmul.f32 %v5447, 0.7978846
    %v5480 = vmul.f32 %v5448, 0.7978846
    %v5481 = vmul.f32 %v5449, 0.7978846
    %v5482 = vmul.f32 %v5450, 0.7978846
    %v5483 = vmul.f32 %v5451, 0.7978846
    %v5484 = vmul.f32 %v5452, 0.7978846
    %v5485 = vmul.f32 %v5453, 0.7978846
    %v5486 = vmul.f32 %v5454, 0.7978846
    %v5487 = vmul.f32 %v5455, 0.7978846
    %v5488 = vmul.f32 %v5456, 0.7978846
    %v5489 = vmul.f32 %v5457, 0.7978846
    %v5490 = vmul.f32 %v5458, 0.7978846
    %v5491 = vmul.f32 %v5459, 0.7978846
    %v5492 = vmul.f32 %v5460, 0.7978846
    %v5493 = vmul.f32 %v5461, 0.7978846
    %v5494 = vmul.f32 %v5462, 0.7978846
    %v5495 = vmul.f32 %v5463, 0.7978846
    %v5496 = vmul.f32 %v5464, 0.7978846
    %v5497 = vmul.f32 %v5465, 0.7978846
    %v5498 = vmul.f32 %v5466, 0.7978846
    %v5499 = vmul.f32 %v5467, 0.7978846
    %v5500 = vmul.f32 %v5468, 0.7978846
    %v5501 = vmul.f32 %v5469, 0.7978846
    %v5502 = vtanh.pop %v5470
    %v5503 = vtanh.pop %v5471
    %v5504 = vtanh.pop %v5472
    %v5505 = vtanh.pop %v5473
    %v5506 = vtanh.pop %v5474
    %v5507 = vtanh.pop %v5475
    %v5508 = vtanh.pop %v5476
    %v5509 = vtanh.pop %v5477
    %v5510 = vtanh.pop %v5478
    %v5511 = vtanh.pop %v5479
    %v5512 = vtanh.pop %v5480
    %v5513 = vtanh.pop %v5481
    %v5514 = vtanh.pop %v5482
    %v5515 = vtanh.pop %v5483
    %v5516 = vtanh.pop %v5484
    %v5517 = vtanh.pop %v5485
    %v5518 = vtanh.pop %v5486
    %v5519 = vtanh.pop %v5487
    %v5520 = vtanh.pop %v5488
    %v5521 = vtanh.pop %v5489
    %v5522 = vtanh.pop %v5490
    %v5523 = vtanh.pop %v5491
    %v5524 = vtanh.pop %v5492
    %v5525 = vtanh.pop %v5493
    %v5526 = vtanh.pop %v5494
    %v5527 = vtanh.pop %v5495
    %v5528 = vtanh.pop %v5496
    %v5529 = vtanh.pop %v5497
    %v5530 = vtanh.pop %v5498
    %v5531 = vtanh.pop %v5499
    %v5532 = vtanh.pop %v5500
    %v5533 = vtanh.pop %v5501
    %v5534 = vadd.f32 %v5502, 1.0
    %v5535 = vadd.f32 %v5503, 1.0
    %v5536 = vadd.f32 %v5504, 1.0
    %v5537 = vadd.f32 %v5505, 1.0
    %v5538 = vadd.f32 %v5506, 1.0
    %v5539 = vadd.f32 %v5507, 1.0
    %v5540 = vadd.f32 %v5508, 1.0
    %v5541 = vadd.f32 %v5509, 1.0
    %v5542 = vadd.f32 %v5510, 1.0
    %v5543 = vadd.f32 %v5511, 1.0
    %v5544 = vadd.f32 %v5512, 1.0
    %v5545 = vadd.f32 %v5513, 1.0
    %v5546 = vadd.f32 %v5514, 1.0
    %v5547 = vadd.f32 %v5515, 1.0
    %v5548 = vadd.f32 %v5516, 1.0
    %v5549 = vadd.f32 %v5517, 1.0
    %v5550 = vadd.f32 %v5518, 1.0
    %v5551 = vadd.f32 %v5519, 1.0
    %v5552 = vadd.f32 %v5520, 1.0
    %v5553 = vadd.f32 %v5521, 1.0
    %v5554 = vadd.f32 %v5522, 1.0
    %v5555 = vadd.f32 %v5523, 1.0
    %v5556 = vadd.f32 %v5524, 1.0
    %v5557 = vadd.f32 %v5525, 1.0
    %v5558 = vadd.f32 %v5526, 1.0
    %v5559 = vadd.f32 %v5527, 1.0
    %v5560 = vadd.f32 %v5528, 1.0
    %v5561 = vadd.f32 %v5529, 1.0
    %v5562 = vadd.f32 %v5530, 1.0
    %v5563 = vadd.f32 %v5531, 1.0
    %v5564 = vadd.f32 %v5532, 1.0
    %v5565 = vadd.f32 %v5533, 1.0
    %v5566 = vmul.f32 %v5310, %v5534
    %v5567 = vmul.f32 %v5311, %v5535
    %v5568 = vmul.f32 %v5312, %v5536
    %v5569 = vmul.f32 %v5313, %v5537
    %v5570 = vmul.f32 %v5314, %v5538
    %v5571 = vmul.f32 %v5315, %v5539
    %v5572 = vmul.f32 %v5316, %v5540
    %v5573 = vmul.f32 %v5317, %v5541
    %v5574 = vmul.f32 %v5318, %v5542
    %v5575 = vmul.f32 %v5319, %v5543
    %v5576 = vmul.f32 %v5320, %v5544
    %v5577 = vmul.f32 %v5321, %v5545
    %v5578 = vmul.f32 %v5322, %v5546
    %v5579 = vmul.f32 %v5323, %v5547
    %v5580 = vmul.f32 %v5324, %v5548
    %v5581 = vmul.f32 %v5325, %v5549
    %v5582 = vmul.f32 %v5326, %v5550
    %v5583 = vmul.f32 %v5327, %v5551
    %v5584 = vmul.f32 %v5328, %v5552
    %v5585 = vmul.f32 %v5329, %v5553
    %v5586 = vmul.f32 %v5330, %v5554
    %v5587 = vmul.f32 %v5331, %v5555
    %v5588 = vmul.f32 %v5332, %v5556
    %v5589 = vmul.f32 %v5333, %v5557
    %v5590 = vmul.f32 %v5334, %v5558
    %v5591 = vmul.f32 %v5335, %v5559
    %v5592 = vmul.f32 %v5336, %v5560
    %v5593 = vmul.f32 %v5337, %v5561
    %v5594 = vmul.f32 %v5338, %v5562
    %v5595 = vmul.f32 %v5339, %v5563
    %v5596 = vmul.f32 %v5340, %v5564
    %v5597 = vmul.f32 %v5341, %v5565
    %v5598 = vpack.c.bf16 %v5568, %v5566
    %v5599 = vpack.c.bf16 %v5569, %v5567
    %v5600 = vpack.c.bf16 %v5572, %v5570
    %v5601 = vpack.c.bf16 %v5573, %v5571
    %v5602 = vpack.c.bf16 %v5576, %v5574
    %v5603 = vpack.c.bf16 %v5577, %v5575
    %v5604 = vpack.c.bf16 %v5580, %v5578
    %v5605 = vpack.c.bf16 %v5581, %v5579
    %v5606 = vpack.c.bf16 %v5584, %v5582
    %v5607 = vpack.c.bf16 %v5585, %v5583
    %v5608 = vpack.c.bf16 %v5588, %v5586
    %v5609 = vpack.c.bf16 %v5589, %v5587
    %v5610 = vpack.c.bf16 %v5592, %v5590
    %v5611 = vpack.c.bf16 %v5593, %v5591
    %v5612 = vpack.c.bf16 %v5596, %v5594
    %v5613 = vpack.c.bf16 %v5597, %v5595
    %v5646 = vunpack.c.l.b16 %v2461
    %v5647 = vunpack.c.l.b16 %v2462
    %v5648 = vunpack.c.l.b16 %v2463
    %v5649 = vunpack.c.l.b16 %v2464
    %v5650 = vunpack.c.l.b16 %v2465
    %v5651 = vunpack.c.l.b16 %v2466
    %v5652 = vunpack.c.l.b16 %v2467
    %v5653 = vunpack.c.l.b16 %v2468
    %v5654 = vunpack.c.l.b16 %v2469
    %v5655 = vunpack.c.l.b16 %v2470
    %v5656 = vunpack.c.l.b16 %v2471
    %v5657 = vunpack.c.l.b16 %v2472
    %v5658 = vunpack.c.l.b16 %v2473
    %v5659 = vunpack.c.l.b16 %v2474
    %v5660 = vunpack.c.l.b16 %v2475
    %v5661 = vunpack.c.l.b16 %v2476
    %v5662 = vunpack.c.l.b16 %v2477
    %v5663 = vunpack.c.l.b16 %v2478
    %v5664 = vunpack.c.l.b16 %v2479
    %v5665 = vunpack.c.l.b16 %v2480
    %v5666 = vunpack.c.l.b16 %v2481
    %v5667 = vunpack.c.l.b16 %v2482
    %v5668 = vunpack.c.l.b16 %v2483
    %v5669 = vunpack.c.l.b16 %v2484
    %v5670 = vunpack.c.l.b16 %v2485
    %v5671 = vunpack.c.l.b16 %v2486
    %v5672 = vunpack.c.l.b16 %v2487
    %v5673 = vunpack.c.l.b16 %v2488
    %v5674 = vunpack.c.l.b16 %v2489
    %v5675 = vunpack.c.l.b16 %v2490
    %v5676 = vunpack.c.l.b16 %v2491
    %v5677 = vunpack.c.l.b16 %v2492
    %v5678 = vpack.c.b16 %v5647, %v5646
    %v5679 = vpack.c.b16 %v5649, %v5648
    %v5680 = vpack.c.b16 %v5651, %v5650
    %v5681 = vpack.c.b16 %v5653, %v5652
    %v5682 = vpack.c.b16 %v5655, %v5654
    %v5683 = vpack.c.b16 %v5657, %v5656
    %v5684 = vpack.c.b16 %v5659, %v5658
    %v5685 = vpack.c.b16 %v5661, %v5660
    %v5686 = vpack.c.b16 %v5663, %v5662
    %v5687 = vpack.c.b16 %v5665, %v5664
    %v5688 = vpack.c.b16 %v5667, %v5666
    %v5689 = vpack.c.b16 %v5669, %v5668
    %v5690 = vpack.c.b16 %v5671, %v5670
    %v5691 = vpack.c.b16 %v5673, %v5672
    %v5692 = vpack.c.b16 %v5675, %v5674
    %v5693 = vpack.c.b16 %v5677, %v5676
    %5710 = vmatpush.bf16.msra.mxu0 %v5685
    %5711 = vmatpush.bf16.msra.mxu0 %v5684
    %5712 = vmatpush.bf16.msra.mxu0 %v5683
    %5713 = vmatpush.bf16.msra.mxu0 %v5682
    %5714 = vmatpush.bf16.msra.mxu0 %v5681
    %5715 = vmatpush.bf16.msra.mxu0 %v5680
    %5716 = vmatpush.bf16.msra.mxu0 %v5679
    %5717 = vmatpush.bf16.msra.mxu0 %v5678
    %5718 = vmatmul.bf16.gmra.mxu0 %v5598
    %v5719 = vpop.f32.mrf.mxu0
    %v5720 = vadd.f32 0.0, %v5719
    %v5721 = vpop.f32.mrf.mxu0
    %v5722 = vadd.f32 0.0, %v5721
    %5723 = vmatmul.bf16.gmra.mxu0 %v5600
    %v5724 = vpop.f32.mrf.mxu0
    %v5725 = vadd.f32 0.0, %v5724
    %v5726 = vpop.f32.mrf.mxu0
    %v5727 = vadd.f32 0.0, %v5726
    %5728 = vmatmul.bf16.gmra.mxu0 %v5602
    %v5729 = vpop.f32.mrf.mxu0
    %v5730 = vadd.f32 0.0, %v5729
    %v5731 = vpop.f32.mrf.mxu0
    %v5732 = vadd.f32 0.0, %v5731
    %5733 = vmatmul.bf16.gmra.mxu0 %v5604
    %v5734 = vpop.f32.mrf.mxu0
    %v5735 = vadd.f32 0.0, %v5734
    %v5736 = vpop.f32.mrf.mxu0
    %v5737 = vadd.f32 0.0, %v5736
    %5738 = vmatmul.bf16.gmra.mxu0 %v5606
    %v5739 = vpop.f32.mrf.mxu0
    %v5740 = vadd.f32 0.0, %v5739
    %v5741 = vpop.f32.mrf.mxu0
    %v5742 = vadd.f32 0.0, %v5741
    %5743 = vmatmul.bf16.gmra.mxu0 %v5608
    %v5744 = vpop.f32.mrf.mxu0
    %v5745 = vadd.f32 0.0, %v5744
    %v5746 = vpop.f32.mrf.mxu0
    %v5747 = vadd.f32 0.0, %v5746
    %5748 = vmatmul.bf16.gmra.mxu0 %v5610
    %v5749 = vpop.f32.mrf.mxu0
    %v5750 = vadd.f32 0.0, %v5749
    %v5751 = vpop.f32.mrf.mxu0
    %v5752 = vadd.f32 0.0, %v5751
    %5753 = vmatmul.bf16.gmra.mxu0 %v5612
    %v5754 = vpop.f32.mrf.mxu0
    %v5755 = vadd.f32 0.0, %v5754
    %v5756 = vpop.f32.mrf.mxu0
    %v5757 = vadd.f32 0.0, %v5756
    %5758 = vdwg.mxu0
    %5759 = vmatpush.bf16.msra.mxu0 %v5693
    %5760 = vmatpush.bf16.msra.mxu0 %v5692
    %5761 = vmatpush.bf16.msra.mxu0 %v5691
    %5762 = vmatpush.bf16.msra.mxu0 %v5690
    %5763 = vmatpush.bf16.msra.mxu0 %v5689
    %5764 = vmatpush.bf16.msra.mxu0 %v5688
    %5765 = vmatpush.bf16.msra.mxu0 %v5687
    %5766 = vmatpush.bf16.msra.mxu0 %v5686
    %5767 = vmatmul.bf16.gmra.mxu0 %v5599
    %v5768 = vpop.f32.mrf.mxu0
    %v5769 = vadd.f32 %v5720, %v5768
    %v5770 = vpop.f32.mrf.mxu0
    %v5771 = vadd.f32 %v5722, %v5770
    %5772 = vmatmul.bf16.gmra.mxu0 %v5601
    %v5773 = vpop.f32.mrf.mxu0
    %v5774 = vadd.f32 %v5725, %v5773
    %v5775 = vpop.f32.mrf.mxu0
    %v5776 = vadd.f32 %v5727, %v5775
    %5777 = vmatmul.bf16.gmra.mxu0 %v5603
    %v5778 = vpop.f32.mrf.mxu0
    %v5779 = vadd.f32 %v5730, %v5778
    %v5780 = vpop.f32.mrf.mxu0
    %v5781 = vadd.f32 %v5732, %v5780
    %5782 = vmatmul.bf16.gmra.mxu0 %v5605
    %v5783 = vpop.f32.mrf.mxu0
    %v5784 = vadd.f32 %v5735, %v5783
    %v5785 = vpop.f32.mrf.mxu0
    %v5786 = vadd.f32 %v5737, %v5785
    %5787 = vmatmul.bf16.gmra.mxu0 %v5607
    %v5788 = vpop.f32.mrf.mxu0
    %v5789 = vadd.f32 %v5740, %v5788
    %v5790 = vpop.f32.mrf.mxu0
    %v5791 = vadd.f32 %v5742, %v5790
    %5792 = vmatmul.bf16.gmra.mxu0 %v5609
    %v5793 = vpop.f32.mrf.mxu0
    %v5794 = vadd.f32 %v5745, %v5793
    %v5795 = vpop.f32.mrf.mxu0
    %v5796 = vadd.f32 %v5747, %v5795
    %5797 = vmatmul.bf16.gmra.mxu0 %v5611
    %v5798 = vpop.f32.mrf.mxu0
    %v5799 = vadd.f32 %v5750, %v5798
    %v5800 = vpop.f32.mrf.mxu0
    %v5801 = vadd.f32 %v5752, %v5800
    %5802 = vmatmul.bf16.gmra.mxu0 %v5613
    %v5803 = vpop.f32.mrf.mxu0
    %v5804 = vadd.f32 %v5755, %v5803
    %v5805 = vpop.f32.mrf.mxu0
    %v5806 = vadd.f32 %v5757, %v5805
    %5807 = vdwg.mxu0
    %v5808 = vadd.f32 %v5103, %v5769
    %v5809 = vadd.f32 %v5104, %v5771
    %v5810 = vadd.f32 %v5105, %v5774
    %v5811 = vadd.f32 %v5106, %v5776
    %v5812 = vadd.f32 %v5107, %v5779
    %v5813 = vadd.f32 %v5108, %v5781
    %v5814 = vadd.f32 %v5109, %v5784
    %v5815 = vadd.f32 %v5110, %v5786
    %v5816 = vadd.f32 %v5111, %v5789
    %v5817 = vadd.f32 %v5112, %v5791
    %v5818 = vadd.f32 %v5113, %v5794
    %v5819 = vadd.f32 %v5114, %v5796
    %v5820 = vadd.f32 %v5115, %v5799
    %v5821 = vadd.f32 %v5116, %v5801
    %v5822 = vadd.f32 %v5117, %v5804
    %v5823 = vadd.f32 %v5118, %v5806
    %v5825 = vperm.slane %v2493, 0
    %v5827 = vadd.f32 %v5808, %v5825
    %v5828 = vadd.f32 %v5809, %v5825
    %v5829 = vadd.f32 %v5810, %v5825
    %v5830 = vadd.f32 %v5811, %v5825
    %v5831 = vadd.f32 %v5812, %v5825
    %v5832 = vadd.f32 %v5813, %v5825
    %v5833 = vadd.f32 %v5814, %v5825
    %v5834 = vadd.f32 %v5815, %v5825
    %v5835 = vadd.f32 %v5816, %v5825
    %v5836 = vadd.f32 %v5817, %v5825
    %v5837 = vadd.f32 %v5818, %v5825
    %v5838 = vadd.f32 %v5819, %v5825
    %v5839 = vadd.f32 %v5820, %v5825
    %v5840 = vadd.f32 %v5821, %v5825
    %v5841 = vadd.f32 %v5822, %v5825
    %v5842 = vadd.f32 %v5823, %v5825
    %5843 = vadd.xlane.f32.xlu0 %v5827
    %v5844 = vpop.xlane.xlu0 %5843
    %5845 = vadd.xlane.f32.xlu0 %v5828
    %v5846 = vpop.xlane.xlu0 %5845
    %5847 = vadd.xlane.f32.xlu0 %v5829
    %v5848 = vpop.xlane.xlu0 %5847
    %5849 = vadd.xlane.f32.xlu0 %v5830
    %v5850 = vpop.xlane.xlu0 %5849
    %5851 = vadd.xlane.f32.xlu0 %v5831
    %v5852 = vpop.xlane.xlu0 %5851
    %5853 = vadd.xlane.f32.xlu0 %v5832
    %v5854 = vpop.xlane.xlu0 %5853
    %5855 = vadd.xlane.f32.xlu0 %v5833
    %v5856 = vpop.xlane.xlu0 %5855
    %5857 = vadd.xlane.f32.xlu0 %v5834
    %v5858 = vpop.xlane.xlu0 %5857
    %5859 = vadd.xlane.f32.xlu0 %v5835
    %v5860 = vpop.xlane.xlu0 %5859
    %5861 = vadd.xlane.f32.xlu0 %v5836
    %v5862 = vpop.xlane.xlu0 %5861
    %5863 = vadd.xlane.f32.xlu0 %v5837
    %v5864 = vpop.xlane.xlu0 %5863
    %5865 = vadd.xlane.f32.xlu0 %v5838
    %v5866 = vpop.xlane.xlu0 %5865
    %5867 = vadd.xlane.f32.xlu0 %v5839
    %v5868 = vpop.xlane.xlu0 %5867
    %5869 = vadd.xlane.f32.xlu0 %v5840
    %v5870 = vpop.xlane.xlu0 %5869
    %5871 = vadd.xlane.f32.xlu0 %v5841
    %v5872 = vpop.xlane.xlu0 %5871
    %5873 = vadd.xlane.f32.xlu0 %v5842
    %v5874 = vpop.xlane.xlu0 %5873
    %v5875 = vmul.f32 %v5844, %v304
    %v5876 = vmul.f32 %v5846, %v304
    %v5877 = vmul.f32 %v5848, %v304
    %v5878 = vmul.f32 %v5850, %v304
    %v5879 = vmul.f32 %v5852, %v304
    %v5880 = vmul.f32 %v5854, %v304
    %v5881 = vmul.f32 %v5856, %v304
    %v5882 = vmul.f32 %v5858, %v304
    %v5883 = vmul.f32 %v5860, %v304
    %v5884 = vmul.f32 %v5862, %v304
    %v5885 = vmul.f32 %v5864, %v304
    %v5886 = vmul.f32 %v5866, %v304
    %v5887 = vmul.f32 %v5868, %v304
    %v5888 = vmul.f32 %v5870, %v304
    %v5889 = vmul.f32 %v5872, %v304
    %v5890 = vmul.f32 %v5874, %v304
    %v5891 = vsub.f32 %v5827, %v5875
    %v5892 = vsub.f32 %v5828, %v5876
    %v5893 = vsub.f32 %v5829, %v5877
    %v5894 = vsub.f32 %v5830, %v5878
    %v5895 = vsub.f32 %v5831, %v5879
    %v5896 = vsub.f32 %v5832, %v5880
    %v5897 = vsub.f32 %v5833, %v5881
    %v5898 = vsub.f32 %v5834, %v5882
    %v5899 = vsub.f32 %v5835, %v5883
    %v5900 = vsub.f32 %v5836, %v5884
    %v5901 = vsub.f32 %v5837, %v5885
    %v5902 = vsub.f32 %v5838, %v5886
    %v5903 = vsub.f32 %v5839, %v5887
    %v5904 = vsub.f32 %v5840, %v5888
    %v5905 = vsub.f32 %v5841, %v5889
    %v5906 = vsub.f32 %v5842, %v5890
    %v5907 = vmul.f32 %v5891, %v5891
    %v5908 = vmul.f32 %v5892, %v5892
    %v5909 = vmul.f32 %v5893, %v5893
    %v5910 = vmul.f32 %v5894, %v5894
    %v5911 = vmul.f32 %v5895, %v5895
    %v5912 = vmul.f32 %v5896, %v5896
    %v5913 = vmul.f32 %v5897, %v5897
    %v5914 = vmul.f32 %v5898, %v5898
    %v5915 = vmul.f32 %v5899, %v5899
    %v5916 = vmul.f32 %v5900, %v5900
    %v5917 = vmul.f32 %v5901, %v5901
    %v5918 = vmul.f32 %v5902, %v5902
    %v5919 = vmul.f32 %v5903, %v5903
    %v5920 = vmul.f32 %v5904, %v5904
    %v5921 = vmul.f32 %v5905, %v5905
    %v5922 = vmul.f32 %v5906, %v5906
    %5923 = vadd.xlane.f32.xlu0 %v5907
    %v5924 = vpop.xlane.xlu0 %5923
    %5925 = vadd.xlane.f32.xlu0 %v5908
    %v5926 = vpop.xlane.xlu0 %5925
    %5927 = vadd.xlane.f32.xlu0 %v5909
    %v5928 = vpop.xlane.xlu0 %5927
    %5929 = vadd.xlane.f32.xlu0 %v5910
    %v5930 = vpop.xlane.xlu0 %5929
    %5931 = vadd.xlane.f32.xlu0 %v5911
    %v5932 = vpop.xlane.xlu0 %5931
    %5933 = vadd.xlane.f32.xlu0 %v5912
    %v5934 = vpop.xlane.xlu0 %5933
    %5935 = vadd.xlane.f32.xlu0 %v5913
    %v5936 = vpop.xlane.xlu0 %5935
    %5937 = vadd.xlane.f32.xlu0 %v5914
    %v5938 = vpop.xlane.xlu0 %5937
    %5939 = vadd.xlane.f32.xlu0 %v5915
    %v5940 = vpop.xlane.xlu0 %5939
    %5941 = vadd.xlane.f32.xlu0 %v5916
    %v5942 = vpop.xlane.xlu0 %5941
    %5943 = vadd.xlane.f32.xlu0 %v5917
    %v5944 = vpop.xlane.xlu0 %5943
    %5945 = vadd.xlane.f32.xlu0 %v5918
    %v5946 = vpop.xlane.xlu0 %5945
    %5947 = vadd.xlane.f32.xlu0 %v5919
    %v5948 = vpop.xlane.xlu0 %5947
    %5949 = vadd.xlane.f32.xlu0 %v5920
    %v5950 = vpop.xlane.xlu0 %5949
    %5951 = vadd.xlane.f32.xlu0 %v5921
    %v5952 = vpop.xlane.xlu0 %5951
    %5953 = vadd.xlane.f32.xlu0 %v5922
    %v5954 = vpop.xlane.xlu0 %5953
    %v5955 = vmul.f32 %v5924, %v304
    %v5956 = vmul.f32 %v5926, %v304
    %v5957 = vmul.f32 %v5928, %v304
    %v5958 = vmul.f32 %v5930, %v304
    %v5959 = vmul.f32 %v5932, %v304
    %v5960 = vmul.f32 %v5934, %v304
    %v5961 = vmul.f32 %v5936, %v304
    %v5962 = vmul.f32 %v5938, %v304
    %v5963 = vmul.f32 %v5940, %v304
    %v5964 = vmul.f32 %v5942, %v304
    %v5965 = vmul.f32 %v5944, %v304
    %v5966 = vmul.f32 %v5946, %v304
    %v5967 = vmul.f32 %v5948, %v304
    %v5968 = vmul.f32 %v5950, %v304
    %v5969 = vmul.f32 %v5952, %v304
    %v5970 = vmul.f32 %v5954, %v304
    %v5971 = vadd.f32 %v5955, 1e-12
    %v5972 = vadd.f32 %v5956, 1e-12
    %v5973 = vadd.f32 %v5957, 1e-12
    %v5974 = vadd.f32 %v5958, 1e-12
    %v5975 = vadd.f32 %v5959, 1e-12
    %v5976 = vadd.f32 %v5960, 1e-12
    %v5977 = vadd.f32 %v5961, 1e-12
    %v5978 = vadd.f32 %v5962, 1e-12
    %v5979 = vadd.f32 %v5963, 1e-12
    %v5980 = vadd.f32 %v5964, 1e-12
    %v5981 = vadd.f32 %v5965, 1e-12
    %v5982 = vadd.f32 %v5966, 1e-12
    %v5983 = vadd.f32 %v5967, 1e-12
    %v5984 = vadd.f32 %v5968, 1e-12
    %v5985 = vadd.f32 %v5969, 1e-12
    %v5986 = vadd.f32 %v5970, 1e-12
    %v5987 = vrsqrt.pop %v5971
    %v5988 = vmul.f32 %v5987, %v5971
    %v5989 = vmul.f32 %v5988, %v5987
    %v5990 = vmul.f32 0.5, %v5989
    %v5991 = vsub.f32 1.5, %v5990
    %v5992 = vmul.f32 %v5987, %v5991
    %vm5993 = vweird.f32 %v5971
    %vm5994 = vweird.f32 %v5987
    %vm5995 = vmor %vm5993, %vm5994
    %v5996 = vsel %vm5995, %v5987, %v5992
    %v5997 = vrsqrt.pop %v5972
    %v5998 = vmul.f32 %v5997, %v5972
    %v5999 = vmul.f32 %v5998, %v5997
    %v6000 = vmul.f32 0.5, %v5999
    %v6001 = vsub.f32 1.5, %v6000
    %v6002 = vmul.f32 %v5997, %v6001
    %vm6003 = vweird.f32 %v5972
    %vm6004 = vweird.f32 %v5997
    %vm6005 = vmor %vm6003, %vm6004
    %v6006 = vsel %vm6005, %v5997, %v6002
    %v6007 = vrsqrt.pop %v5973
    %v6008 = vmul.f32 %v6007, %v5973
    %v6009 = vmul.f32 %v6008, %v6007
    %v6010 = vmul.f32 0.5, %v6009
    %v6011 = vsub.f32 1.5, %v6010
    %v6012 = vmul.f32 %v6007, %v6011
    %vm6013 = vweird.f32 %v5973
    %vm6014 = vweird.f32 %v6007
    %vm6015 = vmor %vm6013, %vm6014
    %v6016 = vsel %vm6015, %v6007, %v6012
    %v6017 = vrsqrt.pop %v5974
    %v6018 = vmul.f32 %v6017, %v5974
    %v6019 = vmul.f32 %v6018, %v6017
    %v6020 = vmul.f32 0.5, %v6019
    %v6021 = vsub.f32 1.5, %v6020
    %v6022 = vmul.f32 %v6017, %v6021
    %vm6023 = vweird.f32 %v5974
    %vm6024 = vweird.f32 %v6017
    %vm6025 = vmor %vm6023, %vm6024
    %v6026 = vsel %vm6025, %v6017, %v6022
    %v6027 = vrsqrt.pop %v5975
    %v6028 = vmul.f32 %v6027, %v5975
    %v6029 = vmul.f32 %v6028, %v6027
    %v6030 = vmul.f32 0.5, %v6029
    %v6031 = vsub.f32 1.5, %v6030
    %v6032 = vmul.f32 %v6027, %v6031
    %vm6033 = vweird.f32 %v5975
    %vm6034 = vweird.f32 %v6027
    %vm6035 = vmor %vm6033, %vm6034
    %v6036 = vsel %vm6035, %v6027, %v6032
    %v6037 = vrsqrt.pop %v5976
    %v6038 = vmul.f32 %v6037, %v5976
    %v6039 = vmul.f32 %v6038, %v6037
    %v6040 = vmul.f32 0.5, %v6039
    %v6041 = vsub.f32 1.5, %v6040
    %v6042 = vmul.f32 %v6037, %v6041
    %vm6043 = vweird.f32 %v5976
    %vm6044 = vweird.f32 %v6037
    %vm6045 = vmor %vm6043, %vm6044
    %v6046 = vsel %vm6045, %v6037, %v6042
    %v6047 = vrsqrt.pop %v5977
    %v6048 = vmul.f32 %v6047, %v5977
    %v6049 = vmul.f32 %v6048, %v6047
    %v6050 = vmul.f32 0.5, %v6049
    %v6051 = vsub.f32 1.5, %v6050
    %v6052 = vmul.f32 %v6047, %v6051
    %vm6053 = vweird.f32 %v5977
    %vm6054 = vweird.f32 %v6047
    %vm6055 = vmor %vm6053, %vm6054
    %v6056 = vsel %vm6055, %v6047, %v6052
    %v6057 = vrsqrt.pop %v5978
    %v6058 = vmul.f32 %v6057, %v5978
    %v6059 = vmul.f32 %v6058, %v6057
    %v6060 = vmul.f32 0.5, %v6059
    %v6061 = vsub.f32 1.5, %v6060
    %v6062 = vmul.f32 %v6057, %v6061
    %vm6063 = vweird.f32 %v5978
    %vm6064 = vweird.f32 %v6057
    %vm6065 = vmor %vm6063, %vm6064
    %v6066 = vsel %vm6065, %v6057, %v6062
    %v6067 = vrsqrt.pop %v5979
    %v6068 = vmul.f32 %v6067, %v5979
    %v6069 = vmul.f32 %v6068, %v6067
    %v6070 = vmul.f32 0.5, %v6069
    %v6071 = vsub.f32 1.5, %v6070
    %v6072 = vmul.f32 %v6067, %v6071
    %vm6073 = vweird.f32 %v5979
    %vm6074 = vweird.f32 %v6067
    %vm6075 = vmor %vm6073, %vm6074
    %v6076 = vsel %vm6075, %v6067, %v6072
    %v6077 = vrsqrt.pop %v5980
    %v6078 = vmul.f32 %v6077, %v5980
    %v6079 = vmul.f32 %v6078, %v6077
    %v6080 = vmul.f32 0.5, %v6079
    %v6081 = vsub.f32 1.5, %v6080
    %v6082 = vmul.f32 %v6077, %v6081
    %vm6083 = vweird.f32 %v5980
    %vm6084 = vweird.f32 %v6077
    %vm6085 = vmor %vm6083, %vm6084
    %v6086 = vsel %vm6085, %v6077, %v6082
    %v6087 = vrsqrt.pop %v5981
    %v6088 = vmul.f32 %v6087, %v5981
    %v6089 = vmul.f32 %v6088, %v6087
    %v6090 = vmul.f32 0.5, %v6089
    %v6091 = vsub.f32 1.5, %v6090
    %v6092 = vmul.f32 %v6087, %v6091
    %vm6093 = vweird.f32 %v5981
    %vm6094 = vweird.f32 %v6087
    %vm6095 = vmor %vm6093, %vm6094
    %v6096 = vsel %vm6095, %v6087, %v6092
    %v6097 = vrsqrt.pop %v5982
    %v6098 = vmul.f32 %v6097, %v5982
    %v6099 = vmul.f32 %v6098, %v6097
    %v6100 = vmul.f32 0.5, %v6099
    %v6101 = vsub.f32 1.5, %v6100
    %v6102 = vmul.f32 %v6097, %v6101
    %vm6103 = vweird.f32 %v5982
    %vm6104 = vweird.f32 %v6097
    %vm6105 = vmor %vm6103, %vm6104
    %v6106 = vsel %vm6105, %v6097, %v6102
    %v6107 = vrsqrt.pop %v5983
    %v6108 = vmul.f32 %v6107, %v5983
    %v6109 = vmul.f32 %v6108, %v6107
    %v6110 = vmul.f32 0.5, %v6109
    %v6111 = vsub.f32 1.5, %v6110
    %v6112 = vmul.f32 %v6107, %v6111
    %vm6113 = vweird.f32 %v5983
    %vm6114 = vweird.f32 %v6107
    %vm6115 = vmor %vm6113, %vm6114
    %v6116 = vsel %vm6115, %v6107, %v6112
    %v6117 = vrsqrt.pop %v5984
    %v6118 = vmul.f32 %v6117, %v5984
    %v6119 = vmul.f32 %v6118, %v6117
    %v6120 = vmul.f32 0.5, %v6119
    %v6121 = vsub.f32 1.5, %v6120
    %v6122 = vmul.f32 %v6117, %v6121
    %vm6123 = vweird.f32 %v5984
    %vm6124 = vweird.f32 %v6117
    %vm6125 = vmor %vm6123, %vm6124
    %v6126 = vsel %vm6125, %v6117, %v6122
    %v6127 = vrsqrt.pop %v5985
    %v6128 = vmul.f32 %v6127, %v5985
    %v6129 = vmul.f32 %v6128, %v6127
    %v6130 = vmul.f32 0.5, %v6129
    %v6131 = vsub.f32 1.5, %v6130
    %v6132 = vmul.f32 %v6127, %v6131
    %vm6133 = vweird.f32 %v5985
    %vm6134 = vweird.f32 %v6127
    %vm6135 = vmor %vm6133, %vm6134
    %v6136 = vsel %vm6135, %v6127, %v6132
    %v6137 = vrsqrt.pop %v5986
    %v6138 = vmul.f32 %v6137, %v5986
    %v6139 = vmul.f32 %v6138, %v6137
    %v6140 = vmul.f32 0.5, %v6139
    %v6141 = vsub.f32 1.5, %v6140
    %v6142 = vmul.f32 %v6137, %v6141
    %vm6143 = vweird.f32 %v5986
    %vm6144 = vweird.f32 %v6137
    %vm6145 = vmor %vm6143, %vm6144
    %v6146 = vsel %vm6145, %v6137, %v6142
    %v6147 = vmul.f32 %v5891, %v5996
    %v6148 = vmul.f32 %v5892, %v6006
    %v6149 = vmul.f32 %v5893, %v6016
    %v6150 = vmul.f32 %v5894, %v6026
    %v6151 = vmul.f32 %v5895, %v6036
    %v6152 = vmul.f32 %v5896, %v6046
    %v6153 = vmul.f32 %v5897, %v6056
    %v6154 = vmul.f32 %v5898, %v6066
    %v6155 = vmul.f32 %v5899, %v6076
    %v6156 = vmul.f32 %v5900, %v6086
    %v6157 = vmul.f32 %v5901, %v6096
    %v6158 = vmul.f32 %v5902, %v6106
    %v6159 = vmul.f32 %v5903, %v6116
    %v6160 = vmul.f32 %v5904, %v6126
    %v6161 = vmul.f32 %v5905, %v6136
    %v6162 = vmul.f32 %v5906, %v6146
    %v6164 = vperm.slane %v2494, 0
    %v6166 = vmul.f32 %v6147, %v6164
    %v6167 = vmul.f32 %v6148, %v6164
    %v6168 = vmul.f32 %v6149, %v6164
    %v6169 = vmul.f32 %v6150, %v6164
    %v6170 = vmul.f32 %v6151, %v6164
    %v6171 = vmul.f32 %v6152, %v6164
    %v6172 = vmul.f32 %v6153, %v6164
    %v6173 = vmul.f32 %v6154, %v6164
    %v6174 = vmul.f32 %v6155, %v6164
    %v6175 = vmul.f32 %v6156, %v6164
    %v6176 = vmul.f32 %v6157, %v6164
    %v6177 = vmul.f32 %v6158, %v6164
    %v6178 = vmul.f32 %v6159, %v6164
    %v6179 = vmul.f32 %v6160, %v6164
    %v6180 = vmul.f32 %v6161, %v6164
    %v6181 = vmul.f32 %v6162, %v6164
    %v6183 = vperm.slane %v2495, 0
    %v6185 = vadd.f32 %v6166, %v6183
    %v6186 = vadd.f32 %v6167, %v6183
    %v6187 = vadd.f32 %v6168, %v6183
    %v6188 = vadd.f32 %v6169, %v6183
    %v6189 = vadd.f32 %v6170, %v6183
    %v6190 = vadd.f32 %v6171, %v6183
    %v6191 = vadd.f32 %v6172, %v6183
    %v6192 = vadd.f32 %v6173, %v6183
    %v6193 = vadd.f32 %v6174, %v6183
    %v6194 = vadd.f32 %v6175, %v6183
    %v6195 = vadd.f32 %v6176, %v6183
    %v6196 = vadd.f32 %v6177, %v6183
    %v6197 = vadd.f32 %v6178, %v6183
    %v6198 = vadd.f32 %v6179, %v6183
    %v6199 = vadd.f32 %v6180, %v6183
    %v6200 = vadd.f32 %v6181, %v6183
    %v6201 = vld [vmem:[%s45] sm:$0xff]
    %6202 = vmatpush.msra.mxu0 %v6200
    %6203 = vmatpush.msra.mxu0 %v6199
    %6204 = vmatpush.msra.mxu0 %v6198
    %6205 = vmatpush.msra.mxu0 %v6197
    %6206 = vmatpush.msra.mxu0 %v6196
    %6207 = vmatpush.msra.mxu0 %v6195
    %6208 = vmatpush.msra.mxu0 %v6194
    %6209 = vmatpush.msra.mxu0 %v6193
    %6210 = vmatpush.msra.mxu0 %v6192
    %6211 = vmatpush.msra.mxu0 %v6191
    %6212 = vmatpush.msra.mxu0 %v6190
    %6213 = vmatpush.msra.mxu0 %v6189
    %6214 = vmatpush.msra.mxu0 %v6188
    %6215 = vmatpush.msra.mxu0 %v6187
    %6216 = vmatpush.msra.mxu0 %v6186
    %6217 = vmatpush.msra.mxu0 %v6185
    %6218 = vmatmul.f32.gmra.mxu0 %v6201
    %v6219 = vpop.f32.mrf.mxu0
    %v6220 = vadd.f32 0.0, %v6219
    %6221 = vdwg.mxu0
    %v6222 = vld [vmem:[#allocation5] sm:$0xf]
    %v6223 = vld [vmem:[#allocation5 + $0x4] sm:$0xf]
    %v6224 = vld [vmem:[#allocation5 + $0x8] sm:$0xf]
    %v6225 = vld [vmem:[#allocation5 + $0xc] sm:$0xf]
    %v6226 = vld [vmem:[#allocation5 + $0x10] sm:$0xf]
    %v6227 = vld [vmem:[#allocation5 + $0x14] sm:$0xf]
    %v6228 = vld [vmem:[#allocation5 + $0x18] sm:$0xf]
    %v6229 = vld [vmem:[#allocation5 + $0x1c] sm:$0xf]
    %v6230 = vld [vmem:[#allocation5 + $0x20] sm:$0xf]
    %v6231 = vld [vmem:[#allocation5 + $0x24] sm:$0xf]
    %v6232 = vld [vmem:[#allocation5 + $0x28] sm:$0xf]
    %v6233 = vld [vmem:[#allocation5 + $0x2c] sm:$0xf]
    %v6234 = vld [vmem:[#allocation5 + $0x30] sm:$0xf]
    %v6235 = vld [vmem:[#allocation5 + $0x34] sm:$0xf]
    %v6236 = vld [vmem:[#allocation5 + $0x38] sm:$0xf]
    %v6237 = vld [vmem:[#allocation5 + $0x3c] sm:$0xf]
    %v6238 = vpack.c.bf16 %v6220, %v6220
    %v6239 = vld [vmem:[%s75] sm:$0x1]
    %v6241 = vperm.slane %v6239, 0
    %v6259 = vunpack.c.l.b16 %v6222
    %v6260 = vunpack.c.l.b16 %v6223
    %v6261 = vunpack.c.l.b16 %v6224
    %v6262 = vunpack.c.l.b16 %v6225
    %v6263 = vunpack.c.l.b16 %v6226
    %v6264 = vunpack.c.l.b16 %v6227
    %v6265 = vunpack.c.l.b16 %v6228
    %v6266 = vunpack.c.l.b16 %v6229
    %v6267 = vunpack.c.l.b16 %v6230
    %v6268 = vunpack.c.l.b16 %v6231
    %v6269 = vunpack.c.l.b16 %v6232
    %v6270 = vunpack.c.l.b16 %v6233
    %v6271 = vunpack.c.l.b16 %v6234
    %v6272 = vunpack.c.l.b16 %v6235
    %v6273 = vunpack.c.l.b16 %v6236
    %v6274 = vunpack.c.l.b16 %v6237
    %v6275 = vpack.c.b16 %v6260, %v6259
    %v6276 = vpack.c.b16 %v6262, %v6261
    %v6277 = vpack.c.b16 %v6264, %v6263
    %v6278 = vpack.c.b16 %v6266, %v6265
    %v6279 = vpack.c.b16 %v6268, %v6267
    %v6280 = vpack.c.b16 %v6270, %v6269
    %v6281 = vpack.c.b16 %v6272, %v6271
    %v6282 = vpack.c.b16 %v6274, %v6273
    %6291 = vmatpush.bf16.msra.mxu0 %v6282
    %6292 = vmatpush.bf16.msra.mxu0 %v6281
    %6293 = vmatpush.bf16.msra.mxu0 %v6280
    %6294 = vmatpush.bf16.msra.mxu0 %v6279
    %6295 = vmatpush.bf16.msra.mxu0 %v6278
    %6296 = vmatpush.bf16.msra.mxu0 %v6277
    %6297 = vmatpush.bf16.msra.mxu0 %v6276
    %6298 = vmatpush.bf16.msra.mxu0 %v6275
    %6299 = vmatmul.bf16.gmra.mxu0 %v6238
    %v6300 = vpop.f32.mrf.mxu0
    %v6301 = vadd.f32 %v6241, %v6300
    %v6302 = vpop.f32.mrf.mxu0
    %6303 = vdwg.mxu0
    %v6304 = vtanh.pop %v6301
    %v6306 = vrot.slane %v6304, 6
    %vm6308 = vcmask 1041408
    %v6309 = vsel %vm6308, %v1999, %v6306
    %v6310 = vld [vmem:[%s41] sm:$0xff]
    %v6311 = vld [vmem:[%s41 + $0x8] sm:$0x3]
    %vm6312 = vcmask 80896
    %v6314 = vsel %vm6312, %v6310, 0
    %v6317 = vsel %vm6312, %v6311, 0
    %v6319 = vsel %vm6308, %v6306, 0
    %6321 = vmatpush.msra.mxu0 0.0
    %6322 = vmatpush.msra.mxu0 0.0
    %6323 = vmatpush.msra.mxu0 0.0
    %6324 = vmatpush.msra.mxu0 0.0
    %6325 = vmatpush.msra.mxu0 0.0
    %6326 = vmatpush.msra.mxu0 0.0
    %6327 = vmatpush.msra.mxu0 0.0
    %6328 = vmatpush.msra.mxu0 0.0
    %6329 = vmatpush.msra.mxu0 0.0
    %6330 = vmatpush.msra.mxu0 0.0
    %6331 = vmatpush.msra.mxu0 0.0
    %6332 = vmatpush.msra.mxu0 0.0
    %6333 = vmatpush.msra.mxu0 0.0
    %6334 = vmatpush.msra.mxu0 0.0
    %6335 = vmatpush.msra.mxu0 %v6319
    %6336 = vmatpush.msra.mxu0 %v6309
    %6337 = vmatmul.f32.gmra.mxu0 %v6314
    %v6338 = vpop.f32.mrf.mxu0
    %v6339 = vadd.f32 0.0, %v6338
    %6340 = vmatmul.f32.gmra.mxu0 %v6317
    %v6341 = vpop.f32.mrf.mxu0
    %v6342 = vadd.f32 0.0, %v6341
    %6343 = vdwg.mxu0
    %v6344 = vld [vmem:[%s39] sm:$0xff]
    %v6345 = vld [vmem:[%s39 + $0x8] sm:$0x3]
    %v6346 = vadd.f32 %v6339, %v6344
    %v6347 = vadd.f32 %v6342, %v6345
    %v6348 = vadd.f32 %v6339, %v6346
    %v6349 = vadd.f32 %v6342, %v6347
    %v6350 = vld [vmem:[%s13] sm:$0x1]
    %v6351 = vld [vmem:[%s11] sm:$0x1]
    %6352 = vadd.xlane.f32.xlu0 %v6348
    %v6353 = vpop.xlane.xlu0 %6352
    %v6354 = vsel %vm6308, %v6349, 0.0
    %6355 = vadd.xlane.f32.xlu0 %v6354
    %v6356 = vpop.xlane.xlu0 %6355
    %v6357 = vmul.f32 %v6353, %v304
    %v6358 = vmul.f32 %v6356, %v304
    %v6359 = vsub.f32 %v6348, %v6357
    %v6360 = vsub.f32 %v6349, %v6358
    %v6361 = vmul.f32 %v6359, %v6359
    %v6362 = vmul.f32 %v6360, %v6360
    %6363 = vadd.xlane.f32.xlu0 %v6361
    %v6364 = vpop.xlane.xlu0 %6363
    %v6365 = vsel %vm6308, %v6362, 0.0
    %6366 = vadd.xlane.f32.xlu0 %v6365
    %v6367 = vpop.xlane.xlu0 %6366
    %v6368 = vmul.f32 %v6364, %v304
    %v6369 = vmul.f32 %v6367, %v304
    %v6370 = vadd.f32 %v6368, 1e-12
    %v6371 = vadd.f32 %v6369, 1e-12
    %v6372 = vrsqrt.pop %v6370
    %v6373 = vmul.f32 %v6372, %v6370
    %v6374 = vmul.f32 %v6373, %v6372
    %v6375 = vmul.f32 0.5, %v6374
    %v6376 = vsub.f32 1.5, %v6375
    %v6377 = vmul.f32 %v6372, %v6376
    %vm6378 = vweird.f32 %v6370
    %vm6379 = vweird.f32 %v6372
    %vm6380 = vmor %vm6378, %vm6379
    %v6381 = vsel %vm6380, %v6372, %v6377
    %v6382 = vrsqrt.pop %v6371
    %v6383 = vmul.f32 %v6382, %v6371
    %v6384 = vmul.f32 %v6383, %v6382
    %v6385 = vmul.f32 0.5, %v6384
    %v6386 = vsub.f32 1.5, %v6385
    %v6387 = vmul.f32 %v6382, %v6386
    %vm6388 = vweird.f32 %v6371
    %vm6389 = vweird.f32 %v6382
    %vm6390 = vmor %vm6388, %vm6389
    %v6391 = vsel %vm6390, %v6382, %v6387
    %v6392 = vmul.f32 %v6359, %v6381
    %v6393 = vmul.f32 %v6360, %v6391
    %v6395 = vperm.slane %v6350, 0
    %v6397 = vmul.f32 %v6392, %v6395
    %v6398 = vmul.f32 %v6393, %v6395
    %v6400 = vperm.slane %v6351, 0
    %v6402 = vadd.f32 %v6397, %v6400
    %v6403 = vadd.f32 %v6398, %v6400
    %v6404 = vld [vmem:[%s9] sm:$0xff]
    %v6405 = vld [vmem:[%s9 + $0x8] sm:$0x3]
    %v6406 = vld [vmem:[%s37] sm:$0xff]
    %v6407 = vld [vmem:[%s37 + $0x8] sm:$0xf]
    %v6408 = vld [vmem:[%s37 + $0xc] sm:$0xff]
    %v6409 = vld [vmem:[%s37 + $0x14] sm:$0xf]
    %v6410 = vld [vmem:[%s37 + $0x18] sm:$0xff]
    %v6411 = vld [vmem:[%s37 + $0x20] sm:$0xf]
    %v6412 = vld [vmem:[%s37 + $0x24] sm:$0xff]
    %v6413 = vld [vmem:[%s37 + $0x2c] sm:$0xf]
    %v6414 = vld [vmem:[%s37 + $0x30] sm:$0xff]
    %v6415 = vld [vmem:[%s37 + $0x38] sm:$0xf]
    %v6416 = vld [vmem:[%s37 + $0x3c] sm:$0xff]
    %v6417 = vld [vmem:[%s37 + $0x44] sm:$0xf]
    %v6418 = vld [vmem:[%s37 + $0x48] sm:$0xff]
    %v6419 = vld [vmem:[%s37 + $0x50] sm:$0xf]
    %v6420 = vld [vmem:[%s37 + $0x54] sm:$0xff]
    %v6421 = vld [vmem:[%s37 + $0x5c] sm:$0xf]
    %v6422 = vld [vmem:[%s37 + $0x60] sm:$0xff]
    %v6423 = vld [vmem:[%s37 + $0x68] sm:$0xf]
    %v6424 = vld [vmem:[%s37 + $0x6c] sm:$0xff]
    %v6425 = vld [vmem:[%s37 + $0x74] sm:$0xf]
    %v6426 = vld [vmem:[%s37 + $0x78] sm:$0xff]
    %v6427 = vld [vmem:[%s37 + $0x80] sm:$0xf]
    %v6428 = vld [vmem:[%s37 + $0x84] sm:$0xff]
    %v6429 = vld [vmem:[%s37 + $0x8c] sm:$0xf]
    %v6430 = vld [vmem:[%s37 + $0x90] sm:$0xff]
    %v6431 = vld [vmem:[%s37 + $0x98] sm:$0xf]
    %v6432 = vld [vmem:[%s37 + $0x9c] sm:$0xff]
    %v6433 = vld [vmem:[%s37 + $0xa4] sm:$0xf]
    %v6434 = vld [vmem:[%s37 + $0xa8] sm:$0xff]
    %v6435 = vld [vmem:[%s37 + $0xb0] sm:$0xf]
    %v6436 = vld [vmem:[%s37 + $0xb4] sm:$0xff]
    %v6437 = vld [vmem:[%s37 + $0xbc] sm:$0xf]
    %v6438 = vld [vmem:[%s21] sm:$0x7]
    %v6439 = vld [vmem:[%s35] sm:$0xf]
    %v6440 = vld [vmem:[%s35 + $0x4] sm:$0xf]
    %v6441 = vld [vmem:[%s35 + $0x8] sm:$0xf]
    %v6442 = vld [vmem:[%s35 + $0xc] sm:$0xf]
    %v6443 = vld [vmem:[%s35 + $0x10] sm:$0xf]
    %v6444 = vld [vmem:[%s35 + $0x14] sm:$0xf]
    %v6445 = vld [vmem:[%s35 + $0x18] sm:$0xf]
    %v6446 = vld [vmem:[%s35 + $0x1c] sm:$0xf]
    %v6447 = vld [vmem:[%s35 + $0x20] sm:$0xf]
    %v6448 = vld [vmem:[%s35 + $0x24] sm:$0xf]
    %v6449 = vld [vmem:[%s35 + $0x28] sm:$0xf]
    %v6450 = vld [vmem:[%s35 + $0x2c] sm:$0xf]
    %v6451 = vld [vmem:[%s35 + $0x30] sm:$0xf]
    %v6452 = vld [vmem:[%s35 + $0x34] sm:$0xf]
    %v6453 = vld [vmem:[%s35 + $0x38] sm:$0xf]
    %v6454 = vld [vmem:[%s35 + $0x3c] sm:$0xf]
    %v6455 = vld [vmem:[%s19] sm:$0x1]
    %v6456 = vld [vmem:[%s25] sm:$0x1]
    %v6457 = vld [vmem:[%s23] sm:$0x1]
    %v6458 = vld [vmem:[%s31] sm:$0xff]
    %v6459 = vld [vmem:[%s31 + $0x8] sm:$0xff]
    %v6460 = vld [vmem:[%s31 + $0x10] sm:$0xff]
    %v6461 = vld [vmem:[%s31 + $0x18] sm:$0xff]
    %v6462 = vld [vmem:[%s31 + $0x20] sm:$0xff]
    %v6463 = vld [vmem:[%s31 + $0x28] sm:$0xff]
    %v6464 = vld [vmem:[%s31 + $0x30] sm:$0xff]
    %v6465 = vld [vmem:[%s31 + $0x38] sm:$0xff]
    %v6466 = vld [vmem:[%s31 + $0x40] sm:$0xff]
    %v6467 = vld [vmem:[%s31 + $0x48] sm:$0xff]
    %v6468 = vld [vmem:[%s31 + $0x50] sm:$0xff]
    %v6469 = vld [vmem:[%s31 + $0x58] sm:$0xff]
    %v6470 = vld [vmem:[%s31 + $0x60] sm:$0xff]
    %v6471 = vld [vmem:[%s31 + $0x68] sm:$0xff]
    %v6472 = vld [vmem:[%s31 + $0x70] sm:$0xff]
    %v6473 = vld [vmem:[%s31 + $0x78] sm:$0xff]
    %v6474 = vld [vmem:[%s15] sm:$0x3]
    %v6475 = vld [vmem:[%s33] sm:$0xf]
    %v6476 = vld [vmem:[%s33 + $0x4] sm:$0xf]
    %v6477 = vld [vmem:[%s33 + $0x8] sm:$0xf]
    %v6478 = vld [vmem:[%s33 + $0xc] sm:$0xf]
    %v6479 = vld [vmem:[%s33 + $0x10] sm:$0xf]
    %v6480 = vld [vmem:[%s33 + $0x14] sm:$0xf]
    %v6481 = vld [vmem:[%s33 + $0x18] sm:$0xf]
    %v6482 = vld [vmem:[%s33 + $0x1c] sm:$0xf]
    %v6483 = vld [vmem:[%s33 + $0x20] sm:$0xf]
    %v6484 = vld [vmem:[%s33 + $0x24] sm:$0xf]
    %v6485 = vld [vmem:[%s33 + $0x28] sm:$0xf]
    %v6486 = vld [vmem:[%s33 + $0x2c] sm:$0xf]
    %v6487 = vld [vmem:[%s33 + $0x30] sm:$0xf]
    %v6488 = vld [vmem:[%s33 + $0x34] sm:$0xf]
    %v6489 = vld [vmem:[%s33 + $0x38] sm:$0xf]
    %v6490 = vld [vmem:[%s33 + $0x3c] sm:$0xf]
    %v6491 = vld [vmem:[%s33 + $0x40] sm:$0xf]
    %v6492 = vld [vmem:[%s33 + $0x44] sm:$0xf]
    %v6493 = vld [vmem:[%s33 + $0x48] sm:$0xf]
    %v6494 = vld [vmem:[%s33 + $0x4c] sm:$0xf]
    %v6495 = vld [vmem:[%s33 + $0x50] sm:$0xf]
    %v6496 = vld [vmem:[%s33 + $0x54] sm:$0xf]
    %v6497 = vld [vmem:[%s33 + $0x58] sm:$0xf]
    %v6498 = vld [vmem:[%s33 + $0x5c] sm:$0xf]
    %v6499 = vld [vmem:[%s33 + $0x60] sm:$0xf]
    %v6500 = vld [vmem:[%s33 + $0x64] sm:$0xf]
    %v6501 = vld [vmem:[%s33 + $0x68] sm:$0xf]
    %v6502 = vld [vmem:[%s33 + $0x6c] sm:$0xf]
    %v6503 = vld [vmem:[%s33 + $0x70] sm:$0xf]
    %v6504 = vld [vmem:[%s33 + $0x74] sm:$0xf]
    %v6505 = vld [vmem:[%s33 + $0x78] sm:$0xf]
    %v6506 = vld [vmem:[%s33 + $0x7c] sm:$0xf]
    %v6507 = vld [vmem:[%s17] sm:$0x1]
    %v6508 = vld [vmem:[%s29] sm:$0x1]
    %v6509 = vld [vmem:[%s27] sm:$0x1]
    %v6510 = vpack.c.bf16 %v6403, %v6402
    %v6512 = vperm.slane %v6438, 0
    %v6513 = vperm.slane %v6438, 1
    %v6514 = vperm.slane %v6438, 2
    %v6550 = vunpack.c.l.b16 %v6406
    %v6551 = vunpack.c.h.b16 %v6406
    %v6552 = vunpack.c.l.b16 %v6407
    %v6553 = vunpack.c.l.b16 %v6408
    %v6554 = vunpack.c.h.b16 %v6408
    %v6555 = vunpack.c.l.b16 %v6409
    %v6556 = vunpack.c.l.b16 %v6410
    %v6557 = vunpack.c.h.b16 %v6410
    %v6558 = vunpack.c.l.b16 %v6411
    %v6559 = vunpack.c.l.b16 %v6412
    %v6560 = vunpack.c.h.b16 %v6412
    %v6561 = vunpack.c.l.b16 %v6413
    %v6562 = vunpack.c.l.b16 %v6414
    %v6563 = vunpack.c.h.b16 %v6414
    %v6564 = vunpack.c.l.b16 %v6415
    %v6565 = vunpack.c.l.b16 %v6416
    %v6566 = vunpack.c.h.b16 %v6416
    %v6567 = vunpack.c.l.b16 %v6417
    %v6568 = vunpack.c.l.b16 %v6418
    %v6569 = vunpack.c.h.b16 %v6418
    %v6570 = vunpack.c.l.b16 %v6419
    %v6571 = vunpack.c.l.b16 %v6420
    %v6572 = vunpack.c.h.b16 %v6420
    %v6573 = vunpack.c.l.b16 %v6421
    %v6574 = vunpack.c.l.b16 %v6422
    %v6575 = vunpack.c.h.b16 %v6422
    %v6576 = vunpack.c.l.b16 %v6423
    %v6577 = vunpack.c.l.b16 %v6424
    %v6578 = vunpack.c.h.b16 %v6424
    %v6579 = vunpack.c.l.b16 %v6425
    %v6580 = vunpack.c.l.b16 %v6426
    %v6581 = vunpack.c.h.b16 %v6426
    %v6582 = vunpack.c.l.b16 %v6427
    %v6583 = vunpack.c.l.b16 %v6428
    %v6584 = vunpack.c.h.b16 %v6428
    %v6585 = vunpack.c.l.b16 %v6429
    %v6586 = vunpack.c.l.b16 %v6430
    %v6587 = vunpack.c.h.b16 %v6430
    %v6588 = vunpack.c.l.b16 %v6431
    %v6589 = vunpack.c.l.b16 %v6432
    %v6590 = vunpack.c.h.b16 %v6432
    %v6591 = vunpack.c.l.b16 %v6433
    %v6592 = vunpack.c.l.b16 %v6434
    %v6593 = vunpack.c.h.b16 %v6434
    %v6594 = vunpack.c.l.b16 %v6435
    %v6595 = vunpack.c.l.b16 %v6436
    %v6596 = vunpack.c.h.b16 %v6436
    %v6597 = vunpack.c.l.b16 %v6437
    %v6598 = vpack.c.b16 %v6553, %v6550
    %v6599 = vpack.c.b16 %v6554, %v6551
    %v6600 = vpack.c.b16 %v6555, %v6552
    %v6601 = vpack.c.b16 %v6559, %v6556
    %v6602 = vpack.c.b16 %v6560, %v6557
    %v6603 = vpack.c.b16 %v6561, %v6558
    %v6604 = vpack.c.b16 %v6565, %v6562
    %v6605 = vpack.c.b16 %v6566, %v6563
    %v6606 = vpack.c.b16 %v6567, %v6564
    %v6607 = vpack.c.b16 %v6571, %v6568
    %v6608 = vpack.c.b16 %v6572, %v6569
    %v6609 = vpack.c.b16 %v6573, %v6570
    %v6610 = vpack.c.b16 %v6577, %v6574
    %v6611 = vpack.c.b16 %v6578, %v6575
    %v6612 = vpack.c.b16 %v6579, %v6576
    %v6613 = vpack.c.b16 %v6583, %v6580
    %v6614 = vpack.c.b16 %v6584, %v6581
    %v6615 = vpack.c.b16 %v6585, %v6582
    %v6616 = vpack.c.b16 %v6589, %v6586
    %v6617 = vpack.c.b16 %v6590, %v6587
    %v6618 = vpack.c.b16 %v6591, %v6588
    %v6619 = vpack.c.b16 %v6595, %v6592
    %v6620 = vpack.c.b16 %v6596, %v6593
    %v6621 = vpack.c.b16 %v6597, %v6594
    %6646 = vmatpush.bf16.msra.mxu0 %v6619
    %6647 = vmatpush.bf16.msra.mxu0 %v6616
    %6648 = vmatpush.bf16.msra.mxu0 %v6613
    %6649 = vmatpush.bf16.msra.mxu0 %v6610
    %6650 = vmatpush.bf16.msra.mxu0 %v6607
    %6651 = vmatpush.bf16.msra.mxu0 %v6604
    %6652 = vmatpush.bf16.msra.mxu0 %v6601
    %6653 = vmatpush.bf16.msra.mxu0 %v6598
    %6654 = vmatmul.bf16.gmra.mxu0 %v6510
    %v6655 = vpop.f32.mrf.mxu0
    %v6656 = vadd.f32 %v6512, %v6655
    %v6657 = vpop.f32.mrf.mxu0
    %v6658 = vadd.f32 %v6512, %v6657
    %6659 = vdwg.mxu0
    %6660 = vmatpush.bf16.msra.mxu0 %v6620
    %6661 = vmatpush.bf16.msra.mxu0 %v6617
    %6662 = vmatpush.bf16.msra.mxu0 %v6614
    %6663 = vmatpush.bf16.msra.mxu0 %v6611
    %6664 = vmatpush.bf16.msra.mxu0 %v6608
    %6665 = vmatpush.bf16.msra.mxu0 %v6605
    %6666 = vmatpush.bf16.msra.mxu0 %v6602
    %6667 = vmatpush.bf16.msra.mxu0 %v6599
    %6668 = vmatmul.bf16.gmra.mxu0 %v6510
    %v6669 = vpop.f32.mrf.mxu0
    %v6670 = vadd.f32 %v6513, %v6669
    %v6671 = vpop.f32.mrf.mxu0
    %v6672 = vadd.f32 %v6513, %v6671
    %6673 = vdwg.mxu0
    %6674 = vmatpush.bf16.msra.mxu0 %v6621
    %6675 = vmatpush.bf16.msra.mxu0 %v6618
    %6676 = vmatpush.bf16.msra.mxu0 %v6615
    %6677 = vmatpush.bf16.msra.mxu0 %v6612
    %6678 = vmatpush.bf16.msra.mxu0 %v6609
    %6679 = vmatpush.bf16.msra.mxu0 %v6606
    %6680 = vmatpush.bf16.msra.mxu0 %v6603
    %6681 = vmatpush.bf16.msra.mxu0 %v6600
    %6682 = vmatmul.bf16.gmra.mxu0 %v6510
    %v6683 = vpop.f32.mrf.mxu0
    %v6684 = vadd.f32 %v6514, %v6683
    %v6685 = vpop.f32.mrf.mxu0
    %v6686 = vadd.f32 %v6514, %v6685
    %6687 = vdwg.mxu0
    %v6688 = vpack.c.bf16 %v6658, %v6656
    %v6689 = vpack.c.bf16 %v6672, %v6670
    %v6691 = vsel %vm693, %v6688, 0
    %v6694 = vsel %vm693, %v6689, 0
    %6696 = vmatpush.bf16.xpose.msra.mxu0 0
    %6697 = vmatpush.bf16.xpose.msra.mxu0 0
    %6698 = vmatpush.bf16.xpose.msra.mxu0 0
    %6699 = vmatpush.bf16.xpose.msra.mxu0 0
    %6700 = vmatpush.bf16.xpose.msra.mxu0 0
    %6701 = vmatpush.bf16.xpose.msra.mxu0 0
    %6702 = vmatpush.bf16.xpose.msra.mxu0 0
    %6703 = vmatpush.bf16.xpose.msra.mxu0 %v6694
    %6704 = vmatmul.bf16.gmra.mxu0 %v6691
    %v6705 = vpop.f32.mrf.mxu0
    %v6706 = vadd.f32 0.0, %v6705
    %v6707 = vpop.f32.mrf.mxu0
    %v6708 = vadd.f32 0.0, %v6707
    %6709 = vdwg.mxu0
    %v6710 = vmul.f32 %v6706, 0.17677669
    %v6711 = vmul.f32 %v6708, 0.17677669
    %v6712 = vadd.f32 %v6710, %v6404
    %v6713 = vadd.f32 %v6711, %v6405
    %v6714 = vsel %vm6312, %v6712, -inf
    %6715 = vmax.xlane.f32.xlu0 %v6714
    %v6716 = vpop.xlane.xlu0 %6715
    %vm6717 = vcmask 74752
    %v6718 = vsel %vm6717, %v6713, -inf
    %6719 = vmax.xlane.f32.xlu0 %v6718
    %v6720 = vpop.xlane.xlu0 %6719
    %v6721 = vsub.f32 %v6712, %v6716
    %v6722 = vsub.f32 %v6713, %v6720
    %v6723 = vmul.f32 %v6721, 1.442695
    %v6724 = vpow.pop %v6723
    %v6725 = vmul.f32 %v6722, 1.442695
    %v6726 = vpow.pop %v6725
    %v6727 = vsel %vm6312, %v6724, 0.0
    %6728 = vadd.xlane.f32.xlu0 %v6727
    %v6729 = vpop.xlane.xlu0 %6728
    %v6730 = vsel %vm6717, %v6726, 0.0
    %6731 = vadd.xlane.f32.xlu0 %v6730
    %v6732 = vpop.xlane.xlu0 %6731
    %v6733 = vrcp.pop %v6729
    %v6734 = vrcp.pop %v6732
    %v6735 = vmul.f32 %v6724, %v6733
    %v6736 = vmul.f32 %v6726, %v6734
    %v6737 = vpack.c.bf16 %v6736, %v6735
    %v6738 = vpack.c.bf16 %v6686, %v6684
    %v6740 = vsel %vm6312, %v6737, 0
    %vm6742 = vcmask 1044480
    %v6744 = vsel %vm6742, %v6738, 0
    %6746 = vmatpush.bf16.msra.mxu0 0
    %6747 = vmatpush.bf16.msra.mxu0 0
    %6748 = vmatpush.bf16.msra.mxu0 0
    %6749 = vmatpush.bf16.msra.mxu0 0
    %6750 = vmatpush.bf16.msra.mxu0 0
    %6751 = vmatpush.bf16.msra.mxu0 0
    %6752 = vmatpush.bf16.msra.mxu0 0
    %6753 = vmatpush.bf16.msra.mxu0 %v6744
    %6754 = vmatmul.bf16.gmra.mxu0 %v6740
    %v6755 = vpop.f32.mrf.mxu0
    %v6756 = vadd.f32 0.0, %v6755
    %v6757 = vpop.f32.mrf.mxu0
    %v6758 = vadd.f32 0.0, %v6757
    %6759 = vdwg.mxu0
    %v6760 = vpack.c.bf16 %v6758, %v6756
    %6762 = vrot.lane.b32.xlu0 %v6688, 96
    %v6763 = vpop.permute.xlu0 %6762
    %6765 = vrot.lane.b32.xlu0 %v6689, 96
    %v6766 = vpop.permute.xlu0 %6765
    %v6768 = vsel %vm693, %v6763, 0
    %v6771 = vsel %vm693, %v6766, 0
    %6773 = vmatpush.bf16.xpose.msra.mxu0 0
    %6774 = vmatpush.bf16.xpose.msra.mxu0 0
    %6775 = vmatpush.bf16.xpose.msra.mxu0 0
    %6776 = vmatpush.bf16.xpose.msra.mxu0 0
    %6777 = vmatpush.bf16.xpose.msra.mxu0 0
    %6778 = vmatpush.bf16.xpose.msra.mxu0 0
    %6779 = vmatpush.bf16.xpose.msra.mxu0 0
    %6780 = vmatpush.bf16.xpose.msra.mxu0 %v6771
    %6781 = vmatmul.bf16.gmra.mxu0 %v6768
    %v6782 = vpop.f32.mrf.mxu0
    %v6783 = vadd.f32 0.0, %v6782
    %v6784 = vpop.f32.mrf.mxu0
    %v6785 = vadd.f32 0.0, %v6784
    %6786 = vdwg.mxu0
    %v6787 = vmul.f32 %v6783, 0.17677669
    %v6788 = vmul.f32 %v6785, 0.17677669
    %v6789 = vadd.f32 %v6787, %v6404
    %v6790 = vadd.f32 %v6788, %v6405
    %v6791 = vsel %vm6312, %v6789, -inf
    %6792 = vmax.xlane.f32.xlu0 %v6791
    %v6793 = vpop.xlane.xlu0 %6792
    %v6794 = vsel %vm6717, %v6790, -inf
    %6795 = vmax.xlane.f32.xlu0 %v6794
    %v6796 = vpop.xlane.xlu0 %6795
    %v6797 = vsub.f32 %v6789, %v6793
    %v6798 = vsub.f32 %v6790, %v6796
    %v6799 = vmul.f32 %v6797, 1.442695
    %v6800 = vpow.pop %v6799
    %v6801 = vmul.f32 %v6798, 1.442695
    %v6802 = vpow.pop %v6801
    %v6803 = vsel %vm6312, %v6800, 0.0
    %6804 = vadd.xlane.f32.xlu0 %v6803
    %v6805 = vpop.xlane.xlu0 %6804
    %v6806 = vsel %vm6717, %v6802, 0.0
    %6807 = vadd.xlane.f32.xlu0 %v6806
    %v6808 = vpop.xlane.xlu0 %6807
    %v6809 = vrcp.pop %v6805
    %v6810 = vrcp.pop %v6808
    %v6811 = vmul.f32 %v6800, %v6809
    %v6812 = vmul.f32 %v6802, %v6810
    %v6813 = vpack.c.bf16 %v6812, %v6811
    %6815 = vrot.lane.b32.xlu0 %v6738, 96
    %v6816 = vpop.permute.xlu0 %6815
    %v6818 = vsel %vm6312, %v6813, 0
    %v6821 = vsel %vm6742, %v6816, 0
    %6823 = vmatpush.bf16.msra.mxu0 0
    %6824 = vmatpush.bf16.msra.mxu0 0
    %6825 = vmatpush.bf16.msra.mxu0 0
    %6826 = vmatpush.bf16.msra.mxu0 0
    %6827 = vmatpush.bf16.msra.mxu0 0
    %6828 = vmatpush.bf16.msra.mxu0 0
    %6829 = vmatpush.bf16.msra.mxu0 0
    %6830 = vmatpush.bf16.msra.mxu0 %v6821
    %6831 = vmatmul.bf16.gmra.mxu0 %v6818
    %v6832 = vpop.f32.mrf.mxu0
    %v6833 = vadd.f32 0.0, %v6832
    %v6834 = vpop.f32.mrf.mxu0
    %v6835 = vadd.f32 0.0, %v6834
    %6836 = vdwg.mxu0
    %v6837 = vpack.c.bf16 %v6835, %v6833
    %v6842 = vunpack.c.l.b16 %v6443
    %v6843 = vunpack.c.l.b16 %v6444
    %v6844 = vunpack.c.l.b16 %v6445
    %v6845 = vunpack.c.l.b16 %v6446
    %v6846 = vpack.c.b16 %v6843, %v6842
    %v6847 = vpack.c.b16 %v6845, %v6844
    %v6851 = vsel %vm693, %v6837, 0
    %6853 = vmatpush.bf16.msra.mxu0 0
    %6854 = vmatpush.bf16.msra.mxu0 0
    %6855 = vmatpush.bf16.msra.mxu0 0
    %6856 = vmatpush.bf16.msra.mxu0 0
    %6857 = vmatpush.bf16.msra.mxu0 0
    %6858 = vmatpush.bf16.msra.mxu0 0
    %6859 = vmatpush.bf16.msra.mxu0 %v6847
    %6860 = vmatpush.bf16.msra.mxu0 %v6846
    %6861 = vmatmul.bf16.gmra.mxu0 %v6851
    %v6862 = vpop.f32.mrf.mxu0
    %v6863 = vadd.f32 0.0, %v6862
    %v6864 = vpop.f32.mrf.mxu0
    %v6865 = vadd.f32 0.0, %v6864
    %6866 = vdwg.mxu0
    %v6871 = vunpack.c.l.b16 %v6439
    %v6872 = vunpack.c.l.b16 %v6440
    %v6873 = vunpack.c.l.b16 %v6441
    %v6874 = vunpack.c.l.b16 %v6442
    %v6875 = vpack.c.b16 %v6872, %v6871
    %v6876 = vpack.c.b16 %v6874, %v6873
    %v6880 = vsel %vm693, %v6760, 0
    %6882 = vmatpush.bf16.msra.mxu0 0
    %6883 = vmatpush.bf16.msra.mxu0 0
    %6884 = vmatpush.bf16.msra.mxu0 0
    %6885 = vmatpush.bf16.msra.mxu0 0
    %6886 = vmatpush.bf16.msra.mxu0 0
    %6887 = vmatpush.bf16.msra.mxu0 0
    %6888 = vmatpush.bf16.msra.mxu0 %v6876
    %6889 = vmatpush.bf16.msra.mxu0 %v6875
    %6890 = vmatmul.bf16.gmra.mxu0 %v6880
    %v6891 = vpop.f32.mrf.mxu0
    %v6892 = vadd.f32 %v6863, %v6891
    %v6893 = vpop.f32.mrf.mxu0
    %v6894 = vadd.f32 %v6865, %v6893
    %6895 = vdwg.mxu0
    %6896 = vrot.lane.b32.xlu0 %v6688, 64
    %v6897 = vpop.permute.xlu0 %6896
    %6898 = vrot.lane.b32.xlu0 %v6689, 64
    %v6899 = vpop.permute.xlu0 %6898
    %v6901 = vsel %vm693, %v6897, 0
    %v6904 = vsel %vm693, %v6899, 0
    %6906 = vmatpush.bf16.xpose.msra.mxu0 0
    %6907 = vmatpush.bf16.xpose.msra.mxu0 0
    %6908 = vmatpush.bf16.xpose.msra.mxu0 0
    %6909 = vmatpush.bf16.xpose.msra.mxu0 0
    %6910 = vmatpush.bf16.xpose.msra.mxu0 0
    %6911 = vmatpush.bf16.xpose.msra.mxu0 0
    %6912 = vmatpush.bf16.xpose.msra.mxu0 0
    %6913 = vmatpush.bf16.xpose.msra.mxu0 %v6904
    %6914 = vmatmul.bf16.gmra.mxu0 %v6901
    %v6915 = vpop.f32.mrf.mxu0
    %v6916 = vadd.f32 0.0, %v6915
    %v6917 = vpop.f32.mrf.mxu0
    %v6918 = vadd.f32 0.0, %v6917
    %6919 = vdwg.mxu0
    %v6920 = vmul.f32 %v6916, 0.17677669
    %v6921 = vmul.f32 %v6918, 0.17677669
    %v6922 = vadd.f32 %v6920, %v6404
    %v6923 = vadd.f32 %v6921, %v6405
    %v6924 = vsel %vm6312, %v6922, -inf
    %6925 = vmax.xlane.f32.xlu0 %v6924
    %v6926 = vpop.xlane.xlu0 %6925
    %v6927 = vsel %vm6717, %v6923, -inf
    %6928 = vmax.xlane.f32.xlu0 %v6927
    %v6929 = vpop.xlane.xlu0 %6928
    %v6930 = vsub.f32 %v6922, %v6926
    %v6931 = vsub.f32 %v6923, %v6929
    %v6932 = vmul.f32 %v6930, 1.442695
    %v6933 = vpow.pop %v6932
    %v6934 = vmul.f32 %v6931, 1.442695
    %v6935 = vpow.pop %v6934
    %v6936 = vsel %vm6312, %v6933, 0.0
    %6937 = vadd.xlane.f32.xlu0 %v6936
    %v6938 = vpop.xlane.xlu0 %6937
    %v6939 = vsel %vm6717, %v6935, 0.0
    %6940 = vadd.xlane.f32.xlu0 %v6939
    %v6941 = vpop.xlane.xlu0 %6940
    %v6942 = vrcp.pop %v6938
    %v6943 = vrcp.pop %v6941
    %v6944 = vmul.f32 %v6933, %v6942
    %v6945 = vmul.f32 %v6935, %v6943
    %v6946 = vpack.c.bf16 %v6945, %v6944
    %6947 = vrot.lane.b32.xlu0 %v6738, 64
    %v6948 = vpop.permute.xlu0 %6947
    %v6950 = vsel %vm6312, %v6946, 0
    %v6953 = vsel %vm6742, %v6948, 0
    %6955 = vmatpush.bf16.msra.mxu0 0
    %6956 = vmatpush.bf16.msra.mxu0 0
    %6957 = vmatpush.bf16.msra.mxu0 0
    %6958 = vmatpush.bf16.msra.mxu0 0
    %6959 = vmatpush.bf16.msra.mxu0 0
    %6960 = vmatpush.bf16.msra.mxu0 0
    %6961 = vmatpush.bf16.msra.mxu0 0
    %6962 = vmatpush.bf16.msra.mxu0 %v6953
    %6963 = vmatmul.bf16.gmra.mxu0 %v6950
    %v6964 = vpop.f32.mrf.mxu0
    %v6965 = vadd.f32 0.0, %v6964
    %v6966 = vpop.f32.mrf.mxu0
    %v6967 = vadd.f32 0.0, %v6966
    %6968 = vdwg.mxu0
    %v6969 = vpack.c.bf16 %v6967, %v6965
    %v6974 = vunpack.c.l.b16 %v6447
    %v6975 = vunpack.c.l.b16 %v6448
    %v6976 = vunpack.c.l.b16 %v6449
    %v6977 = vunpack.c.l.b16 %v6450
    %v6978 = vpack.c.b16 %v6975, %v6974
    %v6979 = vpack.c.b16 %v6977, %v6976
    %v6983 = vsel %vm693, %v6969, 0
    %6985 = vmatpush.bf16.msra.mxu0 0
    %6986 = vmatpush.bf16.msra.mxu0 0
    %6987 = vmatpush.bf16.msra.mxu0 0
    %6988 = vmatpush.bf16.msra.mxu0 0
    %6989 = vmatpush.bf16.msra.mxu0 0
    %6990 = vmatpush.bf16.msra.mxu0 0
    %6991 = vmatpush.bf16.msra.mxu0 %v6979
    %6992 = vmatpush.bf16.msra.mxu0 %v6978
    %6993 = vmatmul.bf16.gmra.mxu0 %v6983
    %v6994 = vpop.f32.mrf.mxu0
    %v6995 = vadd.f32 0.0, %v6994
    %v6996 = vpop.f32.mrf.mxu0
    %v6997 = vadd.f32 0.0, %v6996
    %6998 = vdwg.mxu0
    %v6999 = vadd.f32 %v6892, %v6995
    %v7000 = vadd.f32 %v6894, %v6997
    %7001 = vrot.lane.b32.xlu0 %v6688, 32
    %v7002 = vpop.permute.xlu0 %7001
    %7003 = vrot.lane.b32.xlu0 %v6689, 32
    %v7004 = vpop.permute.xlu0 %7003
    %v7006 = vsel %vm693, %v7002, 0
    %v7009 = vsel %vm693, %v7004, 0
    %7011 = vmatpush.bf16.xpose.msra.mxu0 0
    %7012 = vmatpush.bf16.xpose.msra.mxu0 0
    %7013 = vmatpush.bf16.xpose.msra.mxu0 0
    %7014 = vmatpush.bf16.xpose.msra.mxu0 0
    %7015 = vmatpush.bf16.xpose.msra.mxu0 0
    %7016 = vmatpush.bf16.xpose.msra.mxu0 0
    %7017 = vmatpush.bf16.xpose.msra.mxu0 0
    %7018 = vmatpush.bf16.xpose.msra.mxu0 %v7009
    %7019 = vmatmul.bf16.gmra.mxu0 %v7006
    %v7020 = vpop.f32.mrf.mxu0
    %v7021 = vadd.f32 0.0, %v7020
    %v7022 = vpop.f32.mrf.mxu0
    %v7023 = vadd.f32 0.0, %v7022
    %7024 = vdwg.mxu0
    %v7025 = vmul.f32 %v7021, 0.17677669
    %v7026 = vmul.f32 %v7023, 0.17677669
    %v7027 = vadd.f32 %v7025, %v6404
    %v7028 = vadd.f32 %v7026, %v6405
    %v7029 = vsel %vm6312, %v7027, -inf
    %7030 = vmax.xlane.f32.xlu0 %v7029
    %v7031 = vpop.xlane.xlu0 %7030
    %v7032 = vsel %vm6717, %v7028, -inf
    %7033 = vmax.xlane.f32.xlu0 %v7032
    %v7034 = vpop.xlane.xlu0 %7033
    %v7035 = vsub.f32 %v7027, %v7031
    %v7036 = vsub.f32 %v7028, %v7034
    %v7037 = vmul.f32 %v7035, 1.442695
    %v7038 = vpow.pop %v7037
    %v7039 = vmul.f32 %v7036, 1.442695
    %v7040 = vpow.pop %v7039
    %v7041 = vsel %vm6312, %v7038, 0.0
    %7042 = vadd.xlane.f32.xlu0 %v7041
    %v7043 = vpop.xlane.xlu0 %7042
    %v7044 = vsel %vm6717, %v7040, 0.0
    %7045 = vadd.xlane.f32.xlu0 %v7044
    %v7046 = vpop.xlane.xlu0 %7045
    %v7047 = vrcp.pop %v7043
    %v7048 = vrcp.pop %v7046
    %v7049 = vmul.f32 %v7038, %v7047
    %v7050 = vmul.f32 %v7040, %v7048
    %v7051 = vpack.c.bf16 %v7050, %v7049
    %7052 = vrot.lane.b32.xlu0 %v6738, 32
    %v7053 = vpop.permute.xlu0 %7052
    %v7055 = vsel %vm6312, %v7051, 0
    %v7058 = vsel %vm6742, %v7053, 0
    %7060 = vmatpush.bf16.msra.mxu0 0
    %7061 = vmatpush.bf16.msra.mxu0 0
    %7062 = vmatpush.bf16.msra.mxu0 0
    %7063 = vmatpush.bf16.msra.mxu0 0
    %7064 = vmatpush.bf16.msra.mxu0 0
    %7065 = vmatpush.bf16.msra.mxu0 0
    %7066 = vmatpush.bf16.msra.mxu0 0
    %7067 = vmatpush.bf16.msra.mxu0 %v7058
    %7068 = vmatmul.bf16.gmra.mxu0 %v7055
    %v7069 = vpop.f32.mrf.mxu0
    %v7070 = vadd.f32 0.0, %v7069
    %v7071 = vpop.f32.mrf.mxu0
    %v7072 = vadd.f32 0.0, %v7071
    %7073 = vdwg.mxu0
    %v7074 = vpack.c.bf16 %v7072, %v7070
    %v7079 = vunpack.c.l.b16 %v6451
    %v7080 = vunpack.c.l.b16 %v6452
    %v7081 = vunpack.c.l.b16 %v6453
    %v7082 = vunpack.c.l.b16 %v6454
    %v7083 = vpack.c.b16 %v7080, %v7079
    %v7084 = vpack.c.b16 %v7082, %v7081
    %v7088 = vsel %vm693, %v7074, 0
    %7090 = vmatpush.bf16.msra.mxu0 0
    %7091 = vmatpush.bf16.msra.mxu0 0
    %7092 = vmatpush.bf16.msra.mxu0 0
    %7093 = vmatpush.bf16.msra.mxu0 0
    %7094 = vmatpush.bf16.msra.mxu0 0
    %7095 = vmatpush.bf16.msra.mxu0 0
    %7096 = vmatpush.bf16.msra.mxu0 %v7084
    %7097 = vmatpush.bf16.msra.mxu0 %v7083
    %7098 = vmatmul.bf16.gmra.mxu0 %v7088
    %v7099 = vpop.f32.mrf.mxu0
    %v7100 = vadd.f32 0.0, %v7099
    %v7101 = vpop.f32.mrf.mxu0
    %v7102 = vadd.f32 0.0, %v7101
    %7103 = vdwg.mxu0
    %v7104 = vadd.f32 %v6999, %v7100
    %v7105 = vadd.f32 %v7000, %v7102
    %v7106 = vadd.f32 %v6402, %v7104
    %v7107 = vadd.f32 %v6403, %v7105
    %v7109 = vperm.slane %v6455, 0
    %v7111 = vadd.f32 %v7106, %v7109
    %v7112 = vadd.f32 %v7107, %v7109
    %7113 = vadd.xlane.f32.xlu0 %v7111
    %v7114 = vpop.xlane.xlu0 %7113
    %v7115 = vsel %vm6308, %v7112, 0.0
    %7116 = vadd.xlane.f32.xlu0 %v7115
    %v7117 = vpop.xlane.xlu0 %7116
    %v7118 = vmul.f32 %v7114, %v304
    %v7119 = vmul.f32 %v7117, %v304
    %v7120 = vsub.f32 %v7111, %v7118
    %v7121 = vsub.f32 %v7112, %v7119
    %v7122 = vmul.f32 %v7120, %v7120
    %v7123 = vmul.f32 %v7121, %v7121
    %7124 = vadd.xlane.f32.xlu0 %v7122
    %v7125 = vpop.xlane.xlu0 %7124
    %v7126 = vsel %vm6308, %v7123, 0.0
    %7127 = vadd.xlane.f32.xlu0 %v7126
    %v7128 = vpop.xlane.xlu0 %7127
    %v7129 = vmul.f32 %v7125, %v304
    %v7130 = vmul.f32 %v7128, %v304
    %v7131 = vadd.f32 %v7129, 1e-12
    %v7132 = vadd.f32 %v7130, 1e-12
    %v7133 = vrsqrt.pop %v7131
    %v7134 = vmul.f32 %v7133, %v7131
    %v7135 = vmul.f32 %v7134, %v7133
    %v7136 = vmul.f32 0.5, %v7135
    %v7137 = vsub.f32 1.5, %v7136
    %v7138 = vmul.f32 %v7133, %v7137
    %vm7139 = vweird.f32 %v7131
    %vm7140 = vweird.f32 %v7133
    %vm7141 = vmor %vm7139, %vm7140
    %v7142 = vsel %vm7141, %v7133, %v7138
    %v7143 = vrsqrt.pop %v7132
    %v7144 = vmul.f32 %v7143, %v7132
    %v7145 = vmul.f32 %v7144, %v7143
    %v7146 = vmul.f32 0.5, %v7145
    %v7147 = vsub.f32 1.5, %v7146
    %v7148 = vmul.f32 %v7143, %v7147
    %vm7149 = vweird.f32 %v7132
    %vm7150 = vweird.f32 %v7143
    %vm7151 = vmor %vm7149, %vm7150
    %v7152 = vsel %vm7151, %v7143, %v7148
    %v7153 = vmul.f32 %v7120, %v7142
    %v7154 = vmul.f32 %v7121, %v7152
    %v7156 = vperm.slane %v6456, 0
    %v7158 = vmul.f32 %v7153, %v7156
    %v7159 = vmul.f32 %v7154, %v7156
    %v7161 = vperm.slane %v6457, 0
    %v7163 = vadd.f32 %v7158, %v7161
    %v7164 = vadd.f32 %v7159, %v7161
    %v7165 = vpack.c.bf16 %v7164, %v7163
    %v7167 = vperm.slane %v6474, 0
    %v7168 = vperm.slane %v6474, 1
    %v7187 = vunpack.c.l.b16 %v6458
    %v7188 = vunpack.c.h.b16 %v6458
    %v7189 = vunpack.c.l.b16 %v6459
    %v7190 = vunpack.c.h.b16 %v6459
    %v7191 = vunpack.c.l.b16 %v6460
    %v7192 = vunpack.c.h.b16 %v6460
    %v7193 = vunpack.c.l.b16 %v6461
    %v7194 = vunpack.c.h.b16 %v6461
    %v7195 = vunpack.c.l.b16 %v6462
    %v7196 = vunpack.c.h.b16 %v6462
    %v7197 = vunpack.c.l.b16 %v6463
    %v7198 = vunpack.c.h.b16 %v6463
    %v7199 = vunpack.c.l.b16 %v6464
    %v7200 = vunpack.c.h.b16 %v6464
    %v7201 = vunpack.c.l.b16 %v6465
    %v7202 = vunpack.c.h.b16 %v6465
    %v7203 = vunpack.c.l.b16 %v6466
    %v7204 = vunpack.c.h.b16 %v6466
    %v7205 = vunpack.c.l.b16 %v6467
    %v7206 = vunpack.c.h.b16 %v6467
    %v7207 = vunpack.c.l.b16 %v6468
    %v7208 = vunpack.c.h.b16 %v6468
    %v7209 = vunpack.c.l.b16 %v6469
    %v7210 = vunpack.c.h.b16 %v6469
    %v7211 = vunpack.c.l.b16 %v6470
    %v7212 = vunpack.c.h.b16 %v6470
    %v7213 = vunpack.c.l.b16 %v6471
    %v7214 = vunpack.c.h.b16 %v6471
    %v7215 = vunpack.c.l.b16 %v6472
    %v7216 = vunpack.c.h.b16 %v6472
    %v7217 = vunpack.c.l.b16 %v6473
    %v7218 = vunpack.c.h.b16 %v6473
    %v7219 = vpack.c.b16 %v7189, %v7187
    %v7220 = vpack.c.b16 %v7190, %v7188
    %v7221 = vpack.c.b16 %v7193, %v7191
    %v7222 = vpack.c.b16 %v7194, %v7192
    %v7223 = vpack.c.b16 %v7197, %v7195
    %v7224 = vpack.c.b16 %v7198, %v7196
    %v7225 = vpack.c.b16 %v7201, %v7199
    %v7226 = vpack.c.b16 %v7202, %v7200
    %v7227 = vpack.c.b16 %v7205, %v7203
    %v7228 = vpack.c.b16 %v7206, %v7204
    %v7229 = vpack.c.b16 %v7209, %v7207
    %v7230 = vpack.c.b16 %v7210, %v7208
    %v7231 = vpack.c.b16 %v7213, %v7211
    %v7232 = vpack.c.b16 %v7214, %v7212
    %v7233 = vpack.c.b16 %v7217, %v7215
    %v7234 = vpack.c.b16 %v7218, %v7216
    %7251 = vmatpush.bf16.msra.mxu0 %v7233
    %7252 = vmatpush.bf16.msra.mxu0 %v7231
    %7253 = vmatpush.bf16.msra.mxu0 %v7229
    %7254 = vmatpush.bf16.msra.mxu0 %v7227
    %7255 = vmatpush.bf16.msra.mxu0 %v7225
    %7256 = vmatpush.bf16.msra.mxu0 %v7223
    %7257 = vmatpush.bf16.msra.mxu0 %v7221
    %7258 = vmatpush.bf16.msra.mxu0 %v7219
    %7259 = vmatmul.bf16.gmra.mxu0 %v7165
    %v7260 = vpop.f32.mrf.mxu0
    %v7261 = vadd.f32 %v7167, %v7260
    %v7262 = vpop.f32.mrf.mxu0
    %v7263 = vadd.f32 %v7167, %v7262
    %7264 = vdwg.mxu0
    %7265 = vmatpush.bf16.msra.mxu0 %v7234
    %7266 = vmatpush.bf16.msra.mxu0 %v7232
    %7267 = vmatpush.bf16.msra.mxu0 %v7230
    %7268 = vmatpush.bf16.msra.mxu0 %v7228
    %7269 = vmatpush.bf16.msra.mxu0 %v7226
    %7270 = vmatpush.bf16.msra.mxu0 %v7224
    %7271 = vmatpush.bf16.msra.mxu0 %v7222
    %7272 = vmatpush.bf16.msra.mxu0 %v7220
    %7273 = vmatmul.bf16.gmra.mxu0 %v7165
    %v7274 = vpop.f32.mrf.mxu0
    %v7275 = vadd.f32 %v7168, %v7274
    %v7276 = vpop.f32.mrf.mxu0
    %v7277 = vadd.f32 %v7168, %v7276
    %7278 = vdwg.mxu0
    %v7279 = vmul.f32 %v7261, 0.5
    %v7280 = vmul.f32 %v7275, 0.5
    %v7281 = vmul.f32 %v7263, 0.5
    %v7282 = vmul.f32 %v7277, 0.5
    %v7283 = vmul.f32 %v7261, 0.044715
    %v7284 = vmul.f32 %v7275, 0.044715
    %v7285 = vmul.f32 %v7263, 0.044715
    %v7286 = vmul.f32 %v7277, 0.044715
    %v7287 = vmul.f32 %v7283, %v7261
    %v7288 = vmul.f32 %v7284, %v7275
    %v7289 = vmul.f32 %v7285, %v7263
    %v7290 = vmul.f32 %v7286, %v7277
    %v7291 = vmul.f32 %v7287, %v7261
    %v7292 = vmul.f32 %v7288, %v7275
    %v7293 = vmul.f32 %v7289, %v7263
    %v7294 = vmul.f32 %v7290, %v7277
    %v7295 = vadd.f32 %v7261, %v7291
    %v7296 = vadd.f32 %v7275, %v7292
    %v7297 = vadd.f32 %v7263, %v7293
    %v7298 = vadd.f32 %v7277, %v7294
    %v7299 = vmul.f32 %v7295, 0.7978846
    %v7300 = vmul.f32 %v7296, 0.7978846
    %v7301 = vmul.f32 %v7297, 0.7978846
    %v7302 = vmul.f32 %v7298, 0.7978846
    %v7303 = vtanh.pop %v7299
    %v7304 = vtanh.pop %v7300
    %v7305 = vtanh.pop %v7301
    %v7306 = vtanh.pop %v7302
    %v7307 = vadd.f32 %v7303, 1.0
    %v7308 = vadd.f32 %v7304, 1.0
    %v7309 = vadd.f32 %v7305, 1.0
    %v7310 = vadd.f32 %v7306, 1.0
    %v7311 = vmul.f32 %v7279, %v7307
    %v7312 = vmul.f32 %v7280, %v7308
    %v7313 = vmul.f32 %v7281, %v7309
    %v7314 = vmul.f32 %v7282, %v7310
    %v7315 = vpack.c.bf16 %v7313, %v7311
    %v7316 = vpack.c.bf16 %v7314, %v7312
    %v7349 = vunpack.c.l.b16 %v6475
    %v7350 = vunpack.c.l.b16 %v6476
    %v7351 = vunpack.c.l.b16 %v6477
    %v7352 = vunpack.c.l.b16 %v6478
    %v7353 = vunpack.c.l.b16 %v6479
    %v7354 = vunpack.c.l.b16 %v6480
    %v7355 = vunpack.c.l.b16 %v6481
    %v7356 = vunpack.c.l.b16 %v6482
    %v7357 = vunpack.c.l.b16 %v6483
    %v7358 = vunpack.c.l.b16 %v6484
    %v7359 = vunpack.c.l.b16 %v6485
    %v7360 = vunpack.c.l.b16 %v6486
    %v7361 = vunpack.c.l.b16 %v6487
    %v7362 = vunpack.c.l.b16 %v6488
    %v7363 = vunpack.c.l.b16 %v6489
    %v7364 = vunpack.c.l.b16 %v6490
    %v7365 = vunpack.c.l.b16 %v6491
    %v7366 = vunpack.c.l.b16 %v6492
    %v7367 = vunpack.c.l.b16 %v6493
    %v7368 = vunpack.c.l.b16 %v6494
    %v7369 = vunpack.c.l.b16 %v6495
    %v7370 = vunpack.c.l.b16 %v6496
    %v7371 = vunpack.c.l.b16 %v6497
    %v7372 = vunpack.c.l.b16 %v6498
    %v7373 = vunpack.c.l.b16 %v6499
    %v7374 = vunpack.c.l.b16 %v6500
    %v7375 = vunpack.c.l.b16 %v6501
    %v7376 = vunpack.c.l.b16 %v6502
    %v7377 = vunpack.c.l.b16 %v6503
    %v7378 = vunpack.c.l.b16 %v6504
    %v7379 = vunpack.c.l.b16 %v6505
    %v7380 = vunpack.c.l.b16 %v6506
    %v7381 = vpack.c.b16 %v7350, %v7349
    %v7382 = vpack.c.b16 %v7352, %v7351
    %v7383 = vpack.c.b16 %v7354, %v7353
    %v7384 = vpack.c.b16 %v7356, %v7355
    %v7385 = vpack.c.b16 %v7358, %v7357
    %v7386 = vpack.c.b16 %v7360, %v7359
    %v7387 = vpack.c.b16 %v7362, %v7361
    %v7388 = vpack.c.b16 %v7364, %v7363
    %v7389 = vpack.c.b16 %v7366, %v7365
    %v7390 = vpack.c.b16 %v7368, %v7367
    %v7391 = vpack.c.b16 %v7370, %v7369
    %v7392 = vpack.c.b16 %v7372, %v7371
    %v7393 = vpack.c.b16 %v7374, %v7373
    %v7394 = vpack.c.b16 %v7376, %v7375
    %v7395 = vpack.c.b16 %v7378, %v7377
    %v7396 = vpack.c.b16 %v7380, %v7379
    %7413 = vmatpush.bf16.msra.mxu0 %v7388
    %7414 = vmatpush.bf16.msra.mxu0 %v7387
    %7415 = vmatpush.bf16.msra.mxu0 %v7386
    %7416 = vmatpush.bf16.msra.mxu0 %v7385
    %7417 = vmatpush.bf16.msra.mxu0 %v7384
    %7418 = vmatpush.bf16.msra.mxu0 %v7383
    %7419 = vmatpush.bf16.msra.mxu0 %v7382
    %7420 = vmatpush.bf16.msra.mxu0 %v7381
    %7421 = vmatmul.bf16.gmra.mxu0 %v7315
    %v7422 = vpop.f32.mrf.mxu0
    %v7423 = vadd.f32 0.0, %v7422
    %v7424 = vpop.f32.mrf.mxu0
    %v7425 = vadd.f32 0.0, %v7424
    %7426 = vdwg.mxu0
    %7427 = vmatpush.bf16.msra.mxu0 %v7396
    %7428 = vmatpush.bf16.msra.mxu0 %v7395
    %7429 = vmatpush.bf16.msra.mxu0 %v7394
    %7430 = vmatpush.bf16.msra.mxu0 %v7393
    %7431 = vmatpush.bf16.msra.mxu0 %v7392
    %7432 = vmatpush.bf16.msra.mxu0 %v7391
    %7433 = vmatpush.bf16.msra.mxu0 %v7390
    %7434 = vmatpush.bf16.msra.mxu0 %v7389
    %7435 = vmatmul.bf16.gmra.mxu0 %v7316
    %v7436 = vpop.f32.mrf.mxu0
    %v7437 = vadd.f32 %v7423, %v7436
    %v7438 = vpop.f32.mrf.mxu0
    %v7439 = vadd.f32 %v7425, %v7438
    %7440 = vdwg.mxu0
    %v7441 = vadd.f32 %v7163, %v7437
    %v7442 = vadd.f32 %v7164, %v7439
    %v7444 = vperm.slane %v6507, 0
    %v7446 = vadd.f32 %v7441, %v7444
    %v7447 = vadd.f32 %v7442, %v7444
    %7448 = vadd.xlane.f32.xlu0 %v7446
    %v7449 = vpop.xlane.xlu0 %7448
    %v7450 = vsel %vm6308, %v7447, 0.0
    %7451 = vadd.xlane.f32.xlu0 %v7450
    %v7452 = vpop.xlane.xlu0 %7451
    %v7453 = vmul.f32 %v7449, %v304
    %v7454 = vmul.f32 %v7452, %v304
    %v7455 = vsub.f32 %v7446, %v7453
    %v7456 = vsub.f32 %v7447, %v7454
    %v7457 = vmul.f32 %v7455, %v7455
    %v7458 = vmul.f32 %v7456, %v7456
    %7459 = vadd.xlane.f32.xlu0 %v7457
    %v7460 = vpop.xlane.xlu0 %7459
    %v7461 = vsel %vm6308, %v7458, 0.0
    %7462 = vadd.xlane.f32.xlu0 %v7461
    %v7463 = vpop.xlane.xlu0 %7462
    %v7464 = vmul.f32 %v7460, %v304
    %v7465 = vmul.f32 %v7463, %v304
    %v7466 = vadd.f32 %v7464, 1e-12
    %v7467 = vadd.f32 %v7465, 1e-12
    %v7468 = vrsqrt.pop %v7466
    %v7469 = vmul.f32 %v7468, %v7466
    %v7470 = vmul.f32 %v7469, %v7468
    %v7471 = vmul.f32 0.5, %v7470
    %v7472 = vsub.f32 1.5, %v7471
    %v7473 = vmul.f32 %v7468, %v7472
    %vm7474 = vweird.f32 %v7466
    %vm7475 = vweird.f32 %v7468
    %vm7476 = vmor %vm7474, %vm7475
    %v7477 = vsel %vm7476, %v7468, %v7473
    %v7478 = vrsqrt.pop %v7467
    %v7479 = vmul.f32 %v7478, %v7467
    %v7480 = vmul.f32 %v7479, %v7478
    %v7481 = vmul.f32 0.5, %v7480
    %v7482 = vsub.f32 1.5, %v7481
    %v7483 = vmul.f32 %v7478, %v7482
    %vm7484 = vweird.f32 %v7467
    %vm7485 = vweird.f32 %v7478
    %vm7486 = vmor %vm7484, %vm7485
    %v7487 = vsel %vm7486, %v7478, %v7483
    %v7488 = vmul.f32 %v7455, %v7477
    %v7489 = vmul.f32 %v7456, %v7487
    %v7491 = vperm.slane %v6508, 0
    %v7493 = vmul.f32 %v7488, %v7491
    %v7494 = vmul.f32 %v7489, %v7491
    %v7496 = vperm.slane %v6509, 0
    %v7498 = vadd.f32 %v7493, %v7496
    %v7499 = vadd.f32 %v7494, %v7496
    %v7500 = vld [vmem:[%s43] sm:$0x3]
    %v7502 = vsel %vm6312, %v7500, 0
    %v7505 = vsel %vm6308, %v7499, 0
    %7507 = vmatpush.msra.mxu0 0.0
    %7508 = vmatpush.msra.mxu0 0.0
    %7509 = vmatpush.msra.mxu0 0.0
    %7510 = vmatpush.msra.mxu0 0.0
    %7511 = vmatpush.msra.mxu0 0.0
    %7512 = vmatpush.msra.mxu0 0.0
    %7513 = vmatpush.msra.mxu0 0.0
    %7514 = vmatpush.msra.mxu0 0.0
    %7515 = vmatpush.msra.mxu0 0.0
    %7516 = vmatpush.msra.mxu0 0.0
    %7517 = vmatpush.msra.mxu0 0.0
    %7518 = vmatpush.msra.mxu0 0.0
    %7519 = vmatpush.msra.mxu0 0.0
    %7520 = vmatpush.msra.mxu0 0.0
    %7521 = vmatpush.msra.mxu0 %v7505
    %7522 = vmatpush.msra.mxu0 %v7498
    %7523 = vmatmul.f32.gmra.mxu0 %v7502
    %v7524 = vpop.f32.mrf.mxu0
    %v7525 = vadd.f32 0.0, %v7524
    %7526 = vdwg.mxu0
    %v7527 = vld [vmem:[%s81] sm:$0xff]
    %v7528 = vld [vmem:[%s81 + $0x8] sm:$0xff]
    %v7529 = vld [vmem:[%s81 + $0x10] sm:$0xff]
    %v7530 = vld [vmem:[%s81 + $0x18] sm:$0xff]
    %v7531 = vld [vmem:[%s81 + $0x20] sm:$0xff]
    %v7532 = vld [vmem:[%s81 + $0x28] sm:$0xff]
    %v7533 = vld [vmem:[%s81 + $0x30] sm:$0xff]
    %v7534 = vld [vmem:[%s81 + $0x38] sm:$0xff]
    %v7535 = vld [vmem:[%s81 + $0x40] sm:$0xff]
    %v7536 = vld [vmem:[%s81 + $0x48] sm:$0xff]
    %v7537 = vld [vmem:[%s81 + $0x50] sm:$0xff]
    %v7538 = vld [vmem:[%s81 + $0x58] sm:$0xff]
    %v7539 = vld [vmem:[%s81 + $0x60] sm:$0xff]
    %v7540 = vld [vmem:[%s81 + $0x68] sm:$0xff]
    %v7541 = vld [vmem:[%s81 + $0x70] sm:$0xff]
    %v7542 = vld [vmem:[%s81 + $0x78] sm:$0xff]
    %v7543 = vpack.c.bf16 %v7525, %v7525
    %v7544 = vld [vmem:[%s79] sm:$0x3]
    %v7546 = vperm.slane %v7544, 0
    %v7547 = vperm.slane %v7544, 1
    %v7566 = vunpack.c.l.b16 %v7527
    %v7567 = vunpack.c.h.b16 %v7527
    %v7568 = vunpack.c.l.b16 %v7528
    %v7569 = vunpack.c.h.b16 %v7528
    %v7570 = vunpack.c.l.b16 %v7529
    %v7571 = vunpack.c.h.b16 %v7529
    %v7572 = vunpack.c.l.b16 %v7530
    %v7573 = vunpack.c.h.b16 %v7530
    %v7574 = vunpack.c.l.b16 %v7531
    %v7575 = vunpack.c.h.b16 %v7531
    %v7576 = vunpack.c.l.b16 %v7532
    %v7577 = vunpack.c.h.b16 %v7532
    %v7578 = vunpack.c.l.b16 %v7533
    %v7579 = vunpack.c.h.b16 %v7533
    %v7580 = vunpack.c.l.b16 %v7534
    %v7581 = vunpack.c.h.b16 %v7534
    %v7582 = vunpack.c.l.b16 %v7535
    %v7583 = vunpack.c.h.b16 %v7535
    %v7584 = vunpack.c.l.b16 %v7536
    %v7585 = vunpack.c.h.b16 %v7536
    %v7586 = vunpack.c.l.b16 %v7537
    %v7587 = vunpack.c.h.b16 %v7537
    %v7588 = vunpack.c.l.b16 %v7538
    %v7589 = vunpack.c.h.b16 %v7538
    %v7590 = vunpack.c.l.b16 %v7539
    %v7591 = vunpack.c.h.b16 %v7539
    %v7592 = vunpack.c.l.b16 %v7540
    %v7593 = vunpack.c.h.b16 %v7540
    %v7594 = vunpack.c.l.b16 %v7541
    %v7595 = vunpack.c.h.b16 %v7541
    %v7596 = vunpack.c.l.b16 %v7542
    %v7597 = vunpack.c.h.b16 %v7542
    %v7598 = vpack.c.b16 %v7568, %v7566
    %v7599 = vpack.c.b16 %v7569, %v7567
    %v7600 = vpack.c.b16 %v7572, %v7570
    %v7601 = vpack.c.b16 %v7573, %v7571
    %v7602 = vpack.c.b16 %v7576, %v7574
    %v7603 = vpack.c.b16 %v7577, %v7575
    %v7604 = vpack.c.b16 %v7580, %v7578
    %v7605 = vpack.c.b16 %v7581, %v7579
    %v7606 = vpack.c.b16 %v7584, %v7582
    %v7607 = vpack.c.b16 %v7585, %v7583
    %v7608 = vpack.c.b16 %v7588, %v7586
    %v7609 = vpack.c.b16 %v7589, %v7587
    %v7610 = vpack.c.b16 %v7592, %v7590
    %v7611 = vpack.c.b16 %v7593, %v7591
    %v7612 = vpack.c.b16 %v7596, %v7594
    %v7613 = vpack.c.b16 %v7597, %v7595
    %7630 = vmatpush.bf16.msra.mxu0 %v7612
    %7631 = vmatpush.bf16.msra.mxu0 %v7610
    %7632 = vmatpush.bf16.msra.mxu0 %v7608
    %7633 = vmatpush.bf16.msra.mxu0 %v7606
    %7634 = vmatpush.bf16.msra.mxu0 %v7604
    %7635 = vmatpush.bf16.msra.mxu0 %v7602
    %7636 = vmatpush.bf16.msra.mxu0 %v7600
    %7637 = vmatpush.bf16.msra.mxu0 %v7598
    %7638 = vmatmul.bf16.gmra.mxu0 %v7543
    %v7639 = vpop.f32.mrf.mxu0
    %v7640 = vadd.f32 %v7546, %v7639
    %v7641 = vpop.f32.mrf.mxu0
    %7642 = vdwg.mxu0
    %7643 = vmatpush.bf16.msra.mxu0 %v7613
    %7644 = vmatpush.bf16.msra.mxu0 %v7611
    %7645 = vmatpush.bf16.msra.mxu0 %v7609
    %7646 = vmatpush.bf16.msra.mxu0 %v7607
    %7647 = vmatpush.bf16.msra.mxu0 %v7605
    %7648 = vmatpush.bf16.msra.mxu0 %v7603
    %7649 = vmatpush.bf16.msra.mxu0 %v7601
    %7650 = vmatpush.bf16.msra.mxu0 %v7599
    %7651 = vmatmul.bf16.gmra.mxu0 %v7543
    %v7652 = vpop.f32.mrf.mxu0
    %v7653 = vadd.f32 %v7547, %v7652
    %v7654 = vpop.f32.mrf.mxu0
    %7655 = vdwg.mxu0
    %v7656 = vmax.f32 %v7640, 0.0
    %v7657 = vmax.f32 %v7653, 0.0
    %v7658 = vld [vmem:[%s85] sm:$0xf]
    %v7659 = vld [vmem:[%s85 + $0x4] sm:$0xf]
    %v7660 = vld [vmem:[%s85 + $0x8] sm:$0xf]
    %v7661 = vld [vmem:[%s85 + $0xc] sm:$0xf]
    %v7662 = vld [vmem:[%s85 + $0x10] sm:$0xf]
    %v7663 = vld [vmem:[%s85 + $0x14] sm:$0xf]
    %v7664 = vld [vmem:[%s85 + $0x18] sm:$0xf]
    %v7665 = vld [vmem:[%s85 + $0x1c] sm:$0xf]
    %v7666 = vld [vmem:[%s85 + $0x20] sm:$0xf]
    %v7667 = vld [vmem:[%s85 + $0x24] sm:$0xf]
    %v7668 = vld [vmem:[%s85 + $0x28] sm:$0xf]
    %v7669 = vld [vmem:[%s85 + $0x2c] sm:$0xf]
    %v7670 = vld [vmem:[%s85 + $0x30] sm:$0xf]
    %v7671 = vld [vmem:[%s85 + $0x34] sm:$0xf]
    %v7672 = vld [vmem:[%s85 + $0x38] sm:$0xf]
    %v7673 = vld [vmem:[%s85 + $0x3c] sm:$0xf]
    %v7674 = vld [vmem:[%s85 + $0x40] sm:$0xf]
    %v7675 = vld [vmem:[%s85 + $0x44] sm:$0xf]
    %v7676 = vld [vmem:[%s85 + $0x48] sm:$0xf]
    %v7677 = vld [vmem:[%s85 + $0x4c] sm:$0xf]
    %v7678 = vld [vmem:[%s85 + $0x50] sm:$0xf]
    %v7679 = vld [vmem:[%s85 + $0x54] sm:$0xf]
    %v7680 = vld [vmem:[%s85 + $0x58] sm:$0xf]
    %v7681 = vld [vmem:[%s85 + $0x5c] sm:$0xf]
    %v7682 = vld [vmem:[%s85 + $0x60] sm:$0xf]
    %v7683 = vld [vmem:[%s85 + $0x64] sm:$0xf]
    %v7684 = vld [vmem:[%s85 + $0x68] sm:$0xf]
    %v7685 = vld [vmem:[%s85 + $0x6c] sm:$0xf]
    %v7686 = vld [vmem:[%s85 + $0x70] sm:$0xf]
    %v7687 = vld [vmem:[%s85 + $0x74] sm:$0xf]
    %v7688 = vld [vmem:[%s85 + $0x78] sm:$0xf]
    %v7689 = vld [vmem:[%s85 + $0x7c] sm:$0xf]
    %v7690 = vpack.c.bf16 %v7656, %v7656
    %v7691 = vpack.c.bf16 %v7657, %v7657
    %v7692 = vld [vmem:[%s83] sm:$0x1]
    %v7694 = vperm.slane %v7692, 0
    %v7728 = vunpack.c.l.b16 %v7658
    %v7729 = vunpack.c.l.b16 %v7659
    %v7730 = vunpack.c.l.b16 %v7660
    %v7731 = vunpack.c.l.b16 %v7661
    %v7732 = vunpack.c.l.b16 %v7662
    %v7733 = vunpack.c.l.b16 %v7663
    %v7734 = vunpack.c.l.b16 %v7664
    %v7735 = vunpack.c.l.b16 %v7665
    %v7736 = vunpack.c.l.b16 %v7666
    %v7737 = vunpack.c.l.b16 %v7667
    %v7738 = vunpack.c.l.b16 %v7668
    %v7739 = vunpack.c.l.b16 %v7669
    %v7740 = vunpack.c.l.b16 %v7670
    %v7741 = vunpack.c.l.b16 %v7671
    %v7742 = vunpack.c.l.b16 %v7672
    %v7743 = vunpack.c.l.b16 %v7673
    %v7744 = vunpack.c.l.b16 %v7674
    %v7745 = vunpack.c.l.b16 %v7675
    %v7746 = vunpack.c.l.b16 %v7676
    %v7747 = vunpack.c.l.b16 %v7677
    %v7748 = vunpack.c.l.b16 %v7678
    %v7749 = vunpack.c.l.b16 %v7679
    %v7750 = vunpack.c.l.b16 %v7680
    %v7751 = vunpack.c.l.b16 %v7681
    %v7752 = vunpack.c.l.b16 %v7682
    %v7753 = vunpack.c.l.b16 %v7683
    %v7754 = vunpack.c.l.b16 %v7684
    %v7755 = vunpack.c.l.b16 %v7685
    %v7756 = vunpack.c.l.b16 %v7686
    %v7757 = vunpack.c.l.b16 %v7687
    %v7758 = vunpack.c.l.b16 %v7688
    %v7759 = vunpack.c.l.b16 %v7689
    %v7760 = vpack.c.b16 %v7729, %v7728
    %v7761 = vpack.c.b16 %v7731, %v7730
    %v7762 = vpack.c.b16 %v7733, %v7732
    %v7763 = vpack.c.b16 %v7735, %v7734
    %v7764 = vpack.c.b16 %v7737, %v7736
    %v7765 = vpack.c.b16 %v7739, %v7738
    %v7766 = vpack.c.b16 %v7741, %v7740
    %v7767 = vpack.c.b16 %v7743, %v7742
    %v7768 = vpack.c.b16 %v7745, %v7744
    %v7769 = vpack.c.b16 %v7747, %v7746
    %v7770 = vpack.c.b16 %v7749, %v7748
    %v7771 = vpack.c.b16 %v7751, %v7750
    %v7772 = vpack.c.b16 %v7753, %v7752
    %v7773 = vpack.c.b16 %v7755, %v7754
    %v7774 = vpack.c.b16 %v7757, %v7756
    %v7775 = vpack.c.b16 %v7759, %v7758
    %7792 = vmatpush.bf16.msra.mxu0 %v7767
    %7793 = vmatpush.bf16.msra.mxu0 %v7766
    %7794 = vmatpush.bf16.msra.mxu0 %v7765
    %7795 = vmatpush.bf16.msra.mxu0 %v7764
    %7796 = vmatpush.bf16.msra.mxu0 %v7763
    %7797 = vmatpush.bf16.msra.mxu0 %v7762
    %7798 = vmatpush.bf16.msra.mxu0 %v7761
    %7799 = vmatpush.bf16.msra.mxu0 %v7760
    %7800 = vmatmul.bf16.gmra.mxu0 %v7690
    %v7801 = vpop.f32.mrf.mxu0
    %v7802 = vadd.f32 %v7694, %v7801
    %v7803 = vpop.f32.mrf.mxu0
    %7804 = vdwg.mxu0
    %7805 = vmatpush.bf16.msra.mxu0 %v7775
    %7806 = vmatpush.bf16.msra.mxu0 %v7774
    %7807 = vmatpush.bf16.msra.mxu0 %v7773
    %7808 = vmatpush.bf16.msra.mxu0 %v7772
    %7809 = vmatpush.bf16.msra.mxu0 %v7771
    %7810 = vmatpush.bf16.msra.mxu0 %v7770
    %7811 = vmatpush.bf16.msra.mxu0 %v7769
    %7812 = vmatpush.bf16.msra.mxu0 %v7768
    %7813 = vmatmul.bf16.gmra.mxu0 %v7691
    %v7814 = vpop.f32.mrf.mxu0
    %v7815 = vadd.f32 %v7802, %v7814
    %v7816 = vpop.f32.mrf.mxu0
    %7817 = vdwg.mxu0
    %7818 = vst [vmem:[#allocation7] sm:$0x3] %v7815
    // Predicated region
    $region250: #{_lambda_.1} parent=1 // pred_check
      _
    $region251: #{_lambda_.1} parent=1 // pred_check_branch
      %7820 = sbr.rel (0) target = $region253
    $region252: #{_lambda_.1} parent=1 // pred_region
      %7822 = vsyncadd [#allocation4], 0
      %s7824 = sshll.u32 [#allocation7], 4
      %s7825 = int_to_ptr.vmem [resolvable:$true] %s7824
      %s7826 = sshll.u32 %s121, 4
      %s7827 = int_to_ptr.hbm [resolvable:$true] %s7826
      %7829 = dma.vmem_to_hbm [thread:$0]  %s7825, 32, %s7827, [#allocation4]
    $region253: #{_lambda_.1} parent=1 // pred_fallthru
      _
    // Predicated region
    $region254: #{_lambda_.1} parent=1 // pred_check
      _
    $region255: #{_lambda_.1} parent=1 // pred_check_branch
      %7831 = sbr.rel (0) target = $region257
    $region256: #{_lambda_.1} parent=1 // pred_region
      %7833 = dma.done [#allocation4], 32
    $region257: #{_lambda_.1} parent=1 // pred_fallthru
      _
    %7834 = vsyncpa [#allocation3], 1
    %7835 = vsyncpa [#allocation6], 1
    %7836 = vsyncpa [#allocation4], 1

</llo_original>
